<compile_context>
chip_gen: v7x
topology: tpu7x:2x2x1
jax: 0.10.0
libtpu: 0.0.40
codegen_flags: <defaults>
</compile_context>

<pallas_src>
import functools

import numpy as np
import jax
import jax.numpy as jnp
from jax import lax
from jax.experimental import pallas as pl
from jax.experimental.pallas import tpu as pltpu


# ----------------------------------------------------------------------------
# Pallas GEMM: out = act(x @ w + bias).  K-tiled with an f32 VMEM accumulator,
# bf16 MXU operands.  bias_axis="n": bias over output columns (Linear);
# bias_axis="m": bias over output rows (transposed conv-style GEMM).
# ----------------------------------------------------------------------------
def _linear_kernel(x_ref, w_ref, b_ref, o_ref, acc_ref, *, activation):
    k = pl.program_id(2)

    @pl.when(k == 0)
    def _():
        acc_ref[...] = jnp.zeros_like(acc_ref)

    acc_ref[...] += jnp.dot(x_ref[...], w_ref[...],
                            preferred_element_type=jnp.float32)

    @pl.when(k == pl.num_programs(2) - 1)
    def _():
        r = acc_ref[...] + b_ref[...]          # broadcast works for (1,tn) or (tm,1)
        if activation == "relu":
            r = jnp.maximum(r, 0.0)
        o_ref[...] = r.astype(o_ref.dtype)


def _choose_tk(K, max_tk=8192):
    """Pick a K tile that divides K exactly when possible (no pad copy)."""
    if K <= max_tk:
        return K
    best_any = None
    for d in range(max_tk, 127, -1):
        if K % d == 0:
            if d % 128 == 0:          # e.g. K=68224 -> 5248 (13 steps)
                return d
            if best_any is None:
                best_any = d
    return best_any if best_any is not None else max_tk   # cold pad fallback


def _gemm_tiles(M, K, N):
    if M <= 256:
        tm = M
    elif M >= 1024:
        tm = 512
    else:
        tm = 256
    if N <= 256:
        tn = N
    elif N <= 512:
        tn = 256        # head GEMM N=512 -> grid (.,2,.) : both v7x cores get work
    else:
        tn = 512
    tk = _choose_tk(K)
    return tm, tn, tk


def pallas_linear(x, w, b=None, activation=None, *, bias_axis="n",
                  out_dtype=jnp.float32):
    """(M,K) @ (K,N) + bias [+ReLU] on the MXU, tiled over (M, N, K)."""
    M, K = x.shape
    N = w.shape[1]
    xb = x if x.dtype == jnp.bfloat16 else x.astype(jnp.bfloat16)
    wb = w if w.dtype == jnp.bfloat16 else w.astype(jnp.bfloat16)

    tm, tn, tk = _gemm_tiles(M, K, N)
    nk = (K + tk - 1) // tk
    if nk * tk != K:
        # Cold path: zero-pad K so a partial reduction block never feeds garbage
        # into the accumulator (partial M/N blocks are safe: stores are masked).
        Kp = nk * tk
        xb = jnp.pad(xb, ((0, 0), (0, Kp - K)))
        wb = jnp.pad(wb, ((0, Kp - K), (0, 0)))

    if b is None:
        b = jnp.zeros((N if bias_axis == "n" else M,), jnp.float32)
    if bias_axis == "n":
        b2 = b.astype(jnp.float32).reshape(1, N)
        b_spec = pl.BlockSpec((1, tn), lambda i, j, k: (0, j))
    else:
        b2 = b.astype(jnp.float32).reshape(M, 1)
        b_spec = pl.BlockSpec((tm, 1), lambda i, j, k: (i, 0))

    grid = (pl.cdiv(M, tm), pl.cdiv(N, tn), nk)

    return pl.pallas_call(
        functools.partial(_linear_kernel, activation=activation),
        out_shape=jax.ShapeDtypeStruct((M, N), out_dtype),
        grid_spec=pltpu.PrefetchScalarGridSpec(
            num_scalar_prefetch=0,
            grid=grid,
            in_specs=[
                pl.BlockSpec((tm, tk), lambda i, j, k: (i, k)),
                pl.BlockSpec((tk, tn), lambda i, j, k: (k, j)),
                b_spec,
            ],
            out_specs=pl.BlockSpec((tm, tn), lambda i, j, k: (i, j)),
            scratch_shapes=[pltpu.VMEM((tm, tn), jnp.float32)],
        ),
        compiler_params=pltpu.CompilerParams(
            dimension_semantics=("parallel", "parallel", "arbitrary"),
            vmem_limit_bytes=40 * 1024 * 1024,
        ),
    )(xb, wb, b2)


# ----------------------------------------------------------------------------
# Fused vector branch: ego/others embeddings + EgoAttetion + combine,
# one pallas_call, grid over batch (replaces ~6 tiny kernel launches).
# ----------------------------------------------------------------------------
def _ego_branch_kernel(x_ref, m_ref,
                       e1w_ref, e1b_ref, e2w_ref, e2b_ref,
                       o1w_ref, o1b_ref, o2w_ref, o2b_ref,
                       qkv_ref, comb_ref, out_ref, *, heads):
    x = x_ref[0]                                     # (E, F) bf16
    m = m_ref[0]                                     # (1, E) f32, 1.0 = masked
    feat = e2w_ref.shape[1]
    dh = feat // heads

    # ego / others embeddings: Linear+ReLU, Linear+ReLU
    h_e = jnp.maximum(jnp.dot(x[0:1, :], e1w_ref[...],
                              preferred_element_type=jnp.float32) + e1b_ref[...], 0.0)
    ego_e = jnp.maximum(jnp.dot(h_e.astype(jnp.bfloat16), e2w_ref[...],
                                preferred_element_type=jnp.float32) + e2b_ref[...], 0.0)
    h_o = jnp.maximum(jnp.dot(x[1:, :], o1w_ref[...],
                              preferred_element_type=jnp.float32) + o1b_ref[...], 0.0)
    oth_e = jnp.maximum(jnp.dot(h_o.astype(jnp.bfloat16), o2w_ref[...],
                                preferred_element_type=jnp.float32) + o2b_ref[...], 0.0)

    inp = jnp.concatenate([ego_e, oth_e], axis=0).astype(jnp.bfloat16)   # (E, 64)
    kvq = jnp.dot(inp, qkv_ref[...], preferred_element_type=jnp.float32)  # (E, 192)

    scale = jnp.float32(1.0 / np.sqrt(dh))
    outs = []
    for h in range(heads):
        kh = kvq[:, h * dh:(h + 1) * dh]                           # (E, dh)
        vh = kvq[:, feat + h * dh:feat + (h + 1) * dh]             # (E, dh)
        qh = kvq[0:1, 2 * feat + h * dh:2 * feat + (h + 1) * dh]   # (1, dh)
        s = lax.dot_general(qh, kh, (((1,), (1,)), ((), ())),
                            preferred_element_type=jnp.float32) * scale   # (1, E)
        s = jnp.where(m > 0.5, -1000000000.0, s)
        s = s - jnp.max(s, axis=-1, keepdims=True)
        p = jnp.exp(s)
        p = p / jnp.sum(p, axis=-1, keepdims=True)
        # TODO(synk): nn.Dropout(0) in the reference is an identity; omitted.
        outs.append(jnp.dot(p, vh, preferred_element_type=jnp.float32))   # (1, dh)
    att = jnp.concatenate(outs, axis=-1)                                  # (1, 64)
    comb = jnp.dot(att.astype(jnp.bfloat16), comb_ref[...],
                   preferred_element_type=jnp.float32)                    # (1, 64)
    out_ref[0] = ((comb + ego_e) * 0.5).astype(out_ref.dtype)


def ego_branch(vec_x, mask, p, heads=2):
    B, E, F = vec_x.shape
    feat = 64
    wqkv = jnp.concatenate([p["key_w"], p["val_w"], p["qry_w"]], axis=1)  # (64,192)

    def full_spec(a):
        return pl.BlockSpec(a.shape, lambda b, _n=a.ndim: (0,) * _n)

    args = [
        vec_x.astype(jnp.bfloat16),                      # (B,E,F)
        mask,                                            # (B,1,E) f32
        p["ego1_w"], p["ego1_b"].reshape(1, feat),
        p["ego2_w"], p["ego2_b"].reshape(1, feat),
        p["oth1_w"], p["oth1_b"].reshape(1, feat),
        p["oth2_w"], p["oth2_b"].reshape(1, feat),
        wqkv, p["comb_w"],
    ]
    in_specs = [
        pl.BlockSpec((1, E, F), lambda b: (b, 0, 0)),
        pl.BlockSpec((1, 1, E), lambda b: (b, 0, 0)),
    ] + [full_spec(a) for a in args[2:]]

    out = pl.pallas_call(
        functools.partial(_ego_branch_kernel, heads=heads),
        out_shape=jax.ShapeDtypeStruct((B, 1, feat), jnp.float32),
        grid_spec=pltpu.PrefetchScalarGridSpec(
            num_scalar_prefetch=0,
            grid=(B,),
            in_specs=in_specs,
            out_specs=pl.BlockSpec((1, 1, feat), lambda b: (b, 0, 0)),
        ),
        compiler_params=pltpu.CompilerParams(
            dimension_semantics=("parallel",),
        ),
    )(*args)
    return out.reshape(B, feat)


# ----------------------------------------------------------------------------
# NonLocal attention, channel-major, re-associated:
#   y^T = (g_scaled @ phi^T) @ theta     (intermediate is only (Ci,Ci))
# ----------------------------------------------------------------------------
def _nonlocal_kernel(th_ref, ph_ref, g_ref, y_ref):
    th = th_ref[0]                 # (Ci, N) bf16
    ph = ph_ref[0]                 # (Ci, N) bf16
    gs = g_ref[0]                  # (Ci, N) bf16, already scaled by 1/N
    a = lax.dot_general(gs, ph, (((1,), (1,)), ((), ())),
                        preferred_element_type=jnp.float32)            # (Ci, Ci)
    y = jnp.dot(a.astype(jnp.bfloat16), th,
                preferred_element_type=jnp.float32)                    # (Ci, N)
    y_ref[0] = y.astype(y_ref.dtype)


def nonlocal_attention(theta, phi, g_scaled):
    """theta/phi/g_scaled: (B, Ci, N) channel-major -> (B, Ci, N) bf16."""
    B, Ci, N = theta.shape
    return pl.pallas_call(
        _nonlocal_kernel,
        out_shape=jax.ShapeDtypeStruct((B, Ci, N), jnp.bfloat16),
        grid_spec=pltpu.PrefetchScalarGridSpec(
            num_scalar_prefetch=0,
            grid=(B,),
            in_specs=[
                pl.BlockSpec((1, Ci, N), lambda b: (b, 0, 0)),
                pl.BlockSpec((1, Ci, N), lambda b: (b, 0, 0)),
                pl.BlockSpec((1, Ci, N), lambda b: (b, 0, 0)),
            ],
            out_specs=pl.BlockSpec((1, Ci, N), lambda b: (b, 0, 0)),
        ),
        compiler_params=pltpu.CompilerParams(
            dimension_semantics=("parallel",),
            vmem_limit_bytes=40 * 1024 * 1024,
        ),
    )(theta.astype(jnp.bfloat16), phi.astype(jnp.bfloat16),
      g_scaled.astype(jnp.bfloat16))


# ----------------------------------------------------------------------------
# Conv-as-GEMM, channel-major: y(O, B*ho*wo) = w_flat(O,K) @ patches^T(K, B*ho*wo)
# The large spatial axis is the lane/minor output dim (no masked partial stores),
# and activations stay (C,B,H,W) so no per-conv NCHW transposes are needed.
# ----------------------------------------------------------------------------
def conv2d_relu_cmajor(x, w, b, stride):
    """x: (C,B,H,W) bf16; w: (O,C,kh,kw); PyTorch Conv2d+ReLU (valid pad)."""
    out_c, in_c, kh, kw = w.shape
    C, B, H, W = x.shape
    ho = (H - kh) // stride + 1
    wo = (W - kw) // stride + 1
    # TODO(synk): fuse the im2col patch extraction into the Pallas GEMM (strided
    # window DMA) to avoid materializing the patch tensor in HBM.
    cols = []
    for i in range(kh):
        for j in range(kw):
            cols.append(x[:, :, i:i + stride * (ho - 1) + 1:stride,
                             j:j + stride * (wo - 1) + 1:stride])   # (C,B,ho,wo)
    patches = jnp.stack(cols, axis=1).reshape(C * kh * kw, B * ho * wo)
    w_flat = w.reshape(out_c, in_c * kh * kw)
    y = pallas_linear(w_flat, patches, b, activation="relu",
                      bias_axis="m", out_dtype=jnp.bfloat16)        # (O, B*ho*wo)
    return y.reshape(out_c, B, ho, wo)


# ----------------------------------------------------------------------------
# Parameter init (deterministic; PyTorch-style uniform(-1/sqrt(fan_in), ...)).
# Weight matrices are stored pre-cast to bf16; biases stay f32.
# ----------------------------------------------------------------------------
def _lin(key, fan_in, fan_out, bias=True):
    kw, kb = jax.random.split(key)
    bound = 1.0 / np.sqrt(fan_in)
    w = jax.random.uniform(kw, (fan_in, fan_out), jnp.float32,
                           -bound, bound).astype(jnp.bfloat16)
    b = jax.random.uniform(kb, (fan_out,), jnp.float32, -bound, bound) if bias else None
    return w, b


def _conv(key, in_c, out_c, ksize):
    kw, kb = jax.random.split(key)
    fan_in = in_c * ksize * ksize
    bound = 1.0 / np.sqrt(fan_in)
    w = jax.random.uniform(kw, (out_c, in_c, ksize, ksize), jnp.float32,
                           -bound, bound).astype(jnp.bfloat16)
    b = jax.random.uniform(kb, (out_c,), jnp.float32, -bound, bound)
    return w, b


def init_params(key, vec_feat, img_c, num_actions, head_in_dim):
    ks = iter(jax.random.split(key, 32))
    p = {}
    p["ego1_w"], p["ego1_b"] = _lin(next(ks), vec_feat, 64)
    p["ego2_w"], p["ego2_b"] = _lin(next(ks), 64, 64)
    p["oth1_w"], p["oth1_b"] = _lin(next(ks), vec_feat, 64)
    p["oth2_w"], p["oth2_b"] = _lin(next(ks), 64, 64)
    # EgoAttetion linears (bias=False)
    p["key_w"], _ = _lin(next(ks), 64, 64, bias=False)
    p["val_w"], _ = _lin(next(ks), 64, 64, bias=False)
    p["qry_w"], _ = _lin(next(ks), 64, 64, bias=False)
    p["comb_w"], _ = _lin(next(ks), 64, 64, bias=False)
    # conv features
    p["c1_w"], p["c1_b"] = _conv(next(ks), img_c, 32, 8)
    p["c2_w"], p["c2_b"] = _conv(next(ks), 32, 64, 4)
    p["c3_w"], p["c3_b"] = _conv(next(ks), 64, 64, 3)
    # NONLocalBlock2D(64, sub_sample=False, bn_layer=False): inter_channels = 32
    p["g_w"], p["g_b"] = _lin(next(ks), 64, 32)
    p["th_w"], p["th_b"] = _lin(next(ks), 64, 32)
    p["ph_w"], p["ph_b"] = _lin(next(ks), 64, 32)
    # W conv is zero-initialized (bn_layer=False branch); stored (out=64, in=32)
    p["W_w"] = jnp.zeros((64, 32), jnp.bfloat16)
    p["W_b"] = jnp.zeros((64,), jnp.float32)
    # output head (advantage branch; add_dueling=False). adv1_w is pre-cast bf16.
    p["adv1_w"], p["adv1_b"] = _lin(next(ks), head_in_dim, 512)
    p["adv2_w"], p["adv2_b"] = _lin(next(ks), 512, num_actions)
    return p


# ----------------------------------------------------------------------------
# Forward pass
# ----------------------------------------------------------------------------
def forward(params, vec_x, img_x, heads=2):
    p = params
    B, E, F = vec_x.shape

    # --- split_input mask: entity absent if feature 0 < 0.5 (includes ego) ---
    mask = (vec_x[:, :, 0] < 0.5).astype(jnp.float32)[:, None, :]    # (B,1,E)

    # --- vector branch (embeddings + EgoAttetion + combine): one fused kernel
    ego_att = ego_branch(vec_x, mask, p, heads)                      # (B,64) f32

    # --- conv features, channel-major (C,B,H,W), bf16 activations ---
    x = img_x.astype(jnp.bfloat16).transpose(1, 0, 2, 3)             # (C,B,H,W)
    x = conv2d_relu_cmajor(x, p["c1_w"], p["c1_b"], 4)
    x = conv2d_relu_cmajor(x, p["c2_w"], p["c2_b"], 2)
    x = conv2d_relu_cmajor(x, p["c3_w"], p["c3_b"], 1)               # (64,B,hc,wc)
    C, _, Hc, Wc = x.shape
    Nsp = Hc * Wc

    # --- NonLocal block: fused g/theta/phi 1x1 convs (one GEMM, lane-dense) ---
    # 1/N scale of f is folded into g's weights/bias (linear, exact).
    x_feat = x.reshape(C, B * Nsp)                                   # (64, B*N)
    w_gtp = jnp.concatenate([p["g_w"].T * (1.0 / Nsp),
                             p["th_w"].T, p["ph_w"].T], axis=0)      # (96, 64)
    b_gtp = jnp.concatenate([p["g_b"] * (1.0 / Nsp), p["th_b"], p["ph_b"]], axis=0)
    gtp = pallas_linear(w_gtp, x_feat, b_gtp, bias_axis="m",
                        out_dtype=jnp.bfloat16)                      # (96, B*N)
    gtp = gtp.reshape(96, B, Nsp).transpose(1, 0, 2)                 # (B,96,N)
    g_s = gtp[:, 0:32, :]
    th = gtp[:, 32:64, :]
    ph = gtp[:, 64:96, :]
    y = nonlocal_attention(th, ph, g_s)                              # (B,32,N)
    y_flat = y.transpose(1, 0, 2).reshape(32, B * Nsp)               # (32, B*N)
    wy = pallas_linear(p["W_w"], y_flat, p["W_b"], bias_axis="m",
                       out_dtype=jnp.bfloat16)                       # (64, B*N)
    z = wy.reshape(C, B, Hc, Wc) + x                                 # W zero-init -> z == x

    # --- concat + output head (advantage branch; add_dueling=False) ---
    z_flat = z.transpose(1, 0, 2, 3).reshape(B, C * Nsp)             # PyTorch C,H,W order
    att_cat = jnp.concatenate([ego_att.astype(jnp.bfloat16), z_flat], axis=1)
    h = pallas_linear(att_cat, p["adv1_w"], p["adv1_b"], "relu",
                      out_dtype=jnp.bfloat16)                        # (B,512)
    out = pallas_linear(h, p["adv2_w"], p["adv2_b"])                 # (B,num_actions)
    return out


# ----------------------------------------------------------------------------
if __name__ == "__main__":
    key = jax.random.PRNGKey(0)
    kp, kv, ki = jax.random.split(key, 3)

    B, E, F = 2, 5, 7            # batch, entities (1 ego + 4 others), vec features
    C, H, W = 4, 64, 64          # small image consistent with the 4-channel conv stack
    num_actions = 5

    vec_x = jax.random.normal(kv, (B, E, F), jnp.float32)
    img_x = jax.random.normal(ki, (B, C, H, W), jnp.float32)

    # derive conv output size -> head input dim (PyTorch hardcodes 68224 for [4,150,600])
    h1, w1 = (H - 8) // 4 + 1, (W - 8) // 4 + 1
    h2, w2 = (h1 - 4) // 2 + 1, (w1 - 4) // 2 + 1
    h3, w3 = h2 - 3 + 1, w2 - 3 + 1
    head_in_dim = 64 + 64 * h3 * w3

    params = init_params(kp, F, C, num_actions, head_in_dim)

    out = jax.jit(forward)(params, vec_x, img_x)
    out = jax.block_until_ready(out)
    assert out.shape == (B, num_actions), out.shape
    assert bool(jnp.all(jnp.isfinite(out)))
    print("KERNEL_OK")
</pallas_src>

<mosaic_0001>
module attributes {stable_mosaic.version = 11 : i64} {
  func.func @_linear_kernel(%arg0: i32, %arg1: i32, %arg2: i32, %arg3: memref<32x256xbf16, #tpu.memory_space<vmem>>, %arg4: memref<256x256xbf16, #tpu.memory_space<vmem>>, %arg5: memref<32x1xf32, #tpu.memory_space<vmem>>, %arg6: memref<32x256xbf16, #tpu.memory_space<vmem>>, %arg7: memref<32x256xf32, #tpu.memory_space<vmem>>) attributes {dimension_semantics = [#tpu.dimension_semantics<parallel>, #tpu.dimension_semantics<parallel>, #tpu.dimension_semantics<arbitrary>], iteration_bounds = array<i64: 1, 2, 1>, scalar_prefetch = 0 : i64, scratch_operands = 1 : i64, tpu.core_type = #tpu.core_type<tc>, window_params = [{transform_indices = @transform_0, window_bounds = array<i64: 32, 256>}, {transform_indices = @transform_1, window_bounds = array<i64: 256, 256>}, {transform_indices = @transform_2, window_bounds = array<i64: 32, 1>}, {transform_indices = @transform_3, window_bounds = array<i64: 32, 256>}]} {
    %c0_i32 = arith.constant 0 : i32
    %0 = arith.cmpi eq, %arg2, %c0_i32 : i32
    %1 = arith.extui %0 : i1 to i32
    %c0_i32_0 = arith.constant 0 : i32
    %2 = arith.cmpi ne, %1, %c0_i32_0 : i32
    scf.if %2 {
      %cst_10 = arith.constant 0.000000e+00 : f32
      %12 = vector.broadcast %cst_10 : f32 to vector<32x256xf32>
      %c0_11 = arith.constant 0 : index
      %c0_12 = arith.constant 0 : index
      %13 = vector.load %arg7[%c0_11, %c0_12] : memref<32x256xf32, #tpu.memory_space<vmem>>, vector<32x256xf32>
      tpu.vector_store %arg7[%c0_11, %c0_12], %12 {strides = array<i32>} : memref<32x256xf32, #tpu.memory_space<vmem>>, vector<32x256xf32>,
    } else {
    }
    %c0 = arith.constant 0 : index
    %c0_1 = arith.constant 0 : index
    %3 = vector.load %arg7[%c0, %c0_1] : memref<32x256xf32, #tpu.memory_space<vmem>>, vector<32x256xf32>
    %c0_2 = arith.constant 0 : index
    %c0_3 = arith.constant 0 : index
    %4 = vector.load %arg3[%c0_2, %c0_3] : memref<32x256xbf16, #tpu.memory_space<vmem>>, vector<32x256xbf16>
    %c0_4 = arith.constant 0 : index
    %c0_5 = arith.constant 0 : index
    %5 = vector.load %arg4[%c0_4, %c0_5] : memref<256x256xbf16, #tpu.memory_space<vmem>>, vector<256x256xbf16>
    %cst = arith.constant dense<0.000000e+00> : vector<32x256xf32>
    %6 = tpu.matmul %4, %5, %cst {dimension_numbers = #tpu.dot_dimension_numbers<[1], [0], [0], [1], [0, 0, 1, 1], [], []>} : vector<32x256xbf16>, vector<256x256xbf16>, vector<32x256xf32> -> vector<32x256xf32>
    %7 = arith.addf %3, %6 : vector<32x256xf32>
    %c0_6 = arith.constant 0 : index
    %c0_7 = arith.constant 0 : index
    %8 = vector.load %arg7[%c0_6, %c0_7] : memref<32x256xf32, #tpu.memory_space<vmem>>, vector<32x256xf32>
    tpu.vector_store %arg7[%c0_6, %c0_7], %7 {strides = array<i32>} : memref<32x256xf32, #tpu.memory_space<vmem>>, vector<32x256xf32>,
    %c0_i32_8 = arith.constant 0 : i32
    %9 = arith.cmpi eq, %arg2, %c0_i32_8 : i32
    %10 = arith.extui %9 : i1 to i32
    %c0_i32_9 = arith.constant 0 : i32
    %11 = arith.cmpi ne, %10, %c0_i32_9 : i32
    scf.if %11 {
      %c0_10 = arith.constant 0 : index
      %c0_11 = arith.constant 0 : index
      %12 = vector.load %arg7[%c0_10, %c0_11] : memref<32x256xf32, #tpu.memory_space<vmem>>, vector<32x256xf32>
      %c0_12 = arith.constant 0 : index
      %c0_13 = arith.constant 0 : index
      %13 = vector.load %arg5[%c0_12, %c0_13] : memref<32x1xf32, #tpu.memory_space<vmem>>, vector<32x1xf32>
      %14 = vector.broadcast %13 : vector<32x1xf32> to vector<32x256xf32>
      %15 = arith.addf %12, %14 : vector<32x256xf32>
      %cst_14 = arith.constant 0.000000e+00 : f32
      %16 = vector.broadcast %cst_14 : f32 to vector<32x256xf32>
      %17 = arith.maximumf %15, %16 : vector<32x256xf32>
      %18 = arith.truncf %17 : vector<32x256xf32> to vector<32x256xbf16>
      %c0_15 = arith.constant 0 : index
      %c0_16 = arith.constant 0 : index
      %19 = vector.load %arg6[%c0_15, %c0_16] : memref<32x256xbf16, #tpu.memory_space<vmem>>, vector<32x256xbf16>
      tpu.vector_store %arg6[%c0_15, %c0_16], %18 {strides = array<i32>} : memref<32x256xbf16, #tpu.memory_space<vmem>>, vector<32x256xbf16>,
    } else {
    }
    return
  }
  func.func @transform_0(%arg0: i32, %arg1: i32, %arg2: i32) -> (i32, i32) {
    %c0_i32 = arith.constant 0 : i32
    return %arg0, %arg2 : i32, i32
  }
  func.func @transform_1(%arg0: i32, %arg1: i32, %arg2: i32) -> (i32, i32) {
    %c0_i32 = arith.constant 0 : i32
    return %arg2, %arg1 : i32, i32
  }
  func.func @transform_2(%arg0: i32, %arg1: i32, %arg2: i32) -> (i32, i32) {
    %c0_i32 = arith.constant 0 : i32
    %c0_i32_0 = arith.constant 0 : i32
    return %arg0, %c0_i32 : i32, i32
  }
  func.func @transform_3(%arg0: i32, %arg1: i32, %arg2: i32) -> (i32, i32) {
    %c0_i32 = arith.constant 0 : i32
    return %arg0, %arg1 : i32, i32
  }
}

module attributes {stable_mosaic.version = 11 : i64} {
  func.func @_linear_kernel(%arg0: i32, %arg1: i32, %arg2: i32, %arg3: memref<64x512xbf16, #tpu.memory_space<vmem>>, %arg4: memref<512x72xbf16, #tpu.memory_space<vmem>>, %arg5: memref<64x1xf32, #tpu.memory_space<vmem>>, %arg6: memref<64x72xbf16, #tpu.memory_space<vmem>>, %arg7: memref<64x72xf32, #tpu.memory_space<vmem>>) attributes {dimension_semantics = [#tpu.dimension_semantics<parallel>, #tpu.dimension_semantics<parallel>, #tpu.dimension_semantics<arbitrary>], iteration_bounds = array<i64: 1, 1, 1>, scalar_prefetch = 0 : i64, scratch_operands = 1 : i64, tpu.core_type = #tpu.core_type<tc>, window_params = [{transform_indices = @transform_0, window_bounds = array<i64: 64, 512>}, {transform_indices = @transform_1, window_bounds = array<i64: 512, 72>}, {transform_indices = @transform_2, window_bounds = array<i64: 64, 1>}, {transform_indices = @transform_3, window_bounds = array<i64: 64, 72>}]} {
    %c0_i32 = arith.constant 0 : i32
    %0 = arith.cmpi eq, %arg2, %c0_i32 : i32
    %1 = arith.extui %0 : i1 to i32
    %c0_i32_0 = arith.constant 0 : i32
    %2 = arith.cmpi ne, %1, %c0_i32_0 : i32
    scf.if %2 {
      %cst_10 = arith.constant 0.000000e+00 : f32
      %12 = vector.broadcast %cst_10 : f32 to vector<64x72xf32>
      %c0_11 = arith.constant 0 : index
      %c0_12 = arith.constant 0 : index
      %13 = vector.load %arg7[%c0_11, %c0_12] : memref<64x72xf32, #tpu.memory_space<vmem>>, vector<64x72xf32>
      tpu.vector_store %arg7[%c0_11, %c0_12], %12 {strides = array<i32>} : memref<64x72xf32, #tpu.memory_space<vmem>>, vector<64x72xf32>,
    } else {
    }
    %c0 = arith.constant 0 : index
    %c0_1 = arith.constant 0 : index
    %3 = vector.load %arg7[%c0, %c0_1] : memref<64x72xf32, #tpu.memory_space<vmem>>, vector<64x72xf32>
    %c0_2 = arith.constant 0 : index
    %c0_3 = arith.constant 0 : index
    %4 = vector.load %arg3[%c0_2, %c0_3] : memref<64x512xbf16, #tpu.memory_space<vmem>>, vector<64x512xbf16>
    %c0_4 = arith.constant 0 : index
    %c0_5 = arith.constant 0 : index
    %5 = vector.load %arg4[%c0_4, %c0_5] : memref<512x72xbf16, #tpu.memory_space<vmem>>, vector<512x72xbf16>
    %cst = arith.constant dense<0.000000e+00> : vector<64x72xf32>
    %6 = tpu.matmul %4, %5, %cst {dimension_numbers = #tpu.dot_dimension_numbers<[1], [0], [0], [1], [0, 0, 1, 1], [], []>} : vector<64x512xbf16>, vector<512x72xbf16>, vector<64x72xf32> -> vector<64x72xf32>
    %7 = arith.addf %3, %6 : vector<64x72xf32>
    %c0_6 = arith.constant 0 : index
    %c0_7 = arith.constant 0 : index
    %8 = vector.load %arg7[%c0_6, %c0_7] : memref<64x72xf32, #tpu.memory_space<vmem>>, vector<64x72xf32>
    tpu.vector_store %arg7[%c0_6, %c0_7], %7 {strides = array<i32>} : memref<64x72xf32, #tpu.memory_space<vmem>>, vector<64x72xf32>,
    %c0_i32_8 = arith.constant 0 : i32
    %9 = arith.cmpi eq, %arg2, %c0_i32_8 : i32
    %10 = arith.extui %9 : i1 to i32
    %c0_i32_9 = arith.constant 0 : i32
    %11 = arith.cmpi ne, %10, %c0_i32_9 : i32
    scf.if %11 {
      %c0_10 = arith.constant 0 : index
      %c0_11 = arith.constant 0 : index
      %12 = vector.load %arg7[%c0_10, %c0_11] : memref<64x72xf32, #tpu.memory_space<vmem>>, vector<64x72xf32>
      %c0_12 = arith.constant 0 : index
      %c0_13 = arith.constant 0 : index
      %13 = vector.load %arg5[%c0_12, %c0_13] : memref<64x1xf32, #tpu.memory_space<vmem>>, vector<64x1xf32>
      %14 = vector.broadcast %13 : vector<64x1xf32> to vector<64x72xf32>
      %15 = arith.addf %12, %14 : vector<64x72xf32>
      %cst_14 = arith.constant 0.000000e+00 : f32
      %16 = vector.broadcast %cst_14 : f32 to vector<64x72xf32>
      %17 = arith.maximumf %15, %16 : vector<64x72xf32>
      %18 = arith.truncf %17 : vector<64x72xf32> to vector<64x72xbf16>
      %c0_15 = arith.constant 0 : index
      %c0_16 = arith.constant 0 : index
      %19 = vector.load %arg6[%c0_15, %c0_16] : memref<64x72xbf16, #tpu.memory_space<vmem>>, vector<64x72xbf16>
      tpu.vector_store %arg6[%c0_15, %c0_16], %18 {strides = array<i32>} : memref<64x72xbf16, #tpu.memory_space<vmem>>, vector<64x72xbf16>,
    } else {
    }
    return
  }
  func.func @transform_0(%arg0: i32, %arg1: i32, %arg2: i32) -> (i32, i32) {
    %c0_i32 = arith.constant 0 : i32
    return %arg0, %arg2 : i32, i32
  }
  func.func @transform_1(%arg0: i32, %arg1: i32, %arg2: i32) -> (i32, i32) {
    %c0_i32 = arith.constant 0 : i32
    return %arg2, %arg1 : i32, i32
  }
  func.func @transform_2(%arg0: i32, %arg1: i32, %arg2: i32) -> (i32, i32) {
    %c0_i32 = arith.constant 0 : i32
    %c0_i32_0 = arith.constant 0 : i32
    return %arg0, %c0_i32 : i32, i32
  }
  func.func @transform_3(%arg0: i32, %arg1: i32, %arg2: i32) -> (i32, i32) {
    %c0_i32 = arith.constant 0 : i32
    return %arg0, %arg1 : i32, i32
  }
}

module attributes {stable_mosaic.version = 11 : i64} {
  func.func @_linear_kernel(%arg0: i32, %arg1: i32, %arg2: i32, %arg3: memref<64x576xbf16, #tpu.memory_space<vmem>>, %arg4: memref<576x32xbf16, #tpu.memory_space<vmem>>, %arg5: memref<64x1xf32, #tpu.memory_space<vmem>>, %arg6: memref<64x32xbf16, #tpu.memory_space<vmem>>, %arg7: memref<64x32xf32, #tpu.memory_space<vmem>>) attributes {dimension_semantics = [#tpu.dimension_semantics<parallel>, #tpu.dimension_semantics<parallel>, #tpu.dimension_semantics<arbitrary>], iteration_bounds = array<i64: 1, 1, 1>, scalar_prefetch = 0 : i64, scratch_operands = 1 : i64, tpu.core_type = #tpu.core_type<tc>, window_params = [{transform_indices = @transform_0, window_bounds = array<i64: 64, 576>}, {transform_indices = @transform_1, window_bounds = array<i64: 576, 32>}, {transform_indices = @transform_2, window_bounds = array<i64: 64, 1>}, {transform_indices = @transform_3, window_bounds = array<i64: 64, 32>}]} {
    %c0_i32 = arith.constant 0 : i32
    %0 = arith.cmpi eq, %arg2, %c0_i32 : i32
    %1 = arith.extui %0 : i1 to i32
    %c0_i32_0 = arith.constant 0 : i32
    %2 = arith.cmpi ne, %1, %c0_i32_0 : i32
    scf.if %2 {
      %cst_10 = arith.constant 0.000000e+00 : f32
      %12 = vector.broadcast %cst_10 : f32 to vector<64x32xf32>
      %c0_11 = arith.constant 0 : index
      %c0_12 = arith.constant 0 : index
      %13 = vector.load %arg7[%c0_11, %c0_12] : memref<64x32xf32, #tpu.memory_space<vmem>>, vector<64x32xf32>
      tpu.vector_store %arg7[%c0_11, %c0_12], %12 {strides = array<i32>} : memref<64x32xf32, #tpu.memory_space<vmem>>, vector<64x32xf32>,
    } else {
    }
    %c0 = arith.constant 0 : index
    %c0_1 = arith.constant 0 : index
    %3 = vector.load %arg7[%c0, %c0_1] : memref<64x32xf32, #tpu.memory_space<vmem>>, vector<64x32xf32>
    %c0_2 = arith.constant 0 : index
    %c0_3 = arith.constant 0 : index
    %4 = vector.load %arg3[%c0_2, %c0_3] : memref<64x576xbf16, #tpu.memory_space<vmem>>, vector<64x576xbf16>
    %c0_4 = arith.constant 0 : index
    %c0_5 = arith.constant 0 : index
    %5 = vector.load %arg4[%c0_4, %c0_5] : memref<576x32xbf16, #tpu.memory_space<vmem>>, vector<576x32xbf16>
    %cst = arith.constant dense<0.000000e+00> : vector<64x32xf32>
    %6 = tpu.matmul %4, %5, %cst {dimension_numbers = #tpu.dot_dimension_numbers<[1], [0], [0], [1], [0, 0, 1, 1], [], []>} : vector<64x576xbf16>, vector<576x32xbf16>, vector<64x32xf32> -> vector<64x32xf32>
    %7 = arith.addf %3, %6 : vector<64x32xf32>
    %c0_6 = arith.constant 0 : index
    %c0_7 = arith.constant 0 : index
    %8 = vector.load %arg7[%c0_6, %c0_7] : memref<64x32xf32, #tpu.memory_space<vmem>>, vector<64x32xf32>
    tpu.vector_store %arg7[%c0_6, %c0_7], %7 {strides = array<i32>} : memref<64x32xf32, #tpu.memory_space<vmem>>, vector<64x32xf32>,
    %c0_i32_8 = arith.constant 0 : i32
    %9 = arith.cmpi eq, %arg2, %c0_i32_8 : i32
    %10 = arith.extui %9 : i1 to i32
    %c0_i32_9 = arith.constant 0 : i32
    %11 = arith.cmpi ne, %10, %c0_i32_9 : i32
    scf.if %11 {
      %c0_10 = arith.constant 0 : index
      %c0_11 = arith.constant 0 : index
      %12 = vector.load %arg7[%c0_10, %c0_11] : memref<64x32xf32, #tpu.memory_space<vmem>>, vector<64x32xf32>
      %c0_12 = arith.constant 0 : index
      %c0_13 = arith.constant 0 : index
      %13 = vector.load %arg5[%c0_12, %c0_13] : memref<64x1xf32, #tpu.memory_space<vmem>>, vector<64x1xf32>
      %14 = vector.broadcast %13 : vector<64x1xf32> to vector<64x32xf32>
      %15 = arith.addf %12, %14 : vector<64x32xf32>
      %cst_14 = arith.constant 0.000000e+00 : f32
      %16 = vector.broadcast %cst_14 : f32 to vector<64x32xf32>
      %17 = arith.maximumf %15, %16 : vector<64x32xf32>
      %18 = arith.truncf %17 : vector<64x32xf32> to vector<64x32xbf16>
      %c0_15 = arith.constant 0 : index
      %c0_16 = arith.constant 0 : index
      %19 = vector.load %arg6[%c0_15, %c0_16] : memref<64x32xbf16, #tpu.memory_space<vmem>>, vector<64x32xbf16>
      tpu.vector_store %arg6[%c0_15, %c0_16], %18 {strides = array<i32>} : memref<64x32xbf16, #tpu.memory_space<vmem>>, vector<64x32xbf16>,
    } else {
    }
    return
  }
  func.func @transform_0(%arg0: i32, %arg1: i32, %arg2: i32) -> (i32, i32) {
    %c0_i32 = arith.constant 0 : i32
    return %arg0, %arg2 : i32, i32
  }
  func.func @transform_1(%arg0: i32, %arg1: i32, %arg2: i32) -> (i32, i32) {
    %c0_i32 = arith.constant 0 : i32
    return %arg2, %arg1 : i32, i32
  }
  func.func @transform_2(%arg0: i32, %arg1: i32, %arg2: i32) -> (i32, i32) {
    %c0_i32 = arith.constant 0 : i32
    %c0_i32_0 = arith.constant 0 : i32
    return %arg0, %c0_i32 : i32, i32
  }
  func.func @transform_3(%arg0: i32, %arg1: i32, %arg2: i32) -> (i32, i32) {
    %c0_i32 = arith.constant 0 : i32
    return %arg0, %arg1 : i32, i32
  }
}

module attributes {stable_mosaic.version = 11 : i64} {
  func.func @_linear_kernel(%arg0: i32, %arg1: i32, %arg2: i32, %arg3: memref<96x64xbf16, #tpu.memory_space<vmem>>, %arg4: memref<64x32xbf16, #tpu.memory_space<vmem>>, %arg5: memref<96x1xf32, #tpu.memory_space<vmem>>, %arg6: memref<96x32xbf16, #tpu.memory_space<vmem>>, %arg7: memref<96x32xf32, #tpu.memory_space<vmem>>) attributes {dimension_semantics = [#tpu.dimension_semantics<parallel>, #tpu.dimension_semantics<parallel>, #tpu.dimension_semantics<arbitrary>], iteration_bounds = array<i64: 1, 1, 1>, scalar_prefetch = 0 : i64, scratch_operands = 1 : i64, tpu.core_type = #tpu.core_type<tc>, window_params = [{transform_indices = @transform_0, window_bounds = array<i64: 96, 64>}, {transform_indices = @transform_1, window_bounds = array<i64: 64, 32>}, {transform_indices = @transform_2, window_bounds = array<i64: 96, 1>}, {transform_indices = @transform_3, window_bounds = array<i64: 96, 32>}]} {
    %c0_i32 = arith.constant 0 : i32
    %0 = arith.cmpi eq, %arg2, %c0_i32 : i32
    %1 = arith.extui %0 : i1 to i32
    %c0_i32_0 = arith.constant 0 : i32
    %2 = arith.cmpi ne, %1, %c0_i32_0 : i32
    scf.if %2 {
      %cst_10 = arith.constant 0.000000e+00 : f32
      %12 = vector.broadcast %cst_10 : f32 to vector<96x32xf32>
      %c0_11 = arith.constant 0 : index
      %c0_12 = arith.constant 0 : index
      %13 = vector.load %arg7[%c0_11, %c0_12] : memref<96x32xf32, #tpu.memory_space<vmem>>, vector<96x32xf32>
      tpu.vector_store %arg7[%c0_11, %c0_12], %12 {strides = array<i32>} : memref<96x32xf32, #tpu.memory_space<vmem>>, vector<96x32xf32>,
    } else {
    }
    %c0 = arith.constant 0 : index
    %c0_1 = arith.constant 0 : index
    %3 = vector.load %arg7[%c0, %c0_1] : memref<96x32xf32, #tpu.memory_space<vmem>>, vector<96x32xf32>
    %c0_2 = arith.constant 0 : index
    %c0_3 = arith.constant 0 : index
    %4 = vector.load %arg3[%c0_2, %c0_3] : memref<96x64xbf16, #tpu.memory_space<vmem>>, vector<96x64xbf16>
    %c0_4 = arith.constant 0 : index
    %c0_5 = arith.constant 0 : index
    %5 = vector.load %arg4[%c0_4, %c0_5] : memref<64x32xbf16, #tpu.memory_space<vmem>>, vector<64x32xbf16>
    %cst = arith.constant dense<0.000000e+00> : vector<96x32xf32>
    %6 = tpu.matmul %4, %5, %cst {dimension_numbers = #tpu.dot_dimension_numbers<[1], [0], [0], [1], [0, 0, 1, 1], [], []>} : vector<96x64xbf16>, vector<64x32xbf16>, vector<96x32xf32> -> vector<96x32xf32>
    %7 = arith.addf %3, %6 : vector<96x32xf32>
    %c0_6 = arith.constant 0 : index
    %c0_7 = arith.constant 0 : index
    %8 = vector.load %arg7[%c0_6, %c0_7] : memref<96x32xf32, #tpu.memory_space<vmem>>, vector<96x32xf32>
    tpu.vector_store %arg7[%c0_6, %c0_7], %7 {strides = array<i32>} : memref<96x32xf32, #tpu.memory_space<vmem>>, vector<96x32xf32>,
    %c0_i32_8 = arith.constant 0 : i32
    %9 = arith.cmpi eq, %arg2, %c0_i32_8 : i32
    %10 = arith.extui %9 : i1 to i32
    %c0_i32_9 = arith.constant 0 : i32
    %11 = arith.cmpi ne, %10, %c0_i32_9 : i32
    scf.if %11 {
      %c0_10 = arith.constant 0 : index
      %c0_11 = arith.constant 0 : index
      %12 = vector.load %arg7[%c0_10, %c0_11] : memref<96x32xf32, #tpu.memory_space<vmem>>, vector<96x32xf32>
      %c0_12 = arith.constant 0 : index
      %c0_13 = arith.constant 0 : index
      %13 = vector.load %arg5[%c0_12, %c0_13] : memref<96x1xf32, #tpu.memory_space<vmem>>, vector<96x1xf32>
      %14 = vector.broadcast %13 : vector<96x1xf32> to vector<96x32xf32>
      %15 = arith.addf %12, %14 : vector<96x32xf32>
      %16 = arith.truncf %15 : vector<96x32xf32> to vector<96x32xbf16>
      %c0_14 = arith.constant 0 : index
      %c0_15 = arith.constant 0 : index
      %17 = vector.load %arg6[%c0_14, %c0_15] : memref<96x32xbf16, #tpu.memory_space<vmem>>, vector<96x32xbf16>
      tpu.vector_store %arg6[%c0_14, %c0_15], %16 {strides = array<i32>} : memref<96x32xbf16, #tpu.memory_space<vmem>>, vector<96x32xbf16>,
    } else {
    }
    return
  }
  func.func @transform_0(%arg0: i32, %arg1: i32, %arg2: i32) -> (i32, i32) {
    %c0_i32 = arith.constant 0 : i32
    return %arg0, %arg2 : i32, i32
  }
  func.func @transform_1(%arg0: i32, %arg1: i32, %arg2: i32) -> (i32, i32) {
    %c0_i32 = arith.constant 0 : i32
    return %arg2, %arg1 : i32, i32
  }
  func.func @transform_2(%arg0: i32, %arg1: i32, %arg2: i32) -> (i32, i32) {
    %c0_i32 = arith.constant 0 : i32
    %c0_i32_0 = arith.constant 0 : i32
    return %arg0, %c0_i32 : i32, i32
  }
  func.func @transform_3(%arg0: i32, %arg1: i32, %arg2: i32) -> (i32, i32) {
    %c0_i32 = arith.constant 0 : i32
    return %arg0, %arg1 : i32, i32
  }
}

module attributes {stable_mosaic.version = 11 : i64} {
  func.func @_nonlocal_kernel(%arg0: i32, %arg1: memref<1x32x16xbf16, #tpu.memory_space<vmem>>, %arg2: memref<1x32x16xbf16, #tpu.memory_space<vmem>>, %arg3: memref<1x32x16xbf16, #tpu.memory_space<vmem>>, %arg4: memref<1x32x16xbf16, #tpu.memory_space<vmem>>) attributes {dimension_semantics = [#tpu.dimension_semantics<parallel>], iteration_bounds = array<i64: 2>, scalar_prefetch = 0 : i64, scratch_operands = 0 : i64, tpu.core_type = #tpu.core_type<tc>, window_params = [{transform_indices = @transform_0, window_bounds = array<i64: 1, 32, 16>}, {transform_indices = @transform_1, window_bounds = array<i64: 1, 32, 16>}, {transform_indices = @transform_2, window_bounds = array<i64: 1, 32, 16>}, {transform_indices = @transform_3, window_bounds = array<i64: 1, 32, 16>}]} {
    %c0 = arith.constant 0 : index
    %c0_0 = arith.constant 0 : index
    %c0_1 = arith.constant 0 : index
    %0 = vector.load %arg1[%c0, %c0_0, %c0_1] : memref<1x32x16xbf16, #tpu.memory_space<vmem>>, vector<1x32x16xbf16>
    %1 = vector.shape_cast %0 : vector<1x32x16xbf16> to vector<32x16xbf16>
    %c0_2 = arith.constant 0 : index
    %c0_3 = arith.constant 0 : index
    %c0_4 = arith.constant 0 : index
    %2 = vector.load %arg2[%c0_2, %c0_3, %c0_4] : memref<1x32x16xbf16, #tpu.memory_space<vmem>>, vector<1x32x16xbf16>
    %3 = vector.shape_cast %2 : vector<1x32x16xbf16> to vector<32x16xbf16>
    %c0_5 = arith.constant 0 : index
    %c0_6 = arith.constant 0 : index
    %c0_7 = arith.constant 0 : index
    %4 = vector.load %arg3[%c0_5, %c0_6, %c0_7] : memref<1x32x16xbf16, #tpu.memory_space<vmem>>, vector<1x32x16xbf16>
    %5 = vector.shape_cast %4 : vector<1x32x16xbf16> to vector<32x16xbf16>
    %cst = arith.constant dense<0.000000e+00> : vector<32x32xf32>
    %6 = tpu.matmul %5, %3, %cst {dimension_numbers = #tpu.dot_dimension_numbers<[1], [1], [0], [0], [0, 0, 1, 0], [], []>} : vector<32x16xbf16>, vector<32x16xbf16>, vector<32x32xf32> -> vector<32x32xf32>
    %7 = arith.truncf %6 : vector<32x32xf32> to vector<32x32xbf16>
    %cst_8 = arith.constant dense<0.000000e+00> : vector<32x16xf32>
    %8 = tpu.matmul %7, %1, %cst_8 {dimension_numbers = #tpu.dot_dimension_numbers<[1], [0], [0], [1], [0, 0, 1, 1], [], []>} : vector<32x32xbf16>, vector<32x16xbf16>, vector<32x16xf32> -> vector<32x16xf32>
    %9 = arith.truncf %8 : vector<32x16xf32> to vector<32x16xbf16>
    %c0_9 = arith.constant 0 : index
    %c0_10 = arith.constant 0 : index
    %c0_11 = arith.constant 0 : index
    %10 = vector.load %arg4[%c0_9, %c0_10, %c0_11] : memref<1x32x16xbf16, #tpu.memory_space<vmem>>, vector<1x32x16xbf16>
    %11 = vector.shape_cast %10 : vector<1x32x16xbf16> to vector<32x16xbf16>
    %12 = vector.shape_cast %9 : vector<32x16xbf16> to vector<1x32x16xbf16>
    tpu.vector_store %arg4[%c0_9, %c0_10, %c0_11], %12 {strides = array<i32>} : memref<1x32x16xbf16, #tpu.memory_space<vmem>>, vector<1x32x16xbf16>,
    return
  }
  func.func @transform_0(%arg0: i32) -> (i32, i32, i32) {
    %c0_i32 = arith.constant 0 : i32
    %c0_i32_0 = arith.constant 0 : i32
    %c0_i32_1 = arith.constant 0 : i32
    return %arg0, %c0_i32, %c0_i32_0 : i32, i32, i32
  }
  func.func @transform_1(%arg0: i32) -> (i32, i32, i32) {
    %c0_i32 = arith.constant 0 : i32
    %c0_i32_0 = arith.constant 0 : i32
    %c0_i32_1 = arith.constant 0 : i32
    return %arg0, %c0_i32, %c0_i32_0 : i32, i32, i32
  }
  func.func @transform_2(%arg0: i32) -> (i32, i32, i32) {
    %c0_i32 = arith.constant 0 : i32
    %c0_i32_0 = arith.constant 0 : i32
    %c0_i32_1 = arith.constant 0 : i32
    return %arg0, %c0_i32, %c0_i32_0 : i32, i32, i32
  }
  func.func @transform_3(%arg0: i32) -> (i32, i32, i32) {
    %c0_i32 = arith.constant 0 : i32
    %c0_i32_0 = arith.constant 0 : i32
    %c0_i32_1 = arith.constant 0 : i32
    return %arg0, %c0_i32, %c0_i32_0 : i32, i32, i32
  }
}

module attributes {stable_mosaic.version = 11 : i64} {
  func.func @_linear_kernel(%arg0: i32, %arg1: i32, %arg2: i32, %arg3: memref<64x32xbf16, #tpu.memory_space<vmem>>, %arg4: memref<32x32xbf16, #tpu.memory_space<vmem>>, %arg5: memref<64x1xf32, #tpu.memory_space<vmem>>, %arg6: memref<64x32xbf16, #tpu.memory_space<vmem>>, %arg7: memref<64x32xf32, #tpu.memory_space<vmem>>) attributes {dimension_semantics = [#tpu.dimension_semantics<parallel>, #tpu.dimension_semantics<parallel>, #tpu.dimension_semantics<arbitrary>], iteration_bounds = array<i64: 1, 1, 1>, scalar_prefetch = 0 : i64, scratch_operands = 1 : i64, tpu.core_type = #tpu.core_type<tc>, window_params = [{transform_indices = @transform_0, window_bounds = array<i64: 64, 32>}, {transform_indices = @transform_1, window_bounds = array<i64: 32, 32>}, {transform_indices = @transform_2, window_bounds = array<i64: 64, 1>}, {transform_indices = @transform_3, window_bounds = array<i64: 64, 32>}]} {
    %c0_i32 = arith.constant 0 : i32
    %0 = arith.cmpi eq, %arg2, %c0_i32 : i32
    %1 = arith.extui %0 : i1 to i32
    %c0_i32_0 = arith.constant 0 : i32
    %2 = arith.cmpi ne, %1, %c0_i32_0 : i32
    scf.if %2 {
      %cst_10 = arith.constant 0.000000e+00 : f32
      %12 = vector.broadcast %cst_10 : f32 to vector<64x32xf32>
      %c0_11 = arith.constant 0 : index
      %c0_12 = arith.constant 0 : index
      %13 = vector.load %arg7[%c0_11, %c0_12] : memref<64x32xf32, #tpu.memory_space<vmem>>, vector<64x32xf32>
      tpu.vector_store %arg7[%c0_11, %c0_12], %12 {strides = array<i32>} : memref<64x32xf32, #tpu.memory_space<vmem>>, vector<64x32xf32>,
    } else {
    }
    %c0 = arith.constant 0 : index
    %c0_1 = arith.constant 0 : index
    %3 = vector.load %arg7[%c0, %c0_1] : memref<64x32xf32, #tpu.memory_space<vmem>>, vector<64x32xf32>
    %c0_2 = arith.constant 0 : index
    %c0_3 = arith.constant 0 : index
    %4 = vector.load %arg3[%c0_2, %c0_3] : memref<64x32xbf16, #tpu.memory_space<vmem>>, vector<64x32xbf16>
    %c0_4 = arith.constant 0 : index
    %c0_5 = arith.constant 0 : index
    %5 = vector.load %arg4[%c0_4, %c0_5] : memref<32x32xbf16, #tpu.memory_space<vmem>>, vector<32x32xbf16>
    %cst = arith.constant dense<0.000000e+00> : vector<64x32xf32>
    %6 = tpu.matmul %4, %5, %cst {dimension_numbers = #tpu.dot_dimension_numbers<[1], [0], [0], [1], [0, 0, 1, 1], [], []>} : vector<64x32xbf16>, vector<32x32xbf16>, vector<64x32xf32> -> vector<64x32xf32>
    %7 = arith.addf %3, %6 : vector<64x32xf32>
    %c0_6 = arith.constant 0 : index
    %c0_7 = arith.constant 0 : index
    %8 = vector.load %arg7[%c0_6, %c0_7] : memref<64x32xf32, #tpu.memory_space<vmem>>, vector<64x32xf32>
    tpu.vector_store %arg7[%c0_6, %c0_7], %7 {strides = array<i32>} : memref<64x32xf32, #tpu.memory_space<vmem>>, vector<64x32xf32>,
    %c0_i32_8 = arith.constant 0 : i32
    %9 = arith.cmpi eq, %arg2, %c0_i32_8 : i32
    %10 = arith.extui %9 : i1 to i32
    %c0_i32_9 = arith.constant 0 : i32
    %11 = arith.cmpi ne, %10, %c0_i32_9 : i32
    scf.if %11 {
      %c0_10 = arith.constant 0 : index
      %c0_11 = arith.constant 0 : index
      %12 = vector.load %arg7[%c0_10, %c0_11] : memref<64x32xf32, #tpu.memory_space<vmem>>, vector<64x32xf32>
      %c0_12 = arith.constant 0 : index
      %c0_13 = arith.constant 0 : index
      %13 = vector.load %arg5[%c0_12, %c0_13] : memref<64x1xf32, #tpu.memory_space<vmem>>, vector<64x1xf32>
      %14 = vector.broadcast %13 : vector<64x1xf32> to vector<64x32xf32>
      %15 = arith.addf %12, %14 : vector<64x32xf32>
      %16 = arith.truncf %15 : vector<64x32xf32> to vector<64x32xbf16>
      %c0_14 = arith.constant 0 : index
      %c0_15 = arith.constant 0 : index
      %17 = vector.load %arg6[%c0_14, %c0_15] : memref<64x32xbf16, #tpu.memory_space<vmem>>, vector<64x32xbf16>
      tpu.vector_store %arg6[%c0_14, %c0_15], %16 {strides = array<i32>} : memref<64x32xbf16, #tpu.memory_space<vmem>>, vector<64x32xbf16>,
    } else {
    }
    return
  }
  func.func @transform_0(%arg0: i32, %arg1: i32, %arg2: i32) -> (i32, i32) {
    %c0_i32 = arith.constant 0 : i32
    return %arg0, %arg2 : i32, i32
  }
  func.func @transform_1(%arg0: i32, %arg1: i32, %arg2: i32) -> (i32, i32) {
    %c0_i32 = arith.constant 0 : i32
    return %arg2, %arg1 : i32, i32
  }
  func.func @transform_2(%arg0: i32, %arg1: i32, %arg2: i32) -> (i32, i32) {
    %c0_i32 = arith.constant 0 : i32
    %c0_i32_0 = arith.constant 0 : i32
    return %arg0, %c0_i32 : i32, i32
  }
  func.func @transform_3(%arg0: i32, %arg1: i32, %arg2: i32) -> (i32, i32) {
    %c0_i32 = arith.constant 0 : i32
    return %arg0, %arg1 : i32, i32
  }
}

module attributes {stable_mosaic.version = 11 : i64} {
  func.func @_linear_kernel(%arg0: i32, %arg1: i32, %arg2: i32, %arg3: memref<2x1088xbf16, #tpu.memory_space<vmem>>, %arg4: memref<1088x256xbf16, #tpu.memory_space<vmem>>, %arg5: memref<1x256xf32, #tpu.memory_space<vmem>>, %arg6: memref<2x256xbf16, #tpu.memory_space<vmem>>, %arg7: memref<2x256xf32, #tpu.memory_space<vmem>>) attributes {dimension_semantics = [#tpu.dimension_semantics<parallel>, #tpu.dimension_semantics<parallel>, #tpu.dimension_semantics<arbitrary>], iteration_bounds = array<i64: 1, 2, 1>, scalar_prefetch = 0 : i64, scratch_operands = 1 : i64, tpu.core_type = #tpu.core_type<tc>, window_params = [{transform_indices = @transform_0, window_bounds = array<i64: 2, 1088>}, {transform_indices = @transform_1, window_bounds = array<i64: 1088, 256>}, {transform_indices = @transform_2, window_bounds = array<i64: 1, 256>}, {transform_indices = @transform_3, window_bounds = array<i64: 2, 256>}]} {
    %c0_i32 = arith.constant 0 : i32
    %0 = arith.cmpi eq, %arg2, %c0_i32 : i32
    %1 = arith.extui %0 : i1 to i32
    %c0_i32_0 = arith.constant 0 : i32
    %2 = arith.cmpi ne, %1, %c0_i32_0 : i32
    scf.if %2 {
      %cst_10 = arith.constant 0.000000e+00 : f32
      %12 = vector.broadcast %cst_10 : f32 to vector<2x256xf32>
      %c0_11 = arith.constant 0 : index
      %c0_12 = arith.constant 0 : index
      %13 = vector.load %arg7[%c0_11, %c0_12] : memref<2x256xf32, #tpu.memory_space<vmem>>, vector<2x256xf32>
      tpu.vector_store %arg7[%c0_11, %c0_12], %12 {strides = array<i32>} : memref<2x256xf32, #tpu.memory_space<vmem>>, vector<2x256xf32>,
    } else {
    }
    %c0 = arith.constant 0 : index
    %c0_1 = arith.constant 0 : index
    %3 = vector.load %arg7[%c0, %c0_1] : memref<2x256xf32, #tpu.memory_space<vmem>>, vector<2x256xf32>
    %c0_2 = arith.constant 0 : index
    %c0_3 = arith.constant 0 : index
    %4 = vector.load %arg3[%c0_2, %c0_3] : memref<2x1088xbf16, #tpu.memory_space<vmem>>, vector<2x1088xbf16>
    %c0_4 = arith.constant 0 : index
    %c0_5 = arith.constant 0 : index
    %5 = vector.load %arg4[%c0_4, %c0_5] : memref<1088x256xbf16, #tpu.memory_space<vmem>>, vector<1088x256xbf16>
    %cst = arith.constant dense<0.000000e+00> : vector<2x256xf32>
    %6 = tpu.matmul %4, %5, %cst {dimension_numbers = #tpu.dot_dimension_numbers<[1], [0], [0], [1], [0, 0, 1, 1], [], []>} : vector<2x1088xbf16>, vector<1088x256xbf16>, vector<2x256xf32> -> vector<2x256xf32>
    %7 = arith.addf %3, %6 : vector<2x256xf32>
    %c0_6 = arith.constant 0 : index
    %c0_7 = arith.constant 0 : index
    %8 = vector.load %arg7[%c0_6, %c0_7] : memref<2x256xf32, #tpu.memory_space<vmem>>, vector<2x256xf32>
    tpu.vector_store %arg7[%c0_6, %c0_7], %7 {strides = array<i32>} : memref<2x256xf32, #tpu.memory_space<vmem>>, vector<2x256xf32>,
    %c0_i32_8 = arith.constant 0 : i32
    %9 = arith.cmpi eq, %arg2, %c0_i32_8 : i32
    %10 = arith.extui %9 : i1 to i32
    %c0_i32_9 = arith.constant 0 : i32
    %11 = arith.cmpi ne, %10, %c0_i32_9 : i32
    scf.if %11 {
      %c0_10 = arith.constant 0 : index
      %c0_11 = arith.constant 0 : index
      %12 = vector.load %arg7[%c0_10, %c0_11] : memref<2x256xf32, #tpu.memory_space<vmem>>, vector<2x256xf32>
      %c0_12 = arith.constant 0 : index
      %c0_13 = arith.constant 0 : index
      %13 = vector.load %arg5[%c0_12, %c0_13] : memref<1x256xf32, #tpu.memory_space<vmem>>, vector<1x256xf32>
      %14 = vector.broadcast %13 : vector<1x256xf32> to vector<2x256xf32>
      %15 = arith.addf %12, %14 : vector<2x256xf32>
      %cst_14 = arith.constant 0.000000e+00 : f32
      %16 = vector.broadcast %cst_14 : f32 to vector<2x256xf32>
      %17 = arith.maximumf %15, %16 : vector<2x256xf32>
      %18 = arith.truncf %17 : vector<2x256xf32> to vector<2x256xbf16>
      %c0_15 = arith.constant 0 : index
      %c0_16 = arith.constant 0 : index
      %19 = vector.load %arg6[%c0_15, %c0_16] : memref<2x256xbf16, #tpu.memory_space<vmem>>, vector<2x256xbf16>
      tpu.vector_store %arg6[%c0_15, %c0_16], %18 {strides = array<i32>} : memref<2x256xbf16, #tpu.memory_space<vmem>>, vector<2x256xbf16>,
    } else {
    }
    return
  }
  func.func @transform_0(%arg0: i32, %arg1: i32, %arg2: i32) -> (i32, i32) {
    %c0_i32 = arith.constant 0 : i32
    return %arg0, %arg2 : i32, i32
  }
  func.func @transform_1(%arg0: i32, %arg1: i32, %arg2: i32) -> (i32, i32) {
    %c0_i32 = arith.constant 0 : i32
    return %arg2, %arg1 : i32, i32
  }
  func.func @transform_2(%arg0: i32, %arg1: i32, %arg2: i32) -> (i32, i32) {
    %c0_i32 = arith.constant 0 : i32
    %c0_i32_0 = arith.constant 0 : i32
    return %c0_i32, %arg1 : i32, i32
  }
  func.func @transform_3(%arg0: i32, %arg1: i32, %arg2: i32) -> (i32, i32) {
    %c0_i32 = arith.constant 0 : i32
    return %arg0, %arg1 : i32, i32
  }
}

module attributes {stable_mosaic.version = 11 : i64} {
  func.func @_ego_branch_kernel(%arg0: i32, %arg1: memref<1x5x7xbf16, #tpu.memory_space<vmem>>, %arg2: memref<1x1x5xf32, #tpu.memory_space<vmem>>, %arg3: memref<7x64xbf16, #tpu.memory_space<vmem>>, %arg4: memref<1x64xf32, #tpu.memory_space<vmem>>, %arg5: memref<64x64xbf16, #tpu.memory_space<vmem>>, %arg6: memref<1x64xf32, #tpu.memory_space<vmem>>, %arg7: memref<7x64xbf16, #tpu.memory_space<vmem>>, %arg8: memref<1x64xf32, #tpu.memory_space<vmem>>, %arg9: memref<64x64xbf16, #tpu.memory_space<vmem>>, %arg10: memref<1x64xf32, #tpu.memory_space<vmem>>, %arg11: memref<64x192xbf16, #tpu.memory_space<vmem>>, %arg12: memref<64x64xbf16, #tpu.memory_space<vmem>>, %arg13: memref<1x1x64xf32, #tpu.memory_space<vmem>>) attributes {dimension_semantics = [#tpu.dimension_semantics<parallel>], iteration_bounds = array<i64: 2>, scalar_prefetch = 0 : i64, scratch_operands = 0 : i64, tpu.core_type = #tpu.core_type<tc>, window_params = [{transform_indices = @transform_0, window_bounds = array<i64: 1, 5, 7>}, {transform_indices = @transform_1, window_bounds = array<i64: 1, 1, 5>}, {pipeline_mode = #tpu.pipeline_mode<synchronous>, transform_indices = @transform_2, window_bounds = array<i64: 7, 64>}, {pipeline_mode = #tpu.pipeline_mode<synchronous>, transform_indices = @transform_3, window_bounds = array<i64: 1, 64>}, {pipeline_mode = #tpu.pipeline_mode<synchronous>, transform_indices = @transform_4, window_bounds = array<i64: 64, 64>}, {pipeline_mode = #tpu.pipeline_mode<synchronous>, transform_indices = @transform_5, window_bounds = array<i64: 1, 64>}, {pipeline_mode = #tpu.pipeline_mode<synchronous>, transform_indices = @transform_6, window_bounds = array<i64: 7, 64>}, {pipeline_mode = #tpu.pipeline_mode<synchronous>, transform_indices = @transform_7, window_bounds = array<i64: 1, 64>}, {pipeline_mode = #tpu.pipeline_mode<synchronous>, transform_indices = @transform_8, window_bounds = array<i64: 64, 64>}, {pipeline_mode = #tpu.pipeline_mode<synchronous>, transform_indices = @transform_9, window_bounds = array<i64: 1, 64>}, {pipeline_mode = #tpu.pipeline_mode<synchronous>, transform_indices = @transform_10, window_bounds = array<i64: 64, 192>}, {pipeline_mode = #tpu.pipeline_mode<synchronous>, transform_indices = @transform_11, window_bounds = array<i64: 64, 64>}, {transform_indices = @transform_12, window_bounds = array<i64: 1, 1, 64>}]} {
    %c0 = arith.constant 0 : index
    %c0_0 = arith.constant 0 : index
    %c0_1 = arith.constant 0 : index
    %0 = vector.load %arg1[%c0, %c0_0, %c0_1] : memref<1x5x7xbf16, #tpu.memory_space<vmem>>, vector<1x5x7xbf16>
    %1 = vector.shape_cast %0 : vector<1x5x7xbf16> to vector<5x7xbf16>
    %c0_2 = arith.constant 0 : index
    %c0_3 = arith.constant 0 : index
    %c0_4 = arith.constant 0 : index
    %2 = vector.load %arg2[%c0_2, %c0_3, %c0_4] : memref<1x1x5xf32, #tpu.memory_space<vmem>>, vector<1x1x5xf32>
    %3 = vector.shape_cast %2 : vector<1x1x5xf32> to vector<1x5xf32>
    %4 = vector.extract_strided_slice %1 {offsets = [0, 0], sizes = [1, 7], strides = [1, 1]} : vector<5x7xbf16> to vector<1x7xbf16>
    %c0_5 = arith.constant 0 : index
    %c0_6 = arith.constant 0 : index
    %5 = vector.load %arg3[%c0_5, %c0_6] : memref<7x64xbf16, #tpu.memory_space<vmem>>, vector<7x64xbf16>
    %cst = arith.constant dense<0.000000e+00> : vector<1x64xf32>
    %6 = tpu.matmul %4, %5, %cst {dimension_numbers = #tpu.dot_dimension_numbers<[1], [0], [0], [1], [0, 0, 1, 1], [], []>} : vector<1x7xbf16>, vector<7x64xbf16>, vector<1x64xf32> -> vector<1x64xf32>
    %c0_7 = arith.constant 0 : index
    %c0_8 = arith.constant 0 : index
    %7 = vector.load %arg4[%c0_7, %c0_8] : memref<1x64xf32, #tpu.memory_space<vmem>>, vector<1x64xf32>
    %8 = arith.addf %6, %7 : vector<1x64xf32>
    %cst_9 = arith.constant 0.000000e+00 : f32
    %9 = vector.broadcast %cst_9 : f32 to vector<1x64xf32>
    %10 = arith.maximumf %8, %9 : vector<1x64xf32>
    %11 = arith.truncf %10 : vector<1x64xf32> to vector<1x64xbf16>
    %c0_10 = arith.constant 0 : index
    %c0_11 = arith.constant 0 : index
    %12 = vector.load %arg5[%c0_10, %c0_11] : memref<64x64xbf16, #tpu.memory_space<vmem>>, vector<64x64xbf16>
    %cst_12 = arith.constant dense<0.000000e+00> : vector<1x64xf32>
    %13 = tpu.matmul %11, %12, %cst_12 {dimension_numbers = #tpu.dot_dimension_numbers<[1], [0], [0], [1], [0, 0, 1, 1], [], []>} : vector<1x64xbf16>, vector<64x64xbf16>, vector<1x64xf32> -> vector<1x64xf32>
    %c0_13 = arith.constant 0 : index
    %c0_14 = arith.constant 0 : index
    %14 = vector.load %arg6[%c0_13, %c0_14] : memref<1x64xf32, #tpu.memory_space<vmem>>, vector<1x64xf32>
    %15 = arith.addf %13, %14 : vector<1x64xf32>
    %cst_15 = arith.constant 0.000000e+00 : f32
    %16 = vector.broadcast %cst_15 : f32 to vector<1x64xf32>
    %17 = arith.maximumf %15, %16 : vector<1x64xf32>
    %18 = vector.extract_strided_slice %1 {offsets = [1, 0], sizes = [4, 7], strides = [1, 1]} : vector<5x7xbf16> to vector<4x7xbf16>
    %c0_16 = arith.constant 0 : index
    %c0_17 = arith.constant 0 : index
    %19 = vector.load %arg7[%c0_16, %c0_17] : memref<7x64xbf16, #tpu.memory_space<vmem>>, vector<7x64xbf16>
    %cst_18 = arith.constant dense<0.000000e+00> : vector<4x64xf32>
    %20 = tpu.matmul %18, %19, %cst_18 {dimension_numbers = #tpu.dot_dimension_numbers<[1], [0], [0], [1], [0, 0, 1, 1], [], []>} : vector<4x7xbf16>, vector<7x64xbf16>, vector<4x64xf32> -> vector<4x64xf32>
    %c0_19 = arith.constant 0 : index
    %c0_20 = arith.constant 0 : index
    %21 = vector.load %arg8[%c0_19, %c0_20] : memref<1x64xf32, #tpu.memory_space<vmem>>, vector<1x64xf32>
    %22 = vector.broadcast %21 : vector<1x64xf32> to vector<4x64xf32>
    %23 = arith.addf %20, %22 : vector<4x64xf32>
    %cst_21 = arith.constant 0.000000e+00 : f32
    %24 = vector.broadcast %cst_21 : f32 to vector<4x64xf32>
    %25 = arith.maximumf %23, %24 : vector<4x64xf32>
    %26 = arith.truncf %25 : vector<4x64xf32> to vector<4x64xbf16>
    %c0_22 = arith.constant 0 : index
    %c0_23 = arith.constant 0 : index
    %27 = vector.load %arg9[%c0_22, %c0_23] : memref<64x64xbf16, #tpu.memory_space<vmem>>, vector<64x64xbf16>
    %cst_24 = arith.constant dense<0.000000e+00> : vector<4x64xf32>
    %28 = tpu.matmul %26, %27, %cst_24 {dimension_numbers = #tpu.dot_dimension_numbers<[1], [0], [0], [1], [0, 0, 1, 1], [], []>} : vector<4x64xbf16>, vector<64x64xbf16>, vector<4x64xf32> -> vector<4x64xf32>
    %c0_25 = arith.constant 0 : index
    %c0_26 = arith.constant 0 : index
    %29 = vector.load %arg10[%c0_25, %c0_26] : memref<1x64xf32, #tpu.memory_space<vmem>>, vector<1x64xf32>
    %30 = vector.broadcast %29 : vector<1x64xf32> to vector<4x64xf32>
    %31 = arith.addf %28, %30 : vector<4x64xf32>
    %cst_27 = arith.constant 0.000000e+00 : f32
    %32 = vector.broadcast %cst_27 : f32 to vector<4x64xf32>
    %33 = arith.maximumf %31, %32 : vector<4x64xf32>
    %34 = tpu.concatenate %17, %33 in 0 : vector<1x64xf32>, vector<4x64xf32> -> vector<5x64xf32>
    %35 = arith.truncf %34 : vector<5x64xf32> to vector<5x64xbf16>
    %c0_28 = arith.constant 0 : index
    %c0_29 = arith.constant 0 : index
    %36 = vector.load %arg11[%c0_28, %c0_29] : memref<64x192xbf16, #tpu.memory_space<vmem>>, vector<64x192xbf16>
    %cst_30 = arith.constant dense<0.000000e+00> : vector<5x192xf32>
    %37 = tpu.matmul %35, %36, %cst_30 {dimension_numbers = #tpu.dot_dimension_numbers<[1], [0], [0], [1], [0, 0, 1, 1], [], []>} : vector<5x64xbf16>, vector<64x192xbf16>, vector<5x192xf32> -> vector<5x192xf32>
    %38 = vector.extract_strided_slice %37 {offsets = [0, 0], sizes = [5, 32], strides = [1, 1]} : vector<5x192xf32> to vector<5x32xf32>
    %39 = vector.extract_strided_slice %37 {offsets = [0, 64], sizes = [5, 32], strides = [1, 1]} : vector<5x192xf32> to vector<5x32xf32>
    %40 = vector.extract_strided_slice %37 {offsets = [0, 128], sizes = [1, 32], strides = [1, 1]} : vector<5x192xf32> to vector<1x32xf32>
    %cst_31 = arith.constant dense<0.000000e+00> : vector<1x5xf32>
    %41 = tpu.matmul %40, %38, %cst_31 {dimension_numbers = #tpu.dot_dimension_numbers<[1], [1], [0], [0], [0, 0, 1, 0], [], []>} : vector<1x32xf32>, vector<5x32xf32>, vector<1x5xf32> -> vector<1x5xf32>
    %cst_32 = arith.constant 0.176776692 : f32
    %42 = vector.broadcast %cst_32 : f32 to vector<1x5xf32>
    %43 = arith.mulf %41, %42 : vector<1x5xf32>
    %cst_33 = arith.constant 5.000000e-01 : f32
    %44 = vector.broadcast %cst_33 : f32 to vector<1x5xf32>
    %45 = arith.cmpf ogt, %3, %44 : vector<1x5xf32>
    %cst_34 = arith.constant -1.000000e+09 : f32
    %46 = vector.broadcast %cst_34 : f32 to vector<1x5xf32>
    %47 = arith.select %45, %46, %43 : vector<1x5xi1>, vector<1x5xf32>
    %cst_35 = arith.constant dense<0xFF800000> : vector<1xf32>
    %48 = vector.multi_reduction <maximumf>, %47, %cst_35 [1] : vector<1x5xf32> to vector<1xf32>
    %49 = vector.shape_cast %48 : vector<1xf32> to vector<1x1xf32>
    %50 = vector.broadcast %49 : vector<1x1xf32> to vector<1x5xf32>
    %51 = arith.subf %47, %50 : vector<1x5xf32>
    %52 = math.exp %51 : vector<1x5xf32>
    %cst_36 = arith.constant dense<0.000000e+00> : vector<1xf32>
    %53 = vector.multi_reduction <add>, %52, %cst_36 [1] : vector<1x5xf32> to vector<1xf32>
    %54 = vector.shape_cast %53 : vector<1xf32> to vector<1x1xf32>
    %55 = vector.broadcast %54 : vector<1x1xf32> to vector<1x5xf32>
    %56 = arith.divf %52, %55 : vector<1x5xf32>
    %cst_37 = arith.constant dense<0.000000e+00> : vector<1x32xf32>
    %57 = tpu.matmul %56, %39, %cst_37 {dimension_numbers = #tpu.dot_dimension_numbers<[1], [0], [0], [1], [0, 0, 1, 1], [], []>} : vector<1x5xf32>, vector<5x32xf32>, vector<1x32xf32> -> vector<1x32xf32>
    %58 = vector.extract_strided_slice %37 {offsets = [0, 32], sizes = [5, 32], strides = [1, 1]} : vector<5x192xf32> to vector<5x32xf32>
    %59 = vector.extract_strided_slice %37 {offsets = [0, 96], sizes = [5, 32], strides = [1, 1]} : vector<5x192xf32> to vector<5x32xf32>
    %60 = vector.extract_strided_slice %37 {offsets = [0, 160], sizes = [1, 32], strides = [1, 1]} : vector<5x192xf32> to vector<1x32xf32>
    %cst_38 = arith.constant dense<0.000000e+00> : vector<1x5xf32>
    %61 = tpu.matmul %60, %58, %cst_38 {dimension_numbers = #tpu.dot_dimension_numbers<[1], [1], [0], [0], [0, 0, 1, 0], [], []>} : vector<1x32xf32>, vector<5x32xf32>, vector<1x5xf32> -> vector<1x5xf32>
    %cst_39 = arith.constant 0.176776692 : f32
    %62 = vector.broadcast %cst_39 : f32 to vector<1x5xf32>
    %63 = arith.mulf %61, %62 : vector<1x5xf32>
    %cst_40 = arith.constant 5.000000e-01 : f32
    %64 = vector.broadcast %cst_40 : f32 to vector<1x5xf32>
    %65 = arith.cmpf ogt, %3, %64 : vector<1x5xf32>
    %cst_41 = arith.constant -1.000000e+09 : f32
    %66 = vector.broadcast %cst_41 : f32 to vector<1x5xf32>
    %67 = arith.select %65, %66, %63 : vector<1x5xi1>, vector<1x5xf32>
    %cst_42 = arith.constant dense<0xFF800000> : vector<1xf32>
    %68 = vector.multi_reduction <maximumf>, %67, %cst_42 [1] : vector<1x5xf32> to vector<1xf32>
    %69 = vector.shape_cast %68 : vector<1xf32> to vector<1x1xf32>
    %70 = vector.broadcast %69 : vector<1x1xf32> to vector<1x5xf32>
    %71 = arith.subf %67, %70 : vector<1x5xf32>
    %72 = math.exp %71 : vector<1x5xf32>
    %cst_43 = arith.constant dense<0.000000e+00> : vector<1xf32>
    %73 = vector.multi_reduction <add>, %72, %cst_43 [1] : vector<1x5xf32> to vector<1xf32>
    %74 = vector.shape_cast %73 : vector<1xf32> to vector<1x1xf32>
    %75 = vector.broadcast %74 : vector<1x1xf32> to vector<1x5xf32>
    %76 = arith.divf %72, %75 : vector<1x5xf32>
    %cst_44 = arith.constant dense<0.000000e+00> : vector<1x32xf32>
    %77 = tpu.matmul %76, %59, %cst_44 {dimension_numbers = #tpu.dot_dimension_numbers<[1], [0], [0], [1], [0, 0, 1, 1], [], []>} : vector<1x5xf32>, vector<5x32xf32>, vector<1x32xf32> -> vector<1x32xf32>
    %78 = tpu.concatenate %57, %77 in 1 : vector<1x32xf32>, vector<1x32xf32> -> vector<1x64xf32>
    %79 = arith.truncf %78 : vector<1x64xf32> to vector<1x64xbf16>
    %c0_45 = arith.constant 0 : index
    %c0_46 = arith.constant 0 : index
    %80 = vector.load %arg12[%c0_45, %c0_46] : memref<64x64xbf16, #tpu.memory_space<vmem>>, vector<64x64xbf16>
    %cst_47 = arith.constant dense<0.000000e+00> : vector<1x64xf32>
    %81 = tpu.matmul %79, %80, %cst_47 {dimension_numbers = #tpu.dot_dimension_numbers<[1], [0], [0], [1], [0, 0, 1, 1], [], []>} : vector<1x64xbf16>, vector<64x64xbf16>, vector<1x64xf32> -> vector<1x64xf32>
    %82 = arith.addf %81, %17 : vector<1x64xf32>
    %cst_48 = arith.constant 5.000000e-01 : f32
    %83 = vector.broadcast %cst_48 : f32 to vector<1x64xf32>
    %84 = arith.mulf %82, %83 : vector<1x64xf32>
    %c0_49 = arith.constant 0 : index
    %c0_50 = arith.constant 0 : index
    %c0_51 = arith.constant 0 : index
    %85 = vector.load %arg13[%c0_49, %c0_50, %c0_51] : memref<1x1x64xf32, #tpu.memory_space<vmem>>, vector<1x1x64xf32>
    %86 = vector.shape_cast %85 : vector<1x1x64xf32> to vector<1x64xf32>
    %87 = vector.shape_cast %84 : vector<1x64xf32> to vector<1x1x64xf32>
    tpu.vector_store %arg13[%c0_49, %c0_50, %c0_51], %87 {strides = array<i32>} : memref<1x1x64xf32, #tpu.memory_space<vmem>>, vector<1x1x64xf32>,
    return
  }
  func.func @transform_0(%arg0: i32) -> (i32, i32, i32) {
    %c0_i32 = arith.constant 0 : i32
    %c0_i32_0 = arith.constant 0 : i32
    %c0_i32_1 = arith.constant 0 : i32
    return %arg0, %c0_i32, %c0_i32_0 : i32, i32, i32
  }
  func.func @transform_1(%arg0: i32) -> (i32, i32, i32) {
    %c0_i32 = arith.constant 0 : i32
    %c0_i32_0 = arith.constant 0 : i32
    %c0_i32_1 = arith.constant 0 : i32
    return %arg0, %c0_i32, %c0_i32_0 : i32, i32, i32
  }
  func.func @transform_2(%arg0: i32) -> (i32, i32) {
    %c0_i32 = arith.constant 0 : i32
    %c0_i32_0 = arith.constant 0 : i32
    %c0_i32_1 = arith.constant 0 : i32
    return %c0_i32, %c0_i32_0 : i32, i32
  }
  func.func @transform_3(%arg0: i32) -> (i32, i32) {
    %c0_i32 = arith.constant 0 : i32
    %c0_i32_0 = arith.constant 0 : i32
    %c0_i32_1 = arith.constant 0 : i32
    return %c0_i32, %c0_i32_0 : i32, i32
  }
  func.func @transform_4(%arg0: i32) -> (i32, i32) {
    %c0_i32 = arith.constant 0 : i32
    %c0_i32_0 = arith.constant 0 : i32
    %c0_i32_1 = arith.constant 0 : i32
    return %c0_i32, %c0_i32_0 : i32, i32
  }
  func.func @transform_5(%arg0: i32) -> (i32, i32) {
    %c0_i32 = arith.constant 0 : i32
    %c0_i32_0 = arith.constant 0 : i32
    %c0_i32_1 = arith.constant 0 : i32
    return %c0_i32, %c0_i32_0 : i32, i32
  }
  func.func @transform_6(%arg0: i32) -> (i32, i32) {
    %c0_i32 = arith.constant 0 : i32
    %c0_i32_0 = arith.constant 0 : i32
    %c0_i32_1 = arith.constant 0 : i32
    return %c0_i32, %c0_i32_0 : i32, i32
  }
  func.func @transform_7(%arg0: i32) -> (i32, i32) {
    %c0_i32 = arith.constant 0 : i32
    %c0_i32_0 = arith.constant 0 : i32
    %c0_i32_1 = arith.constant 0 : i32
    return %c0_i32, %c0_i32_0 : i32, i32
  }
  func.func @transform_8(%arg0: i32) -> (i32, i32) {
    %c0_i32 = arith.constant 0 : i32
    %c0_i32_0 = arith.constant 0 : i32
    %c0_i32_1 = arith.constant 0 : i32
    return %c0_i32, %c0_i32_0 : i32, i32
  }
  func.func @transform_9(%arg0: i32) -> (i32, i32) {
    %c0_i32 = arith.constant 0 : i32
    %c0_i32_0 = arith.constant 0 : i32
    %c0_i32_1 = arith.constant 0 : i32
    return %c0_i32, %c0_i32_0 : i32, i32
  }
  func.func @transform_10(%arg0: i32) -> (i32, i32) {
    %c0_i32 = arith.constant 0 : i32
    %c0_i32_0 = arith.constant 0 : i32
    %c0_i32_1 = arith.constant 0 : i32
    return %c0_i32, %c0_i32_0 : i32, i32
  }
  func.func @transform_11(%arg0: i32) -> (i32, i32) {
    %c0_i32 = arith.constant 0 : i32
    %c0_i32_0 = arith.constant 0 : i32
    %c0_i32_1 = arith.constant 0 : i32
    return %c0_i32, %c0_i32_0 : i32, i32
  }
  func.func @transform_12(%arg0: i32) -> (i32, i32, i32) {
    %c0_i32 = arith.constant 0 : i32
    %c0_i32_0 = arith.constant 0 : i32
    %c0_i32_1 = arith.constant 0 : i32
    return %arg0, %c0_i32, %c0_i32_0 : i32, i32, i32
  }
}

module attributes {stable_mosaic.version = 11 : i64} {
  func.func @_linear_kernel(%arg0: i32, %arg1: i32, %arg2: i32, %arg3: memref<2x512xbf16, #tpu.memory_space<vmem>>, %arg4: memref<512x5xbf16, #tpu.memory_space<vmem>>, %arg5: memref<1x5xf32, #tpu.memory_space<vmem>>, %arg6: memref<2x5xf32, #tpu.memory_space<vmem>>, %arg7: memref<2x5xf32, #tpu.memory_space<vmem>>) attributes {dimension_semantics = [#tpu.dimension_semantics<parallel>, #tpu.dimension_semantics<parallel>, #tpu.dimension_semantics<arbitrary>], iteration_bounds = array<i64: 1, 1, 1>, scalar_prefetch = 0 : i64, scratch_operands = 1 : i64, tpu.core_type = #tpu.core_type<tc>, window_params = [{transform_indices = @transform_0, window_bounds = array<i64: 2, 512>}, {transform_indices = @transform_1, window_bounds = array<i64: 512, 5>}, {transform_indices = @transform_2, window_bounds = array<i64: 1, 5>}, {transform_indices = @transform_3, window_bounds = array<i64: 2, 5>}]} {
    %c0_i32 = arith.constant 0 : i32
    %0 = arith.cmpi eq, %arg2, %c0_i32 : i32
    %1 = arith.extui %0 : i1 to i32
    %c0_i32_0 = arith.constant 0 : i32
    %2 = arith.cmpi ne, %1, %c0_i32_0 : i32
    scf.if %2 {
      %cst_10 = arith.constant 0.000000e+00 : f32
      %12 = vector.broadcast %cst_10 : f32 to vector<2x5xf32>
      %c0_11 = arith.constant 0 : index
      %c0_12 = arith.constant 0 : index
      %13 = vector.load %arg7[%c0_11, %c0_12] : memref<2x5xf32, #tpu.memory_space<vmem>>, vector<2x5xf32>
      tpu.vector_store %arg7[%c0_11, %c0_12], %12 {strides = array<i32>} : memref<2x5xf32, #tpu.memory_space<vmem>>, vector<2x5xf32>,
    } else {
    }
    %c0 = arith.constant 0 : index
    %c0_1 = arith.constant 0 : index
    %3 = vector.load %arg7[%c0, %c0_1] : memref<2x5xf32, #tpu.memory_space<vmem>>, vector<2x5xf32>
    %c0_2 = arith.constant 0 : index
    %c0_3 = arith.constant 0 : index
    %4 = vector.load %arg3[%c0_2, %c0_3] : memref<2x512xbf16, #tpu.memory_space<vmem>>, vector<2x512xbf16>
    %c0_4 = arith.constant 0 : index
    %c0_5 = arith.constant 0 : index
    %5 = vector.load %arg4[%c0_4, %c0_5] : memref<512x5xbf16, #tpu.memory_space<vmem>>, vector<512x5xbf16>
    %cst = arith.constant dense<0.000000e+00> : vector<2x5xf32>
    %6 = tpu.matmul %4, %5, %cst {dimension_numbers = #tpu.dot_dimension_numbers<[1], [0], [0], [1], [0, 0, 1, 1], [], []>} : vector<2x512xbf16>, vector<512x5xbf16>, vector<2x5xf32> -> vector<2x5xf32>
    %7 = arith.addf %3, %6 : vector<2x5xf32>
    %c0_6 = arith.constant 0 : index
    %c0_7 = arith.constant 0 : index
    %8 = vector.load %arg7[%c0_6, %c0_7] : memref<2x5xf32, #tpu.memory_space<vmem>>, vector<2x5xf32>
    tpu.vector_store %arg7[%c0_6, %c0_7], %7 {strides = array<i32>} : memref<2x5xf32, #tpu.memory_space<vmem>>, vector<2x5xf32>,
    %c0_i32_8 = arith.constant 0 : i32
    %9 = arith.cmpi eq, %arg2, %c0_i32_8 : i32
    %10 = arith.extui %9 : i1 to i32
    %c0_i32_9 = arith.constant 0 : i32
    %11 = arith.cmpi ne, %10, %c0_i32_9 : i32
    scf.if %11 {
      %c0_10 = arith.constant 0 : index
      %c0_11 = arith.constant 0 : index
      %12 = vector.load %arg7[%c0_10, %c0_11] : memref<2x5xf32, #tpu.memory_space<vmem>>, vector<2x5xf32>
      %c0_12 = arith.constant 0 : index
      %c0_13 = arith.constant 0 : index
      %13 = vector.load %arg5[%c0_12, %c0_13] : memref<1x5xf32, #tpu.memory_space<vmem>>, vector<1x5xf32>
      %14 = vector.broadcast %13 : vector<1x5xf32> to vector<2x5xf32>
      %15 = arith.addf %12, %14 : vector<2x5xf32>
      %c0_14 = arith.constant 0 : index
      %c0_15 = arith.constant 0 : index
      %16 = vector.load %arg6[%c0_14, %c0_15] : memref<2x5xf32, #tpu.memory_space<vmem>>, vector<2x5xf32>
      tpu.vector_store %arg6[%c0_14, %c0_15], %15 {strides = array<i32>} : memref<2x5xf32, #tpu.memory_space<vmem>>, vector<2x5xf32>,
    } else {
    }
    return
  }
  func.func @transform_0(%arg0: i32, %arg1: i32, %arg2: i32) -> (i32, i32) {
    %c0_i32 = arith.constant 0 : i32
    return %arg0, %arg2 : i32, i32
  }
  func.func @transform_1(%arg0: i32, %arg1: i32, %arg2: i32) -> (i32, i32) {
    %c0_i32 = arith.constant 0 : i32
    return %arg2, %arg1 : i32, i32
  }
  func.func @transform_2(%arg0: i32, %arg1: i32, %arg2: i32) -> (i32, i32) {
    %c0_i32 = arith.constant 0 : i32
    %c0_i32_0 = arith.constant 0 : i32
    return %c0_i32, %arg1 : i32, i32
  }
  func.func @transform_3(%arg0: i32, %arg1: i32, %arg2: i32) -> (i32, i32) {
    %c0_i32 = arith.constant 0 : i32
    return %arg0, %arg1 : i32, i32
  }
}

</mosaic_0001>

<llo_original>
// kernel: forward.10
$region0: #{forward.10}
  #allocation0 [shape = 'u32[]', space=smem, size = 0x4, offset = 0x4, fixed_abs, tag = 'smem constant byte address 0x4 - core index']
  #allocation1 [shape = 'u32[144,128]{1,0:T(1,128)}', space=vmem, size = 0x12000, scoped, tag = 'internal scratch']
  #allocation2 [shape = 'f32[32,256]{1,0:T(8,128)}', space=vmem, size = 0x8000, scoped, tag = 'scratch operand']
  %s0 = inlined_call_operand.vmem [shape: bf16[32,256], index: 0, kind: input, shape index: {}]
  %s1 = inlined_call_operand.vmem [shape: bf16[256,450], index: 1, kind: input, shape index: {}]
  %s2 = inlined_call_operand.vmem [shape: f32[32,1], index: 2, kind: input, shape index: {}]
  %s3 = inlined_call_operand.vmem [shape: bf16[32,450], index: 3, kind: output, shape index: {}]
  %s4 = sld [smem:[#allocation0]]
  $region125: #{forward.10} parent=0
    _
  %s6 = ssub.s32 1, %s4
  %s7 = scalar_select 0, %s6, %s4
  $region1: #{forward.10} parent=0
    #allocation3 [shape = 'u8[262144]{0}', space=vmem, size = 0x40000, scoped, tag = 'input window, operand 1']
    #allocation4 [shape = 'u8[32768]{0}', space=vmem, size = 0x8000, scoped, tag = 'output window, operand 0']
    loop: start=0, step=1, limit=4
    $region2: #{forward.10} parent=1 // loop_pre_header
      _
    $region3: #{forward.10} parent=1 // loop_header
      %s9 = sphi 0, %s13
      %p10 = scmp.ge.s32.totalorder %s9, 4
      %s16 = sphi 0, %s35
      %s17 = sphi 0, %s31
      %s18 = sphi 0, %s27
      %s19 = sphi 0, %s16
      %s20 = sphi 0, %s17
      %s21 = sphi 0, %s18
      %s22 = sphi 0, %s19
      %s23 = sphi 0, %s20
      %s24 = sphi 0, %s21
      %s40 = sphi 0, %s42
      %s43 = sphi 0, %s40
      %s44 = sphi 0, %s43
      %s60 = sphi 0, %s44
      %s68 = sphi 0, %s70
      %s71 = sphi 0, %s68
      %s72 = sphi 0, %s71
      %s88 = sphi 0, %s72
      %s94 = sphi 0, %s96
      %s97 = sphi 0, %s94
      %s98 = sphi 0, %s97
      %s114 = sphi 0, %s98
      %s122 = sphi 0, %s124
      %s125 = sphi 0, %s122
      %s126 = sphi 0, %s125
      %s142 = sphi 0, %s126
    $region4: #{forward.10} parent=1 // loop_header_branch
      %12 = sbr.rel (%p10) target = $region8
    $region5: #{forward.10} parent=1 // loop_body
      %s14 = ssub.s32 %s9, 1
      %s15 = ssub.s32 %s9, 2
      %s25 = sadd.s32 1, %s18
      %p26 = scmp.ge.s32.totalorder %s25, 1
      %s27 = scalar_select %p26, 0, %s25
      %s28 = sadd.s32 1, %s17
      %s29 = scalar_select %p26, %s28, %s17
      %p30 = scmp.ge.s32.totalorder %s29, 2
      %s31 = scalar_select %p30, 0, %s29
      %s32 = sadd.s32 1, %s16
      %s33 = scalar_select %p30, %s32, %s16
      %p34 = scmp.ge.s32.totalorder %s33, 1
      %s35 = scalar_select %p34, 0, %s33
      %s36 = ssub.s32 %s16, %s35
      %s37 = ssub.s32 %s18, %s27
      %s38 = sor.u32 %s36, %s37
      %p39 = scmp.eq.s32.totalorder %s38, 0
      %s41 = sadd.s32 %s40, 1
      %s42 = scalar_select %p39, %s40, %s41
      %p45 = pneg %p39
      %p46 = scmp.eq.s32.totalorder %s9, 1
      %p47 = por %p45, %p46
      %p48 = scmp.ne.s32.totalorder %s40, %s43
      %p49 = scmp.eq.s32.totalorder %s9, 0
      %p50 = por %p48, %p49
      %p51 = scmp.ne.s32.totalorder %s40, %s43
      %p52 = scmp.eq.s32.totalorder %s14, 1
      %p53 = por %p51, %p52
      %p54 = scmp.ne.s32.totalorder %s43, %s44
      %p55 = scmp.eq.s32.totalorder %s14, 0
      %p56 = por %p54, %p55
      %p57 = scmp.ne.s32.totalorder %s43, %s44
      %p58 = scmp.eq.s32.totalorder %s15, 1
      %p59 = por %p57, %p58
      %p61 = scmp.ne.s32.totalorder %s44, %s60
      %p62 = scmp.eq.s32.totalorder %s15, 0
      %p63 = por %p61, %p62
      %s64 = ssub.s32 %s18, %s27
      %s65 = ssub.s32 %s17, %s31
      %s66 = sor.u32 %s64, %s65
      %p67 = scmp.eq.s32.totalorder %s66, 0
      %s69 = sadd.s32 %s68, 1
      %s70 = scalar_select %p67, %s68, %s69
      %p73 = pneg %p67
      %p74 = scmp.eq.s32.totalorder %s9, 1
      %p75 = por %p73, %p74
      %p76 = scmp.ne.s32.totalorder %s68, %s71
      %p77 = scmp.eq.s32.totalorder %s9, 0
      %p78 = por %p76, %p77
      %p79 = scmp.ne.s32.totalorder %s68, %s71
      %p80 = scmp.eq.s32.totalorder %s14, 1
      %p81 = por %p79, %p80
      %p82 = scmp.ne.s32.totalorder %s71, %s72
      %p83 = scmp.eq.s32.totalorder %s14, 0
      %p84 = por %p82, %p83
      %p85 = scmp.ne.s32.totalorder %s71, %s72
      %p86 = scmp.eq.s32.totalorder %s15, 1
      %p87 = por %p85, %p86
      %p89 = scmp.ne.s32.totalorder %s72, %s88
      %p90 = scmp.eq.s32.totalorder %s15, 0
      %p91 = por %p89, %p90
      %s92 = ssub.s32 %s16, %s35
      %p93 = scmp.eq.s32.totalorder %s92, 0
      %s95 = sadd.s32 %s94, 1
      %s96 = scalar_select %p93, %s94, %s95
      %p99 = pneg %p93
      %p100 = scmp.eq.s32.totalorder %s9, 1
      %p101 = por %p99, %p100
      %p102 = scmp.ne.s32.totalorder %s94, %s97
      %p103 = scmp.eq.s32.totalorder %s9, 0
      %p104 = por %p102, %p103
      %p105 = scmp.ne.s32.totalorder %s94, %s97
      %p106 = scmp.eq.s32.totalorder %s14, 1
      %p107 = por %p105, %p106
      %p108 = scmp.ne.s32.totalorder %s97, %s98
      %p109 = scmp.eq.s32.totalorder %s14, 0
      %p110 = por %p108, %p109
      %p111 = scmp.ne.s32.totalorder %s97, %s98
      %p112 = scmp.eq.s32.totalorder %s15, 1
      %p113 = por %p111, %p112
      %p115 = scmp.ne.s32.totalorder %s98, %s114
      %p116 = scmp.eq.s32.totalorder %s15, 0
      %p117 = por %p115, %p116
      %s118 = ssub.s32 %s16, %s35
      %s119 = ssub.s32 %s17, %s31
      %s120 = sor.u32 %s118, %s119
      %p121 = scmp.eq.s32.totalorder %s120, 0
      %s123 = sadd.s32 %s122, 1
      %s124 = scalar_select %p121, %s122, %s123
      %p127 = pneg %p121
      %p128 = scmp.eq.s32.totalorder %s9, 1
      %p129 = por %p127, %p128
      %p130 = scmp.ne.s32.totalorder %s122, %s125
      %p131 = scmp.eq.s32.totalorder %s9, 0
      %p132 = por %p130, %p131
      %p133 = scmp.ne.s32.totalorder %s122, %s125
      %p134 = scmp.eq.s32.totalorder %s14, 1
      %p135 = por %p133, %p134
      %p136 = scmp.ne.s32.totalorder %s125, %s126
      %p137 = scmp.eq.s32.totalorder %s14, 0
      %p138 = por %p136, %p137
      %p139 = scmp.ne.s32.totalorder %s125, %s126
      %p140 = scmp.eq.s32.totalorder %s15, 1
      %p141 = por %p139, %p140
      %p143 = scmp.ne.s32.totalorder %s126, %s142
      %p144 = scmp.eq.s32.totalorder %s15, 0
      %p145 = por %p143, %p144
      %p146 = scmp.le.s32.totalorder 1, %s9
      %p147 = scmp.lt.s32.totalorder %s9, 3
      %p148 = pnand %p146, %p147
      %p149 = pneg %p148
      // Predicated region
      $region9: #{forward.10} parent=5 // pred_check
        _
      $region10: #{forward.10} parent=5 // pred_check_branch
        %151 = sbr.rel (%p148) target = $region12
      $region11: #{forward.10} parent=5 // pred_region
        %s152 = ssub.s32 %s9, 1
        // Predicated region
        $region13: #{forward.10} parent=11 // pred_check
          %p153 = pneg %p56
        $region14: #{forward.10} parent=11 // pred_check_branch
          %155 = sbr.rel (%p153) target = $region16
        $region15: #{forward.10} parent=11 // pred_region
          %s156 = smul.u32 4, %s19
          %s157 = smul.u32 2, %s21
          %p158 = scmp.lt.s32.totalorder %s156, 3
          %s159 = scalar_select %p158, %s156, 3
          %p160 = scmp.lt.s32.totalorder %s157, 1
          %s161 = scalar_select %p160, %s157, 1
          %s162 = smul.addr %s159, 2
          %s163 = sadd.s32 %s161, %s162
          %s164 = smul.addr %s163, 4
          %s165 = scalar_lea.vmem %s0, %s164
          %s166 = smul.u32 4, %s19
          %s167 = smul.u32 2, %s21
        $region16: #{forward.10} parent=11 // pred_fallthru
          _
        // Predicated region
        $region17: #{forward.10} parent=11 // pred_check
          %p168 = pneg %p110
        $region18: #{forward.10} parent=11 // pred_check_branch
          %170 = sbr.rel (%p168) target = $region20
        $region19: #{forward.10} parent=11 // pred_region
          %s171 = smul.u32 4, %s19
          %p172 = scmp.lt.s32.totalorder %s171, 3
          %s173 = scalar_select %p172, %s171, 3
          %s174 = smul.addr %s173, 8
          %s175 = scalar_lea.vmem %s2, %s174
          %s176 = smul.u32 4, %s19
        $region20: #{forward.10} parent=11 // pred_fallthru
          _
      $region12: #{forward.10} parent=5 // pred_fallthru
        _
      %p177 = scmp.lt.s32.totalorder %s9, 2
      // Predicated region
      $region21: #{forward.10} parent=5 // pred_check
        %p178 = pneg %p177
      $region22: #{forward.10} parent=5 // pred_check_branch
        %180 = sbr.rel (%p178) target = $region24
      $region23: #{forward.10} parent=5 // pred_region
        // Predicated region
        $region25: #{forward.10} parent=23 // pred_check
          %p181 = pneg %p78
        $region26: #{forward.10} parent=23 // pred_check_branch
          %183 = sbr.rel (%p181) target = $region28
        $region27: #{forward.10} parent=23 // pred_region
          %s184 = sand.u32 %s68, 1
          %s185 = sand.u32 %s68, 1
          %s186 = smul.addr %s185, 256
          %s187 = scalar_lea.vmem [#allocation3], %s186
          %s188 = smul.u32 32, %s18
          %s189 = smul.u32 2, %s17
          %s190 = smul.addr %s188, 4
          %s191 = sadd.s32 %s189, %s190
          %s192 = smul.addr %s191, 4
          %s193 = scalar_lea.vmem %s1, %s192
          // Predicated region
          $region29: #{forward.10} parent=27 // pred_check
            _
          $region30: #{forward.10} parent=27 // pred_check_branch
            %195 = sbr.rel (0) target = $region32
          $region31: #{forward.10} parent=27 // pred_region
            // Predicated region
            $region33: #{forward.10} parent=31 // pred_check
              _
            $region34: #{forward.10} parent=31 // pred_check_branch
              %197 = sbr.rel (0) target = $region36
            $region35: #{forward.10} parent=31 // pred_region
              // Predicated region
              $region48: #{forward.10} parent=35 // pred_check
                _
              $region49: #{forward.10} parent=35 // pred_check_branch
                %274 = sbr.rel (0) target = $region51
              $region50: #{forward.10} parent=35 // pred_region
                loop: start=0, step=1, limit=1
                $region52: #{forward.10} parent=50 // loop_pre_header
                  _
                $region53: #{forward.10} parent=50 // loop_header
                  %s276 = sphi 0, %s280
                  %p277 = scmp.ge.s32.totalorder %s276, 1
                  %s281 = sphi %s193, %s193
                  %s282 = sphi %s187, %s187
                $region54: #{forward.10} parent=50 // loop_header_branch
                  %279 = sbr.rel (%p277) target = $region58
                $region55: #{forward.10} parent=50 // loop_body
                  %v283 = vld [vmem:[%s281] sm:$0xff]
                  %284 = vst [vmem:[%s282] sm:$0xff] %v283
                  %v285 = vld [vmem:[%s281 + $0x10] sm:$0xff]
                  %286 = vst [vmem:[%s282 + $0x8] sm:$0xff] %v285
                  %v287 = vld [vmem:[%s281 + $0x20] sm:$0xff]
                  %288 = vst [vmem:[%s282 + $0x10] sm:$0xff] %v287
                  %v289 = vld [vmem:[%s281 + $0x30] sm:$0xff]
                  %290 = vst [vmem:[%s282 + $0x18] sm:$0xff] %v289
                  %v291 = vld [vmem:[%s281 + $0x40] sm:$0xff]
                  %292 = vst [vmem:[%s282 + $0x20] sm:$0xff] %v291
                  %v293 = vld [vmem:[%s281 + $0x50] sm:$0xff]
                  %294 = vst [vmem:[%s282 + $0x28] sm:$0xff] %v293
                  %v295 = vld [vmem:[%s281 + $0x60] sm:$0xff]
                  %296 = vst [vmem:[%s282 + $0x30] sm:$0xff] %v295
                  %v297 = vld [vmem:[%s281 + $0x70] sm:$0xff]
                  %298 = vst [vmem:[%s282 + $0x38] sm:$0xff] %v297
                  %v299 = vld [vmem:[%s281 + $0x80] sm:$0xff]
                  %300 = vst [vmem:[%s282 + $0x40] sm:$0xff] %v299
                  %v301 = vld [vmem:[%s281 + $0x90] sm:$0xff]
                  %302 = vst [vmem:[%s282 + $0x48] sm:$0xff] %v301
                  %v303 = vld [vmem:[%s281 + $0xa0] sm:$0xff]
                  %304 = vst [vmem:[%s282 + $0x50] sm:$0xff] %v303
                  %v305 = vld [vmem:[%s281 + $0xb0] sm:$0xff]
                  %306 = vst [vmem:[%s282 + $0x58] sm:$0xff] %v305
                  %v307 = vld [vmem:[%s281 + $0xc0] sm:$0xff]
                  %308 = vst [vmem:[%s282 + $0x60] sm:$0xff] %v307
                  %v309 = vld [vmem:[%s281 + $0xd0] sm:$0xff]
                  %310 = vst [vmem:[%s282 + $0x68] sm:$0xff] %v309
                  %v311 = vld [vmem:[%s281 + $0xe0] sm:$0xff]
                  %312 = vst [vmem:[%s282 + $0x70] sm:$0xff] %v311
                  %v313 = vld [vmem:[%s281 + $0xf0] sm:$0xff]
                  %314 = vst [vmem:[%s282 + $0x78] sm:$0xff] %v313
                  %v315 = vld [vmem:[%s281 + $0x100] sm:$0xff]
                  %316 = vst [vmem:[%s282 + $0x80] sm:$0xff] %v315
                  %v317 = vld [vmem:[%s281 + $0x110] sm:$0xff]
                  %318 = vst [vmem:[%s282 + $0x88] sm:$0xff] %v317
                  %v319 = vld [vmem:[%s281 + $0x120] sm:$0xff]
                  %320 = vst [vmem:[%s282 + $0x90] sm:$0xff] %v319
                  %v321 = vld [vmem:[%s281 + $0x130] sm:$0xff]
                  %322 = vst [vmem:[%s282 + $0x98] sm:$0xff] %v321
                  %v323 = vld [vmem:[%s281 + $0x140] sm:$0xff]
                  %324 = vst [vmem:[%s282 + $0xa0] sm:$0xff] %v323
                  %v325 = vld [vmem:[%s281 + $0x150] sm:$0xff]
                  %326 = vst [vmem:[%s282 + $0xa8] sm:$0xff] %v325
                  %v327 = vld [vmem:[%s281 + $0x160] sm:$0xff]
                  %328 = vst [vmem:[%s282 + $0xb0] sm:$0xff] %v327
                  %v329 = vld [vmem:[%s281 + $0x170] sm:$0xff]
                  %330 = vst [vmem:[%s282 + $0xb8] sm:$0xff] %v329
                  %v331 = vld [vmem:[%s281 + $0x180] sm:$0xff]
                  %332 = vst [vmem:[%s282 + $0xc0] sm:$0xff] %v331
                  %v333 = vld [vmem:[%s281 + $0x190] sm:$0xff]
                  %334 = vst [vmem:[%s282 + $0xc8] sm:$0xff] %v333
                  %v335 = vld [vmem:[%s281 + $0x1a0] sm:$0xff]
                  %336 = vst [vmem:[%s282 + $0xd0] sm:$0xff] %v335
                  %v337 = vld [vmem:[%s281 + $0x1b0] sm:$0xff]
                  %338 = vst [vmem:[%s282 + $0xd8] sm:$0xff] %v337
                  %v339 = vld [vmem:[%s281 + $0x1c0] sm:$0xff]
                  %340 = vst [vmem:[%s282 + $0xe0] sm:$0xff] %v339
                  %v341 = vld [vmem:[%s281 + $0x1d0] sm:$0xff]
                  %342 = vst [vmem:[%s282 + $0xe8] sm:$0xff] %v341
                  %v343 = vld [vmem:[%s281 + $0x1e0] sm:$0xff]
                  %344 = vst [vmem:[%s282 + $0xf0] sm:$0xff] %v343
                  %v345 = vld [vmem:[%s281 + $0x1f0] sm:$0xff]
                  %346 = vst [vmem:[%s282 + $0xf8] sm:$0xff] %v345
                $region56: #{forward.10} parent=50 // loop_footer
                  %s280 = sadd.s32 1, %s276
                $region57: #{forward.10} parent=50 // loop_footer_branch
                  %275 = sbr.rel target = $region53
                $region58: #{forward.10} parent=50 // loop_exit
                  _
              $region51: #{forward.10} parent=35 // pred_fallthru
                _
              // Predicated region
              $region59: #{forward.10} parent=35 // pred_check
                _
              $region60: #{forward.10} parent=35 // pred_check_branch
                %348 = sbr.rel target = $region62
              $region61: #{forward.10} parent=35 // pred_region
                _
              $region62: #{forward.10} parent=35 // pred_fallthru
                _
            $region36: #{forward.10} parent=31 // pred_fallthru
              _
            // Predicated region
            $region37: #{forward.10} parent=31 // pred_check
              _
            $region38: #{forward.10} parent=31 // pred_check_branch
              %199 = sbr.rel target = $region40
            $region39: #{forward.10} parent=31 // pred_region
              loop: start=0, step=1, limit=1
              $region41: #{forward.10} parent=39 // loop_pre_header
                _
              $region42: #{forward.10} parent=39 // loop_header
                %s202 = sphi 0, %s206
                %p203 = scmp.ge.s32.totalorder %s202, 1
                %s207 = sphi %s193, %s193
                %s208 = sphi %s187, %s187
              $region43: #{forward.10} parent=39 // loop_header_branch
                %205 = sbr.rel (%p203) target = $region47
              $region44: #{forward.10} parent=39 // loop_body
                %v209 = vld [vmem:[%s207] sm:$0xff]
                %210 = vst [vmem:[%s208] sm:$0xff] %v209
                %v211 = vld [vmem:[%s207 + $0x10] sm:$0xff]
                %212 = vst [vmem:[%s208 + $0x8] sm:$0xff] %v211
                %v213 = vld [vmem:[%s207 + $0x20] sm:$0xff]
                %214 = vst [vmem:[%s208 + $0x10] sm:$0xff] %v213
                %v215 = vld [vmem:[%s207 + $0x30] sm:$0xff]
                %216 = vst [vmem:[%s208 + $0x18] sm:$0xff] %v215
                %v217 = vld [vmem:[%s207 + $0x40] sm:$0xff]
                %218 = vst [vmem:[%s208 + $0x20] sm:$0xff] %v217
                %v219 = vld [vmem:[%s207 + $0x50] sm:$0xff]
                %220 = vst [vmem:[%s208 + $0x28] sm:$0xff] %v219
                %v221 = vld [vmem:[%s207 + $0x60] sm:$0xff]
                %222 = vst [vmem:[%s208 + $0x30] sm:$0xff] %v221
                %v223 = vld [vmem:[%s207 + $0x70] sm:$0xff]
                %224 = vst [vmem:[%s208 + $0x38] sm:$0xff] %v223
                %v225 = vld [vmem:[%s207 + $0x80] sm:$0xff]
                %226 = vst [vmem:[%s208 + $0x40] sm:$0xff] %v225
                %v227 = vld [vmem:[%s207 + $0x90] sm:$0xff]
                %228 = vst [vmem:[%s208 + $0x48] sm:$0xff] %v227
                %v229 = vld [vmem:[%s207 + $0xa0] sm:$0xff]
                %230 = vst [vmem:[%s208 + $0x50] sm:$0xff] %v229
                %v231 = vld [vmem:[%s207 + $0xb0] sm:$0xff]
                %232 = vst [vmem:[%s208 + $0x58] sm:$0xff] %v231
                %v233 = vld [vmem:[%s207 + $0xc0] sm:$0xff]
                %234 = vst [vmem:[%s208 + $0x60] sm:$0xff] %v233
                %v235 = vld [vmem:[%s207 + $0xd0] sm:$0xff]
                %236 = vst [vmem:[%s208 + $0x68] sm:$0xff] %v235
                %v237 = vld [vmem:[%s207 + $0xe0] sm:$0xff]
                %238 = vst [vmem:[%s208 + $0x70] sm:$0xff] %v237
                %v239 = vld [vmem:[%s207 + $0xf0] sm:$0xff]
                %240 = vst [vmem:[%s208 + $0x78] sm:$0xff] %v239
                %v241 = vld [vmem:[%s207 + $0x100] sm:$0xff]
                %242 = vst [vmem:[%s208 + $0x80] sm:$0xff] %v241
                %v243 = vld [vmem:[%s207 + $0x110] sm:$0xff]
                %244 = vst [vmem:[%s208 + $0x88] sm:$0xff] %v243
                %v245 = vld [vmem:[%s207 + $0x120] sm:$0xff]
                %246 = vst [vmem:[%s208 + $0x90] sm:$0xff] %v245
                %v247 = vld [vmem:[%s207 + $0x130] sm:$0xff]
                %248 = vst [vmem:[%s208 + $0x98] sm:$0xff] %v247
                %v249 = vld [vmem:[%s207 + $0x140] sm:$0xff]
                %250 = vst [vmem:[%s208 + $0xa0] sm:$0xff] %v249
                %v251 = vld [vmem:[%s207 + $0x150] sm:$0xff]
                %252 = vst [vmem:[%s208 + $0xa8] sm:$0xff] %v251
                %v253 = vld [vmem:[%s207 + $0x160] sm:$0xff]
                %254 = vst [vmem:[%s208 + $0xb0] sm:$0xff] %v253
                %v255 = vld [vmem:[%s207 + $0x170] sm:$0xff]
                %256 = vst [vmem:[%s208 + $0xb8] sm:$0xff] %v255
                %v257 = vld [vmem:[%s207 + $0x180] sm:$0xff]
                %258 = vst [vmem:[%s208 + $0xc0] sm:$0xff] %v257
                %v259 = vld [vmem:[%s207 + $0x190] sm:$0xff]
                %260 = vst [vmem:[%s208 + $0xc8] sm:$0xff] %v259
                %v261 = vld [vmem:[%s207 + $0x1a0] sm:$0xff]
                %262 = vst [vmem:[%s208 + $0xd0] sm:$0xff] %v261
                %v263 = vld [vmem:[%s207 + $0x1b0] sm:$0xff]
                %264 = vst [vmem:[%s208 + $0xd8] sm:$0xff] %v263
                %v265 = vld [vmem:[%s207 + $0x1c0] sm:$0xff]
                %266 = vst [vmem:[%s208 + $0xe0] sm:$0xff] %v265
                %v267 = vld [vmem:[%s207 + $0x1d0] sm:$0xff]
                %268 = vst [vmem:[%s208 + $0xe8] sm:$0xff] %v267
                %v269 = vld [vmem:[%s207 + $0x1e0] sm:$0xff]
                %270 = vst [vmem:[%s208 + $0xf0] sm:$0xff] %v269
                %v271 = vld [vmem:[%s207 + $0x1f0] sm:$0xff]
                %272 = vst [vmem:[%s208 + $0xf8] sm:$0xff] %v271
              $region45: #{forward.10} parent=39 // loop_footer
                %s206 = sadd.s32 1, %s202
              $region46: #{forward.10} parent=39 // loop_footer_branch
                %201 = sbr.rel target = $region42
              $region47: #{forward.10} parent=39 // loop_exit
                _
            $region40: #{forward.10} parent=31 // pred_fallthru
              _
          $region32: #{forward.10} parent=27 // pred_fallthru
            _
          %349 = vnop
        $region28: #{forward.10} parent=23 // pred_fallthru
          _
      $region24: #{forward.10} parent=5 // pred_fallthru
        _
      %p350 = scmp.le.s32.totalorder 1, %s9
      %p351 = scmp.lt.s32.totalorder %s9, 3
      %p352 = pnand %p350, %p351
      %p353 = pneg %p352
      // Predicated region
      $region63: #{forward.10} parent=5 // pred_check
        _
      $region64: #{forward.10} parent=5 // pred_check_branch
        %355 = sbr.rel (%p352) target = $region66
      $region65: #{forward.10} parent=5 // pred_region
        %s356 = ssub.s32 %s9, 1
        %s357 = sand.u32 %s71, 1
        %s358 = sand.u32 %s71, 1
        %s359 = smul.addr %s358, 256
        %s360 = scalar_lea.vmem [#allocation3], %s359
        // Predicated region
        $region67: #{forward.10} parent=65 // pred_check
          %p361 = pneg %p84
        $region68: #{forward.10} parent=65 // pred_check_branch
          %363 = sbr.rel (%p361) target = $region70
        $region69: #{forward.10} parent=65 // pred_region
          _
        $region70: #{forward.10} parent=65 // pred_fallthru
          _
        %s364 = smul.u32 4, %s19
        %s365 = smul.u32 2, %s21
        %p366 = scmp.lt.s32.totalorder %s364, 3
        %s367 = scalar_select %p366, %s364, 3
        %p368 = scmp.lt.s32.totalorder %s365, 1
        %s369 = scalar_select %p368, %s365, 1
        %s370 = smul.addr %s367, 2
        %s371 = sadd.s32 %s369, %s370
        %s372 = smul.addr %s371, 4
        %s373 = scalar_lea.vmem %s0, %s372
        %p374 = pneg %p56
        %p375 = pneg %p53
        %s376 = sand.u32 %s71, 1
        %s377 = sand.u32 %s71, 1
        %s378 = smul.addr %s377, 256
        %s379 = scalar_lea.vmem [#allocation3], %s378
        %p380 = pneg %p84
        %p381 = pneg %p81
        %s382 = smul.u32 4, %s19
        %p383 = scmp.lt.s32.totalorder %s382, 3
        %s384 = scalar_select %p383, %s382, 3
        %s385 = smul.addr %s384, 8
        %s386 = scalar_lea.vmem %s2, %s385
        %p387 = pneg %p110
        %p388 = pneg %p107
        %p389 = pneg %p138
        %p390 = pneg %p135
        %s391 = sand.u32 %s125, 1
        %s392 = sand.u32 %s125, 1
        %s393 = smul.addr %s392, 32
        %s394 = scalar_lea.vmem [#allocation4], %s393
        %s395 = smul.u32 4, %s19
        %s396 = smul.u32 2, %s21
        %p397 = scmp.lt.s32.totalorder %s395, 3
        %s398 = scalar_select %p397, %s395, 3
        %p399 = scmp.lt.s32.totalorder %s396, 1
        %s400 = scalar_select %p399, %s396, 1
        %s401 = smul.addr %s398, 2
        %s402 = sadd.s32 %s400, %s401
        %s403 = smul.addr %s402, 4
        %s404 = scalar_lea.vmem %s0, %s403
        %s405 = smul.u32 4, %s19
        %s406 = smul.u32 2, %s21
        %s407 = smul.u32 32, %s21
        %s408 = smul.u32 2, %s20
        %s409 = smul.u32 4, %s19
        %p410 = scmp.lt.s32.totalorder %s409, 3
        %s411 = scalar_select %p410, %s409, 3
        %s412 = smul.addr %s411, 8
        %s413 = scalar_lea.vmem %s2, %s412
        %s414 = smul.u32 4, %s19
        %s415 = smul.u32 4, %s19
        %s416 = smul.u32 2, %s20
        %p417 = scmp.eq.s32.totalorder %s21, 0
        // Predicated region
        $region71: #{forward.10} parent=65 // pred_check
          %p418 = pneg %p417
        $region72: #{forward.10} parent=65 // pred_check_branch
          %420 = sbr.rel (%p418) target = $region74
        $region73: #{forward.10} parent=65 // pred_region
          %421 = vst [vmem:[#allocation2] sm:$0xff] 0.0
          %422 = vst [vmem:[#allocation2 + $0x8] sm:$0xff] 0.0
          %423 = vst [vmem:[#allocation2 + $0x10] sm:$0xff] 0.0
          %424 = vst [vmem:[#allocation2 + $0x18] sm:$0xff] 0.0
          %425 = vst [vmem:[#allocation2 + $0x20] sm:$0xff] 0.0
          %426 = vst [vmem:[#allocation2 + $0x28] sm:$0xff] 0.0
          %427 = vst [vmem:[#allocation2 + $0x30] sm:$0xff] 0.0
          %428 = vst [vmem:[#allocation2 + $0x38] sm:$0xff] 0.0
        $region74: #{forward.10} parent=65 // pred_fallthru
          _
        %v429 = vld [vmem:[#allocation2] sm:$0xff]
        %v430 = vld [vmem:[#allocation2 + $0x8] sm:$0xff]
        %v431 = vld [vmem:[#allocation2 + $0x10] sm:$0xff]
        %v432 = vld [vmem:[#allocation2 + $0x18] sm:$0xff]
        %v433 = vld [vmem:[#allocation2 + $0x20] sm:$0xff]
        %v434 = vld [vmem:[#allocation2 + $0x28] sm:$0xff]
        %v435 = vld [vmem:[#allocation2 + $0x30] sm:$0xff]
        %v436 = vld [vmem:[#allocation2 + $0x38] sm:$0xff]
        %v437 = vld [vmem:[%s404] sm:$0xff]
        %v438 = vld [vmem:[%s404 + $0x8] sm:$0xff]
        %v439 = vld [vmem:[%s404 + $0x10] sm:$0xff]
        %v440 = vld [vmem:[%s404 + $0x18] sm:$0xff]
        %v441 = vld [vmem:[%s360] sm:$0xff]
        %v442 = vld [vmem:[%s360 + $0x8] sm:$0xff]
        %v443 = vld [vmem:[%s360 + $0x10] sm:$0xff]
        %v444 = vld [vmem:[%s360 + $0x18] sm:$0xff]
        %v445 = vld [vmem:[%s360 + $0x20] sm:$0xff]
        %v446 = vld [vmem:[%s360 + $0x28] sm:$0xff]
        %v447 = vld [vmem:[%s360 + $0x30] sm:$0xff]
        %v448 = vld [vmem:[%s360 + $0x38] sm:$0xff]
        %v449 = vld [vmem:[%s360 + $0x40] sm:$0xff]
        %v450 = vld [vmem:[%s360 + $0x48] sm:$0xff]
        %v451 = vld [vmem:[%s360 + $0x50] sm:$0xff]
        %v452 = vld [vmem:[%s360 + $0x58] sm:$0xff]
        %v453 = vld [vmem:[%s360 + $0x60] sm:$0xff]
        %v454 = vld [vmem:[%s360 + $0x68] sm:$0xff]
        %v455 = vld [vmem:[%s360 + $0x70] sm:$0xff]
        %v456 = vld [vmem:[%s360 + $0x78] sm:$0xff]
        %v457 = vld [vmem:[%s360 + $0x80] sm:$0xff]
        %v458 = vld [vmem:[%s360 + $0x88] sm:$0xff]
        %v459 = vld [vmem:[%s360 + $0x90] sm:$0xff]
        %v460 = vld [vmem:[%s360 + $0x98] sm:$0xff]
        %v461 = vld [vmem:[%s360 + $0xa0] sm:$0xff]
        %v462 = vld [vmem:[%s360 + $0xa8] sm:$0xff]
        %v463 = vld [vmem:[%s360 + $0xb0] sm:$0xff]
        %v464 = vld [vmem:[%s360 + $0xb8] sm:$0xff]
        %v465 = vld [vmem:[%s360 + $0xc0] sm:$0xff]
        %v466 = vld [vmem:[%s360 + $0xc8] sm:$0xff]
        %v467 = vld [vmem:[%s360 + $0xd0] sm:$0xff]
        %v468 = vld [vmem:[%s360 + $0xd8] sm:$0xff]
        %v469 = vld [vmem:[%s360 + $0xe0] sm:$0xff]
        %v470 = vld [vmem:[%s360 + $0xe8] sm:$0xff]
        %v471 = vld [vmem:[%s360 + $0xf0] sm:$0xff]
        %v472 = vld [vmem:[%s360 + $0xf8] sm:$0xff]
        %v477 = vunpack.c.l.b16 %v437
        %v478 = vunpack.c.h.b16 %v437
        %v479 = vunpack.c.l.b16 %v438
        %v480 = vunpack.c.h.b16 %v438
        %v481 = vunpack.c.l.b16 %v439
        %v482 = vunpack.c.h.b16 %v439
        %v483 = vunpack.c.l.b16 %v440
        %v484 = vunpack.c.h.b16 %v440
        %v485 = vpack.c.b16 %v479, %v477
        %v486 = vpack.c.b16 %v480, %v478
        %v487 = vpack.c.b16 %v483, %v481
        %v488 = vpack.c.b16 %v484, %v482
        %v525 = vunpack.c.l.b16 %v441
        %v526 = vunpack.c.h.b16 %v441
        %v527 = vunpack.c.l.b16 %v442
        %v528 = vunpack.c.h.b16 %v442
        %v529 = vunpack.c.l.b16 %v443
        %v530 = vunpack.c.h.b16 %v443
        %v531 = vunpack.c.l.b16 %v444
        %v532 = vunpack.c.h.b16 %v444
        %v533 = vunpack.c.l.b16 %v445
        %v534 = vunpack.c.h.b16 %v445
        %v535 = vunpack.c.l.b16 %v446
        %v536 = vunpack.c.h.b16 %v446
        %v537 = vunpack.c.l.b16 %v447
        %v538 = vunpack.c.h.b16 %v447
        %v539 = vunpack.c.l.b16 %v448
        %v540 = vunpack.c.h.b16 %v448
        %v541 = vunpack.c.l.b16 %v449
        %v542 = vunpack.c.h.b16 %v449
        %v543 = vunpack.c.l.b16 %v450
        %v544 = vunpack.c.h.b16 %v450
        %v545 = vunpack.c.l.b16 %v451
        %v546 = vunpack.c.h.b16 %v451
        %v547 = vunpack.c.l.b16 %v452
        %v548 = vunpack.c.h.b16 %v452
        %v549 = vunpack.c.l.b16 %v453
        %v550 = vunpack.c.h.b16 %v453
        %v551 = vunpack.c.l.b16 %v454
        %v552 = vunpack.c.h.b16 %v454
        %v553 = vunpack.c.l.b16 %v455
        %v554 = vunpack.c.h.b16 %v455
        %v555 = vunpack.c.l.b16 %v456
        %v556 = vunpack.c.h.b16 %v456
        %v557 = vunpack.c.l.b16 %v457
        %v558 = vunpack.c.h.b16 %v457
        %v559 = vunpack.c.l.b16 %v458
        %v560 = vunpack.c.h.b16 %v458
        %v561 = vunpack.c.l.b16 %v459
        %v562 = vunpack.c.h.b16 %v459
        %v563 = vunpack.c.l.b16 %v460
        %v564 = vunpack.c.h.b16 %v460
        %v565 = vunpack.c.l.b16 %v461
        %v566 = vunpack.c.h.b16 %v461
        %v567 = vunpack.c.l.b16 %v462
        %v568 = vunpack.c.h.b16 %v462
        %v569 = vunpack.c.l.b16 %v463
        %v570 = vunpack.c.h.b16 %v463
        %v571 = vunpack.c.l.b16 %v464
        %v572 = vunpack.c.h.b16 %v464
        %v573 = vunpack.c.l.b16 %v465
        %v574 = vunpack.c.h.b16 %v465
        %v575 = vunpack.c.l.b16 %v466
        %v576 = vunpack.c.h.b16 %v466
        %v577 = vunpack.c.l.b16 %v467
        %v578 = vunpack.c.h.b16 %v467
        %v579 = vunpack.c.l.b16 %v468
        %v580 = vunpack.c.h.b16 %v468
        %v581 = vunpack.c.l.b16 %v469
        %v582 = vunpack.c.h.b16 %v469
        %v583 = vunpack.c.l.b16 %v470
        %v584 = vunpack.c.h.b16 %v470
        %v585 = vunpack.c.l.b16 %v471
        %v586 = vunpack.c.h.b16 %v471
        %v587 = vunpack.c.l.b16 %v472
        %v588 = vunpack.c.h.b16 %v472
        %v589 = vpack.c.b16 %v527, %v525
        %v590 = vpack.c.b16 %v528, %v526
        %v591 = vpack.c.b16 %v531, %v529
        %v592 = vpack.c.b16 %v532, %v530
        %v593 = vpack.c.b16 %v535, %v533
        %v594 = vpack.c.b16 %v536, %v534
        %v595 = vpack.c.b16 %v539, %v537
        %v596 = vpack.c.b16 %v540, %v538
        %v597 = vpack.c.b16 %v543, %v541
        %v598 = vpack.c.b16 %v544, %v542
        %v599 = vpack.c.b16 %v547, %v545
        %v600 = vpack.c.b16 %v548, %v546
        %v601 = vpack.c.b16 %v551, %v549
        %v602 = vpack.c.b16 %v552, %v550
        %v603 = vpack.c.b16 %v555, %v553
        %v604 = vpack.c.b16 %v556, %v554
        %v605 = vpack.c.b16 %v559, %v557
        %v606 = vpack.c.b16 %v560, %v558
        %v607 = vpack.c.b16 %v563, %v561
        %v608 = vpack.c.b16 %v564, %v562
        %v609 = vpack.c.b16 %v567, %v565
        %v610 = vpack.c.b16 %v568, %v566
        %v611 = vpack.c.b16 %v571, %v569
        %v612 = vpack.c.b16 %v572, %v570
        %v613 = vpack.c.b16 %v575, %v573
        %v614 = vpack.c.b16 %v576, %v574
        %v615 = vpack.c.b16 %v579, %v577
        %v616 = vpack.c.b16 %v580, %v578
        %v617 = vpack.c.b16 %v583, %v581
        %v618 = vpack.c.b16 %v584, %v582
        %v619 = vpack.c.b16 %v587, %v585
        %v620 = vpack.c.b16 %v588, %v586
        %653 = vmatprep.subr.bf16.mxu0 %v590
        %654 = vmatpush1.bf16.msra.mxu0 %v589
        %655 = vmatprep.subr.bf16.mxu0 %v592
        %656 = vmatpush1.bf16.msra.mxu0 %v591
        %657 = vmatprep.subr.bf16.mxu0 %v594
        %658 = vmatpush1.bf16.msra.mxu0 %v593
        %659 = vmatprep.subr.bf16.mxu0 %v596
        %660 = vmatpush1.bf16.msra.mxu0 %v595
        %661 = vmatprep.subr.bf16.mxu0 %v598
        %662 = vmatpush1.bf16.msra.mxu0 %v597
        %663 = vmatprep.subr.bf16.mxu0 %v600
        %664 = vmatpush1.bf16.msra.mxu0 %v599
        %665 = vmatprep.subr.bf16.mxu0 %v602
        %666 = vmatpush1.bf16.msra.mxu0 %v601
        %667 = vmatprep.subr.bf16.mxu0 %v604
        %668 = vmatpush1.bf16.msra.mxu0 %v603
        %669 = vmatprep.subr.bf16.mxu0 %v606
        %670 = vmatpush1.bf16.msra.mxu0 %v605
        %671 = vmatprep.subr.bf16.mxu0 %v608
        %672 = vmatpush1.bf16.msra.mxu0 %v607
        %673 = vmatprep.subr.bf16.mxu0 %v610
        %674 = vmatpush1.bf16.msra.mxu0 %v609
        %675 = vmatprep.subr.bf16.mxu0 %v612
        %676 = vmatpush1.bf16.msra.mxu0 %v611
        %677 = vmatprep.subr.bf16.mxu0 %v614
        %678 = vmatpush1.bf16.msra.mxu0 %v613
        %679 = vmatprep.subr.bf16.mxu0 %v616
        %680 = vmatpush1.bf16.msra.mxu0 %v615
        %681 = vmatprep.subr.bf16.mxu0 %v618
        %682 = vmatpush1.bf16.msra.mxu0 %v617
        %683 = vmatprep.subr.bf16.mxu0 %v620
        %684 = vmatpush1.bf16.msra.mxu0 %v619
        %685 = vmatprep.mubr.bf16.mxu0 %v486
        %686 = vmatmul.mubr.bf16.gmra.mrb[0].mxu0 %v485
        %v687 = vpop.f32.mrb[0].mxu0
        %v688 = vadd.f32 0.0, %v687
        %v689 = vpop.f32.mrb[0].mxu0
        %v690 = vadd.f32 0.0, %v689
        %v691 = vpop.f32.mrb[0].mxu0
        %v692 = vadd.f32 0.0, %v691
        %v693 = vpop.f32.mrb[0].mxu0
        %v694 = vadd.f32 0.0, %v693
        %695 = vmatprep.mubr.bf16.mxu0 %v488
        %696 = vmatmul.mubr.bf16.gmra.mrb[0].mxu0 %v487
        %v697 = vpop.f32.mrb[0].mxu0
        %v698 = vadd.f32 0.0, %v697
        %v699 = vpop.f32.mrb[0].mxu0
        %v700 = vadd.f32 0.0, %v699
        %v701 = vpop.f32.mrb[0].mxu0
        %v702 = vadd.f32 0.0, %v701
        %v703 = vpop.f32.mrb[0].mxu0
        %v704 = vadd.f32 0.0, %v703
        %705 = vdwg.mxu0
        %v706 = vadd.f32 %v429, %v688
        %v707 = vadd.f32 %v430, %v690
        %v708 = vadd.f32 %v431, %v692
        %v709 = vadd.f32 %v432, %v694
        %v710 = vadd.f32 %v433, %v698
        %v711 = vadd.f32 %v434, %v700
        %v712 = vadd.f32 %v435, %v702
        %v713 = vadd.f32 %v436, %v704
        %714 = vst [vmem:[#allocation2] sm:$0xff] %v706
        %715 = vst [vmem:[#allocation2 + $0x8] sm:$0xff] %v707
        %716 = vst [vmem:[#allocation2 + $0x10] sm:$0xff] %v708
        %717 = vst [vmem:[#allocation2 + $0x18] sm:$0xff] %v709
        %718 = vst [vmem:[#allocation2 + $0x20] sm:$0xff] %v710
        %719 = vst [vmem:[#allocation2 + $0x28] sm:$0xff] %v711
        %720 = vst [vmem:[#allocation2 + $0x30] sm:$0xff] %v712
        %721 = vst [vmem:[#allocation2 + $0x38] sm:$0xff] %v713
        // Predicated region
        $region75: #{forward.10} parent=65 // pred_check
          %p722 = pneg %p417
        $region76: #{forward.10} parent=65 // pred_check_branch
          %724 = sbr.rel (%p722) target = $region78
        $region77: #{forward.10} parent=65 // pred_region
          %v725 = vld [vmem:[#allocation2] sm:$0xff]
          %v726 = vld [vmem:[#allocation2 + $0x8] sm:$0xff]
          %v727 = vld [vmem:[#allocation2 + $0x10] sm:$0xff]
          %v728 = vld [vmem:[#allocation2 + $0x18] sm:$0xff]
          %v729 = vld [vmem:[#allocation2 + $0x20] sm:$0xff]
          %v730 = vld [vmem:[#allocation2 + $0x28] sm:$0xff]
          %v731 = vld [vmem:[#allocation2 + $0x30] sm:$0xff]
          %v732 = vld [vmem:[#allocation2 + $0x38] sm:$0xff]
          %v733 = vld [vmem:[%s413] sm:$0xff]
          %v734 = vld [vmem:[%s413 + $0x8] sm:$0xff]
          %v735 = vld [vmem:[%s413 + $0x10] sm:$0xff]
          %v736 = vld [vmem:[%s413 + $0x18] sm:$0xff]
          %738 = vset.pattern.permute.xlu0 0
          %739 = vperm.xlu0 %738, %v733
          %v740 = vpop.permute.xlu0 %739
          %743 = vset.pattern.permute.xlu0 0
          %744 = vperm.xlu0 %743, %v734
          %v745 = vpop.permute.xlu0 %744
          %748 = vset.pattern.permute.xlu0 0
          %749 = vperm.xlu0 %748, %v735
          %v750 = vpop.permute.xlu0 %749
          %753 = vset.pattern.permute.xlu0 0
          %754 = vperm.xlu0 %753, %v736
          %v755 = vpop.permute.xlu0 %754
          %v757 = vadd.f32 %v725, %v740
          %v758 = vadd.f32 %v726, %v740
          %v759 = vadd.f32 %v727, %v745
          %v760 = vadd.f32 %v728, %v745
          %v761 = vadd.f32 %v729, %v750
          %v762 = vadd.f32 %v730, %v750
          %v763 = vadd.f32 %v731, %v755
          %v764 = vadd.f32 %v732, %v755
          %v765 = vmax.f32 %v757, 0.0
          %v766 = vmax.f32 %v758, 0.0
          %v767 = vmax.f32 %v759, 0.0
          %v768 = vmax.f32 %v760, 0.0
          %v769 = vmax.f32 %v761, 0.0
          %v770 = vmax.f32 %v762, 0.0
          %v771 = vmax.f32 %v763, 0.0
          %v772 = vmax.f32 %v764, 0.0
          %v773 = vpack.c.bf16 %v767, %v765
          %v774 = vpack.c.bf16 %v768, %v766
          %v775 = vpack.c.bf16 %v771, %v769
          %v776 = vpack.c.bf16 %v772, %v770
          %v781 = vunpack.c.l.b16 %v773
          %v782 = vunpack.c.l.b16 %v774
          %v783 = vunpack.c.h.b16 %v773
          %v784 = vunpack.c.h.b16 %v774
          %v785 = vunpack.c.l.b16 %v775
          %v786 = vunpack.c.l.b16 %v776
          %v787 = vunpack.c.h.b16 %v775
          %v788 = vunpack.c.h.b16 %v776
          %v789 = vpack.c.b16 %v782, %v781
          %v790 = vpack.c.b16 %v784, %v783
          %v791 = vpack.c.b16 %v786, %v785
          %v792 = vpack.c.b16 %v788, %v787
          %797 = vst [vmem:[%s394] sm:$0xff] %v789
          %798 = vst [vmem:[%s394 + $0x8] sm:$0xff] %v790
          %799 = vst [vmem:[%s394 + $0x10] sm:$0xff] %v791
          %800 = vst [vmem:[%s394 + $0x18] sm:$0xff] %v792
        $region78: #{forward.10} parent=65 // pred_fallthru
          _
        %s801 = sand.u32 %s125, 1
        %s802 = sand.u32 %s125, 1
        %s803 = smul.addr %s802, 32
        %s804 = scalar_lea.vmem [#allocation4], %s803
        // Predicated region
        $region79: #{forward.10} parent=65 // pred_check
          %p805 = pneg %p135
        $region80: #{forward.10} parent=65 // pred_check_branch
          %807 = sbr.rel (%p805) target = $region82
        $region81: #{forward.10} parent=65 // pred_region
          %s808 = smul.u32 4, %s19
          %s809 = smul.u32 2, %s20
          %s810 = smul.addr %s808, 4
          %s811 = sadd.s32 %s809, %s810
          %s812 = smul.addr %s811, 4
          %s813 = scalar_lea.vmem %s3, %s812
          // Predicated region
          $region83: #{forward.10} parent=81 // pred_check
            _
          $region84: #{forward.10} parent=81 // pred_check_branch
            %815 = sbr.rel (0) target = $region86
          $region85: #{forward.10} parent=81 // pred_region
            // Predicated region
            $region87: #{forward.10} parent=85 // pred_check
              _
            $region88: #{forward.10} parent=85 // pred_check_branch
              %817 = sbr.rel (0) target = $region90
            $region89: #{forward.10} parent=85 // pred_region
              // Predicated region
              $region102: #{forward.10} parent=89 // pred_check
                _
              $region103: #{forward.10} parent=89 // pred_check_branch
                %838 = sbr.rel (0) target = $region105
              $region104: #{forward.10} parent=89 // pred_region
                loop: start=0, step=1, limit=1
                $region106: #{forward.10} parent=104 // loop_pre_header
                  _
                $region107: #{forward.10} parent=104 // loop_header
                  %s840 = sphi 0, %s844
                  %p841 = scmp.ge.s32.totalorder %s840, 1
                  %s845 = sphi %s804, %s804
                  %s846 = sphi %s813, %s813
                $region108: #{forward.10} parent=104 // loop_header_branch
                  %843 = sbr.rel (%p841) target = $region112
                $region109: #{forward.10} parent=104 // loop_body
                  %v847 = vld [vmem:[%s845] sm:$0xff]
                  %848 = vst [vmem:[%s846] sm:$0xff] %v847
                  %v849 = vld [vmem:[%s845 + $0x8] sm:$0xff]
                  %850 = vst [vmem:[%s846 + $0x10] sm:$0xff] %v849
                  %v851 = vld [vmem:[%s845 + $0x10] sm:$0xff]
                  %852 = vst [vmem:[%s846 + $0x20] sm:$0xff] %v851
                  %v853 = vld [vmem:[%s845 + $0x18] sm:$0xff]
                  %854 = vst [vmem:[%s846 + $0x30] sm:$0xff] %v853
                $region110: #{forward.10} parent=104 // loop_footer
                  %s844 = sadd.s32 1, %s840
                $region111: #{forward.10} parent=104 // loop_footer_branch
                  %839 = sbr.rel target = $region107
                $region112: #{forward.10} parent=104 // loop_exit
                  _
              $region105: #{forward.10} parent=89 // pred_fallthru
                _
              // Predicated region
              $region113: #{forward.10} parent=89 // pred_check
                _
              $region114: #{forward.10} parent=89 // pred_check_branch
                %856 = sbr.rel target = $region116
              $region115: #{forward.10} parent=89 // pred_region
                _
              $region116: #{forward.10} parent=89 // pred_fallthru
                _
            $region90: #{forward.10} parent=85 // pred_fallthru
              _
            // Predicated region
            $region91: #{forward.10} parent=85 // pred_check
              _
            $region92: #{forward.10} parent=85 // pred_check_branch
              %819 = sbr.rel target = $region94
            $region93: #{forward.10} parent=85 // pred_region
              loop: start=0, step=1, limit=1
              $region95: #{forward.10} parent=93 // loop_pre_header
                _
              $region96: #{forward.10} parent=93 // loop_header
                %s822 = sphi 0, %s826
                %p823 = scmp.ge.s32.totalorder %s822, 1
                %s827 = sphi %s804, %s804
                %s828 = sphi %s813, %s813
              $region97: #{forward.10} parent=93 // loop_header_branch
                %825 = sbr.rel (%p823) target = $region101
              $region98: #{forward.10} parent=93 // loop_body
                %v829 = vld [vmem:[%s827] sm:$0xff]
                %830 = vst [vmem:[%s828] sm:$0xff] %v829
                %v831 = vld [vmem:[%s827 + $0x8] sm:$0xff]
                %832 = vst [vmem:[%s828 + $0x10] sm:$0xff] %v831
                %v833 = vld [vmem:[%s827 + $0x10] sm:$0xff]
                %834 = vst [vmem:[%s828 + $0x20] sm:$0xff] %v833
                %v835 = vld [vmem:[%s827 + $0x18] sm:$0xff]
                %836 = vst [vmem:[%s828 + $0x30] sm:$0xff] %v835
              $region99: #{forward.10} parent=93 // loop_footer
                %s826 = sadd.s32 1, %s822
              $region100: #{forward.10} parent=93 // loop_footer_branch
                %821 = sbr.rel target = $region96
              $region101: #{forward.10} parent=93 // loop_exit
                _
            $region94: #{forward.10} parent=85 // pred_fallthru
              _
          $region86: #{forward.10} parent=81 // pred_fallthru
            _
          %857 = vnop
        $region82: #{forward.10} parent=65 // pred_fallthru
          _
      $region66: #{forward.10} parent=5 // pred_fallthru
        _
      %p858 = scmp.le.s32.totalorder 2, %s9
      // Predicated region
      $region117: #{forward.10} parent=5 // pred_check
        %p859 = pneg %p858
      $region118: #{forward.10} parent=5 // pred_check_branch
        %861 = sbr.rel (%p859) target = $region120
      $region119: #{forward.10} parent=5 // pred_region
        %s862 = ssub.s32 %s9, 2
        // Predicated region
        $region121: #{forward.10} parent=119 // pred_check
          %p863 = pneg %p141
        $region122: #{forward.10} parent=119 // pred_check_branch
          %865 = sbr.rel (%p863) target = $region124
        $region123: #{forward.10} parent=119 // pred_region
          %s866 = sand.u32 %s126, 1
          %s867 = sand.u32 %s126, 1
          %s868 = smul.addr %s867, 32
          %s869 = scalar_lea.vmem [#allocation4], %s868
        $region124: #{forward.10} parent=119 // pred_fallthru
          _
      $region120: #{forward.10} parent=5 // pred_fallthru
        _
    $region6: #{forward.10} parent=1 // loop_footer
      %s13 = sadd.s32 1, %s9
    $region7: #{forward.10} parent=1 // loop_footer_branch
      %8 = sbr.rel target = $region3
    $region8: #{forward.10} parent=1 // loop_exit
      _

// kernel: forward.11
$region0: #{forward.11}
  #allocation0 [shape = 'u32[]', space=smem, size = 0x4, offset = 0x4, fixed_abs, tag = 'smem constant byte address 0x4 - core index']
  #allocation1 [shape = 'u32[144,128]{1,0:T(1,128)}', space=vmem, size = 0x12000, scoped, tag = 'internal scratch']
  #allocation2 [shape = 'f32[64,72]{1,0:T(8,128)}', space=vmem, size = 0x8000, scoped, tag = 'scratch operand']
  %s0 = inlined_call_operand.vmem [shape: bf16[64,512], index: 0, kind: input, shape index: {}]
  %s1 = inlined_call_operand.vmem [shape: bf16[512,72], index: 1, kind: input, shape index: {}]
  %s2 = inlined_call_operand.vmem [shape: f32[64,1], index: 2, kind: input, shape index: {}]
  %s3 = inlined_call_operand.vmem [shape: bf16[64,72], index: 3, kind: output, shape index: {}]
  %s4 = sld [smem:[#allocation0]]
  $region30: #{forward.11} parent=0
    _
  %s6 = ssub.s32 1, %s4
  %s7 = scalar_select 0, %s6, %s4
  // Predicated region
  $region2: #{forward.11} parent=0 // pred_check
    _
  $region3: #{forward.11} parent=0 // pred_check_branch
    %9 = sbr.rel (0) target = $region5
  $region4: #{forward.11} parent=0 // pred_region
    _
  $region5: #{forward.11} parent=0 // pred_fallthru
    _
  // Predicated region
  $region6: #{forward.11} parent=0 // pred_check
    _
  $region7: #{forward.11} parent=0 // pred_check_branch
    %11 = sbr.rel (0) target = $region9
  $region8: #{forward.11} parent=0 // pred_region
    _
  $region9: #{forward.11} parent=0 // pred_fallthru
    _
  // Predicated region
  $region10: #{forward.11} parent=0 // pred_check
    _
  $region11: #{forward.11} parent=0 // pred_check_branch
    %13 = sbr.rel (0) target = $region13
  $region12: #{forward.11} parent=0 // pred_region
    _
  $region13: #{forward.11} parent=0 // pred_fallthru
    _
  %p15 = scmp.eq.s32.totalorder 0, 0
  // Predicated region
  $region14: #{forward.11} parent=0 // pred_check
    %p16 = pneg %p15
  $region15: #{forward.11} parent=0 // pred_check_branch
    %18 = sbr.rel (%p16) target = $region17
  $region16: #{forward.11} parent=0 // pred_region
    %vm19 = vcmask 588800
    %20 = vst.msk [vmem:[#allocation2] sm:$0xff] %vm19, 0.0
    %21 = vst.msk [vmem:[#allocation2 + $0x8] sm:$0xff] %vm19, 0.0
    %22 = vst.msk [vmem:[#allocation2 + $0x10] sm:$0xff] %vm19, 0.0
    %23 = vst.msk [vmem:[#allocation2 + $0x18] sm:$0xff] %vm19, 0.0
    %24 = vst.msk [vmem:[#allocation2 + $0x20] sm:$0xff] %vm19, 0.0
    %25 = vst.msk [vmem:[#allocation2 + $0x28] sm:$0xff] %vm19, 0.0
    %26 = vst.msk [vmem:[#allocation2 + $0x30] sm:$0xff] %vm19, 0.0
    %27 = vst.msk [vmem:[#allocation2 + $0x38] sm:$0xff] %vm19, 0.0
  $region17: #{forward.11} parent=0 // pred_fallthru
    _
  %v28 = vld [vmem:[#allocation2] sm:$0xff]
  %v29 = vld [vmem:[#allocation2 + $0x8] sm:$0xff]
  %v30 = vld [vmem:[#allocation2 + $0x10] sm:$0xff]
  %v31 = vld [vmem:[#allocation2 + $0x18] sm:$0xff]
  %v32 = vld [vmem:[#allocation2 + $0x20] sm:$0xff]
  %v33 = vld [vmem:[#allocation2 + $0x28] sm:$0xff]
  %v34 = vld [vmem:[#allocation2 + $0x30] sm:$0xff]
  %v35 = vld [vmem:[#allocation2 + $0x38] sm:$0xff]
  %v36 = vld [vmem:[%s0] sm:$0xff]
  %v37 = vld [vmem:[%s0 + $0x8] sm:$0xff]
  %v38 = vld [vmem:[%s0 + $0x10] sm:$0xff]
  %v39 = vld [vmem:[%s0 + $0x18] sm:$0xff]
  %v40 = vld [vmem:[%s0 + $0x20] sm:$0xff]
  %v41 = vld [vmem:[%s0 + $0x28] sm:$0xff]
  %v42 = vld [vmem:[%s0 + $0x30] sm:$0xff]
  %v43 = vld [vmem:[%s0 + $0x38] sm:$0xff]
  %v44 = vld [vmem:[%s0 + $0x40] sm:$0xff]
  %v45 = vld [vmem:[%s0 + $0x48] sm:$0xff]
  %v46 = vld [vmem:[%s0 + $0x50] sm:$0xff]
  %v47 = vld [vmem:[%s0 + $0x58] sm:$0xff]
  %v48 = vld [vmem:[%s0 + $0x60] sm:$0xff]
  %v49 = vld [vmem:[%s0 + $0x68] sm:$0xff]
  %v50 = vld [vmem:[%s0 + $0x70] sm:$0xff]
  %v51 = vld [vmem:[%s0 + $0x78] sm:$0xff]
  %v52 = vld [vmem:[%s1] sm:$0xf]
  %v53 = vld [vmem:[%s1 + $0x4] sm:$0xf]
  %v54 = vld [vmem:[%s1 + $0x8] sm:$0xf]
  %v55 = vld [vmem:[%s1 + $0xc] sm:$0xf]
  %v56 = vld [vmem:[%s1 + $0x10] sm:$0xf]
  %v57 = vld [vmem:[%s1 + $0x14] sm:$0xf]
  %v58 = vld [vmem:[%s1 + $0x18] sm:$0xf]
  %v59 = vld [vmem:[%s1 + $0x1c] sm:$0xf]
  %v60 = vld [vmem:[%s1 + $0x20] sm:$0xf]
  %v61 = vld [vmem:[%s1 + $0x24] sm:$0xf]
  %v62 = vld [vmem:[%s1 + $0x28] sm:$0xf]
  %v63 = vld [vmem:[%s1 + $0x2c] sm:$0xf]
  %v64 = vld [vmem:[%s1 + $0x30] sm:$0xf]
  %v65 = vld [vmem:[%s1 + $0x34] sm:$0xf]
  %v66 = vld [vmem:[%s1 + $0x38] sm:$0xf]
  %v67 = vld [vmem:[%s1 + $0x3c] sm:$0xf]
  %v68 = vld [vmem:[%s1 + $0x40] sm:$0xf]
  %v69 = vld [vmem:[%s1 + $0x44] sm:$0xf]
  %v70 = vld [vmem:[%s1 + $0x48] sm:$0xf]
  %v71 = vld [vmem:[%s1 + $0x4c] sm:$0xf]
  %v72 = vld [vmem:[%s1 + $0x50] sm:$0xf]
  %v73 = vld [vmem:[%s1 + $0x54] sm:$0xf]
  %v74 = vld [vmem:[%s1 + $0x58] sm:$0xf]
  %v75 = vld [vmem:[%s1 + $0x5c] sm:$0xf]
  %v76 = vld [vmem:[%s1 + $0x60] sm:$0xf]
  %v77 = vld [vmem:[%s1 + $0x64] sm:$0xf]
  %v78 = vld [vmem:[%s1 + $0x68] sm:$0xf]
  %v79 = vld [vmem:[%s1 + $0x6c] sm:$0xf]
  %v80 = vld [vmem:[%s1 + $0x70] sm:$0xf]
  %v81 = vld [vmem:[%s1 + $0x74] sm:$0xf]
  %v82 = vld [vmem:[%s1 + $0x78] sm:$0xf]
  %v83 = vld [vmem:[%s1 + $0x7c] sm:$0xf]
  %v84 = vld [vmem:[%s1 + $0x80] sm:$0xf]
  %v85 = vld [vmem:[%s1 + $0x84] sm:$0xf]
  %v86 = vld [vmem:[%s1 + $0x88] sm:$0xf]
  %v87 = vld [vmem:[%s1 + $0x8c] sm:$0xf]
  %v88 = vld [vmem:[%s1 + $0x90] sm:$0xf]
  %v89 = vld [vmem:[%s1 + $0x94] sm:$0xf]
  %v90 = vld [vmem:[%s1 + $0x98] sm:$0xf]
  %v91 = vld [vmem:[%s1 + $0x9c] sm:$0xf]
  %v92 = vld [vmem:[%s1 + $0xa0] sm:$0xf]
  %v93 = vld [vmem:[%s1 + $0xa4] sm:$0xf]
  %v94 = vld [vmem:[%s1 + $0xa8] sm:$0xf]
  %v95 = vld [vmem:[%s1 + $0xac] sm:$0xf]
  %v96 = vld [vmem:[%s1 + $0xb0] sm:$0xf]
  %v97 = vld [vmem:[%s1 + $0xb4] sm:$0xf]
  %v98 = vld [vmem:[%s1 + $0xb8] sm:$0xf]
  %v99 = vld [vmem:[%s1 + $0xbc] sm:$0xf]
  %v100 = vld [vmem:[%s1 + $0xc0] sm:$0xf]
  %v101 = vld [vmem:[%s1 + $0xc4] sm:$0xf]
  %v102 = vld [vmem:[%s1 + $0xc8] sm:$0xf]
  %v103 = vld [vmem:[%s1 + $0xcc] sm:$0xf]
  %v104 = vld [vmem:[%s1 + $0xd0] sm:$0xf]
  %v105 = vld [vmem:[%s1 + $0xd4] sm:$0xf]
  %v106 = vld [vmem:[%s1 + $0xd8] sm:$0xf]
  %v107 = vld [vmem:[%s1 + $0xdc] sm:$0xf]
  %v108 = vld [vmem:[%s1 + $0xe0] sm:$0xf]
  %v109 = vld [vmem:[%s1 + $0xe4] sm:$0xf]
  %v110 = vld [vmem:[%s1 + $0xe8] sm:$0xf]
  %v111 = vld [vmem:[%s1 + $0xec] sm:$0xf]
  %v112 = vld [vmem:[%s1 + $0xf0] sm:$0xf]
  %v113 = vld [vmem:[%s1 + $0xf4] sm:$0xf]
  %v114 = vld [vmem:[%s1 + $0xf8] sm:$0xf]
  %v115 = vld [vmem:[%s1 + $0xfc] sm:$0xf]
  %v132 = vunpack.c.l.b16 %v36
  %v133 = vunpack.c.h.b16 %v36
  %v134 = vunpack.c.l.b16 %v37
  %v135 = vunpack.c.h.b16 %v37
  %v136 = vunpack.c.l.b16 %v38
  %v137 = vunpack.c.h.b16 %v38
  %v138 = vunpack.c.l.b16 %v39
  %v139 = vunpack.c.h.b16 %v39
  %v140 = vunpack.c.l.b16 %v40
  %v141 = vunpack.c.h.b16 %v40
  %v142 = vunpack.c.l.b16 %v41
  %v143 = vunpack.c.h.b16 %v41
  %v144 = vunpack.c.l.b16 %v42
  %v145 = vunpack.c.h.b16 %v42
  %v146 = vunpack.c.l.b16 %v43
  %v147 = vunpack.c.h.b16 %v43
  %v148 = vunpack.c.l.b16 %v44
  %v149 = vunpack.c.h.b16 %v44
  %v150 = vunpack.c.l.b16 %v45
  %v151 = vunpack.c.h.b16 %v45
  %v152 = vunpack.c.l.b16 %v46
  %v153 = vunpack.c.h.b16 %v46
  %v154 = vunpack.c.l.b16 %v47
  %v155 = vunpack.c.h.b16 %v47
  %v156 = vunpack.c.l.b16 %v48
  %v157 = vunpack.c.h.b16 %v48
  %v158 = vunpack.c.l.b16 %v49
  %v159 = vunpack.c.h.b16 %v49
  %v160 = vunpack.c.l.b16 %v50
  %v161 = vunpack.c.h.b16 %v50
  %v162 = vunpack.c.l.b16 %v51
  %v163 = vunpack.c.h.b16 %v51
  %v164 = vpack.c.b16 %v136, %v132
  %v165 = vpack.c.b16 %v137, %v133
  %v166 = vpack.c.b16 %v138, %v134
  %v167 = vpack.c.b16 %v139, %v135
  %v168 = vpack.c.b16 %v144, %v140
  %v169 = vpack.c.b16 %v145, %v141
  %v170 = vpack.c.b16 %v146, %v142
  %v171 = vpack.c.b16 %v147, %v143
  %v172 = vpack.c.b16 %v152, %v148
  %v173 = vpack.c.b16 %v153, %v149
  %v174 = vpack.c.b16 %v154, %v150
  %v175 = vpack.c.b16 %v155, %v151
  %v176 = vpack.c.b16 %v160, %v156
  %v177 = vpack.c.b16 %v161, %v157
  %v178 = vpack.c.b16 %v162, %v158
  %v179 = vpack.c.b16 %v163, %v159
  %v260 = vunpack.c.l.b16 %v52
  %v261 = vunpack.c.l.b16 %v53
  %v262 = vunpack.c.l.b16 %v54
  %v263 = vunpack.c.l.b16 %v55
  %v264 = vunpack.c.l.b16 %v56
  %v265 = vunpack.c.l.b16 %v57
  %v266 = vunpack.c.l.b16 %v58
  %v267 = vunpack.c.l.b16 %v59
  %v268 = vunpack.c.l.b16 %v60
  %v269 = vunpack.c.l.b16 %v61
  %v270 = vunpack.c.l.b16 %v62
  %v271 = vunpack.c.l.b16 %v63
  %v272 = vunpack.c.l.b16 %v64
  %v273 = vunpack.c.l.b16 %v65
  %v274 = vunpack.c.l.b16 %v66
  %v275 = vunpack.c.l.b16 %v67
  %v276 = vunpack.c.l.b16 %v68
  %v277 = vunpack.c.l.b16 %v69
  %v278 = vunpack.c.l.b16 %v70
  %v279 = vunpack.c.l.b16 %v71
  %v280 = vunpack.c.l.b16 %v72
  %v281 = vunpack.c.l.b16 %v73
  %v282 = vunpack.c.l.b16 %v74
  %v283 = vunpack.c.l.b16 %v75
  %v284 = vunpack.c.l.b16 %v76
  %v285 = vunpack.c.l.b16 %v77
  %v286 = vunpack.c.l.b16 %v78
  %v287 = vunpack.c.l.b16 %v79
  %v288 = vunpack.c.l.b16 %v80
  %v289 = vunpack.c.l.b16 %v81
  %v290 = vunpack.c.l.b16 %v82
  %v291 = vunpack.c.l.b16 %v83
  %v292 = vunpack.c.l.b16 %v84
  %v293 = vunpack.c.l.b16 %v85
  %v294 = vunpack.c.l.b16 %v86
  %v295 = vunpack.c.l.b16 %v87
  %v296 = vunpack.c.l.b16 %v88
  %v297 = vunpack.c.l.b16 %v89
  %v298 = vunpack.c.l.b16 %v90
  %v299 = vunpack.c.l.b16 %v91
  %v300 = vunpack.c.l.b16 %v92
  %v301 = vunpack.c.l.b16 %v93
  %v302 = vunpack.c.l.b16 %v94
  %v303 = vunpack.c.l.b16 %v95
  %v304 = vunpack.c.l.b16 %v96
  %v305 = vunpack.c.l.b16 %v97
  %v306 = vunpack.c.l.b16 %v98
  %v307 = vunpack.c.l.b16 %v99
  %v308 = vunpack.c.l.b16 %v100
  %v309 = vunpack.c.l.b16 %v101
  %v310 = vunpack.c.l.b16 %v102
  %v311 = vunpack.c.l.b16 %v103
  %v312 = vunpack.c.l.b16 %v104
  %v313 = vunpack.c.l.b16 %v105
  %v314 = vunpack.c.l.b16 %v106
  %v315 = vunpack.c.l.b16 %v107
  %v316 = vunpack.c.l.b16 %v108
  %v317 = vunpack.c.l.b16 %v109
  %v318 = vunpack.c.l.b16 %v110
  %v319 = vunpack.c.l.b16 %v111
  %v320 = vunpack.c.l.b16 %v112
  %v321 = vunpack.c.l.b16 %v113
  %v322 = vunpack.c.l.b16 %v114
  %v323 = vunpack.c.l.b16 %v115
  %v324 = vpack.c.b16 %v261, %v260
  %v325 = vpack.c.b16 %v263, %v262
  %v326 = vpack.c.b16 %v265, %v264
  %v327 = vpack.c.b16 %v267, %v266
  %v328 = vpack.c.b16 %v269, %v268
  %v329 = vpack.c.b16 %v271, %v270
  %v330 = vpack.c.b16 %v273, %v272
  %v331 = vpack.c.b16 %v275, %v274
  %v332 = vpack.c.b16 %v277, %v276
  %v333 = vpack.c.b16 %v279, %v278
  %v334 = vpack.c.b16 %v281, %v280
  %v335 = vpack.c.b16 %v283, %v282
  %v336 = vpack.c.b16 %v285, %v284
  %v337 = vpack.c.b16 %v287, %v286
  %v338 = vpack.c.b16 %v289, %v288
  %v339 = vpack.c.b16 %v291, %v290
  %v340 = vpack.c.b16 %v293, %v292
  %v341 = vpack.c.b16 %v295, %v294
  %v342 = vpack.c.b16 %v297, %v296
  %v343 = vpack.c.b16 %v299, %v298
  %v344 = vpack.c.b16 %v301, %v300
  %v345 = vpack.c.b16 %v303, %v302
  %v346 = vpack.c.b16 %v305, %v304
  %v347 = vpack.c.b16 %v307, %v306
  %v348 = vpack.c.b16 %v309, %v308
  %v349 = vpack.c.b16 %v311, %v310
  %v350 = vpack.c.b16 %v313, %v312
  %v351 = vpack.c.b16 %v315, %v314
  %v352 = vpack.c.b16 %v317, %v316
  %v353 = vpack.c.b16 %v319, %v318
  %v354 = vpack.c.b16 %v321, %v320
  %v355 = vpack.c.b16 %v323, %v322
  %388 = vmatprep.subr.bf16.mxu0 0
  %389 = vmatpush1.bf16.msra.mxu0 %v324
  %390 = vmatprep.subr.bf16.mxu0 0
  %391 = vmatpush1.bf16.msra.mxu0 %v325
  %392 = vmatprep.subr.bf16.mxu0 0
  %393 = vmatpush1.bf16.msra.mxu0 %v326
  %394 = vmatprep.subr.bf16.mxu0 0
  %395 = vmatpush1.bf16.msra.mxu0 %v327
  %396 = vmatprep.subr.bf16.mxu0 0
  %397 = vmatpush1.bf16.msra.mxu0 %v328
  %398 = vmatprep.subr.bf16.mxu0 0
  %399 = vmatpush1.bf16.msra.mxu0 %v329
  %400 = vmatprep.subr.bf16.mxu0 0
  %401 = vmatpush1.bf16.msra.mxu0 %v330
  %402 = vmatprep.subr.bf16.mxu0 0
  %403 = vmatpush1.bf16.msra.mxu0 %v331
  %404 = vmatprep.subr.bf16.mxu0 0
  %405 = vmatpush1.bf16.msra.mxu0 %v332
  %406 = vmatprep.subr.bf16.mxu0 0
  %407 = vmatpush1.bf16.msra.mxu0 %v333
  %408 = vmatprep.subr.bf16.mxu0 0
  %409 = vmatpush1.bf16.msra.mxu0 %v334
  %410 = vmatprep.subr.bf16.mxu0 0
  %411 = vmatpush1.bf16.msra.mxu0 %v335
  %412 = vmatprep.subr.bf16.mxu0 0
  %413 = vmatpush1.bf16.msra.mxu0 %v336
  %414 = vmatprep.subr.bf16.mxu0 0
  %415 = vmatpush1.bf16.msra.mxu0 %v337
  %416 = vmatprep.subr.bf16.mxu0 0
  %417 = vmatpush1.bf16.msra.mxu0 %v338
  %418 = vmatprep.subr.bf16.mxu0 0
  %419 = vmatpush1.bf16.msra.mxu0 %v339
  %420 = vmatprep.mubr.bf16.mxu0 %v165
  %421 = vmatmul.mubr.bf16.gmra.mrb[0].mxu0 %v164
  %v422 = vpop.f32.mrb[0].mxu0
  %v423 = vadd.f32 0.0, %v422
  %v424 = vpop.f32.mrb[0].mxu0
  %v425 = vpop.f32.mrb[0].mxu0
  %v426 = vadd.f32 0.0, %v425
  %v427 = vpop.f32.mrb[0].mxu0
  %428 = vmatprep.mubr.bf16.mxu0 %v169
  %429 = vmatmul.mubr.bf16.gmra.mrb[0].mxu0 %v168
  %v430 = vpop.f32.mrb[0].mxu0
  %v431 = vadd.f32 0.0, %v430
  %v432 = vpop.f32.mrb[0].mxu0
  %v433 = vpop.f32.mrb[0].mxu0
  %v434 = vadd.f32 0.0, %v433
  %v435 = vpop.f32.mrb[0].mxu0
  %436 = vmatprep.mubr.bf16.mxu0 %v173
  %437 = vmatmul.mubr.bf16.gmra.mrb[0].mxu0 %v172
  %v438 = vpop.f32.mrb[0].mxu0
  %v439 = vadd.f32 0.0, %v438
  %v440 = vpop.f32.mrb[0].mxu0
  %v441 = vpop.f32.mrb[0].mxu0
  %v442 = vadd.f32 0.0, %v441
  %v443 = vpop.f32.mrb[0].mxu0
  %444 = vmatprep.mubr.bf16.mxu0 %v177
  %445 = vmatmul.mubr.bf16.gmra.mrb[0].mxu0 %v176
  %v446 = vpop.f32.mrb[0].mxu0
  %v447 = vadd.f32 0.0, %v446
  %v448 = vpop.f32.mrb[0].mxu0
  %v449 = vpop.f32.mrb[0].mxu0
  %v450 = vadd.f32 0.0, %v449
  %v451 = vpop.f32.mrb[0].mxu0
  %452 = vdwg.mxu0
  %453 = vmatprep.subr.bf16.mxu0 0
  %454 = vmatpush1.bf16.msra.mxu0 %v340
  %455 = vmatprep.subr.bf16.mxu0 0
  %456 = vmatpush1.bf16.msra.mxu0 %v341
  %457 = vmatprep.subr.bf16.mxu0 0
  %458 = vmatpush1.bf16.msra.mxu0 %v342
  %459 = vmatprep.subr.bf16.mxu0 0
  %460 = vmatpush1.bf16.msra.mxu0 %v343
  %461 = vmatprep.subr.bf16.mxu0 0
  %462 = vmatpush1.bf16.msra.mxu0 %v344
  %463 = vmatprep.subr.bf16.mxu0 0
  %464 = vmatpush1.bf16.msra.mxu0 %v345
  %465 = vmatprep.subr.bf16.mxu0 0
  %466 = vmatpush1.bf16.msra.mxu0 %v346
  %467 = vmatprep.subr.bf16.mxu0 0
  %468 = vmatpush1.bf16.msra.mxu0 %v347
  %469 = vmatprep.subr.bf16.mxu0 0
  %470 = vmatpush1.bf16.msra.mxu0 %v348
  %471 = vmatprep.subr.bf16.mxu0 0
  %472 = vmatpush1.bf16.msra.mxu0 %v349
  %473 = vmatprep.subr.bf16.mxu0 0
  %474 = vmatpush1.bf16.msra.mxu0 %v350
  %475 = vmatprep.subr.bf16.mxu0 0
  %476 = vmatpush1.bf16.msra.mxu0 %v351
  %477 = vmatprep.subr.bf16.mxu0 0
  %478 = vmatpush1.bf16.msra.mxu0 %v352
  %479 = vmatprep.subr.bf16.mxu0 0
  %480 = vmatpush1.bf16.msra.mxu0 %v353
  %481 = vmatprep.subr.bf16.mxu0 0
  %482 = vmatpush1.bf16.msra.mxu0 %v354
  %483 = vmatprep.subr.bf16.mxu0 0
  %484 = vmatpush1.bf16.msra.mxu0 %v355
  %485 = vmatprep.mubr.bf16.mxu0 %v167
  %486 = vmatmul.mubr.bf16.gmra.mrb[0].mxu0 %v166
  %v487 = vpop.f32.mrb[0].mxu0
  %v488 = vadd.f32 %v423, %v487
  %v489 = vpop.f32.mrb[0].mxu0
  %v490 = vpop.f32.mrb[0].mxu0
  %v491 = vadd.f32 %v426, %v490
  %v492 = vpop.f32.mrb[0].mxu0
  %493 = vmatprep.mubr.bf16.mxu0 %v171
  %494 = vmatmul.mubr.bf16.gmra.mrb[0].mxu0 %v170
  %v495 = vpop.f32.mrb[0].mxu0
  %v496 = vadd.f32 %v431, %v495
  %v497 = vpop.f32.mrb[0].mxu0
  %v498 = vpop.f32.mrb[0].mxu0
  %v499 = vadd.f32 %v434, %v498
  %v500 = vpop.f32.mrb[0].mxu0
  %501 = vmatprep.mubr.bf16.mxu0 %v175
  %502 = vmatmul.mubr.bf16.gmra.mrb[0].mxu0 %v174
  %v503 = vpop.f32.mrb[0].mxu0
  %v504 = vadd.f32 %v439, %v503
  %v505 = vpop.f32.mrb[0].mxu0
  %v506 = vpop.f32.mrb[0].mxu0
  %v507 = vadd.f32 %v442, %v506
  %v508 = vpop.f32.mrb[0].mxu0
  %509 = vmatprep.mubr.bf16.mxu0 %v179
  %510 = vmatmul.mubr.bf16.gmra.mrb[0].mxu0 %v178
  %v511 = vpop.f32.mrb[0].mxu0
  %v512 = vadd.f32 %v447, %v511
  %v513 = vpop.f32.mrb[0].mxu0
  %v514 = vpop.f32.mrb[0].mxu0
  %v515 = vadd.f32 %v450, %v514
  %v516 = vpop.f32.mrb[0].mxu0
  %517 = vdwg.mxu0
  %v518 = vadd.f32 %v28, %v488
  %v519 = vadd.f32 %v29, %v491
  %v520 = vadd.f32 %v30, %v496
  %v521 = vadd.f32 %v31, %v499
  %v522 = vadd.f32 %v32, %v504
  %v523 = vadd.f32 %v33, %v507
  %v524 = vadd.f32 %v34, %v512
  %v525 = vadd.f32 %v35, %v515
  %vm526 = vcmask 588800
  %527 = vst.msk [vmem:[#allocation2] sm:$0xff] %vm526, %v518
  %528 = vst.msk [vmem:[#allocation2 + $0x8] sm:$0xff] %vm526, %v519
  %529 = vst.msk [vmem:[#allocation2 + $0x10] sm:$0xff] %vm526, %v520
  %530 = vst.msk [vmem:[#allocation2 + $0x18] sm:$0xff] %vm526, %v521
  %531 = vst.msk [vmem:[#allocation2 + $0x20] sm:$0xff] %vm526, %v522
  %532 = vst.msk [vmem:[#allocation2 + $0x28] sm:$0xff] %vm526, %v523
  %533 = vst.msk [vmem:[#allocation2 + $0x30] sm:$0xff] %vm526, %v524
  %534 = vst.msk [vmem:[#allocation2 + $0x38] sm:$0xff] %vm526, %v525
  // Predicated region
  $region18: #{forward.11} parent=0 // pred_check
    %p535 = pneg %p15
  $region19: #{forward.11} parent=0 // pred_check_branch
    %537 = sbr.rel (%p535) target = $region21
  $region20: #{forward.11} parent=0 // pred_region
    %v538 = vld [vmem:[#allocation2] sm:$0xff]
    %v539 = vld [vmem:[#allocation2 + $0x8] sm:$0xff]
    %v540 = vld [vmem:[#allocation2 + $0x10] sm:$0xff]
    %v541 = vld [vmem:[#allocation2 + $0x18] sm:$0xff]
    %v542 = vld [vmem:[#allocation2 + $0x20] sm:$0xff]
    %v543 = vld [vmem:[#allocation2 + $0x28] sm:$0xff]
    %v544 = vld [vmem:[#allocation2 + $0x30] sm:$0xff]
    %v545 = vld [vmem:[#allocation2 + $0x38] sm:$0xff]
    %v546 = vld [vmem:[%s2] sm:$0xff]
    %v547 = vld [vmem:[%s2 + $0x8] sm:$0xff]
    %v548 = vld [vmem:[%s2 + $0x10] sm:$0xff]
    %v549 = vld [vmem:[%s2 + $0x18] sm:$0xff]
    %v550 = vld [vmem:[%s2 + $0x20] sm:$0xff]
    %v551 = vld [vmem:[%s2 + $0x28] sm:$0xff]
    %v552 = vld [vmem:[%s2 + $0x30] sm:$0xff]
    %v553 = vld [vmem:[%s2 + $0x38] sm:$0xff]
    %555 = vset.pattern.permute.xlu0 0
    %556 = vperm.xlu0 %555, %v546
    %v557 = vpop.permute.xlu0 %556
    %560 = vset.pattern.permute.xlu0 0
    %561 = vperm.xlu0 %560, %v547
    %v562 = vpop.permute.xlu0 %561
    %565 = vset.pattern.permute.xlu0 0
    %566 = vperm.xlu0 %565, %v548
    %v567 = vpop.permute.xlu0 %566
    %570 = vset.pattern.permute.xlu0 0
    %571 = vperm.xlu0 %570, %v549
    %v572 = vpop.permute.xlu0 %571
    %575 = vset.pattern.permute.xlu0 0
    %576 = vperm.xlu0 %575, %v550
    %v577 = vpop.permute.xlu0 %576
    %580 = vset.pattern.permute.xlu0 0
    %581 = vperm.xlu0 %580, %v551
    %v582 = vpop.permute.xlu0 %581
    %585 = vset.pattern.permute.xlu0 0
    %586 = vperm.xlu0 %585, %v552
    %v587 = vpop.permute.xlu0 %586
    %590 = vset.pattern.permute.xlu0 0
    %591 = vperm.xlu0 %590, %v553
    %v592 = vpop.permute.xlu0 %591
    %v594 = vadd.f32 %v538, %v557
    %v595 = vadd.f32 %v539, %v562
    %v596 = vadd.f32 %v540, %v567
    %v597 = vadd.f32 %v541, %v572
    %v598 = vadd.f32 %v542, %v577
    %v599 = vadd.f32 %v543, %v582
    %v600 = vadd.f32 %v544, %v587
    %v601 = vadd.f32 %v545, %v592
    %v602 = vmax.f32 %v594, 0.0
    %v603 = vmax.f32 %v595, 0.0
    %v604 = vmax.f32 %v596, 0.0
    %v605 = vmax.f32 %v597, 0.0
    %v606 = vmax.f32 %v598, 0.0
    %v607 = vmax.f32 %v599, 0.0
    %v608 = vmax.f32 %v600, 0.0
    %v609 = vmax.f32 %v601, 0.0
    %v610 = vpack.c.bf16 %v603, %v602
    %v611 = vpack.c.bf16 %v605, %v604
    %v612 = vpack.c.bf16 %v607, %v606
    %v613 = vpack.c.bf16 %v609, %v608
    %v618 = vunpack.c.l.b16 %v610
    %v619 = vunpack.c.h.b16 %v610
    %v620 = vunpack.c.l.b16 %v611
    %v621 = vunpack.c.h.b16 %v611
    %v622 = vunpack.c.l.b16 %v612
    %v623 = vunpack.c.h.b16 %v612
    %v624 = vunpack.c.l.b16 %v613
    %v625 = vunpack.c.h.b16 %v613
    %v626 = vpack.c.b16 %v618, %v618
    %v627 = vpack.c.b16 %v619, %v619
    %v628 = vpack.c.b16 %v620, %v620
    %v629 = vpack.c.b16 %v621, %v621
    %v630 = vpack.c.b16 %v622, %v622
    %v631 = vpack.c.b16 %v623, %v623
    %v632 = vpack.c.b16 %v624, %v624
    %v633 = vpack.c.b16 %v625, %v625
    %vm642 = vcmask 584704
    %643 = vst.msk [vmem:[%s3] sm:$0xf] %vm642, %v626
    %644 = vst.msk [vmem:[%s3 + $0x4] sm:$0xf] %vm642, %v627
    %645 = vst.msk [vmem:[%s3 + $0x8] sm:$0xf] %vm642, %v628
    %646 = vst.msk [vmem:[%s3 + $0xc] sm:$0xf] %vm642, %v629
    %647 = vst.msk [vmem:[%s3 + $0x10] sm:$0xf] %vm642, %v630
    %648 = vst.msk [vmem:[%s3 + $0x14] sm:$0xf] %vm642, %v631
    %649 = vst.msk [vmem:[%s3 + $0x18] sm:$0xf] %vm642, %v632
    %650 = vst.msk [vmem:[%s3 + $0x1c] sm:$0xf] %vm642, %v633
  $region21: #{forward.11} parent=0 // pred_fallthru
    _
  // Predicated region
  $region22: #{forward.11} parent=0 // pred_check
    _
  $region23: #{forward.11} parent=0 // pred_check_branch
    %652 = sbr.rel (0) target = $region25
  $region24: #{forward.11} parent=0 // pred_region
    _
  $region25: #{forward.11} parent=0 // pred_fallthru
    _
  // Predicated region
  $region26: #{forward.11} parent=0 // pred_check
    _
  $region27: #{forward.11} parent=0 // pred_check_branch
    %654 = sbr.rel (0) target = $region29
  $region28: #{forward.11} parent=0 // pred_region
    _
  $region29: #{forward.11} parent=0 // pred_fallthru
    _

// kernel: forward.13
$region0: #{forward.13}
  #allocation0 [shape = 'u32[]', space=smem, size = 0x4, offset = 0x4, fixed_abs, tag = 'smem constant byte address 0x4 - core index']
  #allocation1 [shape = 'u32[144,128]{1,0:T(1,128)}', space=vmem, size = 0x12000, scoped, tag = 'internal scratch']
  #allocation2 [shape = 'f32[96,32]{1,0:T(8,128)}', space=vmem, size = 0xc000, scoped, tag = 'scratch operand']
  %s0 = inlined_call_operand.vmem [shape: bf16[96,64], index: 0, kind: input, shape index: {}]
  %s1 = inlined_call_operand.vmem [shape: bf16[64,32], index: 1, kind: input, shape index: {}]
  %s2 = inlined_call_operand.vmem [shape: f32[96,1], index: 2, kind: input, shape index: {}]
  %s3 = inlined_call_operand.vmem [shape: bf16[96,32], index: 3, kind: output, shape index: {}]
  %s4 = sld [smem:[#allocation0]]
  $region30: #{forward.13} parent=0
    _
  %s6 = ssub.s32 1, %s4
  %s7 = scalar_select 0, %s6, %s4
  // Predicated region
  $region2: #{forward.13} parent=0 // pred_check
    _
  $region3: #{forward.13} parent=0 // pred_check_branch
    %9 = sbr.rel (0) target = $region5
  $region4: #{forward.13} parent=0 // pred_region
    _
  $region5: #{forward.13} parent=0 // pred_fallthru
    _
  // Predicated region
  $region6: #{forward.13} parent=0 // pred_check
    _
  $region7: #{forward.13} parent=0 // pred_check_branch
    %11 = sbr.rel (0) target = $region9
  $region8: #{forward.13} parent=0 // pred_region
    _
  $region9: #{forward.13} parent=0 // pred_fallthru
    _
  // Predicated region
  $region10: #{forward.13} parent=0 // pred_check
    _
  $region11: #{forward.13} parent=0 // pred_check_branch
    %13 = sbr.rel (0) target = $region13
  $region12: #{forward.13} parent=0 // pred_region
    _
  $region13: #{forward.13} parent=0 // pred_fallthru
    _
  %p15 = scmp.eq.s32.totalorder 0, 0
  // Predicated region
  $region14: #{forward.13} parent=0 // pred_check
    %p16 = pneg %p15
  $region15: #{forward.13} parent=0 // pred_check_branch
    %18 = sbr.rel (%p16) target = $region17
  $region16: #{forward.13} parent=0 // pred_region
    %vm19 = vcmask 261120
    %20 = vst.msk [vmem:[#allocation2] sm:$0xff] %vm19, 0.0
    %21 = vst.msk [vmem:[#allocation2 + $0x8] sm:$0xff] %vm19, 0.0
    %22 = vst.msk [vmem:[#allocation2 + $0x10] sm:$0xff] %vm19, 0.0
    %23 = vst.msk [vmem:[#allocation2 + $0x18] sm:$0xff] %vm19, 0.0
    %24 = vst.msk [vmem:[#allocation2 + $0x20] sm:$0xff] %vm19, 0.0
    %25 = vst.msk [vmem:[#allocation2 + $0x28] sm:$0xff] %vm19, 0.0
    %26 = vst.msk [vmem:[#allocation2 + $0x30] sm:$0xff] %vm19, 0.0
    %27 = vst.msk [vmem:[#allocation2 + $0x38] sm:$0xff] %vm19, 0.0
    %28 = vst.msk [vmem:[#allocation2 + $0x40] sm:$0xff] %vm19, 0.0
    %29 = vst.msk [vmem:[#allocation2 + $0x48] sm:$0xff] %vm19, 0.0
    %30 = vst.msk [vmem:[#allocation2 + $0x50] sm:$0xff] %vm19, 0.0
    %31 = vst.msk [vmem:[#allocation2 + $0x58] sm:$0xff] %vm19, 0.0
  $region17: #{forward.13} parent=0 // pred_fallthru
    _
  %v32 = vld [vmem:[#allocation2] sm:$0xff]
  %v33 = vld [vmem:[#allocation2 + $0x8] sm:$0xff]
  %v34 = vld [vmem:[#allocation2 + $0x10] sm:$0xff]
  %v35 = vld [vmem:[#allocation2 + $0x18] sm:$0xff]
  %v36 = vld [vmem:[#allocation2 + $0x20] sm:$0xff]
  %v37 = vld [vmem:[#allocation2 + $0x28] sm:$0xff]
  %v38 = vld [vmem:[#allocation2 + $0x30] sm:$0xff]
  %v39 = vld [vmem:[#allocation2 + $0x38] sm:$0xff]
  %v40 = vld [vmem:[#allocation2 + $0x40] sm:$0xff]
  %v41 = vld [vmem:[#allocation2 + $0x48] sm:$0xff]
  %v42 = vld [vmem:[#allocation2 + $0x50] sm:$0xff]
  %v43 = vld [vmem:[#allocation2 + $0x58] sm:$0xff]
  %v44 = vld [vmem:[%s0] sm:$0xf]
  %v45 = vld [vmem:[%s0 + $0x4] sm:$0xf]
  %v46 = vld [vmem:[%s0 + $0x8] sm:$0xf]
  %v47 = vld [vmem:[%s0 + $0xc] sm:$0xf]
  %v48 = vld [vmem:[%s0 + $0x10] sm:$0xf]
  %v49 = vld [vmem:[%s0 + $0x14] sm:$0xf]
  %v50 = vld [vmem:[%s0 + $0x18] sm:$0xf]
  %v51 = vld [vmem:[%s0 + $0x1c] sm:$0xf]
  %v52 = vld [vmem:[%s0 + $0x20] sm:$0xf]
  %v53 = vld [vmem:[%s0 + $0x24] sm:$0xf]
  %v54 = vld [vmem:[%s0 + $0x28] sm:$0xf]
  %v55 = vld [vmem:[%s0 + $0x2c] sm:$0xf]
  %v56 = vld [vmem:[%s1] sm:$0xf]
  %v57 = vld [vmem:[%s1 + $0x4] sm:$0xf]
  %v58 = vld [vmem:[%s1 + $0x8] sm:$0xf]
  %v59 = vld [vmem:[%s1 + $0xc] sm:$0xf]
  %v60 = vld [vmem:[%s1 + $0x10] sm:$0xf]
  %v61 = vld [vmem:[%s1 + $0x14] sm:$0xf]
  %v62 = vld [vmem:[%s1 + $0x18] sm:$0xf]
  %v63 = vld [vmem:[%s1 + $0x1c] sm:$0xf]
  %v76 = vunpack.c.l.b16 %v44
  %v77 = vunpack.c.l.b16 %v45
  %v78 = vunpack.c.l.b16 %v46
  %v79 = vunpack.c.l.b16 %v47
  %v80 = vunpack.c.l.b16 %v48
  %v81 = vunpack.c.l.b16 %v49
  %v82 = vunpack.c.l.b16 %v50
  %v83 = vunpack.c.l.b16 %v51
  %v84 = vunpack.c.l.b16 %v52
  %v85 = vunpack.c.l.b16 %v53
  %v86 = vunpack.c.l.b16 %v54
  %v87 = vunpack.c.l.b16 %v55
  %v88 = vpack.c.b16 %v77, %v76
  %v89 = vpack.c.b16 %v79, %v78
  %v90 = vpack.c.b16 %v81, %v80
  %v91 = vpack.c.b16 %v83, %v82
  %v92 = vpack.c.b16 %v85, %v84
  %v93 = vpack.c.b16 %v87, %v86
  %v102 = vunpack.c.l.b16 %v56
  %v103 = vunpack.c.l.b16 %v57
  %v104 = vunpack.c.l.b16 %v58
  %v105 = vunpack.c.l.b16 %v59
  %v106 = vunpack.c.l.b16 %v60
  %v107 = vunpack.c.l.b16 %v61
  %v108 = vunpack.c.l.b16 %v62
  %v109 = vunpack.c.l.b16 %v63
  %v110 = vpack.c.b16 %v103, %v102
  %v111 = vpack.c.b16 %v105, %v104
  %v112 = vpack.c.b16 %v107, %v106
  %v113 = vpack.c.b16 %v109, %v108
  %vm118 = vcmask 523264
  %v120 = vsel %vm118, %v88, 0
  %v123 = vsel %vm118, %v89, 0
  %v126 = vsel %vm118, %v90, 0
  %v129 = vsel %vm118, %v91, 0
  %v132 = vsel %vm118, %v92, 0
  %v135 = vsel %vm118, %v93, 0
  %137 = vmatprep.subr.bf16.mxu0 0
  %138 = vmatpush1.bf16.msra.mxu0 %v110
  %139 = vmatprep.subr.bf16.mxu0 0
  %140 = vmatpush1.bf16.msra.mxu0 %v111
  %141 = vmatprep.subr.bf16.mxu0 0
  %142 = vmatpush1.bf16.msra.mxu0 %v112
  %143 = vmatprep.subr.bf16.mxu0 0
  %144 = vmatpush1.bf16.msra.mxu0 %v113
  %145 = vmatprep.subr.bf16.mxu0 0
  %146 = vmatpush1.bf16.msra.mxu0 0
  %147 = vmatprep.subr.bf16.mxu0 0
  %148 = vmatpush1.bf16.msra.mxu0 0
  %149 = vmatprep.subr.bf16.mxu0 0
  %150 = vmatpush1.bf16.msra.mxu0 0
  %151 = vmatprep.subr.bf16.mxu0 0
  %152 = vmatpush1.bf16.msra.mxu0 0
  %153 = vmatprep.subr.bf16.mxu0 0
  %154 = vmatpush1.bf16.msra.mxu0 0
  %155 = vmatprep.subr.bf16.mxu0 0
  %156 = vmatpush1.bf16.msra.mxu0 0
  %157 = vmatprep.subr.bf16.mxu0 0
  %158 = vmatpush1.bf16.msra.mxu0 0
  %159 = vmatprep.subr.bf16.mxu0 0
  %160 = vmatpush1.bf16.msra.mxu0 0
  %161 = vmatprep.subr.bf16.mxu0 0
  %162 = vmatpush1.bf16.msra.mxu0 0
  %163 = vmatprep.subr.bf16.mxu0 0
  %164 = vmatpush1.bf16.msra.mxu0 0
  %165 = vmatprep.subr.bf16.mxu0 0
  %166 = vmatpush1.bf16.msra.mxu0 0
  %167 = vmatprep.subr.bf16.mxu0 0
  %168 = vmatpush1.bf16.msra.mxu0 0
  %169 = vmatprep.mubr.bf16.mxu0 0
  %170 = vmatmul.mubr.bf16.gmra.mrb[0].mxu0 %v120
  %v171 = vpop.f32.mrb[0].mxu0
  %v172 = vadd.f32 0.0, %v171
  %v173 = vpop.f32.mrb[0].mxu0
  %v174 = vpop.f32.mrb[0].mxu0
  %v175 = vadd.f32 0.0, %v174
  %v176 = vpop.f32.mrb[0].mxu0
  %177 = vmatprep.mubr.bf16.mxu0 0
  %178 = vmatmul.mubr.bf16.gmra.mrb[0].mxu0 %v123
  %v179 = vpop.f32.mrb[0].mxu0
  %v180 = vadd.f32 0.0, %v179
  %v181 = vpop.f32.mrb[0].mxu0
  %v182 = vpop.f32.mrb[0].mxu0
  %v183 = vadd.f32 0.0, %v182
  %v184 = vpop.f32.mrb[0].mxu0
  %185 = vmatprep.mubr.bf16.mxu0 0
  %186 = vmatmul.mubr.bf16.gmra.mrb[0].mxu0 %v126
  %v187 = vpop.f32.mrb[0].mxu0
  %v188 = vadd.f32 0.0, %v187
  %v189 = vpop.f32.mrb[0].mxu0
  %v190 = vpop.f32.mrb[0].mxu0
  %v191 = vadd.f32 0.0, %v190
  %v192 = vpop.f32.mrb[0].mxu0
  %193 = vmatprep.mubr.bf16.mxu0 0
  %194 = vmatmul.mubr.bf16.gmra.mrb[0].mxu0 %v129
  %v195 = vpop.f32.mrb[0].mxu0
  %v196 = vadd.f32 0.0, %v195
  %v197 = vpop.f32.mrb[0].mxu0
  %v198 = vpop.f32.mrb[0].mxu0
  %v199 = vadd.f32 0.0, %v198
  %v200 = vpop.f32.mrb[0].mxu0
  %201 = vmatprep.mubr.bf16.mxu0 0
  %202 = vmatmul.mubr.bf16.gmra.mrb[0].mxu0 %v132
  %v203 = vpop.f32.mrb[0].mxu0
  %v204 = vadd.f32 0.0, %v203
  %v205 = vpop.f32.mrb[0].mxu0
  %v206 = vpop.f32.mrb[0].mxu0
  %v207 = vadd.f32 0.0, %v206
  %v208 = vpop.f32.mrb[0].mxu0
  %209 = vmatprep.mubr.bf16.mxu0 0
  %210 = vmatmul.mubr.bf16.gmra.mrb[0].mxu0 %v135
  %v211 = vpop.f32.mrb[0].mxu0
  %v212 = vadd.f32 0.0, %v211
  %v213 = vpop.f32.mrb[0].mxu0
  %v214 = vpop.f32.mrb[0].mxu0
  %v215 = vadd.f32 0.0, %v214
  %v216 = vpop.f32.mrb[0].mxu0
  %217 = vdwg.mxu0
  %v218 = vadd.f32 %v32, %v172
  %v219 = vadd.f32 %v33, %v175
  %v220 = vadd.f32 %v34, %v180
  %v221 = vadd.f32 %v35, %v183
  %v222 = vadd.f32 %v36, %v188
  %v223 = vadd.f32 %v37, %v191
  %v224 = vadd.f32 %v38, %v196
  %v225 = vadd.f32 %v39, %v199
  %v226 = vadd.f32 %v40, %v204
  %v227 = vadd.f32 %v41, %v207
  %v228 = vadd.f32 %v42, %v212
  %v229 = vadd.f32 %v43, %v215
  %vm230 = vcmask 261120
  %231 = vst.msk [vmem:[#allocation2] sm:$0xff] %vm230, %v218
  %232 = vst.msk [vmem:[#allocation2 + $0x8] sm:$0xff] %vm230, %v219
  %233 = vst.msk [vmem:[#allocation2 + $0x10] sm:$0xff] %vm230, %v220
  %234 = vst.msk [vmem:[#allocation2 + $0x18] sm:$0xff] %vm230, %v221
  %235 = vst.msk [vmem:[#allocation2 + $0x20] sm:$0xff] %vm230, %v222
  %236 = vst.msk [vmem:[#allocation2 + $0x28] sm:$0xff] %vm230, %v223
  %237 = vst.msk [vmem:[#allocation2 + $0x30] sm:$0xff] %vm230, %v224
  %238 = vst.msk [vmem:[#allocation2 + $0x38] sm:$0xff] %vm230, %v225
  %239 = vst.msk [vmem:[#allocation2 + $0x40] sm:$0xff] %vm230, %v226
  %240 = vst.msk [vmem:[#allocation2 + $0x48] sm:$0xff] %vm230, %v227
  %241 = vst.msk [vmem:[#allocation2 + $0x50] sm:$0xff] %vm230, %v228
  %242 = vst.msk [vmem:[#allocation2 + $0x58] sm:$0xff] %vm230, %v229
  // Predicated region
  $region18: #{forward.13} parent=0 // pred_check
    %p243 = pneg %p15
  $region19: #{forward.13} parent=0 // pred_check_branch
    %245 = sbr.rel (%p243) target = $region21
  $region20: #{forward.13} parent=0 // pred_region
    %v246 = vld [vmem:[#allocation2] sm:$0xff]
    %v247 = vld [vmem:[#allocation2 + $0x8] sm:$0xff]
    %v248 = vld [vmem:[#allocation2 + $0x10] sm:$0xff]
    %v249 = vld [vmem:[#allocation2 + $0x18] sm:$0xff]
    %v250 = vld [vmem:[#allocation2 + $0x20] sm:$0xff]
    %v251 = vld [vmem:[#allocation2 + $0x28] sm:$0xff]
    %v252 = vld [vmem:[#allocation2 + $0x30] sm:$0xff]
    %v253 = vld [vmem:[#allocation2 + $0x38] sm:$0xff]
    %v254 = vld [vmem:[#allocation2 + $0x40] sm:$0xff]
    %v255 = vld [vmem:[#allocation2 + $0x48] sm:$0xff]
    %v256 = vld [vmem:[#allocation2 + $0x50] sm:$0xff]
    %v257 = vld [vmem:[#allocation2 + $0x58] sm:$0xff]
    %v258 = vld [vmem:[%s2] sm:$0xff]
    %v259 = vld [vmem:[%s2 + $0x8] sm:$0xff]
    %v260 = vld [vmem:[%s2 + $0x10] sm:$0xff]
    %v261 = vld [vmem:[%s2 + $0x18] sm:$0xff]
    %v262 = vld [vmem:[%s2 + $0x20] sm:$0xff]
    %v263 = vld [vmem:[%s2 + $0x28] sm:$0xff]
    %v264 = vld [vmem:[%s2 + $0x30] sm:$0xff]
    %v265 = vld [vmem:[%s2 + $0x38] sm:$0xff]
    %v266 = vld [vmem:[%s2 + $0x40] sm:$0xff]
    %v267 = vld [vmem:[%s2 + $0x48] sm:$0xff]
    %v268 = vld [vmem:[%s2 + $0x50] sm:$0xff]
    %v269 = vld [vmem:[%s2 + $0x58] sm:$0xff]
    %271 = vset.pattern.permute.xlu0 0
    %272 = vperm.xlu0 %271, %v258
    %v273 = vpop.permute.xlu0 %272
    %276 = vset.pattern.permute.xlu0 0
    %277 = vperm.xlu0 %276, %v259
    %v278 = vpop.permute.xlu0 %277
    %281 = vset.pattern.permute.xlu0 0
    %282 = vperm.xlu0 %281, %v260
    %v283 = vpop.permute.xlu0 %282
    %286 = vset.pattern.permute.xlu0 0
    %287 = vperm.xlu0 %286, %v261
    %v288 = vpop.permute.xlu0 %287
    %291 = vset.pattern.permute.xlu0 0
    %292 = vperm.xlu0 %291, %v262
    %v293 = vpop.permute.xlu0 %292
    %296 = vset.pattern.permute.xlu0 0
    %297 = vperm.xlu0 %296, %v263
    %v298 = vpop.permute.xlu0 %297
    %301 = vset.pattern.permute.xlu0 0
    %302 = vperm.xlu0 %301, %v264
    %v303 = vpop.permute.xlu0 %302
    %306 = vset.pattern.permute.xlu0 0
    %307 = vperm.xlu0 %306, %v265
    %v308 = vpop.permute.xlu0 %307
    %311 = vset.pattern.permute.xlu0 0
    %312 = vperm.xlu0 %311, %v266
    %v313 = vpop.permute.xlu0 %312
    %316 = vset.pattern.permute.xlu0 0
    %317 = vperm.xlu0 %316, %v267
    %v318 = vpop.permute.xlu0 %317
    %321 = vset.pattern.permute.xlu0 0
    %322 = vperm.xlu0 %321, %v268
    %v323 = vpop.permute.xlu0 %322
    %326 = vset.pattern.permute.xlu0 0
    %327 = vperm.xlu0 %326, %v269
    %v328 = vpop.permute.xlu0 %327
    %v330 = vadd.f32 %v246, %v273
    %v331 = vadd.f32 %v247, %v278
    %v332 = vadd.f32 %v248, %v283
    %v333 = vadd.f32 %v249, %v288
    %v334 = vadd.f32 %v250, %v293
    %v335 = vadd.f32 %v251, %v298
    %v336 = vadd.f32 %v252, %v303
    %v337 = vadd.f32 %v253, %v308
    %v338 = vadd.f32 %v254, %v313
    %v339 = vadd.f32 %v255, %v318
    %v340 = vadd.f32 %v256, %v323
    %v341 = vadd.f32 %v257, %v328
    %v342 = vpack.c.bf16 %v331, %v330
    %v343 = vpack.c.bf16 %v333, %v332
    %v344 = vpack.c.bf16 %v335, %v334
    %v345 = vpack.c.bf16 %v337, %v336
    %v346 = vpack.c.bf16 %v339, %v338
    %v347 = vpack.c.bf16 %v341, %v340
    %v354 = vunpack.c.l.b16 %v342
    %v355 = vunpack.c.h.b16 %v342
    %v356 = vunpack.c.l.b16 %v343
    %v357 = vunpack.c.h.b16 %v343
    %v358 = vunpack.c.l.b16 %v344
    %v359 = vunpack.c.h.b16 %v344
    %v360 = vunpack.c.l.b16 %v345
    %v361 = vunpack.c.h.b16 %v345
    %v362 = vunpack.c.l.b16 %v346
    %v363 = vunpack.c.h.b16 %v346
    %v364 = vunpack.c.l.b16 %v347
    %v365 = vunpack.c.h.b16 %v347
    %v366 = vpack.c.b16 %v354, %v354
    %v367 = vpack.c.b16 %v355, %v355
    %v368 = vpack.c.b16 %v356, %v356
    %v369 = vpack.c.b16 %v357, %v357
    %v370 = vpack.c.b16 %v358, %v358
    %v371 = vpack.c.b16 %v359, %v359
    %v372 = vpack.c.b16 %v360, %v360
    %v373 = vpack.c.b16 %v361, %v361
    %v374 = vpack.c.b16 %v362, %v362
    %v375 = vpack.c.b16 %v363, %v363
    %v376 = vpack.c.b16 %v364, %v364
    %v377 = vpack.c.b16 %v365, %v365
    %vm390 = vcmask 257024
    %391 = vst.msk [vmem:[%s3] sm:$0xf] %vm390, %v366
    %392 = vst.msk [vmem:[%s3 + $0x4] sm:$0xf] %vm390, %v367
    %393 = vst.msk [vmem:[%s3 + $0x8] sm:$0xf] %vm390, %v368
    %394 = vst.msk [vmem:[%s3 + $0xc] sm:$0xf] %vm390, %v369
    %395 = vst.msk [vmem:[%s3 + $0x10] sm:$0xf] %vm390, %v370
    %396 = vst.msk [vmem:[%s3 + $0x14] sm:$0xf] %vm390, %v371
    %397 = vst.msk [vmem:[%s3 + $0x18] sm:$0xf] %vm390, %v372
    %398 = vst.msk [vmem:[%s3 + $0x1c] sm:$0xf] %vm390, %v373
    %399 = vst.msk [vmem:[%s3 + $0x20] sm:$0xf] %vm390, %v374
    %400 = vst.msk [vmem:[%s3 + $0x24] sm:$0xf] %vm390, %v375
    %401 = vst.msk [vmem:[%s3 + $0x28] sm:$0xf] %vm390, %v376
    %402 = vst.msk [vmem:[%s3 + $0x2c] sm:$0xf] %vm390, %v377
  $region21: #{forward.13} parent=0 // pred_fallthru
    _
  // Predicated region
  $region22: #{forward.13} parent=0 // pred_check
    _
  $region23: #{forward.13} parent=0 // pred_check_branch
    %404 = sbr.rel (0) target = $region25
  $region24: #{forward.13} parent=0 // pred_region
    _
  $region25: #{forward.13} parent=0 // pred_fallthru
    _
  // Predicated region
  $region26: #{forward.13} parent=0 // pred_check
    _
  $region27: #{forward.13} parent=0 // pred_check_branch
    %406 = sbr.rel (0) target = $region29
  $region28: #{forward.13} parent=0 // pred_region
    _
  $region29: #{forward.13} parent=0 // pred_fallthru
    _

// kernel: forward.12
$region0: #{forward.12}
  #allocation0 [shape = 'u32[]', space=smem, size = 0x4, offset = 0x4, fixed_abs, tag = 'smem constant byte address 0x4 - core index']
  #allocation1 [shape = 'u32[144,128]{1,0:T(1,128)}', space=vmem, size = 0x12000, scoped, tag = 'internal scratch']
  #allocation2 [shape = 'f32[64,32]{1,0:T(8,128)}', space=vmem, size = 0x8000, scoped, tag = 'scratch operand']
  %s0 = inlined_call_operand.vmem [shape: bf16[64,576], index: 0, kind: input, shape index: {}]
  %s1 = inlined_call_operand.vmem [shape: bf16[576,32], index: 1, kind: input, shape index: {}]
  %s2 = inlined_call_operand.vmem [shape: f32[64,1], index: 2, kind: input, shape index: {}]
  %s3 = inlined_call_operand.vmem [shape: bf16[64,32], index: 3, kind: output, shape index: {}]
  %s4 = sld [smem:[#allocation0]]
  $region30: #{forward.12} parent=0
    _
  %s6 = ssub.s32 1, %s4
  %s7 = scalar_select 0, %s6, %s4
  // Predicated region
  $region2: #{forward.12} parent=0 // pred_check
    _
  $region3: #{forward.12} parent=0 // pred_check_branch
    %9 = sbr.rel (0) target = $region5
  $region4: #{forward.12} parent=0 // pred_region
    _
  $region5: #{forward.12} parent=0 // pred_fallthru
    _
  // Predicated region
  $region6: #{forward.12} parent=0 // pred_check
    _
  $region7: #{forward.12} parent=0 // pred_check_branch
    %11 = sbr.rel (0) target = $region9
  $region8: #{forward.12} parent=0 // pred_region
    _
  $region9: #{forward.12} parent=0 // pred_fallthru
    _
  // Predicated region
  $region10: #{forward.12} parent=0 // pred_check
    _
  $region11: #{forward.12} parent=0 // pred_check_branch
    %13 = sbr.rel (0) target = $region13
  $region12: #{forward.12} parent=0 // pred_region
    _
  $region13: #{forward.12} parent=0 // pred_fallthru
    _
  %p15 = scmp.eq.s32.totalorder 0, 0
  // Predicated region
  $region14: #{forward.12} parent=0 // pred_check
    %p16 = pneg %p15
  $region15: #{forward.12} parent=0 // pred_check_branch
    %18 = sbr.rel (%p16) target = $region17
  $region16: #{forward.12} parent=0 // pred_region
    %vm19 = vcmask 261120
    %20 = vst.msk [vmem:[#allocation2] sm:$0xff] %vm19, 0.0
    %21 = vst.msk [vmem:[#allocation2 + $0x8] sm:$0xff] %vm19, 0.0
    %22 = vst.msk [vmem:[#allocation2 + $0x10] sm:$0xff] %vm19, 0.0
    %23 = vst.msk [vmem:[#allocation2 + $0x18] sm:$0xff] %vm19, 0.0
    %24 = vst.msk [vmem:[#allocation2 + $0x20] sm:$0xff] %vm19, 0.0
    %25 = vst.msk [vmem:[#allocation2 + $0x28] sm:$0xff] %vm19, 0.0
    %26 = vst.msk [vmem:[#allocation2 + $0x30] sm:$0xff] %vm19, 0.0
    %27 = vst.msk [vmem:[#allocation2 + $0x38] sm:$0xff] %vm19, 0.0
  $region17: #{forward.12} parent=0 // pred_fallthru
    _
  %v28 = vld [vmem:[#allocation2] sm:$0xff]
  %v29 = vld [vmem:[#allocation2 + $0x8] sm:$0xff]
  %v30 = vld [vmem:[#allocation2 + $0x10] sm:$0xff]
  %v31 = vld [vmem:[#allocation2 + $0x18] sm:$0xff]
  %v32 = vld [vmem:[#allocation2 + $0x20] sm:$0xff]
  %v33 = vld [vmem:[#allocation2 + $0x28] sm:$0xff]
  %v34 = vld [vmem:[#allocation2 + $0x30] sm:$0xff]
  %v35 = vld [vmem:[#allocation2 + $0x38] sm:$0xff]
  %v36 = vld [vmem:[%s0] sm:$0xff]
  %v37 = vld [vmem:[%s0 + $0x8] sm:$0xff]
  %v38 = vld [vmem:[%s0 + $0x10] sm:$0xf]
  %v39 = vld [vmem:[%s0 + $0x14] sm:$0xff]
  %v40 = vld [vmem:[%s0 + $0x1c] sm:$0xff]
  %v41 = vld [vmem:[%s0 + $0x24] sm:$0xf]
  %v42 = vld [vmem:[%s0 + $0x28] sm:$0xff]
  %v43 = vld [vmem:[%s0 + $0x30] sm:$0xff]
  %v44 = vld [vmem:[%s0 + $0x38] sm:$0xf]
  %v45 = vld [vmem:[%s0 + $0x3c] sm:$0xff]
  %v46 = vld [vmem:[%s0 + $0x44] sm:$0xff]
  %v47 = vld [vmem:[%s0 + $0x4c] sm:$0xf]
  %v48 = vld [vmem:[%s0 + $0x50] sm:$0xff]
  %v49 = vld [vmem:[%s0 + $0x58] sm:$0xff]
  %v50 = vld [vmem:[%s0 + $0x60] sm:$0xf]
  %v51 = vld [vmem:[%s0 + $0x64] sm:$0xff]
  %v52 = vld [vmem:[%s0 + $0x6c] sm:$0xff]
  %v53 = vld [vmem:[%s0 + $0x74] sm:$0xf]
  %v54 = vld [vmem:[%s0 + $0x78] sm:$0xff]
  %v55 = vld [vmem:[%s0 + $0x80] sm:$0xff]
  %v56 = vld [vmem:[%s0 + $0x88] sm:$0xf]
  %v57 = vld [vmem:[%s0 + $0x8c] sm:$0xff]
  %v58 = vld [vmem:[%s0 + $0x94] sm:$0xff]
  %v59 = vld [vmem:[%s0 + $0x9c] sm:$0xf]
  %v60 = vld [vmem:[%s1] sm:$0xf]
  %v61 = vld [vmem:[%s1 + $0x4] sm:$0xf]
  %v62 = vld [vmem:[%s1 + $0x8] sm:$0xf]
  %v63 = vld [vmem:[%s1 + $0xc] sm:$0xf]
  %v64 = vld [vmem:[%s1 + $0x10] sm:$0xf]
  %v65 = vld [vmem:[%s1 + $0x14] sm:$0xf]
  %v66 = vld [vmem:[%s1 + $0x18] sm:$0xf]
  %v67 = vld [vmem:[%s1 + $0x1c] sm:$0xf]
  %v68 = vld [vmem:[%s1 + $0x20] sm:$0xf]
  %v69 = vld [vmem:[%s1 + $0x24] sm:$0xf]
  %v70 = vld [vmem:[%s1 + $0x28] sm:$0xf]
  %v71 = vld [vmem:[%s1 + $0x2c] sm:$0xf]
  %v72 = vld [vmem:[%s1 + $0x30] sm:$0xf]
  %v73 = vld [vmem:[%s1 + $0x34] sm:$0xf]
  %v74 = vld [vmem:[%s1 + $0x38] sm:$0xf]
  %v75 = vld [vmem:[%s1 + $0x3c] sm:$0xf]
  %v76 = vld [vmem:[%s1 + $0x40] sm:$0xf]
  %v77 = vld [vmem:[%s1 + $0x44] sm:$0xf]
  %v78 = vld [vmem:[%s1 + $0x48] sm:$0xf]
  %v79 = vld [vmem:[%s1 + $0x4c] sm:$0xf]
  %v80 = vld [vmem:[%s1 + $0x50] sm:$0xf]
  %v81 = vld [vmem:[%s1 + $0x54] sm:$0xf]
  %v82 = vld [vmem:[%s1 + $0x58] sm:$0xf]
  %v83 = vld [vmem:[%s1 + $0x5c] sm:$0xf]
  %v84 = vld [vmem:[%s1 + $0x60] sm:$0xf]
  %v85 = vld [vmem:[%s1 + $0x64] sm:$0xf]
  %v86 = vld [vmem:[%s1 + $0x68] sm:$0xf]
  %v87 = vld [vmem:[%s1 + $0x6c] sm:$0xf]
  %v88 = vld [vmem:[%s1 + $0x70] sm:$0xf]
  %v89 = vld [vmem:[%s1 + $0x74] sm:$0xf]
  %v90 = vld [vmem:[%s1 + $0x78] sm:$0xf]
  %v91 = vld [vmem:[%s1 + $0x7c] sm:$0xf]
  %v92 = vld [vmem:[%s1 + $0x80] sm:$0xf]
  %v93 = vld [vmem:[%s1 + $0x84] sm:$0xf]
  %v94 = vld [vmem:[%s1 + $0x88] sm:$0xf]
  %v95 = vld [vmem:[%s1 + $0x8c] sm:$0xf]
  %v96 = vld [vmem:[%s1 + $0x90] sm:$0xf]
  %v97 = vld [vmem:[%s1 + $0x94] sm:$0xf]
  %v98 = vld [vmem:[%s1 + $0x98] sm:$0xf]
  %v99 = vld [vmem:[%s1 + $0x9c] sm:$0xf]
  %v100 = vld [vmem:[%s1 + $0xa0] sm:$0xf]
  %v101 = vld [vmem:[%s1 + $0xa4] sm:$0xf]
  %v102 = vld [vmem:[%s1 + $0xa8] sm:$0xf]
  %v103 = vld [vmem:[%s1 + $0xac] sm:$0xf]
  %v104 = vld [vmem:[%s1 + $0xb0] sm:$0xf]
  %v105 = vld [vmem:[%s1 + $0xb4] sm:$0xf]
  %v106 = vld [vmem:[%s1 + $0xb8] sm:$0xf]
  %v107 = vld [vmem:[%s1 + $0xbc] sm:$0xf]
  %v108 = vld [vmem:[%s1 + $0xc0] sm:$0xf]
  %v109 = vld [vmem:[%s1 + $0xc4] sm:$0xf]
  %v110 = vld [vmem:[%s1 + $0xc8] sm:$0xf]
  %v111 = vld [vmem:[%s1 + $0xcc] sm:$0xf]
  %v112 = vld [vmem:[%s1 + $0xd0] sm:$0xf]
  %v113 = vld [vmem:[%s1 + $0xd4] sm:$0xf]
  %v114 = vld [vmem:[%s1 + $0xd8] sm:$0xf]
  %v115 = vld [vmem:[%s1 + $0xdc] sm:$0xf]
  %v116 = vld [vmem:[%s1 + $0xe0] sm:$0xf]
  %v117 = vld [vmem:[%s1 + $0xe4] sm:$0xf]
  %v118 = vld [vmem:[%s1 + $0xe8] sm:$0xf]
  %v119 = vld [vmem:[%s1 + $0xec] sm:$0xf]
  %v120 = vld [vmem:[%s1 + $0xf0] sm:$0xf]
  %v121 = vld [vmem:[%s1 + $0xf4] sm:$0xf]
  %v122 = vld [vmem:[%s1 + $0xf8] sm:$0xf]
  %v123 = vld [vmem:[%s1 + $0xfc] sm:$0xf]
  %v124 = vld [vmem:[%s1 + $0x100] sm:$0xf]
  %v125 = vld [vmem:[%s1 + $0x104] sm:$0xf]
  %v126 = vld [vmem:[%s1 + $0x108] sm:$0xf]
  %v127 = vld [vmem:[%s1 + $0x10c] sm:$0xf]
  %v128 = vld [vmem:[%s1 + $0x110] sm:$0xf]
  %v129 = vld [vmem:[%s1 + $0x114] sm:$0xf]
  %v130 = vld [vmem:[%s1 + $0x118] sm:$0xf]
  %v131 = vld [vmem:[%s1 + $0x11c] sm:$0xf]
  %v156 = vunpack.c.l.b16 %v36
  %v157 = vunpack.c.h.b16 %v36
  %v158 = vunpack.c.l.b16 %v37
  %v159 = vunpack.c.h.b16 %v37
  %v160 = vunpack.c.l.b16 %v38
  %v161 = vunpack.c.l.b16 %v39
  %v162 = vunpack.c.h.b16 %v39
  %v163 = vunpack.c.l.b16 %v40
  %v164 = vunpack.c.h.b16 %v40
  %v165 = vunpack.c.l.b16 %v41
  %v166 = vunpack.c.l.b16 %v42
  %v167 = vunpack.c.h.b16 %v42
  %v168 = vunpack.c.l.b16 %v43
  %v169 = vunpack.c.h.b16 %v43
  %v170 = vunpack.c.l.b16 %v44
  %v171 = vunpack.c.l.b16 %v45
  %v172 = vunpack.c.h.b16 %v45
  %v173 = vunpack.c.l.b16 %v46
  %v174 = vunpack.c.h.b16 %v46
  %v175 = vunpack.c.l.b16 %v47
  %v176 = vunpack.c.l.b16 %v48
  %v177 = vunpack.c.h.b16 %v48
  %v178 = vunpack.c.l.b16 %v49
  %v179 = vunpack.c.h.b16 %v49
  %v180 = vunpack.c.l.b16 %v50
  %v181 = vunpack.c.l.b16 %v51
  %v182 = vunpack.c.h.b16 %v51
  %v183 = vunpack.c.l.b16 %v52
  %v184 = vunpack.c.h.b16 %v52
  %v185 = vunpack.c.l.b16 %v53
  %v186 = vunpack.c.l.b16 %v54
  %v187 = vunpack.c.h.b16 %v54
  %v188 = vunpack.c.l.b16 %v55
  %v189 = vunpack.c.h.b16 %v55
  %v190 = vunpack.c.l.b16 %v56
  %v191 = vunpack.c.l.b16 %v57
  %v192 = vunpack.c.h.b16 %v57
  %v193 = vunpack.c.l.b16 %v58
  %v194 = vunpack.c.h.b16 %v58
  %v195 = vunpack.c.l.b16 %v59
  %v196 = vpack.c.b16 %v161, %v156
  %v197 = vpack.c.b16 %v162, %v157
  %v198 = vpack.c.b16 %v163, %v158
  %v199 = vpack.c.b16 %v164, %v159
  %v200 = vpack.c.b16 %v165, %v160
  %v201 = vpack.c.b16 %v171, %v166
  %v202 = vpack.c.b16 %v172, %v167
  %v203 = vpack.c.b16 %v173, %v168
  %v204 = vpack.c.b16 %v174, %v169
  %v205 = vpack.c.b16 %v175, %v170
  %v206 = vpack.c.b16 %v181, %v176
  %v207 = vpack.c.b16 %v182, %v177
  %v208 = vpack.c.b16 %v183, %v178
  %v209 = vpack.c.b16 %v184, %v179
  %v210 = vpack.c.b16 %v185, %v180
  %v211 = vpack.c.b16 %v191, %v186
  %v212 = vpack.c.b16 %v192, %v187
  %v213 = vpack.c.b16 %v193, %v188
  %v214 = vpack.c.b16 %v194, %v189
  %v215 = vpack.c.b16 %v195, %v190
  %v304 = vunpack.c.l.b16 %v60
  %v305 = vunpack.c.l.b16 %v61
  %v306 = vunpack.c.l.b16 %v62
  %v307 = vunpack.c.l.b16 %v63
  %v308 = vunpack.c.l.b16 %v64
  %v309 = vunpack.c.l.b16 %v65
  %v310 = vunpack.c.l.b16 %v66
  %v311 = vunpack.c.l.b16 %v67
  %v312 = vunpack.c.l.b16 %v68
  %v313 = vunpack.c.l.b16 %v69
  %v314 = vunpack.c.l.b16 %v70
  %v315 = vunpack.c.l.b16 %v71
  %v316 = vunpack.c.l.b16 %v72
  %v317 = vunpack.c.l.b16 %v73
  %v318 = vunpack.c.l.b16 %v74
  %v319 = vunpack.c.l.b16 %v75
  %v320 = vunpack.c.l.b16 %v76
  %v321 = vunpack.c.l.b16 %v77
  %v322 = vunpack.c.l.b16 %v78
  %v323 = vunpack.c.l.b16 %v79
  %v324 = vunpack.c.l.b16 %v80
  %v325 = vunpack.c.l.b16 %v81
  %v326 = vunpack.c.l.b16 %v82
  %v327 = vunpack.c.l.b16 %v83
  %v328 = vunpack.c.l.b16 %v84
  %v329 = vunpack.c.l.b16 %v85
  %v330 = vunpack.c.l.b16 %v86
  %v331 = vunpack.c.l.b16 %v87
  %v332 = vunpack.c.l.b16 %v88
  %v333 = vunpack.c.l.b16 %v89
  %v334 = vunpack.c.l.b16 %v90
  %v335 = vunpack.c.l.b16 %v91
  %v336 = vunpack.c.l.b16 %v92
  %v337 = vunpack.c.l.b16 %v93
  %v338 = vunpack.c.l.b16 %v94
  %v339 = vunpack.c.l.b16 %v95
  %v340 = vunpack.c.l.b16 %v96
  %v341 = vunpack.c.l.b16 %v97
  %v342 = vunpack.c.l.b16 %v98
  %v343 = vunpack.c.l.b16 %v99
  %v344 = vunpack.c.l.b16 %v100
  %v345 = vunpack.c.l.b16 %v101
  %v346 = vunpack.c.l.b16 %v102
  %v347 = vunpack.c.l.b16 %v103
  %v348 = vunpack.c.l.b16 %v104
  %v349 = vunpack.c.l.b16 %v105
  %v350 = vunpack.c.l.b16 %v106
  %v351 = vunpack.c.l.b16 %v107
  %v352 = vunpack.c.l.b16 %v108
  %v353 = vunpack.c.l.b16 %v109
  %v354 = vunpack.c.l.b16 %v110
  %v355 = vunpack.c.l.b16 %v111
  %v356 = vunpack.c.l.b16 %v112
  %v357 = vunpack.c.l.b16 %v113
  %v358 = vunpack.c.l.b16 %v114
  %v359 = vunpack.c.l.b16 %v115
  %v360 = vunpack.c.l.b16 %v116
  %v361 = vunpack.c.l.b16 %v117
  %v362 = vunpack.c.l.b16 %v118
  %v363 = vunpack.c.l.b16 %v119
  %v364 = vunpack.c.l.b16 %v120
  %v365 = vunpack.c.l.b16 %v121
  %v366 = vunpack.c.l.b16 %v122
  %v367 = vunpack.c.l.b16 %v123
  %v368 = vunpack.c.l.b16 %v124
  %v369 = vunpack.c.l.b16 %v125
  %v370 = vunpack.c.l.b16 %v126
  %v371 = vunpack.c.l.b16 %v127
  %v372 = vunpack.c.l.b16 %v128
  %v373 = vunpack.c.l.b16 %v129
  %v374 = vunpack.c.l.b16 %v130
  %v375 = vunpack.c.l.b16 %v131
  %v376 = vpack.c.b16 %v305, %v304
  %v377 = vpack.c.b16 %v307, %v306
  %v378 = vpack.c.b16 %v309, %v308
  %v379 = vpack.c.b16 %v311, %v310
  %v380 = vpack.c.b16 %v313, %v312
  %v381 = vpack.c.b16 %v315, %v314
  %v382 = vpack.c.b16 %v317, %v316
  %v383 = vpack.c.b16 %v319, %v318
  %v384 = vpack.c.b16 %v321, %v320
  %v385 = vpack.c.b16 %v323, %v322
  %v386 = vpack.c.b16 %v325, %v324
  %v387 = vpack.c.b16 %v327, %v326
  %v388 = vpack.c.b16 %v329, %v328
  %v389 = vpack.c.b16 %v331, %v330
  %v390 = vpack.c.b16 %v333, %v332
  %v391 = vpack.c.b16 %v335, %v334
  %v392 = vpack.c.b16 %v337, %v336
  %v393 = vpack.c.b16 %v339, %v338
  %v394 = vpack.c.b16 %v341, %v340
  %v395 = vpack.c.b16 %v343, %v342
  %v396 = vpack.c.b16 %v345, %v344
  %v397 = vpack.c.b16 %v347, %v346
  %v398 = vpack.c.b16 %v349, %v348
  %v399 = vpack.c.b16 %v351, %v350
  %v400 = vpack.c.b16 %v353, %v352
  %v401 = vpack.c.b16 %v355, %v354
  %v402 = vpack.c.b16 %v357, %v356
  %v403 = vpack.c.b16 %v359, %v358
  %v404 = vpack.c.b16 %v361, %v360
  %v405 = vpack.c.b16 %v363, %v362
  %v406 = vpack.c.b16 %v365, %v364
  %v407 = vpack.c.b16 %v367, %v366
  %v408 = vpack.c.b16 %v369, %v368
  %v409 = vpack.c.b16 %v371, %v370
  %v410 = vpack.c.b16 %v373, %v372
  %v411 = vpack.c.b16 %v375, %v374
  %vm448 = vcmask 523264
  %v450 = vsel %vm448, %v200, 0
  %v453 = vsel %vm448, %v205, 0
  %v456 = vsel %vm448, %v210, 0
  %v459 = vsel %vm448, %v215, 0
  %461 = vmatprep.subr.bf16.mxu0 0
  %462 = vmatpush1.bf16.msra.mxu0 %v376
  %463 = vmatprep.subr.bf16.mxu0 0
  %464 = vmatpush1.bf16.msra.mxu0 %v377
  %465 = vmatprep.subr.bf16.mxu0 0
  %466 = vmatpush1.bf16.msra.mxu0 %v378
  %467 = vmatprep.subr.bf16.mxu0 0
  %468 = vmatpush1.bf16.msra.mxu0 %v379
  %469 = vmatprep.subr.bf16.mxu0 0
  %470 = vmatpush1.bf16.msra.mxu0 %v380
  %471 = vmatprep.subr.bf16.mxu0 0
  %472 = vmatpush1.bf16.msra.mxu0 %v381
  %473 = vmatprep.subr.bf16.mxu0 0
  %474 = vmatpush1.bf16.msra.mxu0 %v382
  %475 = vmatprep.subr.bf16.mxu0 0
  %476 = vmatpush1.bf16.msra.mxu0 %v383
  %477 = vmatprep.subr.bf16.mxu0 0
  %478 = vmatpush1.bf16.msra.mxu0 %v384
  %479 = vmatprep.subr.bf16.mxu0 0
  %480 = vmatpush1.bf16.msra.mxu0 %v385
  %481 = vmatprep.subr.bf16.mxu0 0
  %482 = vmatpush1.bf16.msra.mxu0 %v386
  %483 = vmatprep.subr.bf16.mxu0 0
  %484 = vmatpush1.bf16.msra.mxu0 %v387
  %485 = vmatprep.subr.bf16.mxu0 0
  %486 = vmatpush1.bf16.msra.mxu0 %v388
  %487 = vmatprep.subr.bf16.mxu0 0
  %488 = vmatpush1.bf16.msra.mxu0 %v389
  %489 = vmatprep.subr.bf16.mxu0 0
  %490 = vmatpush1.bf16.msra.mxu0 %v390
  %491 = vmatprep.subr.bf16.mxu0 0
  %492 = vmatpush1.bf16.msra.mxu0 %v391
  %493 = vmatprep.mubr.bf16.mxu0 %v197
  %494 = vmatmul.mubr.bf16.gmra.mrb[0].mxu0 %v196
  %v495 = vpop.f32.mrb[0].mxu0
  %v496 = vadd.f32 0.0, %v495
  %v497 = vpop.f32.mrb[0].mxu0
  %v498 = vpop.f32.mrb[0].mxu0
  %v499 = vadd.f32 0.0, %v498
  %v500 = vpop.f32.mrb[0].mxu0
  %501 = vmatprep.mubr.bf16.mxu0 %v202
  %502 = vmatmul.mubr.bf16.gmra.mrb[0].mxu0 %v201
  %v503 = vpop.f32.mrb[0].mxu0
  %v504 = vadd.f32 0.0, %v503
  %v505 = vpop.f32.mrb[0].mxu0
  %v506 = vpop.f32.mrb[0].mxu0
  %v507 = vadd.f32 0.0, %v506
  %v508 = vpop.f32.mrb[0].mxu0
  %509 = vmatprep.mubr.bf16.mxu0 %v207
  %510 = vmatmul.mubr.bf16.gmra.mrb[0].mxu0 %v206
  %v511 = vpop.f32.mrb[0].mxu0
  %v512 = vadd.f32 0.0, %v511
  %v513 = vpop.f32.mrb[0].mxu0
  %v514 = vpop.f32.mrb[0].mxu0
  %v515 = vadd.f32 0.0, %v514
  %v516 = vpop.f32.mrb[0].mxu0
  %517 = vmatprep.mubr.bf16.mxu0 %v212
  %518 = vmatmul.mubr.bf16.gmra.mrb[0].mxu0 %v211
  %v519 = vpop.f32.mrb[0].mxu0
  %v520 = vadd.f32 0.0, %v519
  %v521 = vpop.f32.mrb[0].mxu0
  %v522 = vpop.f32.mrb[0].mxu0
  %v523 = vadd.f32 0.0, %v522
  %v524 = vpop.f32.mrb[0].mxu0
  %525 = vdwg.mxu0
  %526 = vmatprep.subr.bf16.mxu0 0
  %527 = vmatpush1.bf16.msra.mxu0 %v392
  %528 = vmatprep.subr.bf16.mxu0 0
  %529 = vmatpush1.bf16.msra.mxu0 %v393
  %530 = vmatprep.subr.bf16.mxu0 0
  %531 = vmatpush1.bf16.msra.mxu0 %v394
  %532 = vmatprep.subr.bf16.mxu0 0
  %533 = vmatpush1.bf16.msra.mxu0 %v395
  %534 = vmatprep.subr.bf16.mxu0 0
  %535 = vmatpush1.bf16.msra.mxu0 %v396
  %536 = vmatprep.subr.bf16.mxu0 0
  %537 = vmatpush1.bf16.msra.mxu0 %v397
  %538 = vmatprep.subr.bf16.mxu0 0
  %539 = vmatpush1.bf16.msra.mxu0 %v398
  %540 = vmatprep.subr.bf16.mxu0 0
  %541 = vmatpush1.bf16.msra.mxu0 %v399
  %542 = vmatprep.subr.bf16.mxu0 0
  %543 = vmatpush1.bf16.msra.mxu0 %v400
  %544 = vmatprep.subr.bf16.mxu0 0
  %545 = vmatpush1.bf16.msra.mxu0 %v401
  %546 = vmatprep.subr.bf16.mxu0 0
  %547 = vmatpush1.bf16.msra.mxu0 %v402
  %548 = vmatprep.subr.bf16.mxu0 0
  %549 = vmatpush1.bf16.msra.mxu0 %v403
  %550 = vmatprep.subr.bf16.mxu0 0
  %551 = vmatpush1.bf16.msra.mxu0 %v404
  %552 = vmatprep.subr.bf16.mxu0 0
  %553 = vmatpush1.bf16.msra.mxu0 %v405
  %554 = vmatprep.subr.bf16.mxu0 0
  %555 = vmatpush1.bf16.msra.mxu0 %v406
  %556 = vmatprep.subr.bf16.mxu0 0
  %557 = vmatpush1.bf16.msra.mxu0 %v407
  %558 = vmatprep.mubr.bf16.mxu0 %v199
  %559 = vmatmul.mubr.bf16.gmra.mrb[0].mxu0 %v198
  %v560 = vpop.f32.mrb[0].mxu0
  %v561 = vadd.f32 %v496, %v560
  %v562 = vpop.f32.mrb[0].mxu0
  %v563 = vpop.f32.mrb[0].mxu0
  %v564 = vadd.f32 %v499, %v563
  %v565 = vpop.f32.mrb[0].mxu0
  %566 = vmatprep.mubr.bf16.mxu0 %v204
  %567 = vmatmul.mubr.bf16.gmra.mrb[0].mxu0 %v203
  %v568 = vpop.f32.mrb[0].mxu0
  %v569 = vadd.f32 %v504, %v568
  %v570 = vpop.f32.mrb[0].mxu0
  %v571 = vpop.f32.mrb[0].mxu0
  %v572 = vadd.f32 %v507, %v571
  %v573 = vpop.f32.mrb[0].mxu0
  %574 = vmatprep.mubr.bf16.mxu0 %v209
  %575 = vmatmul.mubr.bf16.gmra.mrb[0].mxu0 %v208
  %v576 = vpop.f32.mrb[0].mxu0
  %v577 = vadd.f32 %v512, %v576
  %v578 = vpop.f32.mrb[0].mxu0
  %v579 = vpop.f32.mrb[0].mxu0
  %v580 = vadd.f32 %v515, %v579
  %v581 = vpop.f32.mrb[0].mxu0
  %582 = vmatprep.mubr.bf16.mxu0 %v214
  %583 = vmatmul.mubr.bf16.gmra.mrb[0].mxu0 %v213
  %v584 = vpop.f32.mrb[0].mxu0
  %v585 = vadd.f32 %v520, %v584
  %v586 = vpop.f32.mrb[0].mxu0
  %v587 = vpop.f32.mrb[0].mxu0
  %v588 = vadd.f32 %v523, %v587
  %v589 = vpop.f32.mrb[0].mxu0
  %590 = vdwg.mxu0
  %591 = vmatprep.subr.bf16.mxu0 0
  %592 = vmatpush1.bf16.msra.mxu0 %v408
  %593 = vmatprep.subr.bf16.mxu0 0
  %594 = vmatpush1.bf16.msra.mxu0 %v409
  %595 = vmatprep.subr.bf16.mxu0 0
  %596 = vmatpush1.bf16.msra.mxu0 %v410
  %597 = vmatprep.subr.bf16.mxu0 0
  %598 = vmatpush1.bf16.msra.mxu0 %v411
  %599 = vmatprep.subr.bf16.mxu0 0
  %600 = vmatpush1.bf16.msra.mxu0 0
  %601 = vmatprep.subr.bf16.mxu0 0
  %602 = vmatpush1.bf16.msra.mxu0 0
  %603 = vmatprep.subr.bf16.mxu0 0
  %604 = vmatpush1.bf16.msra.mxu0 0
  %605 = vmatprep.subr.bf16.mxu0 0
  %606 = vmatpush1.bf16.msra.mxu0 0
  %607 = vmatprep.subr.bf16.mxu0 0
  %608 = vmatpush1.bf16.msra.mxu0 0
  %609 = vmatprep.subr.bf16.mxu0 0
  %610 = vmatpush1.bf16.msra.mxu0 0
  %611 = vmatprep.subr.bf16.mxu0 0
  %612 = vmatpush1.bf16.msra.mxu0 0
  %613 = vmatprep.subr.bf16.mxu0 0
  %614 = vmatpush1.bf16.msra.mxu0 0
  %615 = vmatprep.subr.bf16.mxu0 0
  %616 = vmatpush1.bf16.msra.mxu0 0
  %617 = vmatprep.subr.bf16.mxu0 0
  %618 = vmatpush1.bf16.msra.mxu0 0
  %619 = vmatprep.subr.bf16.mxu0 0
  %620 = vmatpush1.bf16.msra.mxu0 0
  %621 = vmatprep.subr.bf16.mxu0 0
  %622 = vmatpush1.bf16.msra.mxu0 0
  %623 = vmatprep.mubr.bf16.mxu0 0
  %624 = vmatmul.mubr.bf16.gmra.mrb[0].mxu0 %v450
  %v625 = vpop.f32.mrb[0].mxu0
  %v626 = vadd.f32 %v561, %v625
  %v627 = vpop.f32.mrb[0].mxu0
  %v628 = vpop.f32.mrb[0].mxu0
  %v629 = vadd.f32 %v564, %v628
  %v630 = vpop.f32.mrb[0].mxu0
  %631 = vmatprep.mubr.bf16.mxu0 0
  %632 = vmatmul.mubr.bf16.gmra.mrb[0].mxu0 %v453
  %v633 = vpop.f32.mrb[0].mxu0
  %v634 = vadd.f32 %v569, %v633
  %v635 = vpop.f32.mrb[0].mxu0
  %v636 = vpop.f32.mrb[0].mxu0
  %v637 = vadd.f32 %v572, %v636
  %v638 = vpop.f32.mrb[0].mxu0
  %639 = vmatprep.mubr.bf16.mxu0 0
  %640 = vmatmul.mubr.bf16.gmra.mrb[0].mxu0 %v456
  %v641 = vpop.f32.mrb[0].mxu0
  %v642 = vadd.f32 %v577, %v641
  %v643 = vpop.f32.mrb[0].mxu0
  %v644 = vpop.f32.mrb[0].mxu0
  %v645 = vadd.f32 %v580, %v644
  %v646 = vpop.f32.mrb[0].mxu0
  %647 = vmatprep.mubr.bf16.mxu0 0
  %648 = vmatmul.mubr.bf16.gmra.mrb[0].mxu0 %v459
  %v649 = vpop.f32.mrb[0].mxu0
  %v650 = vadd.f32 %v585, %v649
  %v651 = vpop.f32.mrb[0].mxu0
  %v652 = vpop.f32.mrb[0].mxu0
  %v653 = vadd.f32 %v588, %v652
  %v654 = vpop.f32.mrb[0].mxu0
  %655 = vdwg.mxu0
  %v656 = vadd.f32 %v28, %v626
  %v657 = vadd.f32 %v29, %v629
  %v658 = vadd.f32 %v30, %v634
  %v659 = vadd.f32 %v31, %v637
  %v660 = vadd.f32 %v32, %v642
  %v661 = vadd.f32 %v33, %v645
  %v662 = vadd.f32 %v34, %v650
  %v663 = vadd.f32 %v35, %v653
  %vm664 = vcmask 261120
  %665 = vst.msk [vmem:[#allocation2] sm:$0xff] %vm664, %v656
  %666 = vst.msk [vmem:[#allocation2 + $0x8] sm:$0xff] %vm664, %v657
  %667 = vst.msk [vmem:[#allocation2 + $0x10] sm:$0xff] %vm664, %v658
  %668 = vst.msk [vmem:[#allocation2 + $0x18] sm:$0xff] %vm664, %v659
  %669 = vst.msk [vmem:[#allocation2 + $0x20] sm:$0xff] %vm664, %v660
  %670 = vst.msk [vmem:[#allocation2 + $0x28] sm:$0xff] %vm664, %v661
  %671 = vst.msk [vmem:[#allocation2 + $0x30] sm:$0xff] %vm664, %v662
  %672 = vst.msk [vmem:[#allocation2 + $0x38] sm:$0xff] %vm664, %v663
  // Predicated region
  $region18: #{forward.12} parent=0 // pred_check
    %p673 = pneg %p15
  $region19: #{forward.12} parent=0 // pred_check_branch
    %675 = sbr.rel (%p673) target = $region21
  $region20: #{forward.12} parent=0 // pred_region
    %v676 = vld [vmem:[#allocation2] sm:$0xff]
    %v677 = vld [vmem:[#allocation2 + $0x8] sm:$0xff]
    %v678 = vld [vmem:[#allocation2 + $0x10] sm:$0xff]
    %v679 = vld [vmem:[#allocation2 + $0x18] sm:$0xff]
    %v680 = vld [vmem:[#allocation2 + $0x20] sm:$0xff]
    %v681 = vld [vmem:[#allocation2 + $0x28] sm:$0xff]
    %v682 = vld [vmem:[#allocation2 + $0x30] sm:$0xff]
    %v683 = vld [vmem:[#allocation2 + $0x38] sm:$0xff]
    %v684 = vld [vmem:[%s2] sm:$0xff]
    %v685 = vld [vmem:[%s2 + $0x8] sm:$0xff]
    %v686 = vld [vmem:[%s2 + $0x10] sm:$0xff]
    %v687 = vld [vmem:[%s2 + $0x18] sm:$0xff]
    %v688 = vld [vmem:[%s2 + $0x20] sm:$0xff]
    %v689 = vld [vmem:[%s2 + $0x28] sm:$0xff]
    %v690 = vld [vmem:[%s2 + $0x30] sm:$0xff]
    %v691 = vld [vmem:[%s2 + $0x38] sm:$0xff]
    %693 = vset.pattern.permute.xlu0 0
    %694 = vperm.xlu0 %693, %v684
    %v695 = vpop.permute.xlu0 %694
    %698 = vset.pattern.permute.xlu0 0
    %699 = vperm.xlu0 %698, %v685
    %v700 = vpop.permute.xlu0 %699
    %703 = vset.pattern.permute.xlu0 0
    %704 = vperm.xlu0 %703, %v686
    %v705 = vpop.permute.xlu0 %704
    %708 = vset.pattern.permute.xlu0 0
    %709 = vperm.xlu0 %708, %v687
    %v710 = vpop.permute.xlu0 %709
    %713 = vset.pattern.permute.xlu0 0
    %714 = vperm.xlu0 %713, %v688
    %v715 = vpop.permute.xlu0 %714
    %718 = vset.pattern.permute.xlu0 0
    %719 = vperm.xlu0 %718, %v689
    %v720 = vpop.permute.xlu0 %719
    %723 = vset.pattern.permute.xlu0 0
    %724 = vperm.xlu0 %723, %v690
    %v725 = vpop.permute.xlu0 %724
    %728 = vset.pattern.permute.xlu0 0
    %729 = vperm.xlu0 %728, %v691
    %v730 = vpop.permute.xlu0 %729
    %v732 = vadd.f32 %v676, %v695
    %v733 = vadd.f32 %v677, %v700
    %v734 = vadd.f32 %v678, %v705
    %v735 = vadd.f32 %v679, %v710
    %v736 = vadd.f32 %v680, %v715
    %v737 = vadd.f32 %v681, %v720
    %v738 = vadd.f32 %v682, %v725
    %v739 = vadd.f32 %v683, %v730
    %v740 = vmax.f32 %v732, 0.0
    %v741 = vmax.f32 %v733, 0.0
    %v742 = vmax.f32 %v734, 0.0
    %v743 = vmax.f32 %v735, 0.0
    %v744 = vmax.f32 %v736, 0.0
    %v745 = vmax.f32 %v737, 0.0
    %v746 = vmax.f32 %v738, 0.0
    %v747 = vmax.f32 %v739, 0.0
    %v748 = vpack.c.bf16 %v741, %v740
    %v749 = vpack.c.bf16 %v743, %v742
    %v750 = vpack.c.bf16 %v745, %v744
    %v751 = vpack.c.bf16 %v747, %v746
    %v756 = vunpack.c.l.b16 %v748
    %v757 = vunpack.c.h.b16 %v748
    %v758 = vunpack.c.l.b16 %v749
    %v759 = vunpack.c.h.b16 %v749
    %v760 = vunpack.c.l.b16 %v750
    %v761 = vunpack.c.h.b16 %v750
    %v762 = vunpack.c.l.b16 %v751
    %v763 = vunpack.c.h.b16 %v751
    %v764 = vpack.c.b16 %v756, %v756
    %v765 = vpack.c.b16 %v757, %v757
    %v766 = vpack.c.b16 %v758, %v758
    %v767 = vpack.c.b16 %v759, %v759
    %v768 = vpack.c.b16 %v760, %v760
    %v769 = vpack.c.b16 %v761, %v761
    %v770 = vpack.c.b16 %v762, %v762
    %v771 = vpack.c.b16 %v763, %v763
    %vm780 = vcmask 257024
    %781 = vst.msk [vmem:[%s3] sm:$0xf] %vm780, %v764
    %782 = vst.msk [vmem:[%s3 + $0x4] sm:$0xf] %vm780, %v765
    %783 = vst.msk [vmem:[%s3 + $0x8] sm:$0xf] %vm780, %v766
    %784 = vst.msk [vmem:[%s3 + $0xc] sm:$0xf] %vm780, %v767
    %785 = vst.msk [vmem:[%s3 + $0x10] sm:$0xf] %vm780, %v768
    %786 = vst.msk [vmem:[%s3 + $0x14] sm:$0xf] %vm780, %v769
    %787 = vst.msk [vmem:[%s3 + $0x18] sm:$0xf] %vm780, %v770
    %788 = vst.msk [vmem:[%s3 + $0x1c] sm:$0xf] %vm780, %v771
  $region21: #{forward.12} parent=0 // pred_fallthru
    _
  // Predicated region
  $region22: #{forward.12} parent=0 // pred_check
    _
  $region23: #{forward.12} parent=0 // pred_check_branch
    %790 = sbr.rel (0) target = $region25
  $region24: #{forward.12} parent=0 // pred_region
    _
  $region25: #{forward.12} parent=0 // pred_fallthru
    _
  // Predicated region
  $region26: #{forward.12} parent=0 // pred_check
    _
  $region27: #{forward.12} parent=0 // pred_check_branch
    %792 = sbr.rel (0) target = $region29
  $region28: #{forward.12} parent=0 // pred_region
    _
  $region29: #{forward.12} parent=0 // pred_fallthru
    _

// kernel: forward.14
$region0: #{forward.14}
  #allocation0 [shape = 'u32[]', space=smem, size = 0x4, offset = 0x4, fixed_abs, tag = 'smem constant byte address 0x4 - core index']
  #allocation1 [shape = 'u32[144,128]{1,0:T(1,128)}', space=vmem, size = 0x12000, scoped, tag = 'internal scratch']
  %s0 = inlined_call_operand.vmem [shape: bf16[2,32,16], index: 0, kind: input, shape index: {}]
  %s1 = inlined_call_operand.vmem [shape: bf16[2,32,16], index: 1, kind: input, shape index: {}]
  %s2 = inlined_call_operand.vmem [shape: bf16[2,32,16], index: 2, kind: input, shape index: {}]
  %s3 = inlined_call_operand.vmem [shape: bf16[2,32,16], index: 3, kind: output, shape index: {}]
  %s4 = sld [smem:[#allocation0]]
  $region45: #{forward.14} parent=0
    _
  %s6 = ssub.s32 1, %s4
  %s7 = scalar_select 0, %s6, %s4
  loop: start=0, step=1, limit=4
  $region2: #{forward.14} parent=0 // loop_pre_header
    _
  $region3: #{forward.14} parent=0 // loop_header
    %s9 = sphi 0, %s13
    %p10 = scmp.ge.s32.totalorder %s9, 4
    %s19 = sphi 0, %s21
    %s22 = sphi 0, %s19
    %s23 = sphi 0, %s22
    %s39 = sphi 0, %s23
    %s45 = sphi 0, %s47
    %s48 = sphi 0, %s45
    %s49 = sphi 0, %s48
    %s65 = sphi 0, %s49
    %s71 = sphi 0, %s73
    %s74 = sphi 0, %s71
    %s75 = sphi 0, %s74
    %s91 = sphi 0, %s75
    %s97 = sphi 0, %s99
    %s100 = sphi 0, %s97
    %s101 = sphi 0, %s100
    %s117 = sphi 0, %s101
  $region4: #{forward.14} parent=0 // loop_header_branch
    %12 = sbr.rel (%p10) target = $region8
  $region5: #{forward.14} parent=0 // loop_body
    %s14 = ssub.s32 %s9, 1
    %s15 = ssub.s32 %s9, 2
    %s16 = sadd.s32 %s9, 1
    %s17 = ssub.s32 %s9, %s16
    %p18 = scmp.eq.s32.totalorder %s17, 0
    %s20 = sadd.s32 %s19, 1
    %s21 = scalar_select %p18, %s19, %s20
    %p24 = pneg %p18
    %p25 = scmp.eq.s32.totalorder %s9, 1
    %p26 = por %p24, %p25
    %p27 = scmp.ne.s32.totalorder %s19, %s22
    %p28 = scmp.eq.s32.totalorder %s9, 0
    %p29 = por %p27, %p28
    %p30 = scmp.ne.s32.totalorder %s19, %s22
    %p31 = scmp.eq.s32.totalorder %s14, 1
    %p32 = por %p30, %p31
    %p33 = scmp.ne.s32.totalorder %s22, %s23
    %p34 = scmp.eq.s32.totalorder %s14, 0
    %p35 = por %p33, %p34
    %p36 = scmp.ne.s32.totalorder %s22, %s23
    %p37 = scmp.eq.s32.totalorder %s15, 1
    %p38 = por %p36, %p37
    %p40 = scmp.ne.s32.totalorder %s23, %s39
    %p41 = scmp.eq.s32.totalorder %s15, 0
    %p42 = por %p40, %p41
    %s43 = ssub.s32 %s9, %s16
    %p44 = scmp.eq.s32.totalorder %s43, 0
    %s46 = sadd.s32 %s45, 1
    %s47 = scalar_select %p44, %s45, %s46
    %p50 = pneg %p44
    %p51 = scmp.eq.s32.totalorder %s9, 1
    %p52 = por %p50, %p51
    %p53 = scmp.ne.s32.totalorder %s45, %s48
    %p54 = scmp.eq.s32.totalorder %s9, 0
    %p55 = por %p53, %p54
    %p56 = scmp.ne.s32.totalorder %s45, %s48
    %p57 = scmp.eq.s32.totalorder %s14, 1
    %p58 = por %p56, %p57
    %p59 = scmp.ne.s32.totalorder %s48, %s49
    %p60 = scmp.eq.s32.totalorder %s14, 0
    %p61 = por %p59, %p60
    %p62 = scmp.ne.s32.totalorder %s48, %s49
    %p63 = scmp.eq.s32.totalorder %s15, 1
    %p64 = por %p62, %p63
    %p66 = scmp.ne.s32.totalorder %s49, %s65
    %p67 = scmp.eq.s32.totalorder %s15, 0
    %p68 = por %p66, %p67
    %s69 = ssub.s32 %s9, %s16
    %p70 = scmp.eq.s32.totalorder %s69, 0
    %s72 = sadd.s32 %s71, 1
    %s73 = scalar_select %p70, %s71, %s72
    %p76 = pneg %p70
    %p77 = scmp.eq.s32.totalorder %s9, 1
    %p78 = por %p76, %p77
    %p79 = scmp.ne.s32.totalorder %s71, %s74
    %p80 = scmp.eq.s32.totalorder %s9, 0
    %p81 = por %p79, %p80
    %p82 = scmp.ne.s32.totalorder %s71, %s74
    %p83 = scmp.eq.s32.totalorder %s14, 1
    %p84 = por %p82, %p83
    %p85 = scmp.ne.s32.totalorder %s74, %s75
    %p86 = scmp.eq.s32.totalorder %s14, 0
    %p87 = por %p85, %p86
    %p88 = scmp.ne.s32.totalorder %s74, %s75
    %p89 = scmp.eq.s32.totalorder %s15, 1
    %p90 = por %p88, %p89
    %p92 = scmp.ne.s32.totalorder %s75, %s91
    %p93 = scmp.eq.s32.totalorder %s15, 0
    %p94 = por %p92, %p93
    %s95 = ssub.s32 %s9, %s16
    %p96 = scmp.eq.s32.totalorder %s95, 0
    %s98 = sadd.s32 %s97, 1
    %s99 = scalar_select %p96, %s97, %s98
    %p102 = pneg %p96
    %p103 = scmp.eq.s32.totalorder %s9, 1
    %p104 = por %p102, %p103
    %p105 = scmp.ne.s32.totalorder %s97, %s100
    %p106 = scmp.eq.s32.totalorder %s9, 0
    %p107 = por %p105, %p106
    %p108 = scmp.ne.s32.totalorder %s97, %s100
    %p109 = scmp.eq.s32.totalorder %s14, 1
    %p110 = por %p108, %p109
    %p111 = scmp.ne.s32.totalorder %s100, %s101
    %p112 = scmp.eq.s32.totalorder %s14, 0
    %p113 = por %p111, %p112
    %p114 = scmp.ne.s32.totalorder %s100, %s101
    %p115 = scmp.eq.s32.totalorder %s15, 1
    %p116 = por %p114, %p115
    %p118 = scmp.ne.s32.totalorder %s101, %s117
    %p119 = scmp.eq.s32.totalorder %s15, 0
    %p120 = por %p118, %p119
    %p121 = scmp.le.s32.totalorder 1, %s9
    %p122 = scmp.lt.s32.totalorder %s9, 3
    %p123 = pnand %p121, %p122
    %p124 = pneg %p123
    // Predicated region
    $region9: #{forward.14} parent=5 // pred_check
      _
    $region10: #{forward.14} parent=5 // pred_check_branch
      %126 = sbr.rel (%p123) target = $region12
    $region11: #{forward.14} parent=5 // pred_region
      %s127 = ssub.s32 %s9, 1
    $region12: #{forward.14} parent=5 // pred_fallthru
      _
    %p128 = scmp.lt.s32.totalorder %s9, 2
    // Predicated region
    $region13: #{forward.14} parent=5 // pred_check
      %p129 = pneg %p128
    $region14: #{forward.14} parent=5 // pred_check_branch
      %131 = sbr.rel (%p129) target = $region16
    $region15: #{forward.14} parent=5 // pred_region
      // Predicated region
      $region17: #{forward.14} parent=15 // pred_check
        %p132 = pneg %p29
      $region18: #{forward.14} parent=15 // pred_check_branch
        %134 = sbr.rel (%p132) target = $region20
      $region19: #{forward.14} parent=15 // pred_region
        %p135 = scmp.lt.s32.totalorder %s9, 1
        %s136 = scalar_select %p135, %s9, 1
        %s137 = smul.addr %s136, 4
        %s138 = smul.addr %s137, 4
        %s139 = scalar_lea.vmem %s0, %s138
      $region20: #{forward.14} parent=15 // pred_fallthru
        _
      // Predicated region
      $region21: #{forward.14} parent=15 // pred_check
        %p140 = pneg %p55
      $region22: #{forward.14} parent=15 // pred_check_branch
        %142 = sbr.rel (%p140) target = $region24
      $region23: #{forward.14} parent=15 // pred_region
        %p143 = scmp.lt.s32.totalorder %s9, 1
        %s144 = scalar_select %p143, %s9, 1
        %s145 = smul.addr %s144, 4
        %s146 = smul.addr %s145, 4
        %s147 = scalar_lea.vmem %s1, %s146
      $region24: #{forward.14} parent=15 // pred_fallthru
        _
      // Predicated region
      $region25: #{forward.14} parent=15 // pred_check
        %p148 = pneg %p81
      $region26: #{forward.14} parent=15 // pred_check_branch
        %150 = sbr.rel (%p148) target = $region28
      $region27: #{forward.14} parent=15 // pred_region
        %p151 = scmp.lt.s32.totalorder %s9, 1
        %s152 = scalar_select %p151, %s9, 1
        %s153 = smul.addr %s152, 4
        %s154 = smul.addr %s153, 4
        %s155 = scalar_lea.vmem %s2, %s154
      $region28: #{forward.14} parent=15 // pred_fallthru
        _
    $region16: #{forward.14} parent=5 // pred_fallthru
      _
    %p156 = scmp.le.s32.totalorder 1, %s9
    %p157 = scmp.lt.s32.totalorder %s9, 3
    %p158 = pnand %p156, %p157
    %p159 = pneg %p158
    // Predicated region
    $region29: #{forward.14} parent=5 // pred_check
      _
    $region30: #{forward.14} parent=5 // pred_check_branch
      %161 = sbr.rel (%p158) target = $region32
    $region31: #{forward.14} parent=5 // pred_region
      %s162 = ssub.s32 %s9, 1
      %p163 = scmp.lt.s32.totalorder %s14, 1
      %s164 = scalar_select %p163, %s14, 1
      %s165 = smul.addr %s164, 4
      %s166 = smul.addr %s165, 4
      %s167 = scalar_lea.vmem %s0, %s166
      %p168 = pneg %p35
      %p169 = pneg %p32
      %p170 = scmp.lt.s32.totalorder %s14, 1
      %s171 = scalar_select %p170, %s14, 1
      %s172 = smul.addr %s171, 4
      %s173 = smul.addr %s172, 4
      %s174 = scalar_lea.vmem %s1, %s173
      %p175 = pneg %p61
      %p176 = pneg %p58
      %p177 = scmp.lt.s32.totalorder %s14, 1
      %s178 = scalar_select %p177, %s14, 1
      %s179 = smul.addr %s178, 4
      %s180 = smul.addr %s179, 4
      %s181 = scalar_lea.vmem %s2, %s180
      %p182 = pneg %p87
      %p183 = pneg %p84
      %p184 = pneg %p113
      %p185 = pneg %p110
      %p186 = scmp.lt.s32.totalorder %s14, 1
      %s187 = scalar_select %p186, %s14, 1
      %s188 = smul.addr %s187, 4
      %s189 = smul.addr %s188, 4
      %s190 = scalar_lea.vmem %s3, %s189
      %p191 = scmp.lt.s32.totalorder %s14, 1
      %s192 = scalar_select %p191, %s14, 1
      %s193 = smul.addr %s192, 4
      %s194 = smul.addr %s193, 4
      %s195 = scalar_lea.vmem %s0, %s194
      %p196 = scmp.lt.s32.totalorder %s14, 1
      %s197 = scalar_select %p196, %s14, 1
      %s198 = smul.addr %s197, 4
      %s199 = smul.addr %s198, 4
      %s200 = scalar_lea.vmem %s1, %s199
      %p201 = scmp.lt.s32.totalorder %s14, 1
      %s202 = scalar_select %p201, %s14, 1
      %s203 = smul.addr %s202, 4
      %s204 = smul.addr %s203, 4
      %s205 = scalar_lea.vmem %s2, %s204
      %p206 = scmp.lt.s32.totalorder %s14, 1
      %s207 = scalar_select %p206, %s14, 1
      %s208 = smul.addr %s207, 4
      %s209 = smul.addr %s208, 4
      %s210 = scalar_lea.vmem %s3, %s209
      %v212 = vld [vmem:[%s195] sm:$0xf]
      %v213 = vld [vmem:[%s195 + $0x4] sm:$0xf]
      %v214 = vld [vmem:[%s195 + $0x8] sm:$0xf]
      %v215 = vld [vmem:[%s195 + $0xc] sm:$0xf]
      %v216 = vld [vmem:[%s200] sm:$0xf]
      %v217 = vld [vmem:[%s200 + $0x4] sm:$0xf]
      %v218 = vld [vmem:[%s200 + $0x8] sm:$0xf]
      %v219 = vld [vmem:[%s200 + $0xc] sm:$0xf]
      %v220 = vld [vmem:[%s205] sm:$0xf]
      %v221 = vld [vmem:[%s205 + $0x4] sm:$0xf]
      %v222 = vld [vmem:[%s205 + $0x8] sm:$0xf]
      %v223 = vld [vmem:[%s205 + $0xc] sm:$0xf]
      %v228 = vunpack.c.l.b16 %v220
      %v229 = vunpack.c.l.b16 %v221
      %v230 = vunpack.c.l.b16 %v222
      %v231 = vunpack.c.l.b16 %v223
      %v232 = vpack.c.b16 %v229, %v228
      %v233 = vpack.c.b16 %v231, %v230
      %v238 = vunpack.c.l.b16 %v216
      %v239 = vunpack.c.l.b16 %v217
      %v240 = vunpack.c.l.b16 %v218
      %v241 = vunpack.c.l.b16 %v219
      %v242 = vpack.c.b16 %v239, %v238
      %v243 = vpack.c.b16 %v241, %v240
      %vm244 = vcmask 130048
      %v246 = vsel %vm244, %v232, 0
      %v249 = vsel %vm244, %v233, 0
      %v252 = vsel %vm244, %v242, 0
      %v255 = vsel %vm244, %v243, 0
      %257 = vmatprep.subr.bf16.mxu0 0
      %258 = vmatpush1.bf16.xpose.msra.mxu0 %v252
      %259 = vmatprep.subr.bf16.mxu0 0
      %260 = vmatpush1.bf16.xpose.msra.mxu0 %v255
      %261 = vmatprep.subr.bf16.mxu0 0
      %262 = vmatpush1.bf16.xpose.msra.mxu0 0
      %263 = vmatprep.subr.bf16.mxu0 0
      %264 = vmatpush1.bf16.xpose.msra.mxu0 0
      %265 = vmatprep.subr.bf16.mxu0 0
      %266 = vmatpush1.bf16.xpose.msra.mxu0 0
      %267 = vmatprep.subr.bf16.mxu0 0
      %268 = vmatpush1.bf16.xpose.msra.mxu0 0
      %269 = vmatprep.subr.bf16.mxu0 0
      %270 = vmatpush1.bf16.xpose.msra.mxu0 0
      %271 = vmatprep.subr.bf16.mxu0 0
      %272 = vmatpush1.bf16.xpose.msra.mxu0 0
      %273 = vmatprep.subr.bf16.mxu0 0
      %274 = vmatpush1.bf16.xpose.msra.mxu0 0
      %275 = vmatprep.subr.bf16.mxu0 0
      %276 = vmatpush1.bf16.xpose.msra.mxu0 0
      %277 = vmatprep.subr.bf16.mxu0 0
      %278 = vmatpush1.bf16.xpose.msra.mxu0 0
      %279 = vmatprep.subr.bf16.mxu0 0
      %280 = vmatpush1.bf16.xpose.msra.mxu0 0
      %281 = vmatprep.subr.bf16.mxu0 0
      %282 = vmatpush1.bf16.xpose.msra.mxu0 0
      %283 = vmatprep.subr.bf16.mxu0 0
      %284 = vmatpush1.bf16.xpose.msra.mxu0 0
      %285 = vmatprep.subr.bf16.mxu0 0
      %286 = vmatpush1.bf16.xpose.msra.mxu0 0
      %287 = vmatprep.subr.bf16.mxu0 0
      %288 = vmatpush1.bf16.xpose.msra.mxu0 0
      %289 = vmatprep.mubr.bf16.mxu0 0
      %290 = vmatmul.mubr.bf16.gmra.mrb[0].mxu0 %v246
      %v291 = vpop.f32.mrb[0].mxu0
      %v292 = vadd.f32 0.0, %v291
      %v293 = vpop.f32.mrb[0].mxu0
      %v294 = vpop.f32.mrb[0].mxu0
      %v295 = vadd.f32 0.0, %v294
      %v296 = vpop.f32.mrb[0].mxu0
      %297 = vmatprep.mubr.bf16.mxu0 0
      %298 = vmatmul.mubr.bf16.gmra.mrb[0].mxu0 %v249
      %v299 = vpop.f32.mrb[0].mxu0
      %v300 = vadd.f32 0.0, %v299
      %v301 = vpop.f32.mrb[0].mxu0
      %v302 = vpop.f32.mrb[0].mxu0
      %v303 = vadd.f32 0.0, %v302
      %v304 = vpop.f32.mrb[0].mxu0
      %305 = vdwg.mxu0
      %v306 = vpack.c.bf16 %v295, %v292
      %v307 = vpack.c.bf16 %v303, %v300
      %v312 = vunpack.c.l.b16 %v212
      %v313 = vunpack.c.l.b16 %v213
      %v314 = vunpack.c.l.b16 %v214
      %v315 = vunpack.c.l.b16 %v215
      %v316 = vpack.c.b16 %v313, %v312
      %v317 = vpack.c.b16 %v315, %v314
      %vm320 = vcmask 261120
      %v322 = vsel %vm320, %v306, 0
      %v325 = vsel %vm320, %v307, 0
      %327 = vmatprep.subr.bf16.mxu0 0
      %328 = vmatpush1.bf16.msra.mxu0 %v316
      %329 = vmatprep.subr.bf16.mxu0 0
      %330 = vmatpush1.bf16.msra.mxu0 %v317
      %331 = vmatprep.subr.bf16.mxu0 0
      %332 = vmatpush1.bf16.msra.mxu0 0
      %333 = vmatprep.subr.bf16.mxu0 0
      %334 = vmatpush1.bf16.msra.mxu0 0
      %335 = vmatprep.subr.bf16.mxu0 0
      %336 = vmatpush1.bf16.msra.mxu0 0
      %337 = vmatprep.subr.bf16.mxu0 0
      %338 = vmatpush1.bf16.msra.mxu0 0
      %339 = vmatprep.subr.bf16.mxu0 0
      %340 = vmatpush1.bf16.msra.mxu0 0
      %341 = vmatprep.subr.bf16.mxu0 0
      %342 = vmatpush1.bf16.msra.mxu0 0
      %343 = vmatprep.subr.bf16.mxu0 0
      %344 = vmatpush1.bf16.msra.mxu0 0
      %345 = vmatprep.subr.bf16.mxu0 0
      %346 = vmatpush1.bf16.msra.mxu0 0
      %347 = vmatprep.subr.bf16.mxu0 0
      %348 = vmatpush1.bf16.msra.mxu0 0
      %349 = vmatprep.subr.bf16.mxu0 0
      %350 = vmatpush1.bf16.msra.mxu0 0
      %351 = vmatprep.subr.bf16.mxu0 0
      %352 = vmatpush1.bf16.msra.mxu0 0
      %353 = vmatprep.subr.bf16.mxu0 0
      %354 = vmatpush1.bf16.msra.mxu0 0
      %355 = vmatprep.subr.bf16.mxu0 0
      %356 = vmatpush1.bf16.msra.mxu0 0
      %357 = vmatprep.subr.bf16.mxu0 0
      %358 = vmatpush1.bf16.msra.mxu0 0
      %359 = vmatprep.mubr.bf16.mxu0 0
      %360 = vmatmul.mubr.bf16.gmra.mrb[0].mxu0 %v322
      %v361 = vpop.f32.mrb[0].mxu0
      %v362 = vadd.f32 0.0, %v361
      %v363 = vpop.f32.mrb[0].mxu0
      %v364 = vpop.f32.mrb[0].mxu0
      %v365 = vadd.f32 0.0, %v364
      %v366 = vpop.f32.mrb[0].mxu0
      %367 = vmatprep.mubr.bf16.mxu0 0
      %368 = vmatmul.mubr.bf16.gmra.mrb[0].mxu0 %v325
      %v369 = vpop.f32.mrb[0].mxu0
      %v370 = vadd.f32 0.0, %v369
      %v371 = vpop.f32.mrb[0].mxu0
      %v372 = vpop.f32.mrb[0].mxu0
      %v373 = vadd.f32 0.0, %v372
      %v374 = vpop.f32.mrb[0].mxu0
      %375 = vdwg.mxu0
      %v376 = vpack.c.bf16 %v365, %v362
      %v377 = vpack.c.bf16 %v373, %v370
      %v380 = vunpack.c.l.b16 %v376
      %v381 = vunpack.c.h.b16 %v376
      %v382 = vunpack.c.l.b16 %v377
      %v383 = vunpack.c.h.b16 %v377
      %v384 = vpack.c.b16 %v380, %v380
      %v385 = vpack.c.b16 %v381, %v381
      %v386 = vpack.c.b16 %v382, %v382
      %v387 = vpack.c.b16 %v383, %v383
      %vm392 = vcmask 125952
      %393 = vst.msk [vmem:[%s210] sm:$0xf] %vm392, %v384
      %394 = vst.msk [vmem:[%s210 + $0x4] sm:$0xf] %vm392, %v385
      %395 = vst.msk [vmem:[%s210 + $0x8] sm:$0xf] %vm392, %v386
      %396 = vst.msk [vmem:[%s210 + $0xc] sm:$0xf] %vm392, %v387
      %p397 = scmp.lt.s32.totalorder %s14, 1
      %s398 = scalar_select %p397, %s14, 1
      %s399 = smul.addr %s398, 4
      %s400 = smul.addr %s399, 4
      %s401 = scalar_lea.vmem %s3, %s400
      // Predicated region
      $region33: #{forward.14} parent=31 // pred_check
        %p402 = pneg %p110
      $region34: #{forward.14} parent=31 // pred_check_branch
        %404 = sbr.rel (%p402) target = $region36
      $region35: #{forward.14} parent=31 // pred_region
        _
      $region36: #{forward.14} parent=31 // pred_fallthru
        _
    $region32: #{forward.14} parent=5 // pred_fallthru
      _
    %p405 = scmp.le.s32.totalorder 2, %s9
    // Predicated region
    $region37: #{forward.14} parent=5 // pred_check
      %p406 = pneg %p405
    $region38: #{forward.14} parent=5 // pred_check_branch
      %408 = sbr.rel (%p406) target = $region40
    $region39: #{forward.14} parent=5 // pred_region
      %s409 = ssub.s32 %s9, 2
      // Predicated region
      $region41: #{forward.14} parent=39 // pred_check
        %p410 = pneg %p116
      $region42: #{forward.14} parent=39 // pred_check_branch
        %412 = sbr.rel (%p410) target = $region44
      $region43: #{forward.14} parent=39 // pred_region
        %p413 = scmp.lt.s32.totalorder %s15, 1
        %s414 = scalar_select %p413, %s15, 1
        %s415 = smul.addr %s414, 4
        %s416 = smul.addr %s415, 4
        %s417 = scalar_lea.vmem %s3, %s416
      $region44: #{forward.14} parent=39 // pred_fallthru
        _
    $region40: #{forward.14} parent=5 // pred_fallthru
      _
  $region6: #{forward.14} parent=0 // loop_footer
    %s13 = sadd.s32 1, %s9
  $region7: #{forward.14} parent=0 // loop_footer_branch
    %8 = sbr.rel target = $region3
  $region8: #{forward.14} parent=0 // loop_exit
    _

// kernel: forward.15
$region0: #{forward.15}
  #allocation0 [shape = 'u32[]', space=smem, size = 0x4, offset = 0x4, fixed_abs, tag = 'smem constant byte address 0x4 - core index']
  #allocation1 [shape = 'u32[144,128]{1,0:T(1,128)}', space=vmem, size = 0x12000, scoped, tag = 'internal scratch']
  #allocation2 [shape = 'f32[64,32]{1,0:T(8,128)}', space=vmem, size = 0x8000, scoped, tag = 'scratch operand']
  %s0 = inlined_call_operand.vmem [shape: bf16[64,32], index: 0, kind: input, shape index: {}]
  %s1 = inlined_call_operand.vmem [shape: bf16[32,32], index: 1, kind: input, shape index: {}]
  %s2 = inlined_call_operand.vmem [shape: f32[64,1], index: 2, kind: input, shape index: {}]
  %s3 = inlined_call_operand.vmem [shape: bf16[64,32], index: 3, kind: output, shape index: {}]
  %s4 = sld [smem:[#allocation0]]
  $region30: #{forward.15} parent=0
    _
  %s6 = ssub.s32 1, %s4
  %s7 = scalar_select 0, %s6, %s4
  // Predicated region
  $region2: #{forward.15} parent=0 // pred_check
    _
  $region3: #{forward.15} parent=0 // pred_check_branch
    %9 = sbr.rel (0) target = $region5
  $region4: #{forward.15} parent=0 // pred_region
    _
  $region5: #{forward.15} parent=0 // pred_fallthru
    _
  // Predicated region
  $region6: #{forward.15} parent=0 // pred_check
    _
  $region7: #{forward.15} parent=0 // pred_check_branch
    %11 = sbr.rel (0) target = $region9
  $region8: #{forward.15} parent=0 // pred_region
    _
  $region9: #{forward.15} parent=0 // pred_fallthru
    _
  // Predicated region
  $region10: #{forward.15} parent=0 // pred_check
    _
  $region11: #{forward.15} parent=0 // pred_check_branch
    %13 = sbr.rel (0) target = $region13
  $region12: #{forward.15} parent=0 // pred_region
    _
  $region13: #{forward.15} parent=0 // pred_fallthru
    _
  %p15 = scmp.eq.s32.totalorder 0, 0
  // Predicated region
  $region14: #{forward.15} parent=0 // pred_check
    %p16 = pneg %p15
  $region15: #{forward.15} parent=0 // pred_check_branch
    %18 = sbr.rel (%p16) target = $region17
  $region16: #{forward.15} parent=0 // pred_region
    %vm19 = vcmask 261120
    %20 = vst.msk [vmem:[#allocation2] sm:$0xff] %vm19, 0.0
    %21 = vst.msk [vmem:[#allocation2 + $0x8] sm:$0xff] %vm19, 0.0
    %22 = vst.msk [vmem:[#allocation2 + $0x10] sm:$0xff] %vm19, 0.0
    %23 = vst.msk [vmem:[#allocation2 + $0x18] sm:$0xff] %vm19, 0.0
    %24 = vst.msk [vmem:[#allocation2 + $0x20] sm:$0xff] %vm19, 0.0
    %25 = vst.msk [vmem:[#allocation2 + $0x28] sm:$0xff] %vm19, 0.0
    %26 = vst.msk [vmem:[#allocation2 + $0x30] sm:$0xff] %vm19, 0.0
    %27 = vst.msk [vmem:[#allocation2 + $0x38] sm:$0xff] %vm19, 0.0
  $region17: #{forward.15} parent=0 // pred_fallthru
    _
  %v28 = vld [vmem:[#allocation2] sm:$0xff]
  %v29 = vld [vmem:[#allocation2 + $0x8] sm:$0xff]
  %v30 = vld [vmem:[#allocation2 + $0x10] sm:$0xff]
  %v31 = vld [vmem:[#allocation2 + $0x18] sm:$0xff]
  %v32 = vld [vmem:[#allocation2 + $0x20] sm:$0xff]
  %v33 = vld [vmem:[#allocation2 + $0x28] sm:$0xff]
  %v34 = vld [vmem:[#allocation2 + $0x30] sm:$0xff]
  %v35 = vld [vmem:[#allocation2 + $0x38] sm:$0xff]
  %v36 = vld [vmem:[%s0] sm:$0xf]
  %v37 = vld [vmem:[%s0 + $0x4] sm:$0xf]
  %v38 = vld [vmem:[%s0 + $0x8] sm:$0xf]
  %v39 = vld [vmem:[%s0 + $0xc] sm:$0xf]
  %v40 = vld [vmem:[%s0 + $0x10] sm:$0xf]
  %v41 = vld [vmem:[%s0 + $0x14] sm:$0xf]
  %v42 = vld [vmem:[%s0 + $0x18] sm:$0xf]
  %v43 = vld [vmem:[%s0 + $0x1c] sm:$0xf]
  %v44 = vld [vmem:[%s1] sm:$0xf]
  %v45 = vld [vmem:[%s1 + $0x4] sm:$0xf]
  %v46 = vld [vmem:[%s1 + $0x8] sm:$0xf]
  %v47 = vld [vmem:[%s1 + $0xc] sm:$0xf]
  %v56 = vunpack.c.l.b16 %v36
  %v57 = vunpack.c.l.b16 %v37
  %v58 = vunpack.c.l.b16 %v38
  %v59 = vunpack.c.l.b16 %v39
  %v60 = vunpack.c.l.b16 %v40
  %v61 = vunpack.c.l.b16 %v41
  %v62 = vunpack.c.l.b16 %v42
  %v63 = vunpack.c.l.b16 %v43
  %v64 = vpack.c.b16 %v57, %v56
  %v65 = vpack.c.b16 %v59, %v58
  %v66 = vpack.c.b16 %v61, %v60
  %v67 = vpack.c.b16 %v63, %v62
  %v72 = vunpack.c.l.b16 %v44
  %v73 = vunpack.c.l.b16 %v45
  %v74 = vunpack.c.l.b16 %v46
  %v75 = vunpack.c.l.b16 %v47
  %v76 = vpack.c.b16 %v73, %v72
  %v77 = vpack.c.b16 %v75, %v74
  %vm80 = vcmask 261120
  %v82 = vsel %vm80, %v64, 0
  %v85 = vsel %vm80, %v65, 0
  %v88 = vsel %vm80, %v66, 0
  %v91 = vsel %vm80, %v67, 0
  %93 = vmatprep.subr.bf16.mxu0 0
  %94 = vmatpush1.bf16.msra.mxu0 %v76
  %95 = vmatprep.subr.bf16.mxu0 0
  %96 = vmatpush1.bf16.msra.mxu0 %v77
  %97 = vmatprep.subr.bf16.mxu0 0
  %98 = vmatpush1.bf16.msra.mxu0 0
  %99 = vmatprep.subr.bf16.mxu0 0
  %100 = vmatpush1.bf16.msra.mxu0 0
  %101 = vmatprep.subr.bf16.mxu0 0
  %102 = vmatpush1.bf16.msra.mxu0 0
  %103 = vmatprep.subr.bf16.mxu0 0
  %104 = vmatpush1.bf16.msra.mxu0 0
  %105 = vmatprep.subr.bf16.mxu0 0
  %106 = vmatpush1.bf16.msra.mxu0 0
  %107 = vmatprep.subr.bf16.mxu0 0
  %108 = vmatpush1.bf16.msra.mxu0 0
  %109 = vmatprep.subr.bf16.mxu0 0
  %110 = vmatpush1.bf16.msra.mxu0 0
  %111 = vmatprep.subr.bf16.mxu0 0
  %112 = vmatpush1.bf16.msra.mxu0 0
  %113 = vmatprep.subr.bf16.mxu0 0
  %114 = vmatpush1.bf16.msra.mxu0 0
  %115 = vmatprep.subr.bf16.mxu0 0
  %116 = vmatpush1.bf16.msra.mxu0 0
  %117 = vmatprep.subr.bf16.mxu0 0
  %118 = vmatpush1.bf16.msra.mxu0 0
  %119 = vmatprep.subr.bf16.mxu0 0
  %120 = vmatpush1.bf16.msra.mxu0 0
  %121 = vmatprep.subr.bf16.mxu0 0
  %122 = vmatpush1.bf16.msra.mxu0 0
  %123 = vmatprep.subr.bf16.mxu0 0
  %124 = vmatpush1.bf16.msra.mxu0 0
  %125 = vmatprep.mubr.bf16.mxu0 0
  %126 = vmatmul.mubr.bf16.gmra.mrb[0].mxu0 %v82
  %v127 = vpop.f32.mrb[0].mxu0
  %v128 = vadd.f32 0.0, %v127
  %v129 = vpop.f32.mrb[0].mxu0
  %v130 = vpop.f32.mrb[0].mxu0
  %v131 = vadd.f32 0.0, %v130
  %v132 = vpop.f32.mrb[0].mxu0
  %133 = vmatprep.mubr.bf16.mxu0 0
  %134 = vmatmul.mubr.bf16.gmra.mrb[0].mxu0 %v85
  %v135 = vpop.f32.mrb[0].mxu0
  %v136 = vadd.f32 0.0, %v135
  %v137 = vpop.f32.mrb[0].mxu0
  %v138 = vpop.f32.mrb[0].mxu0
  %v139 = vadd.f32 0.0, %v138
  %v140 = vpop.f32.mrb[0].mxu0
  %141 = vmatprep.mubr.bf16.mxu0 0
  %142 = vmatmul.mubr.bf16.gmra.mrb[0].mxu0 %v88
  %v143 = vpop.f32.mrb[0].mxu0
  %v144 = vadd.f32 0.0, %v143
  %v145 = vpop.f32.mrb[0].mxu0
  %v146 = vpop.f32.mrb[0].mxu0
  %v147 = vadd.f32 0.0, %v146
  %v148 = vpop.f32.mrb[0].mxu0
  %149 = vmatprep.mubr.bf16.mxu0 0
  %150 = vmatmul.mubr.bf16.gmra.mrb[0].mxu0 %v91
  %v151 = vpop.f32.mrb[0].mxu0
  %v152 = vadd.f32 0.0, %v151
  %v153 = vpop.f32.mrb[0].mxu0
  %v154 = vpop.f32.mrb[0].mxu0
  %v155 = vadd.f32 0.0, %v154
  %v156 = vpop.f32.mrb[0].mxu0
  %157 = vdwg.mxu0
  %v158 = vadd.f32 %v28, %v128
  %v159 = vadd.f32 %v29, %v131
  %v160 = vadd.f32 %v30, %v136
  %v161 = vadd.f32 %v31, %v139
  %v162 = vadd.f32 %v32, %v144
  %v163 = vadd.f32 %v33, %v147
  %v164 = vadd.f32 %v34, %v152
  %v165 = vadd.f32 %v35, %v155
  %166 = vst.msk [vmem:[#allocation2] sm:$0xff] %vm80, %v158
  %167 = vst.msk [vmem:[#allocation2 + $0x8] sm:$0xff] %vm80, %v159
  %168 = vst.msk [vmem:[#allocation2 + $0x10] sm:$0xff] %vm80, %v160
  %169 = vst.msk [vmem:[#allocation2 + $0x18] sm:$0xff] %vm80, %v161
  %170 = vst.msk [vmem:[#allocation2 + $0x20] sm:$0xff] %vm80, %v162
  %171 = vst.msk [vmem:[#allocation2 + $0x28] sm:$0xff] %vm80, %v163
  %172 = vst.msk [vmem:[#allocation2 + $0x30] sm:$0xff] %vm80, %v164
  %173 = vst.msk [vmem:[#allocation2 + $0x38] sm:$0xff] %vm80, %v165
  // Predicated region
  $region18: #{forward.15} parent=0 // pred_check
    %p174 = pneg %p15
  $region19: #{forward.15} parent=0 // pred_check_branch
    %176 = sbr.rel (%p174) target = $region21
  $region20: #{forward.15} parent=0 // pred_region
    %v177 = vld [vmem:[#allocation2] sm:$0xff]
    %v178 = vld [vmem:[#allocation2 + $0x8] sm:$0xff]
    %v179 = vld [vmem:[#allocation2 + $0x10] sm:$0xff]
    %v180 = vld [vmem:[#allocation2 + $0x18] sm:$0xff]
    %v181 = vld [vmem:[#allocation2 + $0x20] sm:$0xff]
    %v182 = vld [vmem:[#allocation2 + $0x28] sm:$0xff]
    %v183 = vld [vmem:[#allocation2 + $0x30] sm:$0xff]
    %v184 = vld [vmem:[#allocation2 + $0x38] sm:$0xff]
    %v185 = vld [vmem:[%s2] sm:$0xff]
    %v186 = vld [vmem:[%s2 + $0x8] sm:$0xff]
    %v187 = vld [vmem:[%s2 + $0x10] sm:$0xff]
    %v188 = vld [vmem:[%s2 + $0x18] sm:$0xff]
    %v189 = vld [vmem:[%s2 + $0x20] sm:$0xff]
    %v190 = vld [vmem:[%s2 + $0x28] sm:$0xff]
    %v191 = vld [vmem:[%s2 + $0x30] sm:$0xff]
    %v192 = vld [vmem:[%s2 + $0x38] sm:$0xff]
    %194 = vset.pattern.permute.xlu0 0
    %195 = vperm.xlu0 %194, %v185
    %v196 = vpop.permute.xlu0 %195
    %199 = vset.pattern.permute.xlu0 0
    %200 = vperm.xlu0 %199, %v186
    %v201 = vpop.permute.xlu0 %200
    %204 = vset.pattern.permute.xlu0 0
    %205 = vperm.xlu0 %204, %v187
    %v206 = vpop.permute.xlu0 %205
    %209 = vset.pattern.permute.xlu0 0
    %210 = vperm.xlu0 %209, %v188
    %v211 = vpop.permute.xlu0 %210
    %214 = vset.pattern.permute.xlu0 0
    %215 = vperm.xlu0 %214, %v189
    %v216 = vpop.permute.xlu0 %215
    %219 = vset.pattern.permute.xlu0 0
    %220 = vperm.xlu0 %219, %v190
    %v221 = vpop.permute.xlu0 %220
    %224 = vset.pattern.permute.xlu0 0
    %225 = vperm.xlu0 %224, %v191
    %v226 = vpop.permute.xlu0 %225
    %229 = vset.pattern.permute.xlu0 0
    %230 = vperm.xlu0 %229, %v192
    %v231 = vpop.permute.xlu0 %230
    %v233 = vadd.f32 %v177, %v196
    %v234 = vadd.f32 %v178, %v201
    %v235 = vadd.f32 %v179, %v206
    %v236 = vadd.f32 %v180, %v211
    %v237 = vadd.f32 %v181, %v216
    %v238 = vadd.f32 %v182, %v221
    %v239 = vadd.f32 %v183, %v226
    %v240 = vadd.f32 %v184, %v231
    %v241 = vpack.c.bf16 %v234, %v233
    %v242 = vpack.c.bf16 %v236, %v235
    %v243 = vpack.c.bf16 %v238, %v237
    %v244 = vpack.c.bf16 %v240, %v239
    %v249 = vunpack.c.l.b16 %v241
    %v250 = vunpack.c.h.b16 %v241
    %v251 = vunpack.c.l.b16 %v242
    %v252 = vunpack.c.h.b16 %v242
    %v253 = vunpack.c.l.b16 %v243
    %v254 = vunpack.c.h.b16 %v243
    %v255 = vunpack.c.l.b16 %v244
    %v256 = vunpack.c.h.b16 %v244
    %v257 = vpack.c.b16 %v249, %v249
    %v258 = vpack.c.b16 %v250, %v250
    %v259 = vpack.c.b16 %v251, %v251
    %v260 = vpack.c.b16 %v252, %v252
    %v261 = vpack.c.b16 %v253, %v253
    %v262 = vpack.c.b16 %v254, %v254
    %v263 = vpack.c.b16 %v255, %v255
    %v264 = vpack.c.b16 %v256, %v256
    %vm273 = vcmask 257024
    %274 = vst.msk [vmem:[%s3] sm:$0xf] %vm273, %v257
    %275 = vst.msk [vmem:[%s3 + $0x4] sm:$0xf] %vm273, %v258
    %276 = vst.msk [vmem:[%s3 + $0x8] sm:$0xf] %vm273, %v259
    %277 = vst.msk [vmem:[%s3 + $0xc] sm:$0xf] %vm273, %v260
    %278 = vst.msk [vmem:[%s3 + $0x10] sm:$0xf] %vm273, %v261
    %279 = vst.msk [vmem:[%s3 + $0x14] sm:$0xf] %vm273, %v262
    %280 = vst.msk [vmem:[%s3 + $0x18] sm:$0xf] %vm273, %v263
    %281 = vst.msk [vmem:[%s3 + $0x1c] sm:$0xf] %vm273, %v264
  $region21: #{forward.15} parent=0 // pred_fallthru
    _
  // Predicated region
  $region22: #{forward.15} parent=0 // pred_check
    _
  $region23: #{forward.15} parent=0 // pred_check_branch
    %283 = sbr.rel (0) target = $region25
  $region24: #{forward.15} parent=0 // pred_region
    _
  $region25: #{forward.15} parent=0 // pred_fallthru
    _
  // Predicated region
  $region26: #{forward.15} parent=0 // pred_check
    _
  $region27: #{forward.15} parent=0 // pred_check_branch
    %285 = sbr.rel (0) target = $region29
  $region28: #{forward.15} parent=0 // pred_region
    _
  $region29: #{forward.15} parent=0 // pred_fallthru
    _

// kernel: forward.16
$region0: #{forward.16}
  #allocation0 [shape = 'u32[]', space=smem, size = 0x4, offset = 0x4, fixed_abs, tag = 'smem constant byte address 0x4 - core index']
  #allocation1 [shape = 'u32[144,128]{1,0:T(1,128)}', space=vmem, size = 0x12000, scoped, tag = 'internal scratch']
  #allocation2 [shape = 'f32[2,256]{1,0:T(2,128)}', space=vmem, size = 0x800, scoped, tag = 'scratch operand']
  %s0 = inlined_call_operand.vmem [shape: bf16[2,1088], index: 0, kind: input, shape index: {}]
  %s1 = inlined_call_operand.vmem [shape: bf16[1088,512], index: 1, kind: input, shape index: {}]
  %s2 = inlined_call_operand.vmem [shape: f32[1,512], index: 2, kind: input, shape index: {}]
  %s3 = inlined_call_operand.vmem [shape: bf16[2,512], index: 3, kind: output, shape index: {}]
  %s4 = sld [smem:[#allocation0]]
  $region91: #{forward.16} parent=0
    _
  %s6 = ssub.s32 1, %s4
  %s7 = scalar_select 0, %s6, %s4
  $region1: #{forward.16} parent=0
    #allocation3 [shape = 'u8[1114112]{0}', space=vmem, size = 0x110000, scoped, tag = 'input window, operand 1']
    loop: start=0, step=1, limit=4
    $region2: #{forward.16} parent=1 // loop_pre_header
      _
    $region3: #{forward.16} parent=1 // loop_header
      %s9 = sphi 0, %s13
      %p10 = scmp.ge.s32.totalorder %s9, 4
      %s16 = sphi 0, %s35
      %s17 = sphi 0, %s31
      %s18 = sphi 0, %s27
      %s19 = sphi 0, %s16
      %s20 = sphi 0, %s17
      %s21 = sphi 0, %s18
      %s22 = sphi 0, %s19
      %s23 = sphi 0, %s20
      %s24 = sphi 0, %s21
      %s40 = sphi 0, %s42
      %s43 = sphi 0, %s40
      %s44 = sphi 0, %s43
      %s60 = sphi 0, %s44
      %s68 = sphi 0, %s70
      %s71 = sphi 0, %s68
      %s72 = sphi 0, %s71
      %s88 = sphi 0, %s72
      %s94 = sphi 0, %s96
      %s97 = sphi 0, %s94
      %s98 = sphi 0, %s97
      %s114 = sphi 0, %s98
      %s122 = sphi 0, %s124
      %s125 = sphi 0, %s122
      %s126 = sphi 0, %s125
      %s142 = sphi 0, %s126
    $region4: #{forward.16} parent=1 // loop_header_branch
      %12 = sbr.rel (%p10) target = $region8
    $region5: #{forward.16} parent=1 // loop_body
      %s14 = ssub.s32 %s9, 1
      %s15 = ssub.s32 %s9, 2
      %s25 = sadd.s32 1, %s18
      %p26 = scmp.ge.s32.totalorder %s25, 1
      %s27 = scalar_select %p26, 0, %s25
      %s28 = sadd.s32 1, %s17
      %s29 = scalar_select %p26, %s28, %s17
      %p30 = scmp.ge.s32.totalorder %s29, 2
      %s31 = scalar_select %p30, 0, %s29
      %s32 = sadd.s32 1, %s16
      %s33 = scalar_select %p30, %s32, %s16
      %p34 = scmp.ge.s32.totalorder %s33, 1
      %s35 = scalar_select %p34, 0, %s33
      %s36 = ssub.s32 %s16, %s35
      %s37 = ssub.s32 %s18, %s27
      %s38 = sor.u32 %s36, %s37
      %p39 = scmp.eq.s32.totalorder %s38, 0
      %s41 = sadd.s32 %s40, 1
      %s42 = scalar_select %p39, %s40, %s41
      %p45 = pneg %p39
      %p46 = scmp.eq.s32.totalorder %s9, 1
      %p47 = por %p45, %p46
      %p48 = scmp.ne.s32.totalorder %s40, %s43
      %p49 = scmp.eq.s32.totalorder %s9, 0
      %p50 = por %p48, %p49
      %p51 = scmp.ne.s32.totalorder %s40, %s43
      %p52 = scmp.eq.s32.totalorder %s14, 1
      %p53 = por %p51, %p52
      %p54 = scmp.ne.s32.totalorder %s43, %s44
      %p55 = scmp.eq.s32.totalorder %s14, 0
      %p56 = por %p54, %p55
      %p57 = scmp.ne.s32.totalorder %s43, %s44
      %p58 = scmp.eq.s32.totalorder %s15, 1
      %p59 = por %p57, %p58
      %p61 = scmp.ne.s32.totalorder %s44, %s60
      %p62 = scmp.eq.s32.totalorder %s15, 0
      %p63 = por %p61, %p62
      %s64 = ssub.s32 %s18, %s27
      %s65 = ssub.s32 %s17, %s31
      %s66 = sor.u32 %s64, %s65
      %p67 = scmp.eq.s32.totalorder %s66, 0
      %s69 = sadd.s32 %s68, 1
      %s70 = scalar_select %p67, %s68, %s69
      %p73 = pneg %p67
      %p74 = scmp.eq.s32.totalorder %s9, 1
      %p75 = por %p73, %p74
      %p76 = scmp.ne.s32.totalorder %s68, %s71
      %p77 = scmp.eq.s32.totalorder %s9, 0
      %p78 = por %p76, %p77
      %p79 = scmp.ne.s32.totalorder %s68, %s71
      %p80 = scmp.eq.s32.totalorder %s14, 1
      %p81 = por %p79, %p80
      %p82 = scmp.ne.s32.totalorder %s71, %s72
      %p83 = scmp.eq.s32.totalorder %s14, 0
      %p84 = por %p82, %p83
      %p85 = scmp.ne.s32.totalorder %s71, %s72
      %p86 = scmp.eq.s32.totalorder %s15, 1
      %p87 = por %p85, %p86
      %p89 = scmp.ne.s32.totalorder %s72, %s88
      %p90 = scmp.eq.s32.totalorder %s15, 0
      %p91 = por %p89, %p90
      %s92 = ssub.s32 %s17, %s31
      %p93 = scmp.eq.s32.totalorder %s92, 0
      %s95 = sadd.s32 %s94, 1
      %s96 = scalar_select %p93, %s94, %s95
      %p99 = pneg %p93
      %p100 = scmp.eq.s32.totalorder %s9, 1
      %p101 = por %p99, %p100
      %p102 = scmp.ne.s32.totalorder %s94, %s97
      %p103 = scmp.eq.s32.totalorder %s9, 0
      %p104 = por %p102, %p103
      %p105 = scmp.ne.s32.totalorder %s94, %s97
      %p106 = scmp.eq.s32.totalorder %s14, 1
      %p107 = por %p105, %p106
      %p108 = scmp.ne.s32.totalorder %s97, %s98
      %p109 = scmp.eq.s32.totalorder %s14, 0
      %p110 = por %p108, %p109
      %p111 = scmp.ne.s32.totalorder %s97, %s98
      %p112 = scmp.eq.s32.totalorder %s15, 1
      %p113 = por %p111, %p112
      %p115 = scmp.ne.s32.totalorder %s98, %s114
      %p116 = scmp.eq.s32.totalorder %s15, 0
      %p117 = por %p115, %p116
      %s118 = ssub.s32 %s16, %s35
      %s119 = ssub.s32 %s17, %s31
      %s120 = sor.u32 %s118, %s119
      %p121 = scmp.eq.s32.totalorder %s120, 0
      %s123 = sadd.s32 %s122, 1
      %s124 = scalar_select %p121, %s122, %s123
      %p127 = pneg %p121
      %p128 = scmp.eq.s32.totalorder %s9, 1
      %p129 = por %p127, %p128
      %p130 = scmp.ne.s32.totalorder %s122, %s125
      %p131 = scmp.eq.s32.totalorder %s9, 0
      %p132 = por %p130, %p131
      %p133 = scmp.ne.s32.totalorder %s122, %s125
      %p134 = scmp.eq.s32.totalorder %s14, 1
      %p135 = por %p133, %p134
      %p136 = scmp.ne.s32.totalorder %s125, %s126
      %p137 = scmp.eq.s32.totalorder %s14, 0
      %p138 = por %p136, %p137
      %p139 = scmp.ne.s32.totalorder %s125, %s126
      %p140 = scmp.eq.s32.totalorder %s15, 1
      %p141 = por %p139, %p140
      %p143 = scmp.ne.s32.totalorder %s126, %s142
      %p144 = scmp.eq.s32.totalorder %s15, 0
      %p145 = por %p143, %p144
      %p146 = scmp.le.s32.totalorder 1, %s9
      %p147 = scmp.lt.s32.totalorder %s9, 3
      %p148 = pnand %p146, %p147
      %p149 = pneg %p148
      // Predicated region
      $region9: #{forward.16} parent=5 // pred_check
        _
      $region10: #{forward.16} parent=5 // pred_check_branch
        %151 = sbr.rel (%p148) target = $region12
      $region11: #{forward.16} parent=5 // pred_region
        %s152 = ssub.s32 %s9, 1
        // Predicated region
        $region13: #{forward.16} parent=11 // pred_check
          %p153 = pneg %p56
        $region14: #{forward.16} parent=11 // pred_check_branch
          %155 = sbr.rel (%p153) target = $region16
        $region15: #{forward.16} parent=11 // pred_region
          %s156 = smul.u32 9, %s21
          %p157 = scmp.lt.s32.totalorder %s19, 0
          %s158 = scalar_select %p157, %s19, 0
          %p159 = scmp.lt.s32.totalorder %s156, 8
          %s160 = scalar_select %p159, %s156, 8
          %s161 = smul.addr %s158, 9
          %s162 = sadd.s32 %s160, %s161
          %s163 = scalar_lea.vmem %s0, %s162
          %s164 = smul.u32 9, %s21
        $region16: #{forward.16} parent=11 // pred_fallthru
          _
      $region12: #{forward.16} parent=5 // pred_fallthru
        _
      %p165 = scmp.lt.s32.totalorder %s9, 2
      // Predicated region
      $region17: #{forward.16} parent=5 // pred_check
        %p166 = pneg %p165
      $region18: #{forward.16} parent=5 // pred_check_branch
        %168 = sbr.rel (%p166) target = $region20
      $region19: #{forward.16} parent=5 // pred_region
        // Predicated region
        $region21: #{forward.16} parent=19 // pred_check
          %p169 = pneg %p78
        $region22: #{forward.16} parent=19 // pred_check_branch
          %171 = sbr.rel (%p169) target = $region24
        $region23: #{forward.16} parent=19 // pred_region
          %s172 = sand.u32 %s68, 1
          %s173 = sand.u32 %s68, 1
          %s174 = smul.addr %s173, 1088
          %s175 = scalar_lea.vmem [#allocation3], %s174
          %s176 = smul.u32 136, %s18
          %s177 = smul.u32 2, %s17
          %s178 = smul.addr %s176, 4
          %s179 = sadd.s32 %s177, %s178
          %s180 = smul.addr %s179, 4
          %s181 = scalar_lea.vmem %s1, %s180
          // Predicated region
          $region25: #{forward.16} parent=23 // pred_check
            _
          $region26: #{forward.16} parent=23 // pred_check_branch
            %183 = sbr.rel (0) target = $region28
          $region27: #{forward.16} parent=23 // pred_region
            // Predicated region
            $region29: #{forward.16} parent=27 // pred_check
              _
            $region30: #{forward.16} parent=27 // pred_check_branch
              %185 = sbr.rel (0) target = $region32
            $region31: #{forward.16} parent=27 // pred_region
              // Predicated region
              $region44: #{forward.16} parent=31 // pred_check
                _
              $region45: #{forward.16} parent=31 // pred_check_branch
                %470 = sbr.rel (0) target = $region47
              $region46: #{forward.16} parent=31 // pred_region
                loop: start=0, step=1, limit=1
                $region48: #{forward.16} parent=46 // loop_pre_header
                  _
                $region49: #{forward.16} parent=46 // loop_header
                  %s472 = sphi 0, %s476
                  %p473 = scmp.ge.s32.totalorder %s472, 1
                  %s477 = sphi %s181, %s181
                  %s478 = sphi %s175, %s175
                $region50: #{forward.16} parent=46 // loop_header_branch
                  %475 = sbr.rel (%p473) target = $region54
                $region51: #{forward.16} parent=46 // loop_body
                  %v479 = vld [vmem:[%s477] sm:$0xff]
                  %480 = vst [vmem:[%s478] sm:$0xff] %v479
                  %v481 = vld [vmem:[%s477 + $0x10] sm:$0xff]
                  %482 = vst [vmem:[%s478 + $0x8] sm:$0xff] %v481
                  %v483 = vld [vmem:[%s477 + $0x20] sm:$0xff]
                  %484 = vst [vmem:[%s478 + $0x10] sm:$0xff] %v483
                  %v485 = vld [vmem:[%s477 + $0x30] sm:$0xff]
                  %486 = vst [vmem:[%s478 + $0x18] sm:$0xff] %v485
                  %v487 = vld [vmem:[%s477 + $0x40] sm:$0xff]
                  %488 = vst [vmem:[%s478 + $0x20] sm:$0xff] %v487
                  %v489 = vld [vmem:[%s477 + $0x50] sm:$0xff]
                  %490 = vst [vmem:[%s478 + $0x28] sm:$0xff] %v489
                  %v491 = vld [vmem:[%s477 + $0x60] sm:$0xff]
                  %492 = vst [vmem:[%s478 + $0x30] sm:$0xff] %v491
                  %v493 = vld [vmem:[%s477 + $0x70] sm:$0xff]
                  %494 = vst [vmem:[%s478 + $0x38] sm:$0xff] %v493
                  %v495 = vld [vmem:[%s477 + $0x80] sm:$0xff]
                  %496 = vst [vmem:[%s478 + $0x40] sm:$0xff] %v495
                  %v497 = vld [vmem:[%s477 + $0x90] sm:$0xff]
                  %498 = vst [vmem:[%s478 + $0x48] sm:$0xff] %v497
                  %v499 = vld [vmem:[%s477 + $0xa0] sm:$0xff]
                  %500 = vst [vmem:[%s478 + $0x50] sm:$0xff] %v499
                  %v501 = vld [vmem:[%s477 + $0xb0] sm:$0xff]
                  %502 = vst [vmem:[%s478 + $0x58] sm:$0xff] %v501
                  %v503 = vld [vmem:[%s477 + $0xc0] sm:$0xff]
                  %504 = vst [vmem:[%s478 + $0x60] sm:$0xff] %v503
                  %v505 = vld [vmem:[%s477 + $0xd0] sm:$0xff]
                  %506 = vst [vmem:[%s478 + $0x68] sm:$0xff] %v505
                  %v507 = vld [vmem:[%s477 + $0xe0] sm:$0xff]
                  %508 = vst [vmem:[%s478 + $0x70] sm:$0xff] %v507
                  %v509 = vld [vmem:[%s477 + $0xf0] sm:$0xff]
                  %510 = vst [vmem:[%s478 + $0x78] sm:$0xff] %v509
                  %v511 = vld [vmem:[%s477 + $0x100] sm:$0xff]
                  %512 = vst [vmem:[%s478 + $0x80] sm:$0xff] %v511
                  %v513 = vld [vmem:[%s477 + $0x110] sm:$0xff]
                  %514 = vst [vmem:[%s478 + $0x88] sm:$0xff] %v513
                  %v515 = vld [vmem:[%s477 + $0x120] sm:$0xff]
                  %516 = vst [vmem:[%s478 + $0x90] sm:$0xff] %v515
                  %v517 = vld [vmem:[%s477 + $0x130] sm:$0xff]
                  %518 = vst [vmem:[%s478 + $0x98] sm:$0xff] %v517
                  %v519 = vld [vmem:[%s477 + $0x140] sm:$0xff]
                  %520 = vst [vmem:[%s478 + $0xa0] sm:$0xff] %v519
                  %v521 = vld [vmem:[%s477 + $0x150] sm:$0xff]
                  %522 = vst [vmem:[%s478 + $0xa8] sm:$0xff] %v521
                  %v523 = vld [vmem:[%s477 + $0x160] sm:$0xff]
                  %524 = vst [vmem:[%s478 + $0xb0] sm:$0xff] %v523
                  %v525 = vld [vmem:[%s477 + $0x170] sm:$0xff]
                  %526 = vst [vmem:[%s478 + $0xb8] sm:$0xff] %v525
                  %v527 = vld [vmem:[%s477 + $0x180] sm:$0xff]
                  %528 = vst [vmem:[%s478 + $0xc0] sm:$0xff] %v527
                  %v529 = vld [vmem:[%s477 + $0x190] sm:$0xff]
                  %530 = vst [vmem:[%s478 + $0xc8] sm:$0xff] %v529
                  %v531 = vld [vmem:[%s477 + $0x1a0] sm:$0xff]
                  %532 = vst [vmem:[%s478 + $0xd0] sm:$0xff] %v531
                  %v533 = vld [vmem:[%s477 + $0x1b0] sm:$0xff]
                  %534 = vst [vmem:[%s478 + $0xd8] sm:$0xff] %v533
                  %v535 = vld [vmem:[%s477 + $0x1c0] sm:$0xff]
                  %536 = vst [vmem:[%s478 + $0xe0] sm:$0xff] %v535
                  %v537 = vld [vmem:[%s477 + $0x1d0] sm:$0xff]
                  %538 = vst [vmem:[%s478 + $0xe8] sm:$0xff] %v537
                  %v539 = vld [vmem:[%s477 + $0x1e0] sm:$0xff]
                  %540 = vst [vmem:[%s478 + $0xf0] sm:$0xff] %v539
                  %v541 = vld [vmem:[%s477 + $0x1f0] sm:$0xff]
                  %542 = vst [vmem:[%s478 + $0xf8] sm:$0xff] %v541
                  %v543 = vld [vmem:[%s477 + $0x200] sm:$0xff]
                  %544 = vst [vmem:[%s478 + $0x100] sm:$0xff] %v543
                  %v545 = vld [vmem:[%s477 + $0x210] sm:$0xff]
                  %546 = vst [vmem:[%s478 + $0x108] sm:$0xff] %v545
                  %v547 = vld [vmem:[%s477 + $0x220] sm:$0xff]
                  %548 = vst [vmem:[%s478 + $0x110] sm:$0xff] %v547
                  %v549 = vld [vmem:[%s477 + $0x230] sm:$0xff]
                  %550 = vst [vmem:[%s478 + $0x118] sm:$0xff] %v549
                  %v551 = vld [vmem:[%s477 + $0x240] sm:$0xff]
                  %552 = vst [vmem:[%s478 + $0x120] sm:$0xff] %v551
                  %v553 = vld [vmem:[%s477 + $0x250] sm:$0xff]
                  %554 = vst [vmem:[%s478 + $0x128] sm:$0xff] %v553
                  %v555 = vld [vmem:[%s477 + $0x260] sm:$0xff]
                  %556 = vst [vmem:[%s478 + $0x130] sm:$0xff] %v555
                  %v557 = vld [vmem:[%s477 + $0x270] sm:$0xff]
                  %558 = vst [vmem:[%s478 + $0x138] sm:$0xff] %v557
                  %v559 = vld [vmem:[%s477 + $0x280] sm:$0xff]
                  %560 = vst [vmem:[%s478 + $0x140] sm:$0xff] %v559
                  %v561 = vld [vmem:[%s477 + $0x290] sm:$0xff]
                  %562 = vst [vmem:[%s478 + $0x148] sm:$0xff] %v561
                  %v563 = vld [vmem:[%s477 + $0x2a0] sm:$0xff]
                  %564 = vst [vmem:[%s478 + $0x150] sm:$0xff] %v563
                  %v565 = vld [vmem:[%s477 + $0x2b0] sm:$0xff]
                  %566 = vst [vmem:[%s478 + $0x158] sm:$0xff] %v565
                  %v567 = vld [vmem:[%s477 + $0x2c0] sm:$0xff]
                  %568 = vst [vmem:[%s478 + $0x160] sm:$0xff] %v567
                  %v569 = vld [vmem:[%s477 + $0x2d0] sm:$0xff]
                  %570 = vst [vmem:[%s478 + $0x168] sm:$0xff] %v569
                  %v571 = vld [vmem:[%s477 + $0x2e0] sm:$0xff]
                  %572 = vst [vmem:[%s478 + $0x170] sm:$0xff] %v571
                  %v573 = vld [vmem:[%s477 + $0x2f0] sm:$0xff]
                  %574 = vst [vmem:[%s478 + $0x178] sm:$0xff] %v573
                  %v575 = vld [vmem:[%s477 + $0x300] sm:$0xff]
                  %576 = vst [vmem:[%s478 + $0x180] sm:$0xff] %v575
                  %v577 = vld [vmem:[%s477 + $0x310] sm:$0xff]
                  %578 = vst [vmem:[%s478 + $0x188] sm:$0xff] %v577
                  %v579 = vld [vmem:[%s477 + $0x320] sm:$0xff]
                  %580 = vst [vmem:[%s478 + $0x190] sm:$0xff] %v579
                  %v581 = vld [vmem:[%s477 + $0x330] sm:$0xff]
                  %582 = vst [vmem:[%s478 + $0x198] sm:$0xff] %v581
                  %v583 = vld [vmem:[%s477 + $0x340] sm:$0xff]
                  %584 = vst [vmem:[%s478 + $0x1a0] sm:$0xff] %v583
                  %v585 = vld [vmem:[%s477 + $0x350] sm:$0xff]
                  %586 = vst [vmem:[%s478 + $0x1a8] sm:$0xff] %v585
                  %v587 = vld [vmem:[%s477 + $0x360] sm:$0xff]
                  %588 = vst [vmem:[%s478 + $0x1b0] sm:$0xff] %v587
                  %v589 = vld [vmem:[%s477 + $0x370] sm:$0xff]
                  %590 = vst [vmem:[%s478 + $0x1b8] sm:$0xff] %v589
                  %v591 = vld [vmem:[%s477 + $0x380] sm:$0xff]
                  %592 = vst [vmem:[%s478 + $0x1c0] sm:$0xff] %v591
                  %v593 = vld [vmem:[%s477 + $0x390] sm:$0xff]
                  %594 = vst [vmem:[%s478 + $0x1c8] sm:$0xff] %v593
                  %v595 = vld [vmem:[%s477 + $0x3a0] sm:$0xff]
                  %596 = vst [vmem:[%s478 + $0x1d0] sm:$0xff] %v595
                  %v597 = vld [vmem:[%s477 + $0x3b0] sm:$0xff]
                  %598 = vst [vmem:[%s478 + $0x1d8] sm:$0xff] %v597
                  %v599 = vld [vmem:[%s477 + $0x3c0] sm:$0xff]
                  %600 = vst [vmem:[%s478 + $0x1e0] sm:$0xff] %v599
                  %v601 = vld [vmem:[%s477 + $0x3d0] sm:$0xff]
                  %602 = vst [vmem:[%s478 + $0x1e8] sm:$0xff] %v601
                  %v603 = vld [vmem:[%s477 + $0x3e0] sm:$0xff]
                  %604 = vst [vmem:[%s478 + $0x1f0] sm:$0xff] %v603
                  %v605 = vld [vmem:[%s477 + $0x3f0] sm:$0xff]
                  %606 = vst [vmem:[%s478 + $0x1f8] sm:$0xff] %v605
                  %v607 = vld [vmem:[%s477 + $0x400] sm:$0xff]
                  %608 = vst [vmem:[%s478 + $0x200] sm:$0xff] %v607
                  %v609 = vld [vmem:[%s477 + $0x410] sm:$0xff]
                  %610 = vst [vmem:[%s478 + $0x208] sm:$0xff] %v609
                  %v611 = vld [vmem:[%s477 + $0x420] sm:$0xff]
                  %612 = vst [vmem:[%s478 + $0x210] sm:$0xff] %v611
                  %v613 = vld [vmem:[%s477 + $0x430] sm:$0xff]
                  %614 = vst [vmem:[%s478 + $0x218] sm:$0xff] %v613
                  %v615 = vld [vmem:[%s477 + $0x440] sm:$0xff]
                  %616 = vst [vmem:[%s478 + $0x220] sm:$0xff] %v615
                  %v617 = vld [vmem:[%s477 + $0x450] sm:$0xff]
                  %618 = vst [vmem:[%s478 + $0x228] sm:$0xff] %v617
                  %v619 = vld [vmem:[%s477 + $0x460] sm:$0xff]
                  %620 = vst [vmem:[%s478 + $0x230] sm:$0xff] %v619
                  %v621 = vld [vmem:[%s477 + $0x470] sm:$0xff]
                  %622 = vst [vmem:[%s478 + $0x238] sm:$0xff] %v621
                  %v623 = vld [vmem:[%s477 + $0x480] sm:$0xff]
                  %624 = vst [vmem:[%s478 + $0x240] sm:$0xff] %v623
                  %v625 = vld [vmem:[%s477 + $0x490] sm:$0xff]
                  %626 = vst [vmem:[%s478 + $0x248] sm:$0xff] %v625
                  %v627 = vld [vmem:[%s477 + $0x4a0] sm:$0xff]
                  %628 = vst [vmem:[%s478 + $0x250] sm:$0xff] %v627
                  %v629 = vld [vmem:[%s477 + $0x4b0] sm:$0xff]
                  %630 = vst [vmem:[%s478 + $0x258] sm:$0xff] %v629
                  %v631 = vld [vmem:[%s477 + $0x4c0] sm:$0xff]
                  %632 = vst [vmem:[%s478 + $0x260] sm:$0xff] %v631
                  %v633 = vld [vmem:[%s477 + $0x4d0] sm:$0xff]
                  %634 = vst [vmem:[%s478 + $0x268] sm:$0xff] %v633
                  %v635 = vld [vmem:[%s477 + $0x4e0] sm:$0xff]
                  %636 = vst [vmem:[%s478 + $0x270] sm:$0xff] %v635
                  %v637 = vld [vmem:[%s477 + $0x4f0] sm:$0xff]
                  %638 = vst [vmem:[%s478 + $0x278] sm:$0xff] %v637
                  %v639 = vld [vmem:[%s477 + $0x500] sm:$0xff]
                  %640 = vst [vmem:[%s478 + $0x280] sm:$0xff] %v639
                  %v641 = vld [vmem:[%s477 + $0x510] sm:$0xff]
                  %642 = vst [vmem:[%s478 + $0x288] sm:$0xff] %v641
                  %v643 = vld [vmem:[%s477 + $0x520] sm:$0xff]
                  %644 = vst [vmem:[%s478 + $0x290] sm:$0xff] %v643
                  %v645 = vld [vmem:[%s477 + $0x530] sm:$0xff]
                  %646 = vst [vmem:[%s478 + $0x298] sm:$0xff] %v645
                  %v647 = vld [vmem:[%s477 + $0x540] sm:$0xff]
                  %648 = vst [vmem:[%s478 + $0x2a0] sm:$0xff] %v647
                  %v649 = vld [vmem:[%s477 + $0x550] sm:$0xff]
                  %650 = vst [vmem:[%s478 + $0x2a8] sm:$0xff] %v649
                  %v651 = vld [vmem:[%s477 + $0x560] sm:$0xff]
                  %652 = vst [vmem:[%s478 + $0x2b0] sm:$0xff] %v651
                  %v653 = vld [vmem:[%s477 + $0x570] sm:$0xff]
                  %654 = vst [vmem:[%s478 + $0x2b8] sm:$0xff] %v653
                  %v655 = vld [vmem:[%s477 + $0x580] sm:$0xff]
                  %656 = vst [vmem:[%s478 + $0x2c0] sm:$0xff] %v655
                  %v657 = vld [vmem:[%s477 + $0x590] sm:$0xff]
                  %658 = vst [vmem:[%s478 + $0x2c8] sm:$0xff] %v657
                  %v659 = vld [vmem:[%s477 + $0x5a0] sm:$0xff]
                  %660 = vst [vmem:[%s478 + $0x2d0] sm:$0xff] %v659
                  %v661 = vld [vmem:[%s477 + $0x5b0] sm:$0xff]
                  %662 = vst [vmem:[%s478 + $0x2d8] sm:$0xff] %v661
                  %v663 = vld [vmem:[%s477 + $0x5c0] sm:$0xff]
                  %664 = vst [vmem:[%s478 + $0x2e0] sm:$0xff] %v663
                  %v665 = vld [vmem:[%s477 + $0x5d0] sm:$0xff]
                  %666 = vst [vmem:[%s478 + $0x2e8] sm:$0xff] %v665
                  %v667 = vld [vmem:[%s477 + $0x5e0] sm:$0xff]
                  %668 = vst [vmem:[%s478 + $0x2f0] sm:$0xff] %v667
                  %v669 = vld [vmem:[%s477 + $0x5f0] sm:$0xff]
                  %670 = vst [vmem:[%s478 + $0x2f8] sm:$0xff] %v669
                  %v671 = vld [vmem:[%s477 + $0x600] sm:$0xff]
                  %672 = vst [vmem:[%s478 + $0x300] sm:$0xff] %v671
                  %v673 = vld [vmem:[%s477 + $0x610] sm:$0xff]
                  %674 = vst [vmem:[%s478 + $0x308] sm:$0xff] %v673
                  %v675 = vld [vmem:[%s477 + $0x620] sm:$0xff]
                  %676 = vst [vmem:[%s478 + $0x310] sm:$0xff] %v675
                  %v677 = vld [vmem:[%s477 + $0x630] sm:$0xff]
                  %678 = vst [vmem:[%s478 + $0x318] sm:$0xff] %v677
                  %v679 = vld [vmem:[%s477 + $0x640] sm:$0xff]
                  %680 = vst [vmem:[%s478 + $0x320] sm:$0xff] %v679
                  %v681 = vld [vmem:[%s477 + $0x650] sm:$0xff]
                  %682 = vst [vmem:[%s478 + $0x328] sm:$0xff] %v681
                  %v683 = vld [vmem:[%s477 + $0x660] sm:$0xff]
                  %684 = vst [vmem:[%s478 + $0x330] sm:$0xff] %v683
                  %v685 = vld [vmem:[%s477 + $0x670] sm:$0xff]
                  %686 = vst [vmem:[%s478 + $0x338] sm:$0xff] %v685
                  %v687 = vld [vmem:[%s477 + $0x680] sm:$0xff]
                  %688 = vst [vmem:[%s478 + $0x340] sm:$0xff] %v687
                  %v689 = vld [vmem:[%s477 + $0x690] sm:$0xff]
                  %690 = vst [vmem:[%s478 + $0x348] sm:$0xff] %v689
                  %v691 = vld [vmem:[%s477 + $0x6a0] sm:$0xff]
                  %692 = vst [vmem:[%s478 + $0x350] sm:$0xff] %v691
                  %v693 = vld [vmem:[%s477 + $0x6b0] sm:$0xff]
                  %694 = vst [vmem:[%s478 + $0x358] sm:$0xff] %v693
                  %v695 = vld [vmem:[%s477 + $0x6c0] sm:$0xff]
                  %696 = vst [vmem:[%s478 + $0x360] sm:$0xff] %v695
                  %v697 = vld [vmem:[%s477 + $0x6d0] sm:$0xff]
                  %698 = vst [vmem:[%s478 + $0x368] sm:$0xff] %v697
                  %v699 = vld [vmem:[%s477 + $0x6e0] sm:$0xff]
                  %700 = vst [vmem:[%s478 + $0x370] sm:$0xff] %v699
                  %v701 = vld [vmem:[%s477 + $0x6f0] sm:$0xff]
                  %702 = vst [vmem:[%s478 + $0x378] sm:$0xff] %v701
                  %v703 = vld [vmem:[%s477 + $0x700] sm:$0xff]
                  %704 = vst [vmem:[%s478 + $0x380] sm:$0xff] %v703
                  %v705 = vld [vmem:[%s477 + $0x710] sm:$0xff]
                  %706 = vst [vmem:[%s478 + $0x388] sm:$0xff] %v705
                  %v707 = vld [vmem:[%s477 + $0x720] sm:$0xff]
                  %708 = vst [vmem:[%s478 + $0x390] sm:$0xff] %v707
                  %v709 = vld [vmem:[%s477 + $0x730] sm:$0xff]
                  %710 = vst [vmem:[%s478 + $0x398] sm:$0xff] %v709
                  %v711 = vld [vmem:[%s477 + $0x740] sm:$0xff]
                  %712 = vst [vmem:[%s478 + $0x3a0] sm:$0xff] %v711
                  %v713 = vld [vmem:[%s477 + $0x750] sm:$0xff]
                  %714 = vst [vmem:[%s478 + $0x3a8] sm:$0xff] %v713
                  %v715 = vld [vmem:[%s477 + $0x760] sm:$0xff]
                  %716 = vst [vmem:[%s478 + $0x3b0] sm:$0xff] %v715
                  %v717 = vld [vmem:[%s477 + $0x770] sm:$0xff]
                  %718 = vst [vmem:[%s478 + $0x3b8] sm:$0xff] %v717
                  %v719 = vld [vmem:[%s477 + $0x780] sm:$0xff]
                  %720 = vst [vmem:[%s478 + $0x3c0] sm:$0xff] %v719
                  %v721 = vld [vmem:[%s477 + $0x790] sm:$0xff]
                  %722 = vst [vmem:[%s478 + $0x3c8] sm:$0xff] %v721
                  %v723 = vld [vmem:[%s477 + $0x7a0] sm:$0xff]
                  %724 = vst [vmem:[%s478 + $0x3d0] sm:$0xff] %v723
                  %v725 = vld [vmem:[%s477 + $0x7b0] sm:$0xff]
                  %726 = vst [vmem:[%s478 + $0x3d8] sm:$0xff] %v725
                  %v727 = vld [vmem:[%s477 + $0x7c0] sm:$0xff]
                  %728 = vst [vmem:[%s478 + $0x3e0] sm:$0xff] %v727
                  %v729 = vld [vmem:[%s477 + $0x7d0] sm:$0xff]
                  %730 = vst [vmem:[%s478 + $0x3e8] sm:$0xff] %v729
                  %v731 = vld [vmem:[%s477 + $0x7e0] sm:$0xff]
                  %732 = vst [vmem:[%s478 + $0x3f0] sm:$0xff] %v731
                  %v733 = vld [vmem:[%s477 + $0x7f0] sm:$0xff]
                  %734 = vst [vmem:[%s478 + $0x3f8] sm:$0xff] %v733
                  %v735 = vld [vmem:[%s477 + $0x800] sm:$0xff]
                  %736 = vst [vmem:[%s478 + $0x400] sm:$0xff] %v735
                  %v737 = vld [vmem:[%s477 + $0x810] sm:$0xff]
                  %738 = vst [vmem:[%s478 + $0x408] sm:$0xff] %v737
                  %v739 = vld [vmem:[%s477 + $0x820] sm:$0xff]
                  %740 = vst [vmem:[%s478 + $0x410] sm:$0xff] %v739
                  %v741 = vld [vmem:[%s477 + $0x830] sm:$0xff]
                  %742 = vst [vmem:[%s478 + $0x418] sm:$0xff] %v741
                  %v743 = vld [vmem:[%s477 + $0x840] sm:$0xff]
                  %744 = vst [vmem:[%s478 + $0x420] sm:$0xff] %v743
                  %v745 = vld [vmem:[%s477 + $0x850] sm:$0xff]
                  %746 = vst [vmem:[%s478 + $0x428] sm:$0xff] %v745
                  %v747 = vld [vmem:[%s477 + $0x860] sm:$0xff]
                  %748 = vst [vmem:[%s478 + $0x430] sm:$0xff] %v747
                  %v749 = vld [vmem:[%s477 + $0x870] sm:$0xff]
                  %750 = vst [vmem:[%s478 + $0x438] sm:$0xff] %v749
                $region52: #{forward.16} parent=46 // loop_footer
                  %s476 = sadd.s32 1, %s472
                $region53: #{forward.16} parent=46 // loop_footer_branch
                  %471 = sbr.rel target = $region49
                $region54: #{forward.16} parent=46 // loop_exit
                  _
              $region47: #{forward.16} parent=31 // pred_fallthru
                _
              // Predicated region
              $region55: #{forward.16} parent=31 // pred_check
                _
              $region56: #{forward.16} parent=31 // pred_check_branch
                %752 = sbr.rel target = $region58
              $region57: #{forward.16} parent=31 // pred_region
                _
              $region58: #{forward.16} parent=31 // pred_fallthru
                _
            $region32: #{forward.16} parent=27 // pred_fallthru
              _
            // Predicated region
            $region33: #{forward.16} parent=27 // pred_check
              _
            $region34: #{forward.16} parent=27 // pred_check_branch
              %187 = sbr.rel target = $region36
            $region35: #{forward.16} parent=27 // pred_region
              loop: start=0, step=1, limit=1
              $region37: #{forward.16} parent=35 // loop_pre_header
                _
              $region38: #{forward.16} parent=35 // loop_header
                %s190 = sphi 0, %s194
                %p191 = scmp.ge.s32.totalorder %s190, 1
                %s195 = sphi %s181, %s181
                %s196 = sphi %s175, %s175
              $region39: #{forward.16} parent=35 // loop_header_branch
                %193 = sbr.rel (%p191) target = $region43
              $region40: #{forward.16} parent=35 // loop_body
                %v197 = vld [vmem:[%s195] sm:$0xff]
                %198 = vst [vmem:[%s196] sm:$0xff] %v197
                %v199 = vld [vmem:[%s195 + $0x10] sm:$0xff]
                %200 = vst [vmem:[%s196 + $0x8] sm:$0xff] %v199
                %v201 = vld [vmem:[%s195 + $0x20] sm:$0xff]
                %202 = vst [vmem:[%s196 + $0x10] sm:$0xff] %v201
                %v203 = vld [vmem:[%s195 + $0x30] sm:$0xff]
                %204 = vst [vmem:[%s196 + $0x18] sm:$0xff] %v203
                %v205 = vld [vmem:[%s195 + $0x40] sm:$0xff]
                %206 = vst [vmem:[%s196 + $0x20] sm:$0xff] %v205
                %v207 = vld [vmem:[%s195 + $0x50] sm:$0xff]
                %208 = vst [vmem:[%s196 + $0x28] sm:$0xff] %v207
                %v209 = vld [vmem:[%s195 + $0x60] sm:$0xff]
                %210 = vst [vmem:[%s196 + $0x30] sm:$0xff] %v209
                %v211 = vld [vmem:[%s195 + $0x70] sm:$0xff]
                %212 = vst [vmem:[%s196 + $0x38] sm:$0xff] %v211
                %v213 = vld [vmem:[%s195 + $0x80] sm:$0xff]
                %214 = vst [vmem:[%s196 + $0x40] sm:$0xff] %v213
                %v215 = vld [vmem:[%s195 + $0x90] sm:$0xff]
                %216 = vst [vmem:[%s196 + $0x48] sm:$0xff] %v215
                %v217 = vld [vmem:[%s195 + $0xa0] sm:$0xff]
                %218 = vst [vmem:[%s196 + $0x50] sm:$0xff] %v217
                %v219 = vld [vmem:[%s195 + $0xb0] sm:$0xff]
                %220 = vst [vmem:[%s196 + $0x58] sm:$0xff] %v219
                %v221 = vld [vmem:[%s195 + $0xc0] sm:$0xff]
                %222 = vst [vmem:[%s196 + $0x60] sm:$0xff] %v221
                %v223 = vld [vmem:[%s195 + $0xd0] sm:$0xff]
                %224 = vst [vmem:[%s196 + $0x68] sm:$0xff] %v223
                %v225 = vld [vmem:[%s195 + $0xe0] sm:$0xff]
                %226 = vst [vmem:[%s196 + $0x70] sm:$0xff] %v225
                %v227 = vld [vmem:[%s195 + $0xf0] sm:$0xff]
                %228 = vst [vmem:[%s196 + $0x78] sm:$0xff] %v227
                %v229 = vld [vmem:[%s195 + $0x100] sm:$0xff]
                %230 = vst [vmem:[%s196 + $0x80] sm:$0xff] %v229
                %v231 = vld [vmem:[%s195 + $0x110] sm:$0xff]
                %232 = vst [vmem:[%s196 + $0x88] sm:$0xff] %v231
                %v233 = vld [vmem:[%s195 + $0x120] sm:$0xff]
                %234 = vst [vmem:[%s196 + $0x90] sm:$0xff] %v233
                %v235 = vld [vmem:[%s195 + $0x130] sm:$0xff]
                %236 = vst [vmem:[%s196 + $0x98] sm:$0xff] %v235
                %v237 = vld [vmem:[%s195 + $0x140] sm:$0xff]
                %238 = vst [vmem:[%s196 + $0xa0] sm:$0xff] %v237
                %v239 = vld [vmem:[%s195 + $0x150] sm:$0xff]
                %240 = vst [vmem:[%s196 + $0xa8] sm:$0xff] %v239
                %v241 = vld [vmem:[%s195 + $0x160] sm:$0xff]
                %242 = vst [vmem:[%s196 + $0xb0] sm:$0xff] %v241
                %v243 = vld [vmem:[%s195 + $0x170] sm:$0xff]
                %244 = vst [vmem:[%s196 + $0xb8] sm:$0xff] %v243
                %v245 = vld [vmem:[%s195 + $0x180] sm:$0xff]
                %246 = vst [vmem:[%s196 + $0xc0] sm:$0xff] %v245
                %v247 = vld [vmem:[%s195 + $0x190] sm:$0xff]
                %248 = vst [vmem:[%s196 + $0xc8] sm:$0xff] %v247
                %v249 = vld [vmem:[%s195 + $0x1a0] sm:$0xff]
                %250 = vst [vmem:[%s196 + $0xd0] sm:$0xff] %v249
                %v251 = vld [vmem:[%s195 + $0x1b0] sm:$0xff]
                %252 = vst [vmem:[%s196 + $0xd8] sm:$0xff] %v251
                %v253 = vld [vmem:[%s195 + $0x1c0] sm:$0xff]
                %254 = vst [vmem:[%s196 + $0xe0] sm:$0xff] %v253
                %v255 = vld [vmem:[%s195 + $0x1d0] sm:$0xff]
                %256 = vst [vmem:[%s196 + $0xe8] sm:$0xff] %v255
                %v257 = vld [vmem:[%s195 + $0x1e0] sm:$0xff]
                %258 = vst [vmem:[%s196 + $0xf0] sm:$0xff] %v257
                %v259 = vld [vmem:[%s195 + $0x1f0] sm:$0xff]
                %260 = vst [vmem:[%s196 + $0xf8] sm:$0xff] %v259
                %v261 = vld [vmem:[%s195 + $0x200] sm:$0xff]
                %262 = vst [vmem:[%s196 + $0x100] sm:$0xff] %v261
                %v263 = vld [vmem:[%s195 + $0x210] sm:$0xff]
                %264 = vst [vmem:[%s196 + $0x108] sm:$0xff] %v263
                %v265 = vld [vmem:[%s195 + $0x220] sm:$0xff]
                %266 = vst [vmem:[%s196 + $0x110] sm:$0xff] %v265
                %v267 = vld [vmem:[%s195 + $0x230] sm:$0xff]
                %268 = vst [vmem:[%s196 + $0x118] sm:$0xff] %v267
                %v269 = vld [vmem:[%s195 + $0x240] sm:$0xff]
                %270 = vst [vmem:[%s196 + $0x120] sm:$0xff] %v269
                %v271 = vld [vmem:[%s195 + $0x250] sm:$0xff]
                %272 = vst [vmem:[%s196 + $0x128] sm:$0xff] %v271
                %v273 = vld [vmem:[%s195 + $0x260] sm:$0xff]
                %274 = vst [vmem:[%s196 + $0x130] sm:$0xff] %v273
                %v275 = vld [vmem:[%s195 + $0x270] sm:$0xff]
                %276 = vst [vmem:[%s196 + $0x138] sm:$0xff] %v275
                %v277 = vld [vmem:[%s195 + $0x280] sm:$0xff]
                %278 = vst [vmem:[%s196 + $0x140] sm:$0xff] %v277
                %v279 = vld [vmem:[%s195 + $0x290] sm:$0xff]
                %280 = vst [vmem:[%s196 + $0x148] sm:$0xff] %v279
                %v281 = vld [vmem:[%s195 + $0x2a0] sm:$0xff]
                %282 = vst [vmem:[%s196 + $0x150] sm:$0xff] %v281
                %v283 = vld [vmem:[%s195 + $0x2b0] sm:$0xff]
                %284 = vst [vmem:[%s196 + $0x158] sm:$0xff] %v283
                %v285 = vld [vmem:[%s195 + $0x2c0] sm:$0xff]
                %286 = vst [vmem:[%s196 + $0x160] sm:$0xff] %v285
                %v287 = vld [vmem:[%s195 + $0x2d0] sm:$0xff]
                %288 = vst [vmem:[%s196 + $0x168] sm:$0xff] %v287
                %v289 = vld [vmem:[%s195 + $0x2e0] sm:$0xff]
                %290 = vst [vmem:[%s196 + $0x170] sm:$0xff] %v289
                %v291 = vld [vmem:[%s195 + $0x2f0] sm:$0xff]
                %292 = vst [vmem:[%s196 + $0x178] sm:$0xff] %v291
                %v293 = vld [vmem:[%s195 + $0x300] sm:$0xff]
                %294 = vst [vmem:[%s196 + $0x180] sm:$0xff] %v293
                %v295 = vld [vmem:[%s195 + $0x310] sm:$0xff]
                %296 = vst [vmem:[%s196 + $0x188] sm:$0xff] %v295
                %v297 = vld [vmem:[%s195 + $0x320] sm:$0xff]
                %298 = vst [vmem:[%s196 + $0x190] sm:$0xff] %v297
                %v299 = vld [vmem:[%s195 + $0x330] sm:$0xff]
                %300 = vst [vmem:[%s196 + $0x198] sm:$0xff] %v299
                %v301 = vld [vmem:[%s195 + $0x340] sm:$0xff]
                %302 = vst [vmem:[%s196 + $0x1a0] sm:$0xff] %v301
                %v303 = vld [vmem:[%s195 + $0x350] sm:$0xff]
                %304 = vst [vmem:[%s196 + $0x1a8] sm:$0xff] %v303
                %v305 = vld [vmem:[%s195 + $0x360] sm:$0xff]
                %306 = vst [vmem:[%s196 + $0x1b0] sm:$0xff] %v305
                %v307 = vld [vmem:[%s195 + $0x370] sm:$0xff]
                %308 = vst [vmem:[%s196 + $0x1b8] sm:$0xff] %v307
                %v309 = vld [vmem:[%s195 + $0x380] sm:$0xff]
                %310 = vst [vmem:[%s196 + $0x1c0] sm:$0xff] %v309
                %v311 = vld [vmem:[%s195 + $0x390] sm:$0xff]
                %312 = vst [vmem:[%s196 + $0x1c8] sm:$0xff] %v311
                %v313 = vld [vmem:[%s195 + $0x3a0] sm:$0xff]
                %314 = vst [vmem:[%s196 + $0x1d0] sm:$0xff] %v313
                %v315 = vld [vmem:[%s195 + $0x3b0] sm:$0xff]
                %316 = vst [vmem:[%s196 + $0x1d8] sm:$0xff] %v315
                %v317 = vld [vmem:[%s195 + $0x3c0] sm:$0xff]
                %318 = vst [vmem:[%s196 + $0x1e0] sm:$0xff] %v317
                %v319 = vld [vmem:[%s195 + $0x3d0] sm:$0xff]
                %320 = vst [vmem:[%s196 + $0x1e8] sm:$0xff] %v319
                %v321 = vld [vmem:[%s195 + $0x3e0] sm:$0xff]
                %322 = vst [vmem:[%s196 + $0x1f0] sm:$0xff] %v321
                %v323 = vld [vmem:[%s195 + $0x3f0] sm:$0xff]
                %324 = vst [vmem:[%s196 + $0x1f8] sm:$0xff] %v323
                %v325 = vld [vmem:[%s195 + $0x400] sm:$0xff]
                %326 = vst [vmem:[%s196 + $0x200] sm:$0xff] %v325
                %v327 = vld [vmem:[%s195 + $0x410] sm:$0xff]
                %328 = vst [vmem:[%s196 + $0x208] sm:$0xff] %v327
                %v329 = vld [vmem:[%s195 + $0x420] sm:$0xff]
                %330 = vst [vmem:[%s196 + $0x210] sm:$0xff] %v329
                %v331 = vld [vmem:[%s195 + $0x430] sm:$0xff]
                %332 = vst [vmem:[%s196 + $0x218] sm:$0xff] %v331
                %v333 = vld [vmem:[%s195 + $0x440] sm:$0xff]
                %334 = vst [vmem:[%s196 + $0x220] sm:$0xff] %v333
                %v335 = vld [vmem:[%s195 + $0x450] sm:$0xff]
                %336 = vst [vmem:[%s196 + $0x228] sm:$0xff] %v335
                %v337 = vld [vmem:[%s195 + $0x460] sm:$0xff]
                %338 = vst [vmem:[%s196 + $0x230] sm:$0xff] %v337
                %v339 = vld [vmem:[%s195 + $0x470] sm:$0xff]
                %340 = vst [vmem:[%s196 + $0x238] sm:$0xff] %v339
                %v341 = vld [vmem:[%s195 + $0x480] sm:$0xff]
                %342 = vst [vmem:[%s196 + $0x240] sm:$0xff] %v341
                %v343 = vld [vmem:[%s195 + $0x490] sm:$0xff]
                %344 = vst [vmem:[%s196 + $0x248] sm:$0xff] %v343
                %v345 = vld [vmem:[%s195 + $0x4a0] sm:$0xff]
                %346 = vst [vmem:[%s196 + $0x250] sm:$0xff] %v345
                %v347 = vld [vmem:[%s195 + $0x4b0] sm:$0xff]
                %348 = vst [vmem:[%s196 + $0x258] sm:$0xff] %v347
                %v349 = vld [vmem:[%s195 + $0x4c0] sm:$0xff]
                %350 = vst [vmem:[%s196 + $0x260] sm:$0xff] %v349
                %v351 = vld [vmem:[%s195 + $0x4d0] sm:$0xff]
                %352 = vst [vmem:[%s196 + $0x268] sm:$0xff] %v351
                %v353 = vld [vmem:[%s195 + $0x4e0] sm:$0xff]
                %354 = vst [vmem:[%s196 + $0x270] sm:$0xff] %v353
                %v355 = vld [vmem:[%s195 + $0x4f0] sm:$0xff]
                %356 = vst [vmem:[%s196 + $0x278] sm:$0xff] %v355
                %v357 = vld [vmem:[%s195 + $0x500] sm:$0xff]
                %358 = vst [vmem:[%s196 + $0x280] sm:$0xff] %v357
                %v359 = vld [vmem:[%s195 + $0x510] sm:$0xff]
                %360 = vst [vmem:[%s196 + $0x288] sm:$0xff] %v359
                %v361 = vld [vmem:[%s195 + $0x520] sm:$0xff]
                %362 = vst [vmem:[%s196 + $0x290] sm:$0xff] %v361
                %v363 = vld [vmem:[%s195 + $0x530] sm:$0xff]
                %364 = vst [vmem:[%s196 + $0x298] sm:$0xff] %v363
                %v365 = vld [vmem:[%s195 + $0x540] sm:$0xff]
                %366 = vst [vmem:[%s196 + $0x2a0] sm:$0xff] %v365
                %v367 = vld [vmem:[%s195 + $0x550] sm:$0xff]
                %368 = vst [vmem:[%s196 + $0x2a8] sm:$0xff] %v367
                %v369 = vld [vmem:[%s195 + $0x560] sm:$0xff]
                %370 = vst [vmem:[%s196 + $0x2b0] sm:$0xff] %v369
                %v371 = vld [vmem:[%s195 + $0x570] sm:$0xff]
                %372 = vst [vmem:[%s196 + $0x2b8] sm:$0xff] %v371
                %v373 = vld [vmem:[%s195 + $0x580] sm:$0xff]
                %374 = vst [vmem:[%s196 + $0x2c0] sm:$0xff] %v373
                %v375 = vld [vmem:[%s195 + $0x590] sm:$0xff]
                %376 = vst [vmem:[%s196 + $0x2c8] sm:$0xff] %v375
                %v377 = vld [vmem:[%s195 + $0x5a0] sm:$0xff]
                %378 = vst [vmem:[%s196 + $0x2d0] sm:$0xff] %v377
                %v379 = vld [vmem:[%s195 + $0x5b0] sm:$0xff]
                %380 = vst [vmem:[%s196 + $0x2d8] sm:$0xff] %v379
                %v381 = vld [vmem:[%s195 + $0x5c0] sm:$0xff]
                %382 = vst [vmem:[%s196 + $0x2e0] sm:$0xff] %v381
                %v383 = vld [vmem:[%s195 + $0x5d0] sm:$0xff]
                %384 = vst [vmem:[%s196 + $0x2e8] sm:$0xff] %v383
                %v385 = vld [vmem:[%s195 + $0x5e0] sm:$0xff]
                %386 = vst [vmem:[%s196 + $0x2f0] sm:$0xff] %v385
                %v387 = vld [vmem:[%s195 + $0x5f0] sm:$0xff]
                %388 = vst [vmem:[%s196 + $0x2f8] sm:$0xff] %v387
                %v389 = vld [vmem:[%s195 + $0x600] sm:$0xff]
                %390 = vst [vmem:[%s196 + $0x300] sm:$0xff] %v389
                %v391 = vld [vmem:[%s195 + $0x610] sm:$0xff]
                %392 = vst [vmem:[%s196 + $0x308] sm:$0xff] %v391
                %v393 = vld [vmem:[%s195 + $0x620] sm:$0xff]
                %394 = vst [vmem:[%s196 + $0x310] sm:$0xff] %v393
                %v395 = vld [vmem:[%s195 + $0x630] sm:$0xff]
                %396 = vst [vmem:[%s196 + $0x318] sm:$0xff] %v395
                %v397 = vld [vmem:[%s195 + $0x640] sm:$0xff]
                %398 = vst [vmem:[%s196 + $0x320] sm:$0xff] %v397
                %v399 = vld [vmem:[%s195 + $0x650] sm:$0xff]
                %400 = vst [vmem:[%s196 + $0x328] sm:$0xff] %v399
                %v401 = vld [vmem:[%s195 + $0x660] sm:$0xff]
                %402 = vst [vmem:[%s196 + $0x330] sm:$0xff] %v401
                %v403 = vld [vmem:[%s195 + $0x670] sm:$0xff]
                %404 = vst [vmem:[%s196 + $0x338] sm:$0xff] %v403
                %v405 = vld [vmem:[%s195 + $0x680] sm:$0xff]
                %406 = vst [vmem:[%s196 + $0x340] sm:$0xff] %v405
                %v407 = vld [vmem:[%s195 + $0x690] sm:$0xff]
                %408 = vst [vmem:[%s196 + $0x348] sm:$0xff] %v407
                %v409 = vld [vmem:[%s195 + $0x6a0] sm:$0xff]
                %410 = vst [vmem:[%s196 + $0x350] sm:$0xff] %v409
                %v411 = vld [vmem:[%s195 + $0x6b0] sm:$0xff]
                %412 = vst [vmem:[%s196 + $0x358] sm:$0xff] %v411
                %v413 = vld [vmem:[%s195 + $0x6c0] sm:$0xff]
                %414 = vst [vmem:[%s196 + $0x360] sm:$0xff] %v413
                %v415 = vld [vmem:[%s195 + $0x6d0] sm:$0xff]
                %416 = vst [vmem:[%s196 + $0x368] sm:$0xff] %v415
                %v417 = vld [vmem:[%s195 + $0x6e0] sm:$0xff]
                %418 = vst [vmem:[%s196 + $0x370] sm:$0xff] %v417
                %v419 = vld [vmem:[%s195 + $0x6f0] sm:$0xff]
                %420 = vst [vmem:[%s196 + $0x378] sm:$0xff] %v419
                %v421 = vld [vmem:[%s195 + $0x700] sm:$0xff]
                %422 = vst [vmem:[%s196 + $0x380] sm:$0xff] %v421
                %v423 = vld [vmem:[%s195 + $0x710] sm:$0xff]
                %424 = vst [vmem:[%s196 + $0x388] sm:$0xff] %v423
                %v425 = vld [vmem:[%s195 + $0x720] sm:$0xff]
                %426 = vst [vmem:[%s196 + $0x390] sm:$0xff] %v425
                %v427 = vld [vmem:[%s195 + $0x730] sm:$0xff]
                %428 = vst [vmem:[%s196 + $0x398] sm:$0xff] %v427
                %v429 = vld [vmem:[%s195 + $0x740] sm:$0xff]
                %430 = vst [vmem:[%s196 + $0x3a0] sm:$0xff] %v429
                %v431 = vld [vmem:[%s195 + $0x750] sm:$0xff]
                %432 = vst [vmem:[%s196 + $0x3a8] sm:$0xff] %v431
                %v433 = vld [vmem:[%s195 + $0x760] sm:$0xff]
                %434 = vst [vmem:[%s196 + $0x3b0] sm:$0xff] %v433
                %v435 = vld [vmem:[%s195 + $0x770] sm:$0xff]
                %436 = vst [vmem:[%s196 + $0x3b8] sm:$0xff] %v435
                %v437 = vld [vmem:[%s195 + $0x780] sm:$0xff]
                %438 = vst [vmem:[%s196 + $0x3c0] sm:$0xff] %v437
                %v439 = vld [vmem:[%s195 + $0x790] sm:$0xff]
                %440 = vst [vmem:[%s196 + $0x3c8] sm:$0xff] %v439
                %v441 = vld [vmem:[%s195 + $0x7a0] sm:$0xff]
                %442 = vst [vmem:[%s196 + $0x3d0] sm:$0xff] %v441
                %v443 = vld [vmem:[%s195 + $0x7b0] sm:$0xff]
                %444 = vst [vmem:[%s196 + $0x3d8] sm:$0xff] %v443
                %v445 = vld [vmem:[%s195 + $0x7c0] sm:$0xff]
                %446 = vst [vmem:[%s196 + $0x3e0] sm:$0xff] %v445
                %v447 = vld [vmem:[%s195 + $0x7d0] sm:$0xff]
                %448 = vst [vmem:[%s196 + $0x3e8] sm:$0xff] %v447
                %v449 = vld [vmem:[%s195 + $0x7e0] sm:$0xff]
                %450 = vst [vmem:[%s196 + $0x3f0] sm:$0xff] %v449
                %v451 = vld [vmem:[%s195 + $0x7f0] sm:$0xff]
                %452 = vst [vmem:[%s196 + $0x3f8] sm:$0xff] %v451
                %v453 = vld [vmem:[%s195 + $0x800] sm:$0xff]
                %454 = vst [vmem:[%s196 + $0x400] sm:$0xff] %v453
                %v455 = vld [vmem:[%s195 + $0x810] sm:$0xff]
                %456 = vst [vmem:[%s196 + $0x408] sm:$0xff] %v455
                %v457 = vld [vmem:[%s195 + $0x820] sm:$0xff]
                %458 = vst [vmem:[%s196 + $0x410] sm:$0xff] %v457
                %v459 = vld [vmem:[%s195 + $0x830] sm:$0xff]
                %460 = vst [vmem:[%s196 + $0x418] sm:$0xff] %v459
                %v461 = vld [vmem:[%s195 + $0x840] sm:$0xff]
                %462 = vst [vmem:[%s196 + $0x420] sm:$0xff] %v461
                %v463 = vld [vmem:[%s195 + $0x850] sm:$0xff]
                %464 = vst [vmem:[%s196 + $0x428] sm:$0xff] %v463
                %v465 = vld [vmem:[%s195 + $0x860] sm:$0xff]
                %466 = vst [vmem:[%s196 + $0x430] sm:$0xff] %v465
                %v467 = vld [vmem:[%s195 + $0x870] sm:$0xff]
                %468 = vst [vmem:[%s196 + $0x438] sm:$0xff] %v467
              $region41: #{forward.16} parent=35 // loop_footer
                %s194 = sadd.s32 1, %s190
              $region42: #{forward.16} parent=35 // loop_footer_branch
                %189 = sbr.rel target = $region38
              $region43: #{forward.16} parent=35 // loop_exit
                _
            $region36: #{forward.16} parent=27 // pred_fallthru
              _
          $region28: #{forward.16} parent=23 // pred_fallthru
            _
          %753 = vnop
        $region24: #{forward.16} parent=19 // pred_fallthru
          _
        // Predicated region
        $region59: #{forward.16} parent=19 // pred_check
          %p754 = pneg %p104
        $region60: #{forward.16} parent=19 // pred_check_branch
          %756 = sbr.rel (%p754) target = $region62
        $region61: #{forward.16} parent=19 // pred_region
          %s757 = smul.u32 2, %s17
          %p758 = scmp.lt.s32.totalorder %s757, 3
          %s759 = scalar_select %p758, %s757, 3
          %s760 = scalar_lea.vmem %s2, %s759
          %s761 = smul.u32 2, %s17
        $region62: #{forward.16} parent=19 // pred_fallthru
          _
      $region20: #{forward.16} parent=5 // pred_fallthru
        _
      %p762 = scmp.le.s32.totalorder 1, %s9
      %p763 = scmp.lt.s32.totalorder %s9, 3
      %p764 = pnand %p762, %p763
      %p765 = pneg %p764
      // Predicated region
      $region63: #{forward.16} parent=5 // pred_check
        _
      $region64: #{forward.16} parent=5 // pred_check_branch
        %767 = sbr.rel (%p764) target = $region66
      $region65: #{forward.16} parent=5 // pred_region
        %s768 = ssub.s32 %s9, 1
        %s769 = sand.u32 %s71, 1
        %s770 = sand.u32 %s71, 1
        %s771 = smul.addr %s770, 1088
        %s772 = scalar_lea.vmem [#allocation3], %s771
        // Predicated region
        $region67: #{forward.16} parent=65 // pred_check
          %p773 = pneg %p84
        $region68: #{forward.16} parent=65 // pred_check_branch
          %775 = sbr.rel (%p773) target = $region70
        $region69: #{forward.16} parent=65 // pred_region
          _
        $region70: #{forward.16} parent=65 // pred_fallthru
          _
        %s776 = smul.u32 9, %s21
        %p777 = scmp.lt.s32.totalorder %s19, 0
        %s778 = scalar_select %p777, %s19, 0
        %p779 = scmp.lt.s32.totalorder %s776, 8
        %s780 = scalar_select %p779, %s776, 8
        %s781 = smul.addr %s778, 9
        %s782 = sadd.s32 %s780, %s781
        %s783 = scalar_lea.vmem %s0, %s782
        %p784 = pneg %p56
        %p785 = pneg %p53
        %s786 = sand.u32 %s71, 1
        %s787 = sand.u32 %s71, 1
        %s788 = smul.addr %s787, 1088
        %s789 = scalar_lea.vmem [#allocation3], %s788
        %p790 = pneg %p84
        %p791 = pneg %p81
        %s792 = smul.u32 2, %s20
        %p793 = scmp.lt.s32.totalorder %s792, 3
        %s794 = scalar_select %p793, %s792, 3
        %s795 = scalar_lea.vmem %s2, %s794
        %p796 = pneg %p110
        %p797 = pneg %p107
        %p798 = pneg %p138
        %p799 = pneg %p135
        %s800 = smul.u32 2, %s20
        %p801 = scmp.lt.s32.totalorder %s19, 0
        %s802 = scalar_select %p801, %s19, 0
        %p803 = scmp.lt.s32.totalorder %s800, 3
        %s804 = scalar_select %p803, %s800, 3
        %s805 = smul.addr %s802, 4
        %s806 = sadd.s32 %s804, %s805
        %s807 = scalar_lea.vmem %s3, %s806
        %s808 = smul.u32 9, %s21
        %p809 = scmp.lt.s32.totalorder %s19, 0
        %s810 = scalar_select %p809, %s19, 0
        %p811 = scmp.lt.s32.totalorder %s808, 8
        %s812 = scalar_select %p811, %s808, 8
        %s813 = smul.addr %s810, 9
        %s814 = sadd.s32 %s812, %s813
        %s815 = scalar_lea.vmem %s0, %s814
        %s816 = smul.u32 9, %s21
        %s817 = smul.u32 136, %s21
        %s818 = smul.u32 2, %s20
        %s819 = smul.u32 2, %s20
        %p820 = scmp.lt.s32.totalorder %s819, 3
        %s821 = scalar_select %p820, %s819, 3
        %s822 = scalar_lea.vmem %s2, %s821
        %s823 = smul.u32 2, %s20
        %s824 = smul.u32 2, %s20
        %p825 = scmp.lt.s32.totalorder %s19, 0
        %s826 = scalar_select %p825, %s19, 0
        %p827 = scmp.lt.s32.totalorder %s824, 3
        %s828 = scalar_select %p827, %s824, 3
        %s829 = smul.addr %s826, 4
        %s830 = sadd.s32 %s828, %s829
        %s831 = scalar_lea.vmem %s3, %s830
        %s832 = smul.u32 2, %s20
        %p834 = scmp.eq.s32.totalorder %s21, 0
        // Predicated region
        $region71: #{forward.16} parent=65 // pred_check
          %p835 = pneg %p834
        $region72: #{forward.16} parent=65 // pred_check_branch
          %837 = sbr.rel (%p835) target = $region74
        $region73: #{forward.16} parent=65 // pred_region
          %838 = vst [vmem:[#allocation2] sm:$0xf] 0.0
        $region74: #{forward.16} parent=65 // pred_fallthru
          _
        %v839 = vld [vmem:[#allocation2] sm:$0xf]
        %v840 = vld [vmem:[%s815] sm:$0xff]
        %v841 = vld [vmem:[%s815 + $0x8] sm:$0x1]
        %v842 = vld [vmem:[%s772] sm:$0xff]
        %v843 = vld [vmem:[%s772 + $0x8] sm:$0xff]
        %v844 = vld [vmem:[%s772 + $0x10] sm:$0xff]
        %v845 = vld [vmem:[%s772 + $0x18] sm:$0xff]
        %v846 = vld [vmem:[%s772 + $0x20] sm:$0xff]
        %v847 = vld [vmem:[%s772 + $0x28] sm:$0xff]
        %v848 = vld [vmem:[%s772 + $0x30] sm:$0xff]
        %v849 = vld [vmem:[%s772 + $0x38] sm:$0xff]
        %v850 = vld [vmem:[%s772 + $0x40] sm:$0xff]
        %v851 = vld [vmem:[%s772 + $0x48] sm:$0xff]
        %v852 = vld [vmem:[%s772 + $0x50] sm:$0xff]
        %v853 = vld [vmem:[%s772 + $0x58] sm:$0xff]
        %v854 = vld [vmem:[%s772 + $0x60] sm:$0xff]
        %v855 = vld [vmem:[%s772 + $0x68] sm:$0xff]
        %v856 = vld [vmem:[%s772 + $0x70] sm:$0xff]
        %v857 = vld [vmem:[%s772 + $0x78] sm:$0xff]
        %v858 = vld [vmem:[%s772 + $0x80] sm:$0xff]
        %v859 = vld [vmem:[%s772 + $0x88] sm:$0xff]
        %v860 = vld [vmem:[%s772 + $0x90] sm:$0xff]
        %v861 = vld [vmem:[%s772 + $0x98] sm:$0xff]
        %v862 = vld [vmem:[%s772 + $0xa0] sm:$0xff]
        %v863 = vld [vmem:[%s772 + $0xa8] sm:$0xff]
        %v864 = vld [vmem:[%s772 + $0xb0] sm:$0xff]
        %v865 = vld [vmem:[%s772 + $0xb8] sm:$0xff]
        %v866 = vld [vmem:[%s772 + $0xc0] sm:$0xff]
        %v867 = vld [vmem:[%s772 + $0xc8] sm:$0xff]
        %v868 = vld [vmem:[%s772 + $0xd0] sm:$0xff]
        %v869 = vld [vmem:[%s772 + $0xd8] sm:$0xff]
        %v870 = vld [vmem:[%s772 + $0xe0] sm:$0xff]
        %v871 = vld [vmem:[%s772 + $0xe8] sm:$0xff]
        %v872 = vld [vmem:[%s772 + $0xf0] sm:$0xff]
        %v873 = vld [vmem:[%s772 + $0xf8] sm:$0xff]
        %v874 = vld [vmem:[%s772 + $0x100] sm:$0xff]
        %v875 = vld [vmem:[%s772 + $0x108] sm:$0xff]
        %v876 = vld [vmem:[%s772 + $0x110] sm:$0xff]
        %v877 = vld [vmem:[%s772 + $0x118] sm:$0xff]
        %v878 = vld [vmem:[%s772 + $0x120] sm:$0xff]
        %v879 = vld [vmem:[%s772 + $0x128] sm:$0xff]
        %v880 = vld [vmem:[%s772 + $0x130] sm:$0xff]
        %v881 = vld [vmem:[%s772 + $0x138] sm:$0xff]
        %v882 = vld [vmem:[%s772 + $0x140] sm:$0xff]
        %v883 = vld [vmem:[%s772 + $0x148] sm:$0xff]
        %v884 = vld [vmem:[%s772 + $0x150] sm:$0xff]
        %v885 = vld [vmem:[%s772 + $0x158] sm:$0xff]
        %v886 = vld [vmem:[%s772 + $0x160] sm:$0xff]
        %v887 = vld [vmem:[%s772 + $0x168] sm:$0xff]
        %v888 = vld [vmem:[%s772 + $0x170] sm:$0xff]
        %v889 = vld [vmem:[%s772 + $0x178] sm:$0xff]
        %v890 = vld [vmem:[%s772 + $0x180] sm:$0xff]
        %v891 = vld [vmem:[%s772 + $0x188] sm:$0xff]
        %v892 = vld [vmem:[%s772 + $0x190] sm:$0xff]
        %v893 = vld [vmem:[%s772 + $0x198] sm:$0xff]
        %v894 = vld [vmem:[%s772 + $0x1a0] sm:$0xff]
        %v895 = vld [vmem:[%s772 + $0x1a8] sm:$0xff]
        %v896 = vld [vmem:[%s772 + $0x1b0] sm:$0xff]
        %v897 = vld [vmem:[%s772 + $0x1b8] sm:$0xff]
        %v898 = vld [vmem:[%s772 + $0x1c0] sm:$0xff]
        %v899 = vld [vmem:[%s772 + $0x1c8] sm:$0xff]
        %v900 = vld [vmem:[%s772 + $0x1d0] sm:$0xff]
        %v901 = vld [vmem:[%s772 + $0x1d8] sm:$0xff]
        %v902 = vld [vmem:[%s772 + $0x1e0] sm:$0xff]
        %v903 = vld [vmem:[%s772 + $0x1e8] sm:$0xff]
        %v904 = vld [vmem:[%s772 + $0x1f0] sm:$0xff]
        %v905 = vld [vmem:[%s772 + $0x1f8] sm:$0xff]
        %v906 = vld [vmem:[%s772 + $0x200] sm:$0xff]
        %v907 = vld [vmem:[%s772 + $0x208] sm:$0xff]
        %v908 = vld [vmem:[%s772 + $0x210] sm:$0xff]
        %v909 = vld [vmem:[%s772 + $0x218] sm:$0xff]
        %v910 = vld [vmem:[%s772 + $0x220] sm:$0xff]
        %v911 = vld [vmem:[%s772 + $0x228] sm:$0xff]
        %v912 = vld [vmem:[%s772 + $0x230] sm:$0xff]
        %v913 = vld [vmem:[%s772 + $0x238] sm:$0xff]
        %v914 = vld [vmem:[%s772 + $0x240] sm:$0xff]
        %v915 = vld [vmem:[%s772 + $0x248] sm:$0xff]
        %v916 = vld [vmem:[%s772 + $0x250] sm:$0xff]
        %v917 = vld [vmem:[%s772 + $0x258] sm:$0xff]
        %v918 = vld [vmem:[%s772 + $0x260] sm:$0xff]
        %v919 = vld [vmem:[%s772 + $0x268] sm:$0xff]
        %v920 = vld [vmem:[%s772 + $0x270] sm:$0xff]
        %v921 = vld [vmem:[%s772 + $0x278] sm:$0xff]
        %v922 = vld [vmem:[%s772 + $0x280] sm:$0xff]
        %v923 = vld [vmem:[%s772 + $0x288] sm:$0xff]
        %v924 = vld [vmem:[%s772 + $0x290] sm:$0xff]
        %v925 = vld [vmem:[%s772 + $0x298] sm:$0xff]
        %v926 = vld [vmem:[%s772 + $0x2a0] sm:$0xff]
        %v927 = vld [vmem:[%s772 + $0x2a8] sm:$0xff]
        %v928 = vld [vmem:[%s772 + $0x2b0] sm:$0xff]
        %v929 = vld [vmem:[%s772 + $0x2b8] sm:$0xff]
        %v930 = vld [vmem:[%s772 + $0x2c0] sm:$0xff]
        %v931 = vld [vmem:[%s772 + $0x2c8] sm:$0xff]
        %v932 = vld [vmem:[%s772 + $0x2d0] sm:$0xff]
        %v933 = vld [vmem:[%s772 + $0x2d8] sm:$0xff]
        %v934 = vld [vmem:[%s772 + $0x2e0] sm:$0xff]
        %v935 = vld [vmem:[%s772 + $0x2e8] sm:$0xff]
        %v936 = vld [vmem:[%s772 + $0x2f0] sm:$0xff]
        %v937 = vld [vmem:[%s772 + $0x2f8] sm:$0xff]
        %v938 = vld [vmem:[%s772 + $0x300] sm:$0xff]
        %v939 = vld [vmem:[%s772 + $0x308] sm:$0xff]
        %v940 = vld [vmem:[%s772 + $0x310] sm:$0xff]
        %v941 = vld [vmem:[%s772 + $0x318] sm:$0xff]
        %v942 = vld [vmem:[%s772 + $0x320] sm:$0xff]
        %v943 = vld [vmem:[%s772 + $0x328] sm:$0xff]
        %v944 = vld [vmem:[%s772 + $0x330] sm:$0xff]
        %v945 = vld [vmem:[%s772 + $0x338] sm:$0xff]
        %v946 = vld [vmem:[%s772 + $0x340] sm:$0xff]
        %v947 = vld [vmem:[%s772 + $0x348] sm:$0xff]
        %v948 = vld [vmem:[%s772 + $0x350] sm:$0xff]
        %v949 = vld [vmem:[%s772 + $0x358] sm:$0xff]
        %v950 = vld [vmem:[%s772 + $0x360] sm:$0xff]
        %v951 = vld [vmem:[%s772 + $0x368] sm:$0xff]
        %v952 = vld [vmem:[%s772 + $0x370] sm:$0xff]
        %v953 = vld [vmem:[%s772 + $0x378] sm:$0xff]
        %v954 = vld [vmem:[%s772 + $0x380] sm:$0xff]
        %v955 = vld [vmem:[%s772 + $0x388] sm:$0xff]
        %v956 = vld [vmem:[%s772 + $0x390] sm:$0xff]
        %v957 = vld [vmem:[%s772 + $0x398] sm:$0xff]
        %v958 = vld [vmem:[%s772 + $0x3a0] sm:$0xff]
        %v959 = vld [vmem:[%s772 + $0x3a8] sm:$0xff]
        %v960 = vld [vmem:[%s772 + $0x3b0] sm:$0xff]
        %v961 = vld [vmem:[%s772 + $0x3b8] sm:$0xff]
        %v962 = vld [vmem:[%s772 + $0x3c0] sm:$0xff]
        %v963 = vld [vmem:[%s772 + $0x3c8] sm:$0xff]
        %v964 = vld [vmem:[%s772 + $0x3d0] sm:$0xff]
        %v965 = vld [vmem:[%s772 + $0x3d8] sm:$0xff]
        %v966 = vld [vmem:[%s772 + $0x3e0] sm:$0xff]
        %v967 = vld [vmem:[%s772 + $0x3e8] sm:$0xff]
        %v968 = vld [vmem:[%s772 + $0x3f0] sm:$0xff]
        %v969 = vld [vmem:[%s772 + $0x3f8] sm:$0xff]
        %v970 = vld [vmem:[%s772 + $0x400] sm:$0xff]
        %v971 = vld [vmem:[%s772 + $0x408] sm:$0xff]
        %v972 = vld [vmem:[%s772 + $0x410] sm:$0xff]
        %v973 = vld [vmem:[%s772 + $0x418] sm:$0xff]
        %v974 = vld [vmem:[%s772 + $0x420] sm:$0xff]
        %v975 = vld [vmem:[%s772 + $0x428] sm:$0xff]
        %v976 = vld [vmem:[%s772 + $0x430] sm:$0xff]
        %v977 = vld [vmem:[%s772 + $0x438] sm:$0xff]
        %v980 = vcombine.high %v840, %v840
        %v982 = vunpack.c.l.s4 1966171168
        %v983 = vunpack.c.0.s8 %v982
        %v984 = vlaneseq
        %v985 = vshrl.u32 %v984, 7
        %v986 = vsub.s32 %v983, %v985
        %v987 = vrot.slane %v840, %v986
        %v989 = vunpack.c.l.s4 1966171168
        %v990 = vunpack.c.0.s8 %v989
        %v991 = vlaneseq
        %v992 = vshrl.u32 %v991, 7
        %v993 = vsub.s32 %v990, %v992
        %v994 = vrot.slane %v980, %v993
        %v995 = vcombine.high %v987, %v987
        %v996 = vcombine.high %v994, %v994
        %v998 = vunpack.c.l.s4 1966171168
        %v999 = vunpack.c.0.s8 %v998
        %v1000 = vlaneseq
        %v1001 = vshrl.u32 %v1000, 7
        %v1002 = vsub.s32 %v999, %v1001
        %v1003 = vrot.slane %v987, %v1002
        %v1005 = vunpack.c.l.s4 1966171168
        %v1006 = vunpack.c.0.s8 %v1005
        %v1007 = vlaneseq
        %v1008 = vshrl.u32 %v1007, 7
        %v1009 = vsub.s32 %v1006, %v1008
        %v1010 = vrot.slane %v994, %v1009
        %v1012 = vunpack.c.l.s4 1966171168
        %v1013 = vunpack.c.0.s8 %v1012
        %v1014 = vlaneseq
        %v1015 = vshrl.u32 %v1014, 7
        %v1016 = vsub.s32 %v1013, %v1015
        %v1017 = vrot.slane %v995, %v1016
        %v1019 = vunpack.c.l.s4 1966171168
        %v1020 = vunpack.c.0.s8 %v1019
        %v1021 = vlaneseq
        %v1022 = vshrl.u32 %v1021, 7
        %v1023 = vsub.s32 %v1020, %v1022
        %v1024 = vrot.slane %v996, %v1023
        %v1025 = vcombine.high %v1003, %v1003
        %v1026 = vcombine.high %v1010, %v1010
        %v1027 = vcombine.high %v1017, %v1017
        %v1028 = vcombine.high %v1024, %v1024
        %v1030 = vunpack.c.l.s4 1966171168
        %v1031 = vunpack.c.0.s8 %v1030
        %v1032 = vlaneseq
        %v1033 = vshrl.u32 %v1032, 7
        %v1034 = vsub.s32 %v1031, %v1033
        %v1035 = vrot.slane %v841, %v1034
        %v1037 = vunpack.c.l.s4 1966171168
        %v1038 = vunpack.c.0.s8 %v1037
        %v1039 = vlaneseq
        %v1040 = vshrl.u32 %v1039, 7
        %v1041 = vsub.s32 %v1038, %v1040
        %v1042 = vrot.slane %v1035, %v1041
        %v1187 = vunpack.c.l.b16 %v842
        %v1188 = vunpack.c.h.b16 %v842
        %v1189 = vunpack.c.l.b16 %v843
        %v1190 = vunpack.c.h.b16 %v843
        %v1191 = vunpack.c.l.b16 %v844
        %v1192 = vunpack.c.h.b16 %v844
        %v1193 = vunpack.c.l.b16 %v845
        %v1194 = vunpack.c.h.b16 %v845
        %v1195 = vunpack.c.l.b16 %v846
        %v1196 = vunpack.c.h.b16 %v846
        %v1197 = vunpack.c.l.b16 %v847
        %v1198 = vunpack.c.h.b16 %v847
        %v1199 = vunpack.c.l.b16 %v848
        %v1200 = vunpack.c.h.b16 %v848
        %v1201 = vunpack.c.l.b16 %v849
        %v1202 = vunpack.c.h.b16 %v849
        %v1203 = vunpack.c.l.b16 %v850
        %v1204 = vunpack.c.h.b16 %v850
        %v1205 = vunpack.c.l.b16 %v851
        %v1206 = vunpack.c.h.b16 %v851
        %v1207 = vunpack.c.l.b16 %v852
        %v1208 = vunpack.c.h.b16 %v852
        %v1209 = vunpack.c.l.b16 %v853
        %v1210 = vunpack.c.h.b16 %v853
        %v1211 = vunpack.c.l.b16 %v854
        %v1212 = vunpack.c.h.b16 %v854
        %v1213 = vunpack.c.l.b16 %v855
        %v1214 = vunpack.c.h.b16 %v855
        %v1215 = vunpack.c.l.b16 %v856
        %v1216 = vunpack.c.h.b16 %v856
        %v1217 = vunpack.c.l.b16 %v857
        %v1218 = vunpack.c.h.b16 %v857
        %v1219 = vunpack.c.l.b16 %v858
        %v1220 = vunpack.c.h.b16 %v858
        %v1221 = vunpack.c.l.b16 %v859
        %v1222 = vunpack.c.h.b16 %v859
        %v1223 = vunpack.c.l.b16 %v860
        %v1224 = vunpack.c.h.b16 %v860
        %v1225 = vunpack.c.l.b16 %v861
        %v1226 = vunpack.c.h.b16 %v861
        %v1227 = vunpack.c.l.b16 %v862
        %v1228 = vunpack.c.h.b16 %v862
        %v1229 = vunpack.c.l.b16 %v863
        %v1230 = vunpack.c.h.b16 %v863
        %v1231 = vunpack.c.l.b16 %v864
        %v1232 = vunpack.c.h.b16 %v864
        %v1233 = vunpack.c.l.b16 %v865
        %v1234 = vunpack.c.h.b16 %v865
        %v1235 = vunpack.c.l.b16 %v866
        %v1236 = vunpack.c.h.b16 %v866
        %v1237 = vunpack.c.l.b16 %v867
        %v1238 = vunpack.c.h.b16 %v867
        %v1239 = vunpack.c.l.b16 %v868
        %v1240 = vunpack.c.h.b16 %v868
        %v1241 = vunpack.c.l.b16 %v869
        %v1242 = vunpack.c.h.b16 %v869
        %v1243 = vunpack.c.l.b16 %v870
        %v1244 = vunpack.c.h.b16 %v870
        %v1245 = vunpack.c.l.b16 %v871
        %v1246 = vunpack.c.h.b16 %v871
        %v1247 = vunpack.c.l.b16 %v872
        %v1248 = vunpack.c.h.b16 %v872
        %v1249 = vunpack.c.l.b16 %v873
        %v1250 = vunpack.c.h.b16 %v873
        %v1251 = vunpack.c.l.b16 %v874
        %v1252 = vunpack.c.h.b16 %v874
        %v1253 = vunpack.c.l.b16 %v875
        %v1254 = vunpack.c.h.b16 %v875
        %v1255 = vunpack.c.l.b16 %v876
        %v1256 = vunpack.c.h.b16 %v876
        %v1257 = vunpack.c.l.b16 %v877
        %v1258 = vunpack.c.h.b16 %v877
        %v1259 = vunpack.c.l.b16 %v878
        %v1260 = vunpack.c.h.b16 %v878
        %v1261 = vunpack.c.l.b16 %v879
        %v1262 = vunpack.c.h.b16 %v879
        %v1263 = vunpack.c.l.b16 %v880
        %v1264 = vunpack.c.h.b16 %v880
        %v1265 = vunpack.c.l.b16 %v881
        %v1266 = vunpack.c.h.b16 %v881
        %v1267 = vunpack.c.l.b16 %v882
        %v1268 = vunpack.c.h.b16 %v882
        %v1269 = vunpack.c.l.b16 %v883
        %v1270 = vunpack.c.h.b16 %v883
        %v1271 = vunpack.c.l.b16 %v884
        %v1272 = vunpack.c.h.b16 %v884
        %v1273 = vunpack.c.l.b16 %v885
        %v1274 = vunpack.c.h.b16 %v885
        %v1275 = vunpack.c.l.b16 %v886
        %v1276 = vunpack.c.h.b16 %v886
        %v1277 = vunpack.c.l.b16 %v887
        %v1278 = vunpack.c.h.b16 %v887
        %v1279 = vunpack.c.l.b16 %v888
        %v1280 = vunpack.c.h.b16 %v888
        %v1281 = vunpack.c.l.b16 %v889
        %v1282 = vunpack.c.h.b16 %v889
        %v1283 = vunpack.c.l.b16 %v890
        %v1284 = vunpack.c.h.b16 %v890
        %v1285 = vunpack.c.l.b16 %v891
        %v1286 = vunpack.c.h.b16 %v891
        %v1287 = vunpack.c.l.b16 %v892
        %v1288 = vunpack.c.h.b16 %v892
        %v1289 = vunpack.c.l.b16 %v893
        %v1290 = vunpack.c.h.b16 %v893
        %v1291 = vunpack.c.l.b16 %v894
        %v1292 = vunpack.c.h.b16 %v894
        %v1293 = vunpack.c.l.b16 %v895
        %v1294 = vunpack.c.h.b16 %v895
        %v1295 = vunpack.c.l.b16 %v896
        %v1296 = vunpack.c.h.b16 %v896
        %v1297 = vunpack.c.l.b16 %v897
        %v1298 = vunpack.c.h.b16 %v897
        %v1299 = vunpack.c.l.b16 %v898
        %v1300 = vunpack.c.h.b16 %v898
        %v1301 = vunpack.c.l.b16 %v899
        %v1302 = vunpack.c.h.b16 %v899
        %v1303 = vunpack.c.l.b16 %v900
        %v1304 = vunpack.c.h.b16 %v900
        %v1305 = vunpack.c.l.b16 %v901
        %v1306 = vunpack.c.h.b16 %v901
        %v1307 = vunpack.c.l.b16 %v902
        %v1308 = vunpack.c.h.b16 %v902
        %v1309 = vunpack.c.l.b16 %v903
        %v1310 = vunpack.c.h.b16 %v903
        %v1311 = vunpack.c.l.b16 %v904
        %v1312 = vunpack.c.h.b16 %v904
        %v1313 = vunpack.c.l.b16 %v905
        %v1314 = vunpack.c.h.b16 %v905
        %v1315 = vunpack.c.l.b16 %v906
        %v1316 = vunpack.c.h.b16 %v906
        %v1317 = vunpack.c.l.b16 %v907
        %v1318 = vunpack.c.h.b16 %v907
        %v1319 = vunpack.c.l.b16 %v908
        %v1320 = vunpack.c.h.b16 %v908
        %v1321 = vunpack.c.l.b16 %v909
        %v1322 = vunpack.c.h.b16 %v909
        %v1323 = vunpack.c.l.b16 %v910
        %v1324 = vunpack.c.h.b16 %v910
        %v1325 = vunpack.c.l.b16 %v911
        %v1326 = vunpack.c.h.b16 %v911
        %v1327 = vunpack.c.l.b16 %v912
        %v1328 = vunpack.c.h.b16 %v912
        %v1329 = vunpack.c.l.b16 %v913
        %v1330 = vunpack.c.h.b16 %v913
        %v1331 = vunpack.c.l.b16 %v914
        %v1332 = vunpack.c.h.b16 %v914
        %v1333 = vunpack.c.l.b16 %v915
        %v1334 = vunpack.c.h.b16 %v915
        %v1335 = vunpack.c.l.b16 %v916
        %v1336 = vunpack.c.h.b16 %v916
        %v1337 = vunpack.c.l.b16 %v917
        %v1338 = vunpack.c.h.b16 %v917
        %v1339 = vunpack.c.l.b16 %v918
        %v1340 = vunpack.c.h.b16 %v918
        %v1341 = vunpack.c.l.b16 %v919
        %v1342 = vunpack.c.h.b16 %v919
        %v1343 = vunpack.c.l.b16 %v920
        %v1344 = vunpack.c.h.b16 %v920
        %v1345 = vunpack.c.l.b16 %v921
        %v1346 = vunpack.c.h.b16 %v921
        %v1347 = vunpack.c.l.b16 %v922
        %v1348 = vunpack.c.h.b16 %v922
        %v1349 = vunpack.c.l.b16 %v923
        %v1350 = vunpack.c.h.b16 %v923
        %v1351 = vunpack.c.l.b16 %v924
        %v1352 = vunpack.c.h.b16 %v924
        %v1353 = vunpack.c.l.b16 %v925
        %v1354 = vunpack.c.h.b16 %v925
        %v1355 = vunpack.c.l.b16 %v926
        %v1356 = vunpack.c.h.b16 %v926
        %v1357 = vunpack.c.l.b16 %v927
        %v1358 = vunpack.c.h.b16 %v927
        %v1359 = vunpack.c.l.b16 %v928
        %v1360 = vunpack.c.h.b16 %v928
        %v1361 = vunpack.c.l.b16 %v929
        %v1362 = vunpack.c.h.b16 %v929
        %v1363 = vunpack.c.l.b16 %v930
        %v1364 = vunpack.c.h.b16 %v930
        %v1365 = vunpack.c.l.b16 %v931
        %v1366 = vunpack.c.h.b16 %v931
        %v1367 = vunpack.c.l.b16 %v932
        %v1368 = vunpack.c.h.b16 %v932
        %v1369 = vunpack.c.l.b16 %v933
        %v1370 = vunpack.c.h.b16 %v933
        %v1371 = vunpack.c.l.b16 %v934
        %v1372 = vunpack.c.h.b16 %v934
        %v1373 = vunpack.c.l.b16 %v935
        %v1374 = vunpack.c.h.b16 %v935
        %v1375 = vunpack.c.l.b16 %v936
        %v1376 = vunpack.c.h.b16 %v936
        %v1377 = vunpack.c.l.b16 %v937
        %v1378 = vunpack.c.h.b16 %v937
        %v1379 = vunpack.c.l.b16 %v938
        %v1380 = vunpack.c.h.b16 %v938
        %v1381 = vunpack.c.l.b16 %v939
        %v1382 = vunpack.c.h.b16 %v939
        %v1383 = vunpack.c.l.b16 %v940
        %v1384 = vunpack.c.h.b16 %v940
        %v1385 = vunpack.c.l.b16 %v941
        %v1386 = vunpack.c.h.b16 %v941
        %v1387 = vunpack.c.l.b16 %v942
        %v1388 = vunpack.c.h.b16 %v942
        %v1389 = vunpack.c.l.b16 %v943
        %v1390 = vunpack.c.h.b16 %v943
        %v1391 = vunpack.c.l.b16 %v944
        %v1392 = vunpack.c.h.b16 %v944
        %v1393 = vunpack.c.l.b16 %v945
        %v1394 = vunpack.c.h.b16 %v945
        %v1395 = vunpack.c.l.b16 %v946
        %v1396 = vunpack.c.h.b16 %v946
        %v1397 = vunpack.c.l.b16 %v947
        %v1398 = vunpack.c.h.b16 %v947
        %v1399 = vunpack.c.l.b16 %v948
        %v1400 = vunpack.c.h.b16 %v948
        %v1401 = vunpack.c.l.b16 %v949
        %v1402 = vunpack.c.h.b16 %v949
        %v1403 = vunpack.c.l.b16 %v950
        %v1404 = vunpack.c.h.b16 %v950
        %v1405 = vunpack.c.l.b16 %v951
        %v1406 = vunpack.c.h.b16 %v951
        %v1407 = vunpack.c.l.b16 %v952
        %v1408 = vunpack.c.h.b16 %v952
        %v1409 = vunpack.c.l.b16 %v953
        %v1410 = vunpack.c.h.b16 %v953
        %v1411 = vunpack.c.l.b16 %v954
        %v1412 = vunpack.c.h.b16 %v954
        %v1413 = vunpack.c.l.b16 %v955
        %v1414 = vunpack.c.h.b16 %v955
        %v1415 = vunpack.c.l.b16 %v956
        %v1416 = vunpack.c.h.b16 %v956
        %v1417 = vunpack.c.l.b16 %v957
        %v1418 = vunpack.c.h.b16 %v957
        %v1419 = vunpack.c.l.b16 %v958
        %v1420 = vunpack.c.h.b16 %v958
        %v1421 = vunpack.c.l.b16 %v959
        %v1422 = vunpack.c.h.b16 %v959
        %v1423 = vunpack.c.l.b16 %v960
        %v1424 = vunpack.c.h.b16 %v960
        %v1425 = vunpack.c.l.b16 %v961
        %v1426 = vunpack.c.h.b16 %v961
        %v1427 = vunpack.c.l.b16 %v962
        %v1428 = vunpack.c.h.b16 %v962
        %v1429 = vunpack.c.l.b16 %v963
        %v1430 = vunpack.c.h.b16 %v963
        %v1431 = vunpack.c.l.b16 %v964
        %v1432 = vunpack.c.h.b16 %v964
        %v1433 = vunpack.c.l.b16 %v965
        %v1434 = vunpack.c.h.b16 %v965
        %v1435 = vunpack.c.l.b16 %v966
        %v1436 = vunpack.c.h.b16 %v966
        %v1437 = vunpack.c.l.b16 %v967
        %v1438 = vunpack.c.h.b16 %v967
        %v1439 = vunpack.c.l.b16 %v968
        %v1440 = vunpack.c.h.b16 %v968
        %v1441 = vunpack.c.l.b16 %v969
        %v1442 = vunpack.c.h.b16 %v969
        %v1443 = vunpack.c.l.b16 %v970
        %v1444 = vunpack.c.h.b16 %v970
        %v1445 = vunpack.c.l.b16 %v971
        %v1446 = vunpack.c.h.b16 %v971
        %v1447 = vunpack.c.l.b16 %v972
        %v1448 = vunpack.c.h.b16 %v972
        %v1449 = vunpack.c.l.b16 %v973
        %v1450 = vunpack.c.h.b16 %v973
        %v1451 = vunpack.c.l.b16 %v974
        %v1452 = vunpack.c.h.b16 %v974
        %v1453 = vunpack.c.l.b16 %v975
        %v1454 = vunpack.c.h.b16 %v975
        %v1455 = vunpack.c.l.b16 %v976
        %v1456 = vunpack.c.h.b16 %v976
        %v1457 = vunpack.c.l.b16 %v977
        %v1458 = vunpack.c.h.b16 %v977
        %v1459 = vpack.c.b16 %v1189, %v1187
        %v1460 = vpack.c.b16 %v1190, %v1188
        %v1461 = vpack.c.b16 %v1193, %v1191
        %v1462 = vpack.c.b16 %v1194, %v1192
        %v1463 = vpack.c.b16 %v1197, %v1195
        %v1464 = vpack.c.b16 %v1198, %v1196
        %v1465 = vpack.c.b16 %v1201, %v1199
        %v1466 = vpack.c.b16 %v1202, %v1200
        %v1467 = vpack.c.b16 %v1205, %v1203
        %v1468 = vpack.c.b16 %v1206, %v1204
        %v1469 = vpack.c.b16 %v1209, %v1207
        %v1470 = vpack.c.b16 %v1210, %v1208
        %v1471 = vpack.c.b16 %v1213, %v1211
        %v1472 = vpack.c.b16 %v1214, %v1212
        %v1473 = vpack.c.b16 %v1217, %v1215
        %v1474 = vpack.c.b16 %v1218, %v1216
        %v1475 = vpack.c.b16 %v1221, %v1219
        %v1476 = vpack.c.b16 %v1222, %v1220
        %v1477 = vpack.c.b16 %v1225, %v1223
        %v1478 = vpack.c.b16 %v1226, %v1224
        %v1479 = vpack.c.b16 %v1229, %v1227
        %v1480 = vpack.c.b16 %v1230, %v1228
        %v1481 = vpack.c.b16 %v1233, %v1231
        %v1482 = vpack.c.b16 %v1234, %v1232
        %v1483 = vpack.c.b16 %v1237, %v1235
        %v1484 = vpack.c.b16 %v1238, %v1236
        %v1485 = vpack.c.b16 %v1241, %v1239
        %v1486 = vpack.c.b16 %v1242, %v1240
        %v1487 = vpack.c.b16 %v1245, %v1243
        %v1488 = vpack.c.b16 %v1246, %v1244
        %v1489 = vpack.c.b16 %v1249, %v1247
        %v1490 = vpack.c.b16 %v1250, %v1248
        %v1491 = vpack.c.b16 %v1253, %v1251
        %v1492 = vpack.c.b16 %v1254, %v1252
        %v1493 = vpack.c.b16 %v1257, %v1255
        %v1494 = vpack.c.b16 %v1258, %v1256
        %v1495 = vpack.c.b16 %v1261, %v1259
        %v1496 = vpack.c.b16 %v1262, %v1260
        %v1497 = vpack.c.b16 %v1265, %v1263
        %v1498 = vpack.c.b16 %v1266, %v1264
        %v1499 = vpack.c.b16 %v1269, %v1267
        %v1500 = vpack.c.b16 %v1270, %v1268
        %v1501 = vpack.c.b16 %v1273, %v1271
        %v1502 = vpack.c.b16 %v1274, %v1272
        %v1503 = vpack.c.b16 %v1277, %v1275
        %v1504 = vpack.c.b16 %v1278, %v1276
        %v1505 = vpack.c.b16 %v1281, %v1279
        %v1506 = vpack.c.b16 %v1282, %v1280
        %v1507 = vpack.c.b16 %v1285, %v1283
        %v1508 = vpack.c.b16 %v1286, %v1284
        %v1509 = vpack.c.b16 %v1289, %v1287
        %v1510 = vpack.c.b16 %v1290, %v1288
        %v1511 = vpack.c.b16 %v1293, %v1291
        %v1512 = vpack.c.b16 %v1294, %v1292
        %v1513 = vpack.c.b16 %v1297, %v1295
        %v1514 = vpack.c.b16 %v1298, %v1296
        %v1515 = vpack.c.b16 %v1301, %v1299
        %v1516 = vpack.c.b16 %v1302, %v1300
        %v1517 = vpack.c.b16 %v1305, %v1303
        %v1518 = vpack.c.b16 %v1306, %v1304
        %v1519 = vpack.c.b16 %v1309, %v1307
        %v1520 = vpack.c.b16 %v1310, %v1308
        %v1521 = vpack.c.b16 %v1313, %v1311
        %v1522 = vpack.c.b16 %v1314, %v1312
        %v1523 = vpack.c.b16 %v1317, %v1315
        %v1524 = vpack.c.b16 %v1318, %v1316
        %v1525 = vpack.c.b16 %v1321, %v1319
        %v1526 = vpack.c.b16 %v1322, %v1320
        %v1527 = vpack.c.b16 %v1325, %v1323
        %v1528 = vpack.c.b16 %v1326, %v1324
        %v1529 = vpack.c.b16 %v1329, %v1327
        %v1530 = vpack.c.b16 %v1330, %v1328
        %v1531 = vpack.c.b16 %v1333, %v1331
        %v1532 = vpack.c.b16 %v1334, %v1332
        %v1533 = vpack.c.b16 %v1337, %v1335
        %v1534 = vpack.c.b16 %v1338, %v1336
        %v1535 = vpack.c.b16 %v1341, %v1339
        %v1536 = vpack.c.b16 %v1342, %v1340
        %v1537 = vpack.c.b16 %v1345, %v1343
        %v1538 = vpack.c.b16 %v1346, %v1344
        %v1539 = vpack.c.b16 %v1349, %v1347
        %v1540 = vpack.c.b16 %v1350, %v1348
        %v1541 = vpack.c.b16 %v1353, %v1351
        %v1542 = vpack.c.b16 %v1354, %v1352
        %v1543 = vpack.c.b16 %v1357, %v1355
        %v1544 = vpack.c.b16 %v1358, %v1356
        %v1545 = vpack.c.b16 %v1361, %v1359
        %v1546 = vpack.c.b16 %v1362, %v1360
        %v1547 = vpack.c.b16 %v1365, %v1363
        %v1548 = vpack.c.b16 %v1366, %v1364
        %v1549 = vpack.c.b16 %v1369, %v1367
        %v1550 = vpack.c.b16 %v1370, %v1368
        %v1551 = vpack.c.b16 %v1373, %v1371
        %v1552 = vpack.c.b16 %v1374, %v1372
        %v1553 = vpack.c.b16 %v1377, %v1375
        %v1554 = vpack.c.b16 %v1378, %v1376
        %v1555 = vpack.c.b16 %v1381, %v1379
        %v1556 = vpack.c.b16 %v1382, %v1380
        %v1557 = vpack.c.b16 %v1385, %v1383
        %v1558 = vpack.c.b16 %v1386, %v1384
        %v1559 = vpack.c.b16 %v1389, %v1387
        %v1560 = vpack.c.b16 %v1390, %v1388
        %v1561 = vpack.c.b16 %v1393, %v1391
        %v1562 = vpack.c.b16 %v1394, %v1392
        %v1563 = vpack.c.b16 %v1397, %v1395
        %v1564 = vpack.c.b16 %v1398, %v1396
        %v1565 = vpack.c.b16 %v1401, %v1399
        %v1566 = vpack.c.b16 %v1402, %v1400
        %v1567 = vpack.c.b16 %v1405, %v1403
        %v1568 = vpack.c.b16 %v1406, %v1404
        %v1569 = vpack.c.b16 %v1409, %v1407
        %v1570 = vpack.c.b16 %v1410, %v1408
        %v1571 = vpack.c.b16 %v1413, %v1411
        %v1572 = vpack.c.b16 %v1414, %v1412
        %v1573 = vpack.c.b16 %v1417, %v1415
        %v1574 = vpack.c.b16 %v1418, %v1416
        %v1575 = vpack.c.b16 %v1421, %v1419
        %v1576 = vpack.c.b16 %v1422, %v1420
        %v1577 = vpack.c.b16 %v1425, %v1423
        %v1578 = vpack.c.b16 %v1426, %v1424
        %v1579 = vpack.c.b16 %v1429, %v1427
        %v1580 = vpack.c.b16 %v1430, %v1428
        %v1581 = vpack.c.b16 %v1433, %v1431
        %v1582 = vpack.c.b16 %v1434, %v1432
        %v1583 = vpack.c.b16 %v1437, %v1435
        %v1584 = vpack.c.b16 %v1438, %v1436
        %v1585 = vpack.c.b16 %v1441, %v1439
        %v1586 = vpack.c.b16 %v1442, %v1440
        %v1587 = vpack.c.b16 %v1445, %v1443
        %v1588 = vpack.c.b16 %v1446, %v1444
        %v1589 = vpack.c.b16 %v1449, %v1447
        %v1590 = vpack.c.b16 %v1450, %v1448
        %v1591 = vpack.c.b16 %v1453, %v1451
        %v1592 = vpack.c.b16 %v1454, %v1452
        %v1593 = vpack.c.b16 %v1457, %v1455
        %v1594 = vpack.c.b16 %v1458, %v1456
        %vm1731 = vcmask 523264
        %v1733 = vsel %vm1731, %v1042, 0
        %1735 = vmatprep.subr.bf16.mxu0 %v1460
        %1736 = vmatpush1.bf16.msra.mxu0 %v1459
        %1737 = vmatprep.subr.bf16.mxu0 %v1462
        %1738 = vmatpush1.bf16.msra.mxu0 %v1461
        %1739 = vmatprep.subr.bf16.mxu0 %v1464
        %1740 = vmatpush1.bf16.msra.mxu0 %v1463
        %1741 = vmatprep.subr.bf16.mxu0 %v1466
        %1742 = vmatpush1.bf16.msra.mxu0 %v1465
        %1743 = vmatprep.subr.bf16.mxu0 %v1468
        %1744 = vmatpush1.bf16.msra.mxu0 %v1467
        %1745 = vmatprep.subr.bf16.mxu0 %v1470
        %1746 = vmatpush1.bf16.msra.mxu0 %v1469
        %1747 = vmatprep.subr.bf16.mxu0 %v1472
        %1748 = vmatpush1.bf16.msra.mxu0 %v1471
        %1749 = vmatprep.subr.bf16.mxu0 %v1474
        %1750 = vmatpush1.bf16.msra.mxu0 %v1473
        %1751 = vmatprep.subr.bf16.mxu0 %v1476
        %1752 = vmatpush1.bf16.msra.mxu0 %v1475
        %1753 = vmatprep.subr.bf16.mxu0 %v1478
        %1754 = vmatpush1.bf16.msra.mxu0 %v1477
        %1755 = vmatprep.subr.bf16.mxu0 %v1480
        %1756 = vmatpush1.bf16.msra.mxu0 %v1479
        %1757 = vmatprep.subr.bf16.mxu0 %v1482
        %1758 = vmatpush1.bf16.msra.mxu0 %v1481
        %1759 = vmatprep.subr.bf16.mxu0 %v1484
        %1760 = vmatpush1.bf16.msra.mxu0 %v1483
        %1761 = vmatprep.subr.bf16.mxu0 %v1486
        %1762 = vmatpush1.bf16.msra.mxu0 %v1485
        %1763 = vmatprep.subr.bf16.mxu0 %v1488
        %1764 = vmatpush1.bf16.msra.mxu0 %v1487
        %1765 = vmatprep.subr.bf16.mxu0 %v1490
        %1766 = vmatpush1.bf16.msra.mxu0 %v1489
        %1767 = vmatprep.mubr.bf16.mxu0 %v1017
        %1768 = vmatmul.mubr.bf16.gmra.mrb[0].mxu0 %v1003
        %v1769 = vpop.f32.mrb[0].mxu0
        %v1770 = vadd.f32 0.0, %v1769
        %v1771 = vpop.f32.mrb[0].mxu0
        %v1772 = vadd.f32 0.0, %v1771
        %v1773 = vpop.f32.mrb[0].mxu0
        %v1774 = vpop.f32.mrb[0].mxu0
        %1775 = vdwg.mxu0
        %1776 = vmatprep.subr.bf16.mxu0 %v1492
        %1777 = vmatpush1.bf16.msra.mxu0 %v1491
        %1778 = vmatprep.subr.bf16.mxu0 %v1494
        %1779 = vmatpush1.bf16.msra.mxu0 %v1493
        %1780 = vmatprep.subr.bf16.mxu0 %v1496
        %1781 = vmatpush1.bf16.msra.mxu0 %v1495
        %1782 = vmatprep.subr.bf16.mxu0 %v1498
        %1783 = vmatpush1.bf16.msra.mxu0 %v1497
        %1784 = vmatprep.subr.bf16.mxu0 %v1500
        %1785 = vmatpush1.bf16.msra.mxu0 %v1499
        %1786 = vmatprep.subr.bf16.mxu0 %v1502
        %1787 = vmatpush1.bf16.msra.mxu0 %v1501
        %1788 = vmatprep.subr.bf16.mxu0 %v1504
        %1789 = vmatpush1.bf16.msra.mxu0 %v1503
        %1790 = vmatprep.subr.bf16.mxu0 %v1506
        %1791 = vmatpush1.bf16.msra.mxu0 %v1505
        %1792 = vmatprep.subr.bf16.mxu0 %v1508
        %1793 = vmatpush1.bf16.msra.mxu0 %v1507
        %1794 = vmatprep.subr.bf16.mxu0 %v1510
        %1795 = vmatpush1.bf16.msra.mxu0 %v1509
        %1796 = vmatprep.subr.bf16.mxu0 %v1512
        %1797 = vmatpush1.bf16.msra.mxu0 %v1511
        %1798 = vmatprep.subr.bf16.mxu0 %v1514
        %1799 = vmatpush1.bf16.msra.mxu0 %v1513
        %1800 = vmatprep.subr.bf16.mxu0 %v1516
        %1801 = vmatpush1.bf16.msra.mxu0 %v1515
        %1802 = vmatprep.subr.bf16.mxu0 %v1518
        %1803 = vmatpush1.bf16.msra.mxu0 %v1517
        %1804 = vmatprep.subr.bf16.mxu0 %v1520
        %1805 = vmatpush1.bf16.msra.mxu0 %v1519
        %1806 = vmatprep.subr.bf16.mxu0 %v1522
        %1807 = vmatpush1.bf16.msra.mxu0 %v1521
        %1808 = vmatprep.mubr.bf16.mxu0 %v1027
        %1809 = vmatmul.mubr.bf16.gmra.mrb[0].mxu0 %v1025
        %v1810 = vpop.f32.mrb[0].mxu0
        %v1811 = vadd.f32 %v1770, %v1810
        %v1812 = vpop.f32.mrb[0].mxu0
        %v1813 = vadd.f32 %v1772, %v1812
        %v1814 = vpop.f32.mrb[0].mxu0
        %v1815 = vpop.f32.mrb[0].mxu0
        %1816 = vdwg.mxu0
        %1817 = vmatprep.subr.bf16.mxu0 %v1524
        %1818 = vmatpush1.bf16.msra.mxu0 %v1523
        %1819 = vmatprep.subr.bf16.mxu0 %v1526
        %1820 = vmatpush1.bf16.msra.mxu0 %v1525
        %1821 = vmatprep.subr.bf16.mxu0 %v1528
        %1822 = vmatpush1.bf16.msra.mxu0 %v1527
        %1823 = vmatprep.subr.bf16.mxu0 %v1530
        %1824 = vmatpush1.bf16.msra.mxu0 %v1529
        %1825 = vmatprep.subr.bf16.mxu0 %v1532
        %1826 = vmatpush1.bf16.msra.mxu0 %v1531
        %1827 = vmatprep.subr.bf16.mxu0 %v1534
        %1828 = vmatpush1.bf16.msra.mxu0 %v1533
        %1829 = vmatprep.subr.bf16.mxu0 %v1536
        %1830 = vmatpush1.bf16.msra.mxu0 %v1535
        %1831 = vmatprep.subr.bf16.mxu0 %v1538
        %1832 = vmatpush1.bf16.msra.mxu0 %v1537
        %1833 = vmatprep.subr.bf16.mxu0 %v1540
        %1834 = vmatpush1.bf16.msra.mxu0 %v1539
        %1835 = vmatprep.subr.bf16.mxu0 %v1542
        %1836 = vmatpush1.bf16.msra.mxu0 %v1541
        %1837 = vmatprep.subr.bf16.mxu0 %v1544
        %1838 = vmatpush1.bf16.msra.mxu0 %v1543
        %1839 = vmatprep.subr.bf16.mxu0 %v1546
        %1840 = vmatpush1.bf16.msra.mxu0 %v1545
        %1841 = vmatprep.subr.bf16.mxu0 %v1548
        %1842 = vmatpush1.bf16.msra.mxu0 %v1547
        %1843 = vmatprep.subr.bf16.mxu0 %v1550
        %1844 = vmatpush1.bf16.msra.mxu0 %v1549
        %1845 = vmatprep.subr.bf16.mxu0 %v1552
        %1846 = vmatpush1.bf16.msra.mxu0 %v1551
        %1847 = vmatprep.subr.bf16.mxu0 %v1554
        %1848 = vmatpush1.bf16.msra.mxu0 %v1553
        %1849 = vmatprep.mubr.bf16.mxu0 %v1024
        %1850 = vmatmul.mubr.bf16.gmra.mrb[0].mxu0 %v1010
        %v1851 = vpop.f32.mrb[0].mxu0
        %v1852 = vadd.f32 %v1811, %v1851
        %v1853 = vpop.f32.mrb[0].mxu0
        %v1854 = vadd.f32 %v1813, %v1853
        %v1855 = vpop.f32.mrb[0].mxu0
        %v1856 = vpop.f32.mrb[0].mxu0
        %1857 = vdwg.mxu0
        %1858 = vmatprep.subr.bf16.mxu0 %v1556
        %1859 = vmatpush1.bf16.msra.mxu0 %v1555
        %1860 = vmatprep.subr.bf16.mxu0 %v1558
        %1861 = vmatpush1.bf16.msra.mxu0 %v1557
        %1862 = vmatprep.subr.bf16.mxu0 %v1560
        %1863 = vmatpush1.bf16.msra.mxu0 %v1559
        %1864 = vmatprep.subr.bf16.mxu0 %v1562
        %1865 = vmatpush1.bf16.msra.mxu0 %v1561
        %1866 = vmatprep.subr.bf16.mxu0 %v1564
        %1867 = vmatpush1.bf16.msra.mxu0 %v1563
        %1868 = vmatprep.subr.bf16.mxu0 %v1566
        %1869 = vmatpush1.bf16.msra.mxu0 %v1565
        %1870 = vmatprep.subr.bf16.mxu0 %v1568
        %1871 = vmatpush1.bf16.msra.mxu0 %v1567
        %1872 = vmatprep.subr.bf16.mxu0 %v1570
        %1873 = vmatpush1.bf16.msra.mxu0 %v1569
        %1874 = vmatprep.subr.bf16.mxu0 %v1572
        %1875 = vmatpush1.bf16.msra.mxu0 %v1571
        %1876 = vmatprep.subr.bf16.mxu0 %v1574
        %1877 = vmatpush1.bf16.msra.mxu0 %v1573
        %1878 = vmatprep.subr.bf16.mxu0 %v1576
        %1879 = vmatpush1.bf16.msra.mxu0 %v1575
        %1880 = vmatprep.subr.bf16.mxu0 %v1578
        %1881 = vmatpush1.bf16.msra.mxu0 %v1577
        %1882 = vmatprep.subr.bf16.mxu0 %v1580
        %1883 = vmatpush1.bf16.msra.mxu0 %v1579
        %1884 = vmatprep.subr.bf16.mxu0 %v1582
        %1885 = vmatpush1.bf16.msra.mxu0 %v1581
        %1886 = vmatprep.subr.bf16.mxu0 %v1584
        %1887 = vmatpush1.bf16.msra.mxu0 %v1583
        %1888 = vmatprep.subr.bf16.mxu0 %v1586
        %1889 = vmatpush1.bf16.msra.mxu0 %v1585
        %1890 = vmatprep.mubr.bf16.mxu0 %v1028
        %1891 = vmatmul.mubr.bf16.gmra.mrb[0].mxu0 %v1026
        %v1892 = vpop.f32.mrb[0].mxu0
        %v1893 = vadd.f32 %v1852, %v1892
        %v1894 = vpop.f32.mrb[0].mxu0
        %v1895 = vadd.f32 %v1854, %v1894
        %v1896 = vpop.f32.mrb[0].mxu0
        %v1897 = vpop.f32.mrb[0].mxu0
        %1898 = vdwg.mxu0
        %1899 = vmatprep.subr.bf16.mxu0 %v1588
        %1900 = vmatpush1.bf16.msra.mxu0 %v1587
        %1901 = vmatprep.subr.bf16.mxu0 %v1590
        %1902 = vmatpush1.bf16.msra.mxu0 %v1589
        %1903 = vmatprep.subr.bf16.mxu0 %v1592
        %1904 = vmatpush1.bf16.msra.mxu0 %v1591
        %1905 = vmatprep.subr.bf16.mxu0 %v1594
        %1906 = vmatpush1.bf16.msra.mxu0 %v1593
        %1907 = vmatprep.subr.bf16.mxu0 0
        %1908 = vmatpush1.bf16.msra.mxu0 0
        %1909 = vmatprep.subr.bf16.mxu0 0
        %1910 = vmatpush1.bf16.msra.mxu0 0
        %1911 = vmatprep.subr.bf16.mxu0 0
        %1912 = vmatpush1.bf16.msra.mxu0 0
        %1913 = vmatprep.subr.bf16.mxu0 0
        %1914 = vmatpush1.bf16.msra.mxu0 0
        %1915 = vmatprep.subr.bf16.mxu0 0
        %1916 = vmatpush1.bf16.msra.mxu0 0
        %1917 = vmatprep.subr.bf16.mxu0 0
        %1918 = vmatpush1.bf16.msra.mxu0 0
        %1919 = vmatprep.subr.bf16.mxu0 0
        %1920 = vmatpush1.bf16.msra.mxu0 0
        %1921 = vmatprep.subr.bf16.mxu0 0
        %1922 = vmatpush1.bf16.msra.mxu0 0
        %1923 = vmatprep.subr.bf16.mxu0 0
        %1924 = vmatpush1.bf16.msra.mxu0 0
        %1925 = vmatprep.subr.bf16.mxu0 0
        %1926 = vmatpush1.bf16.msra.mxu0 0
        %1927 = vmatprep.subr.bf16.mxu0 0
        %1928 = vmatpush1.bf16.msra.mxu0 0
        %1929 = vmatprep.subr.bf16.mxu0 0
        %1930 = vmatpush1.bf16.msra.mxu0 0
        %1931 = vmatprep.mubr.bf16.mxu0 0
        %1932 = vmatmul.mubr.bf16.gmra.mrb[0].mxu0 %v1733
        %v1933 = vpop.f32.mrb[0].mxu0
        %v1934 = vadd.f32 %v1893, %v1933
        %v1935 = vpop.f32.mrb[0].mxu0
        %v1936 = vadd.f32 %v1895, %v1935
        %v1937 = vpop.f32.mrb[0].mxu0
        %v1938 = vpop.f32.mrb[0].mxu0
        %1939 = vdwg.mxu0
        %v1942 = vcombine.low %v1934, %v1936
        %v1944 = vunpack.c.l.s4 1983009808
        %v1945 = vunpack.c.0.s8 %v1944
        %v1946 = vlaneseq
        %v1947 = vshrl.u32 %v1946, 7
        %v1948 = vsub.s32 %v1945, %v1947
        %v1949 = vrot.slane %v1942, %v1948
        %v1951 = vadd.f32 %v839, %v1949
        %1952 = vst [vmem:[#allocation2] sm:$0xf] %v1951
        // Predicated region
        $region75: #{forward.16} parent=65 // pred_check
          %p1953 = pneg %p834
        $region76: #{forward.16} parent=65 // pred_check_branch
          %1955 = sbr.rel (%p1953) target = $region78
        $region77: #{forward.16} parent=65 // pred_region
          %v1956 = vld [vmem:[#allocation2] sm:$0xf]
          %v1957 = vld [vmem:[%s822] sm:$0x3]
          %v1959 = vlaneseq
          %v1960 = vshrl.u32 %v1959, 7
          %v1961 = vsub.s32 0, %v1960
          %v1962 = vrot.slane %v1957, %v1961
          %v1963 = vlaneseq
          %v1964 = vshrl.u32 %v1963, 7
          %v1965 = vsub.s32 1, %v1964
          %v1966 = vrot.slane %v1957, %v1965
          %v1967 = vcombine.low %v1962, %v1966
          %v1969 = vunpack.c.l.s4 1983009808
          %v1970 = vunpack.c.0.s8 %v1969
          %v1971 = vlaneseq
          %v1972 = vshrl.u32 %v1971, 7
          %v1973 = vsub.s32 %v1970, %v1972
          %v1974 = vrot.slane %v1967, %v1973
          %v1976 = vadd.f32 %v1956, %v1974
          %v1977 = vmax.f32 %v1976, 0.0
          %v1980 = vunpack.c.l.s4 1983009808
          %v1981 = vunpack.c.0.s8 %v1980
          %v1982 = vlaneseq
          %v1983 = vshrl.u32 %v1982, 7
          %v1984 = vsub.s32 %v1981, %v1983
          %v1985 = vrot.slane %v1977, %v1984
          %v1986 = vcombine.high %v1985, %v1985
          %v1989 = vpack.c.bf16 %v1985, %v1985
          %v1990 = vpack.c.bf16 %v1986, %v1986
          %v1993 = vcombine.low %v1989, %v1990
          %v1995 = vunpack.c.l.s4 1966171168
          %v1996 = vunpack.c.0.s8 %v1995
          %v1997 = vlaneseq
          %v1998 = vshrl.u32 %v1997, 7
          %v1999 = vsub.s32 %v1996, %v1998
          %v2000 = vrot.slane %v1993, %v1999
          %v2002 = vunpack.c.l.s4 1966171168
          %v2003 = vunpack.c.0.s8 %v2002
          %v2004 = vlaneseq
          %v2005 = vshrl.u32 %v2004, 7
          %v2006 = vsub.s32 %v2003, %v2005
          %v2007 = vrot.slane %v2000, %v2006
          %2009 = vst [vmem:[%s831] sm:$0x3] %v2007
        $region78: #{forward.16} parent=65 // pred_fallthru
          _
        %s2010 = smul.u32 2, %s20
        %p2011 = scmp.lt.s32.totalorder %s19, 0
        %s2012 = scalar_select %p2011, %s19, 0
        %p2013 = scmp.lt.s32.totalorder %s2010, 3
        %s2014 = scalar_select %p2013, %s2010, 3
        %s2015 = smul.addr %s2012, 4
        %s2016 = sadd.s32 %s2014, %s2015
        %s2017 = scalar_lea.vmem %s3, %s2016
        // Predicated region
        $region79: #{forward.16} parent=65 // pred_check
          %p2018 = pneg %p135
        $region80: #{forward.16} parent=65 // pred_check_branch
          %2020 = sbr.rel (%p2018) target = $region82
        $region81: #{forward.16} parent=65 // pred_region
          %s2021 = smul.u32 2, %s20
        $region82: #{forward.16} parent=65 // pred_fallthru
          _
      $region66: #{forward.16} parent=5 // pred_fallthru
        _
      %p2022 = scmp.le.s32.totalorder 2, %s9
      // Predicated region
      $region83: #{forward.16} parent=5 // pred_check
        %p2023 = pneg %p2022
      $region84: #{forward.16} parent=5 // pred_check_branch
        %2025 = sbr.rel (%p2023) target = $region86
      $region85: #{forward.16} parent=5 // pred_region
        %s2026 = ssub.s32 %s9, 2
        // Predicated region
        $region87: #{forward.16} parent=85 // pred_check
          %p2027 = pneg %p141
        $region88: #{forward.16} parent=85 // pred_check_branch
          %2029 = sbr.rel (%p2027) target = $region90
        $region89: #{forward.16} parent=85 // pred_region
          %s2030 = smul.u32 2, %s23
          %p2031 = scmp.lt.s32.totalorder %s22, 0
          %s2032 = scalar_select %p2031, %s22, 0
          %p2033 = scmp.lt.s32.totalorder %s2030, 3
          %s2034 = scalar_select %p2033, %s2030, 3
          %s2035 = smul.addr %s2032, 4
          %s2036 = sadd.s32 %s2034, %s2035
          %s2037 = scalar_lea.vmem %s3, %s2036
        $region90: #{forward.16} parent=85 // pred_fallthru
          _
      $region86: #{forward.16} parent=5 // pred_fallthru
        _
    $region6: #{forward.16} parent=1 // loop_footer
      %s13 = sadd.s32 1, %s9
    $region7: #{forward.16} parent=1 // loop_footer_branch
      %8 = sbr.rel target = $region3
    $region8: #{forward.16} parent=1 // loop_exit
      _

// kernel: forward.9
$region0: #{forward.9}
  #allocation0 [shape = 'u32[]', space=smem, size = 0x4, offset = 0x4, fixed_abs, tag = 'smem constant byte address 0x4 - core index']
  #allocation1 [shape = 'u32[144,128]{1,0:T(1,128)}', space=vmem, size = 0x12000, scoped, tag = 'internal scratch']
  %s0 = inlined_call_operand.vmem [shape: bf16[2,5,7], index: 0, kind: input, shape index: {}]
  %s1 = inlined_call_operand.vmem [shape: f32[2,1,5], index: 1, kind: input, shape index: {}]
  %s2 = inlined_call_operand.vmem [shape: bf16[7,64], index: 2, kind: input, shape index: {}]
  %s3 = inlined_call_operand.vmem [shape: f32[1,64], index: 3, kind: input, shape index: {}]
  %s4 = inlined_call_operand.vmem [shape: bf16[64,64], index: 4, kind: input, shape index: {}]
  %s5 = inlined_call_operand.vmem [shape: f32[1,64], index: 5, kind: input, shape index: {}]
  %s6 = inlined_call_operand.vmem [shape: bf16[7,64], index: 6, kind: input, shape index: {}]
  %s7 = inlined_call_operand.vmem [shape: f32[1,64], index: 7, kind: input, shape index: {}]
  %s8 = inlined_call_operand.vmem [shape: bf16[64,64], index: 8, kind: input, shape index: {}]
  %s9 = inlined_call_operand.vmem [shape: f32[1,64], index: 9, kind: input, shape index: {}]
  %s10 = inlined_call_operand.vmem [shape: bf16[64,192], index: 10, kind: input, shape index: {}]
  %s11 = inlined_call_operand.vmem [shape: bf16[64,64], index: 11, kind: input, shape index: {}]
  %s12 = inlined_call_operand.vmem [shape: f32[2,1,64], index: 12, kind: output, shape index: {}]
  %s13 = sld [smem:[#allocation0]]
  $region81: #{forward.9} parent=0
    _
  %s15 = ssub.s32 1, %s13
  %s16 = scalar_select 0, %s15, %s13
  loop: start=0, step=1, limit=4
  $region2: #{forward.9} parent=0 // loop_pre_header
    _
  $region3: #{forward.9} parent=0 // loop_header
    %s18 = sphi 0, %s22
    %p19 = scmp.ge.s32.totalorder %s18, 4
    %s28 = sphi 0, %s30
    %s31 = sphi 0, %s28
    %s32 = sphi 0, %s31
    %s48 = sphi 0, %s32
    %s54 = sphi 0, %s56
    %s57 = sphi 0, %s54
    %s58 = sphi 0, %s57
    %s74 = sphi 0, %s58
    %s78 = sphi 0, %s78
    %s80 = sphi 0, %s78
    %s81 = sphi 0, %s80
    %s95 = sphi 0, %s81
    %s99 = sphi 0, %s99
    %s101 = sphi 0, %s99
    %s102 = sphi 0, %s101
    %s116 = sphi 0, %s102
    %s120 = sphi 0, %s120
    %s122 = sphi 0, %s120
    %s123 = sphi 0, %s122
    %s137 = sphi 0, %s123
    %s141 = sphi 0, %s141
    %s143 = sphi 0, %s141
    %s144 = sphi 0, %s143
    %s158 = sphi 0, %s144
    %s162 = sphi 0, %s162
    %s164 = sphi 0, %s162
    %s165 = sphi 0, %s164
    %s179 = sphi 0, %s165
    %s183 = sphi 0, %s183
    %s185 = sphi 0, %s183
    %s186 = sphi 0, %s185
    %s200 = sphi 0, %s186
    %s204 = sphi 0, %s204
    %s206 = sphi 0, %s204
    %s207 = sphi 0, %s206
    %s221 = sphi 0, %s207
    %s225 = sphi 0, %s225
    %s227 = sphi 0, %s225
    %s228 = sphi 0, %s227
    %s242 = sphi 0, %s228
    %s246 = sphi 0, %s246
    %s248 = sphi 0, %s246
    %s249 = sphi 0, %s248
    %s263 = sphi 0, %s249
    %s267 = sphi 0, %s267
    %s269 = sphi 0, %s267
    %s270 = sphi 0, %s269
    %s284 = sphi 0, %s270
    %s290 = sphi 0, %s292
    %s293 = sphi 0, %s290
    %s294 = sphi 0, %s293
    %s310 = sphi 0, %s294
  $region4: #{forward.9} parent=0 // loop_header_branch
    %21 = sbr.rel (%p19) target = $region8
  $region5: #{forward.9} parent=0 // loop_body
    %s23 = ssub.s32 %s18, 1
    %s24 = ssub.s32 %s18, 2
    %s25 = sadd.s32 %s18, 1
    %s26 = ssub.s32 %s18, %s25
    %p27 = scmp.eq.s32.totalorder %s26, 0
    %s29 = sadd.s32 %s28, 1
    %s30 = scalar_select %p27, %s28, %s29
    %p33 = pneg %p27
    %p34 = scmp.eq.s32.totalorder %s18, 1
    %p35 = por %p33, %p34
    %p36 = scmp.ne.s32.totalorder %s28, %s31
    %p37 = scmp.eq.s32.totalorder %s18, 0
    %p38 = por %p36, %p37
    %p39 = scmp.ne.s32.totalorder %s28, %s31
    %p40 = scmp.eq.s32.totalorder %s23, 1
    %p41 = por %p39, %p40
    %p42 = scmp.ne.s32.totalorder %s31, %s32
    %p43 = scmp.eq.s32.totalorder %s23, 0
    %p44 = por %p42, %p43
    %p45 = scmp.ne.s32.totalorder %s31, %s32
    %p46 = scmp.eq.s32.totalorder %s24, 1
    %p47 = por %p45, %p46
    %p49 = scmp.ne.s32.totalorder %s32, %s48
    %p50 = scmp.eq.s32.totalorder %s24, 0
    %p51 = por %p49, %p50
    %s52 = ssub.s32 %s18, %s25
    %p53 = scmp.eq.s32.totalorder %s52, 0
    %s55 = sadd.s32 %s54, 1
    %s56 = scalar_select %p53, %s54, %s55
    %p59 = pneg %p53
    %p60 = scmp.eq.s32.totalorder %s18, 1
    %p61 = por %p59, %p60
    %p62 = scmp.ne.s32.totalorder %s54, %s57
    %p63 = scmp.eq.s32.totalorder %s18, 0
    %p64 = por %p62, %p63
    %p65 = scmp.ne.s32.totalorder %s54, %s57
    %p66 = scmp.eq.s32.totalorder %s23, 1
    %p67 = por %p65, %p66
    %p68 = scmp.ne.s32.totalorder %s57, %s58
    %p69 = scmp.eq.s32.totalorder %s23, 0
    %p70 = por %p68, %p69
    %p71 = scmp.ne.s32.totalorder %s57, %s58
    %p72 = scmp.eq.s32.totalorder %s24, 1
    %p73 = por %p71, %p72
    %p75 = scmp.ne.s32.totalorder %s58, %s74
    %p76 = scmp.eq.s32.totalorder %s24, 0
    %p77 = por %p75, %p76
    %s79 = sadd.s32 %s78, 1
    %p82 = scmp.eq.s32.totalorder %s18, 1
    %p83 = scmp.ne.s32.totalorder %s78, %s80
    %p84 = scmp.eq.s32.totalorder %s18, 0
    %p85 = por %p83, %p84
    %p86 = scmp.ne.s32.totalorder %s78, %s80
    %p87 = scmp.eq.s32.totalorder %s23, 1
    %p88 = por %p86, %p87
    %p89 = scmp.ne.s32.totalorder %s80, %s81
    %p90 = scmp.eq.s32.totalorder %s23, 0
    %p91 = por %p89, %p90
    %p92 = scmp.ne.s32.totalorder %s80, %s81
    %p93 = scmp.eq.s32.totalorder %s24, 1
    %p94 = por %p92, %p93
    %p96 = scmp.ne.s32.totalorder %s81, %s95
    %p97 = scmp.eq.s32.totalorder %s24, 0
    %p98 = por %p96, %p97
    %s100 = sadd.s32 %s99, 1
    %p103 = scmp.eq.s32.totalorder %s18, 1
    %p104 = scmp.ne.s32.totalorder %s99, %s101
    %p105 = scmp.eq.s32.totalorder %s18, 0
    %p106 = por %p104, %p105
    %p107 = scmp.ne.s32.totalorder %s99, %s101
    %p108 = scmp.eq.s32.totalorder %s23, 1
    %p109 = por %p107, %p108
    %p110 = scmp.ne.s32.totalorder %s101, %s102
    %p111 = scmp.eq.s32.totalorder %s23, 0
    %p112 = por %p110, %p111
    %p113 = scmp.ne.s32.totalorder %s101, %s102
    %p114 = scmp.eq.s32.totalorder %s24, 1
    %p115 = por %p113, %p114
    %p117 = scmp.ne.s32.totalorder %s102, %s116
    %p118 = scmp.eq.s32.totalorder %s24, 0
    %p119 = por %p117, %p118
    %s121 = sadd.s32 %s120, 1
    %p124 = scmp.eq.s32.totalorder %s18, 1
    %p125 = scmp.ne.s32.totalorder %s120, %s122
    %p126 = scmp.eq.s32.totalorder %s18, 0
    %p127 = por %p125, %p126
    %p128 = scmp.ne.s32.totalorder %s120, %s122
    %p129 = scmp.eq.s32.totalorder %s23, 1
    %p130 = por %p128, %p129
    %p131 = scmp.ne.s32.totalorder %s122, %s123
    %p132 = scmp.eq.s32.totalorder %s23, 0
    %p133 = por %p131, %p132
    %p134 = scmp.ne.s32.totalorder %s122, %s123
    %p135 = scmp.eq.s32.totalorder %s24, 1
    %p136 = por %p134, %p135
    %p138 = scmp.ne.s32.totalorder %s123, %s137
    %p139 = scmp.eq.s32.totalorder %s24, 0
    %p140 = por %p138, %p139
    %s142 = sadd.s32 %s141, 1
    %p145 = scmp.eq.s32.totalorder %s18, 1
    %p146 = scmp.ne.s32.totalorder %s141, %s143
    %p147 = scmp.eq.s32.totalorder %s18, 0
    %p148 = por %p146, %p147
    %p149 = scmp.ne.s32.totalorder %s141, %s143
    %p150 = scmp.eq.s32.totalorder %s23, 1
    %p151 = por %p149, %p150
    %p152 = scmp.ne.s32.totalorder %s143, %s144
    %p153 = scmp.eq.s32.totalorder %s23, 0
    %p154 = por %p152, %p153
    %p155 = scmp.ne.s32.totalorder %s143, %s144
    %p156 = scmp.eq.s32.totalorder %s24, 1
    %p157 = por %p155, %p156
    %p159 = scmp.ne.s32.totalorder %s144, %s158
    %p160 = scmp.eq.s32.totalorder %s24, 0
    %p161 = por %p159, %p160
    %s163 = sadd.s32 %s162, 1
    %p166 = scmp.eq.s32.totalorder %s18, 1
    %p167 = scmp.ne.s32.totalorder %s162, %s164
    %p168 = scmp.eq.s32.totalorder %s18, 0
    %p169 = por %p167, %p168
    %p170 = scmp.ne.s32.totalorder %s162, %s164
    %p171 = scmp.eq.s32.totalorder %s23, 1
    %p172 = por %p170, %p171
    %p173 = scmp.ne.s32.totalorder %s164, %s165
    %p174 = scmp.eq.s32.totalorder %s23, 0
    %p175 = por %p173, %p174
    %p176 = scmp.ne.s32.totalorder %s164, %s165
    %p177 = scmp.eq.s32.totalorder %s24, 1
    %p178 = por %p176, %p177
    %p180 = scmp.ne.s32.totalorder %s165, %s179
    %p181 = scmp.eq.s32.totalorder %s24, 0
    %p182 = por %p180, %p181
    %s184 = sadd.s32 %s183, 1
    %p187 = scmp.eq.s32.totalorder %s18, 1
    %p188 = scmp.ne.s32.totalorder %s183, %s185
    %p189 = scmp.eq.s32.totalorder %s18, 0
    %p190 = por %p188, %p189
    %p191 = scmp.ne.s32.totalorder %s183, %s185
    %p192 = scmp.eq.s32.totalorder %s23, 1
    %p193 = por %p191, %p192
    %p194 = scmp.ne.s32.totalorder %s185, %s186
    %p195 = scmp.eq.s32.totalorder %s23, 0
    %p196 = por %p194, %p195
    %p197 = scmp.ne.s32.totalorder %s185, %s186
    %p198 = scmp.eq.s32.totalorder %s24, 1
    %p199 = por %p197, %p198
    %p201 = scmp.ne.s32.totalorder %s186, %s200
    %p202 = scmp.eq.s32.totalorder %s24, 0
    %p203 = por %p201, %p202
    %s205 = sadd.s32 %s204, 1
    %p208 = scmp.eq.s32.totalorder %s18, 1
    %p209 = scmp.ne.s32.totalorder %s204, %s206
    %p210 = scmp.eq.s32.totalorder %s18, 0
    %p211 = por %p209, %p210
    %p212 = scmp.ne.s32.totalorder %s204, %s206
    %p213 = scmp.eq.s32.totalorder %s23, 1
    %p214 = por %p212, %p213
    %p215 = scmp.ne.s32.totalorder %s206, %s207
    %p216 = scmp.eq.s32.totalorder %s23, 0
    %p217 = por %p215, %p216
    %p218 = scmp.ne.s32.totalorder %s206, %s207
    %p219 = scmp.eq.s32.totalorder %s24, 1
    %p220 = por %p218, %p219
    %p222 = scmp.ne.s32.totalorder %s207, %s221
    %p223 = scmp.eq.s32.totalorder %s24, 0
    %p224 = por %p222, %p223
    %s226 = sadd.s32 %s225, 1
    %p229 = scmp.eq.s32.totalorder %s18, 1
    %p230 = scmp.ne.s32.totalorder %s225, %s227
    %p231 = scmp.eq.s32.totalorder %s18, 0
    %p232 = por %p230, %p231
    %p233 = scmp.ne.s32.totalorder %s225, %s227
    %p234 = scmp.eq.s32.totalorder %s23, 1
    %p235 = por %p233, %p234
    %p236 = scmp.ne.s32.totalorder %s227, %s228
    %p237 = scmp.eq.s32.totalorder %s23, 0
    %p238 = por %p236, %p237
    %p239 = scmp.ne.s32.totalorder %s227, %s228
    %p240 = scmp.eq.s32.totalorder %s24, 1
    %p241 = por %p239, %p240
    %p243 = scmp.ne.s32.totalorder %s228, %s242
    %p244 = scmp.eq.s32.totalorder %s24, 0
    %p245 = por %p243, %p244
    %s247 = sadd.s32 %s246, 1
    %p250 = scmp.eq.s32.totalorder %s18, 1
    %p251 = scmp.ne.s32.totalorder %s246, %s248
    %p252 = scmp.eq.s32.totalorder %s18, 0
    %p253 = por %p251, %p252
    %p254 = scmp.ne.s32.totalorder %s246, %s248
    %p255 = scmp.eq.s32.totalorder %s23, 1
    %p256 = por %p254, %p255
    %p257 = scmp.ne.s32.totalorder %s248, %s249
    %p258 = scmp.eq.s32.totalorder %s23, 0
    %p259 = por %p257, %p258
    %p260 = scmp.ne.s32.totalorder %s248, %s249
    %p261 = scmp.eq.s32.totalorder %s24, 1
    %p262 = por %p260, %p261
    %p264 = scmp.ne.s32.totalorder %s249, %s263
    %p265 = scmp.eq.s32.totalorder %s24, 0
    %p266 = por %p264, %p265
    %s268 = sadd.s32 %s267, 1
    %p271 = scmp.eq.s32.totalorder %s18, 1
    %p272 = scmp.ne.s32.totalorder %s267, %s269
    %p273 = scmp.eq.s32.totalorder %s18, 0
    %p274 = por %p272, %p273
    %p275 = scmp.ne.s32.totalorder %s267, %s269
    %p276 = scmp.eq.s32.totalorder %s23, 1
    %p277 = por %p275, %p276
    %p278 = scmp.ne.s32.totalorder %s269, %s270
    %p279 = scmp.eq.s32.totalorder %s23, 0
    %p280 = por %p278, %p279
    %p281 = scmp.ne.s32.totalorder %s269, %s270
    %p282 = scmp.eq.s32.totalorder %s24, 1
    %p283 = por %p281, %p282
    %p285 = scmp.ne.s32.totalorder %s270, %s284
    %p286 = scmp.eq.s32.totalorder %s24, 0
    %p287 = por %p285, %p286
    %s288 = ssub.s32 %s18, %s25
    %p289 = scmp.eq.s32.totalorder %s288, 0
    %s291 = sadd.s32 %s290, 1
    %s292 = scalar_select %p289, %s290, %s291
    %p295 = pneg %p289
    %p296 = scmp.eq.s32.totalorder %s18, 1
    %p297 = por %p295, %p296
    %p298 = scmp.ne.s32.totalorder %s290, %s293
    %p299 = scmp.eq.s32.totalorder %s18, 0
    %p300 = por %p298, %p299
    %p301 = scmp.ne.s32.totalorder %s290, %s293
    %p302 = scmp.eq.s32.totalorder %s23, 1
    %p303 = por %p301, %p302
    %p304 = scmp.ne.s32.totalorder %s293, %s294
    %p305 = scmp.eq.s32.totalorder %s23, 0
    %p306 = por %p304, %p305
    %p307 = scmp.ne.s32.totalorder %s293, %s294
    %p308 = scmp.eq.s32.totalorder %s24, 1
    %p309 = por %p307, %p308
    %p311 = scmp.ne.s32.totalorder %s294, %s310
    %p312 = scmp.eq.s32.totalorder %s24, 0
    %p313 = por %p311, %p312
    %p314 = scmp.le.s32.totalorder 1, %s18
    %p315 = scmp.lt.s32.totalorder %s18, 3
    %p316 = pnand %p314, %p315
    %p317 = pneg %p316
    // Predicated region
    $region9: #{forward.9} parent=5 // pred_check
      _
    $region10: #{forward.9} parent=5 // pred_check_branch
      %319 = sbr.rel (%p316) target = $region12
    $region11: #{forward.9} parent=5 // pred_region
      %s320 = ssub.s32 %s18, 1
      // Predicated region
      $region13: #{forward.9} parent=11 // pred_check
        %p321 = pneg %p91
      $region14: #{forward.9} parent=11 // pred_check_branch
        %323 = sbr.rel (%p321) target = $region16
      $region15: #{forward.9} parent=11 // pred_region
        _
      $region16: #{forward.9} parent=11 // pred_fallthru
        _
      // Predicated region
      $region17: #{forward.9} parent=11 // pred_check
        %p324 = pneg %p112
      $region18: #{forward.9} parent=11 // pred_check_branch
        %326 = sbr.rel (%p324) target = $region20
      $region19: #{forward.9} parent=11 // pred_region
        _
      $region20: #{forward.9} parent=11 // pred_fallthru
        _
      // Predicated region
      $region21: #{forward.9} parent=11 // pred_check
        %p327 = pneg %p133
      $region22: #{forward.9} parent=11 // pred_check_branch
        %329 = sbr.rel (%p327) target = $region24
      $region23: #{forward.9} parent=11 // pred_region
        _
      $region24: #{forward.9} parent=11 // pred_fallthru
        _
      // Predicated region
      $region25: #{forward.9} parent=11 // pred_check
        %p330 = pneg %p154
      $region26: #{forward.9} parent=11 // pred_check_branch
        %332 = sbr.rel (%p330) target = $region28
      $region27: #{forward.9} parent=11 // pred_region
        _
      $region28: #{forward.9} parent=11 // pred_fallthru
        _
      // Predicated region
      $region29: #{forward.9} parent=11 // pred_check
        %p333 = pneg %p175
      $region30: #{forward.9} parent=11 // pred_check_branch
        %335 = sbr.rel (%p333) target = $region32
      $region31: #{forward.9} parent=11 // pred_region
        _
      $region32: #{forward.9} parent=11 // pred_fallthru
        _
      // Predicated region
      $region33: #{forward.9} parent=11 // pred_check
        %p336 = pneg %p196
      $region34: #{forward.9} parent=11 // pred_check_branch
        %338 = sbr.rel (%p336) target = $region36
      $region35: #{forward.9} parent=11 // pred_region
        _
      $region36: #{forward.9} parent=11 // pred_fallthru
        _
      // Predicated region
      $region37: #{forward.9} parent=11 // pred_check
        %p339 = pneg %p217
      $region38: #{forward.9} parent=11 // pred_check_branch
        %341 = sbr.rel (%p339) target = $region40
      $region39: #{forward.9} parent=11 // pred_region
        _
      $region40: #{forward.9} parent=11 // pred_fallthru
        _
      // Predicated region
      $region41: #{forward.9} parent=11 // pred_check
        %p342 = pneg %p238
      $region42: #{forward.9} parent=11 // pred_check_branch
        %344 = sbr.rel (%p342) target = $region44
      $region43: #{forward.9} parent=11 // pred_region
        _
      $region44: #{forward.9} parent=11 // pred_fallthru
        _
      // Predicated region
      $region45: #{forward.9} parent=11 // pred_check
        %p345 = pneg %p259
      $region46: #{forward.9} parent=11 // pred_check_branch
        %347 = sbr.rel (%p345) target = $region48
      $region47: #{forward.9} parent=11 // pred_region
        _
      $region48: #{forward.9} parent=11 // pred_fallthru
        _
      // Predicated region
      $region49: #{forward.9} parent=11 // pred_check
        %p348 = pneg %p280
      $region50: #{forward.9} parent=11 // pred_check_branch
        %350 = sbr.rel (%p348) target = $region52
      $region51: #{forward.9} parent=11 // pred_region
        _
      $region52: #{forward.9} parent=11 // pred_fallthru
        _
    $region12: #{forward.9} parent=5 // pred_fallthru
      _
    %p351 = scmp.lt.s32.totalorder %s18, 2
    // Predicated region
    $region53: #{forward.9} parent=5 // pred_check
      %p352 = pneg %p351
    $region54: #{forward.9} parent=5 // pred_check_branch
      %354 = sbr.rel (%p352) target = $region56
    $region55: #{forward.9} parent=5 // pred_region
      // Predicated region
      $region57: #{forward.9} parent=55 // pred_check
        %p355 = pneg %p38
      $region58: #{forward.9} parent=55 // pred_check_branch
        %357 = sbr.rel (%p355) target = $region60
      $region59: #{forward.9} parent=55 // pred_region
        %p358 = scmp.lt.s32.totalorder %s18, 1
        %s359 = scalar_select %p358, %s18, 1
        %s360 = smul.addr %s359, 4
        %s361 = scalar_lea.vmem %s0, %s360
      $region60: #{forward.9} parent=55 // pred_fallthru
        _
      // Predicated region
      $region61: #{forward.9} parent=55 // pred_check
        %p362 = pneg %p64
      $region62: #{forward.9} parent=55 // pred_check_branch
        %364 = sbr.rel (%p362) target = $region64
      $region63: #{forward.9} parent=55 // pred_region
        %p365 = scmp.lt.s32.totalorder %s18, 1
        %s366 = scalar_select %p365, %s18, 1
        %s367 = scalar_lea.vmem %s1, %s366
      $region64: #{forward.9} parent=55 // pred_fallthru
        _
    $region56: #{forward.9} parent=5 // pred_fallthru
      _
    %p368 = scmp.le.s32.totalorder 1, %s18
    %p369 = scmp.lt.s32.totalorder %s18, 3
    %p370 = pnand %p368, %p369
    %p371 = pneg %p370
    // Predicated region
    $region65: #{forward.9} parent=5 // pred_check
      _
    $region66: #{forward.9} parent=5 // pred_check_branch
      %373 = sbr.rel (%p370) target = $region68
    $region67: #{forward.9} parent=5 // pred_region
      %s374 = ssub.s32 %s18, 1
      %p375 = scmp.lt.s32.totalorder %s23, 1
      %s376 = scalar_select %p375, %s23, 1
      %s377 = smul.addr %s376, 4
      %s378 = scalar_lea.vmem %s0, %s377
      %p379 = pneg %p44
      %p380 = pneg %p41
      %p381 = scmp.lt.s32.totalorder %s23, 1
      %s382 = scalar_select %p381, %s23, 1
      %s383 = scalar_lea.vmem %s1, %s382
      %p384 = pneg %p70
      %p385 = pneg %p67
      %p386 = pneg %p91
      %p387 = pneg %p88
      %p388 = pneg %p112
      %p389 = pneg %p109
      %p390 = pneg %p133
      %p391 = pneg %p130
      %p392 = pneg %p154
      %p393 = pneg %p151
      %p394 = pneg %p175
      %p395 = pneg %p172
      %p396 = pneg %p196
      %p397 = pneg %p193
      %p398 = pneg %p217
      %p399 = pneg %p214
      %p400 = pneg %p238
      %p401 = pneg %p235
      %p402 = pneg %p259
      %p403 = pneg %p256
      %p404 = pneg %p280
      %p405 = pneg %p277
      %p406 = pneg %p306
      %p407 = pneg %p303
      %p408 = scmp.lt.s32.totalorder %s23, 1
      %s409 = scalar_select %p408, %s23, 1
      %s410 = scalar_lea.vmem %s12, %s409
      %p411 = scmp.lt.s32.totalorder %s23, 1
      %s412 = scalar_select %p411, %s23, 1
      %s413 = smul.addr %s412, 4
      %s414 = scalar_lea.vmem %s0, %s413
      %p415 = scmp.lt.s32.totalorder %s23, 1
      %s416 = scalar_select %p415, %s23, 1
      %s417 = scalar_lea.vmem %s1, %s416
      %p418 = scmp.lt.s32.totalorder %s23, 1
      %s419 = scalar_select %p418, %s23, 1
      %s420 = scalar_lea.vmem %s12, %s419
      %v422 = vld [vmem:[%s414] sm:$0x7]
      %v423 = vld [vmem:[%s417] sm:$0x1]
      %v424 = vld [vmem:[%s2] sm:$0xf]
      %v425 = vld [vmem:[%s3] sm:$0x1]
      %vm426 = vcmask 56320
      %v428 = vsel %vm426, %v422, 0
      %vm430 = vcmask 1042432
      %vm431 = vcmask 1043456
      %v432 = vsel %vm430, 4294967295, 65535
      %v433 = vsel %vm431, %v432, 0
      %v435 = vand.u32 %v424, %v433
      %437 = vmatprep.subr.bf16.mxu0 0
      %438 = vmatpush1.bf16.msra.mxu0 %v435
      %439 = vmatprep.subr.bf16.mxu0 0
      %440 = vmatpush1.bf16.msra.mxu0 0
      %441 = vmatprep.subr.bf16.mxu0 0
      %442 = vmatpush1.bf16.msra.mxu0 0
      %443 = vmatprep.subr.bf16.mxu0 0
      %444 = vmatpush1.bf16.msra.mxu0 0
      %445 = vmatprep.subr.bf16.mxu0 0
      %446 = vmatpush1.bf16.msra.mxu0 0
      %447 = vmatprep.subr.bf16.mxu0 0
      %448 = vmatpush1.bf16.msra.mxu0 0
      %449 = vmatprep.subr.bf16.mxu0 0
      %450 = vmatpush1.bf16.msra.mxu0 0
      %451 = vmatprep.subr.bf16.mxu0 0
      %452 = vmatpush1.bf16.msra.mxu0 0
      %453 = vmatprep.subr.bf16.mxu0 0
      %454 = vmatpush1.bf16.msra.mxu0 0
      %455 = vmatprep.subr.bf16.mxu0 0
      %456 = vmatpush1.bf16.msra.mxu0 0
      %457 = vmatprep.subr.bf16.mxu0 0
      %458 = vmatpush1.bf16.msra.mxu0 0
      %459 = vmatprep.subr.bf16.mxu0 0
      %460 = vmatpush1.bf16.msra.mxu0 0
      %461 = vmatprep.subr.bf16.mxu0 0
      %462 = vmatpush1.bf16.msra.mxu0 0
      %463 = vmatprep.subr.bf16.mxu0 0
      %464 = vmatpush1.bf16.msra.mxu0 0
      %465 = vmatprep.subr.bf16.mxu0 0
      %466 = vmatpush1.bf16.msra.mxu0 0
      %467 = vmatprep.subr.bf16.mxu0 0
      %468 = vmatpush1.bf16.msra.mxu0 0
      %469 = vmatprep.mubr.bf16.mxu0 0
      %470 = vmatmul.mubr.bf16.gmra.mrb[0].mxu0 %v428
      %v471 = vpop.f32.mrb[0].mxu0
      %v472 = vadd.f32 %v425, %v471
      %v473 = vpop.f32.mrb[0].mxu0
      %v474 = vpop.f32.mrb[0].mxu0
      %v475 = vpop.f32.mrb[0].mxu0
      %476 = vdwg.mxu0
      %v477 = vmax.f32 %v472, 0.0
      %v478 = vpack.c.bf16 %v477, %v477
      %v479 = vld [vmem:[%s4] sm:$0xf]
      %v480 = vld [vmem:[%s4 + $0x4] sm:$0xf]
      %v481 = vld [vmem:[%s4 + $0x8] sm:$0xf]
      %v482 = vld [vmem:[%s4 + $0xc] sm:$0xf]
      %v483 = vld [vmem:[%s4 + $0x10] sm:$0xf]
      %v484 = vld [vmem:[%s4 + $0x14] sm:$0xf]
      %v485 = vld [vmem:[%s4 + $0x18] sm:$0xf]
      %v486 = vld [vmem:[%s4 + $0x1c] sm:$0xf]
      %v487 = vld [vmem:[%s5] sm:$0x1]
      %v496 = vunpack.c.l.b16 %v479
      %v497 = vunpack.c.l.b16 %v480
      %v498 = vunpack.c.l.b16 %v481
      %v499 = vunpack.c.l.b16 %v482
      %v500 = vunpack.c.l.b16 %v483
      %v501 = vunpack.c.l.b16 %v484
      %v502 = vunpack.c.l.b16 %v485
      %v503 = vunpack.c.l.b16 %v486
      %v504 = vpack.c.b16 %v497, %v496
      %v505 = vpack.c.b16 %v499, %v498
      %v506 = vpack.c.b16 %v501, %v500
      %v507 = vpack.c.b16 %v503, %v502
      %vm512 = vcmask 523264
      %v514 = vsel %vm512, %v478, 0
      %516 = vmatprep.subr.bf16.mxu0 0
      %517 = vmatpush1.bf16.msra.mxu0 %v504
      %518 = vmatprep.subr.bf16.mxu0 0
      %519 = vmatpush1.bf16.msra.mxu0 %v505
      %520 = vmatprep.subr.bf16.mxu0 0
      %521 = vmatpush1.bf16.msra.mxu0 %v506
      %522 = vmatprep.subr.bf16.mxu0 0
      %523 = vmatpush1.bf16.msra.mxu0 %v507
      %524 = vmatprep.subr.bf16.mxu0 0
      %525 = vmatpush1.bf16.msra.mxu0 0
      %526 = vmatprep.subr.bf16.mxu0 0
      %527 = vmatpush1.bf16.msra.mxu0 0
      %528 = vmatprep.subr.bf16.mxu0 0
      %529 = vmatpush1.bf16.msra.mxu0 0
      %530 = vmatprep.subr.bf16.mxu0 0
      %531 = vmatpush1.bf16.msra.mxu0 0
      %532 = vmatprep.subr.bf16.mxu0 0
      %533 = vmatpush1.bf16.msra.mxu0 0
      %534 = vmatprep.subr.bf16.mxu0 0
      %535 = vmatpush1.bf16.msra.mxu0 0
      %536 = vmatprep.subr.bf16.mxu0 0
      %537 = vmatpush1.bf16.msra.mxu0 0
      %538 = vmatprep.subr.bf16.mxu0 0
      %539 = vmatpush1.bf16.msra.mxu0 0
      %540 = vmatprep.subr.bf16.mxu0 0
      %541 = vmatpush1.bf16.msra.mxu0 0
      %542 = vmatprep.subr.bf16.mxu0 0
      %543 = vmatpush1.bf16.msra.mxu0 0
      %544 = vmatprep.subr.bf16.mxu0 0
      %545 = vmatpush1.bf16.msra.mxu0 0
      %546 = vmatprep.subr.bf16.mxu0 0
      %547 = vmatpush1.bf16.msra.mxu0 0
      %548 = vmatprep.mubr.bf16.mxu0 0
      %549 = vmatmul.mubr.bf16.gmra.mrb[0].mxu0 %v514
      %v550 = vpop.f32.mrb[0].mxu0
      %v551 = vadd.f32 %v487, %v550
      %v552 = vpop.f32.mrb[0].mxu0
      %v553 = vpop.f32.mrb[0].mxu0
      %v554 = vpop.f32.mrb[0].mxu0
      %555 = vdwg.mxu0
      %v556 = vmax.f32 %v551, 0.0
      %v557 = vld [vmem:[%s6] sm:$0xf]
      %v558 = vld [vmem:[%s7] sm:$0x1]
      %v560 = vlaneseq
      %v561 = vshrl.u32 %v560, 7
      %v562 = vsub.s32 0, %v561
      %v563 = vrot.slane %v558, %v562
      %v566 = vunpack.c.l.b16 %v422
      %v567 = vpack.c.b16 %v566, %v566
      %v569 = vshrl.u32 %v567, 16
      %v571 = vshll.u32 %v567, 16
      %v573 = vrot.slane %v571, 1
      %v574 = vor.u32 %v569, %v573
      %v576 = vsel %vm426, %v574, 0
      %v579 = vand.u32 %v557, %v433
      %581 = vmatprep.subr.bf16.mxu0 0
      %582 = vmatpush1.bf16.msra.mxu0 %v579
      %583 = vmatprep.subr.bf16.mxu0 0
      %584 = vmatpush1.bf16.msra.mxu0 0
      %585 = vmatprep.subr.bf16.mxu0 0
      %586 = vmatpush1.bf16.msra.mxu0 0
      %587 = vmatprep.subr.bf16.mxu0 0
      %588 = vmatpush1.bf16.msra.mxu0 0
      %589 = vmatprep.subr.bf16.mxu0 0
      %590 = vmatpush1.bf16.msra.mxu0 0
      %591 = vmatprep.subr.bf16.mxu0 0
      %592 = vmatpush1.bf16.msra.mxu0 0
      %593 = vmatprep.subr.bf16.mxu0 0
      %594 = vmatpush1.bf16.msra.mxu0 0
      %595 = vmatprep.subr.bf16.mxu0 0
      %596 = vmatpush1.bf16.msra.mxu0 0
      %597 = vmatprep.subr.bf16.mxu0 0
      %598 = vmatpush1.bf16.msra.mxu0 0
      %599 = vmatprep.subr.bf16.mxu0 0
      %600 = vmatpush1.bf16.msra.mxu0 0
      %601 = vmatprep.subr.bf16.mxu0 0
      %602 = vmatpush1.bf16.msra.mxu0 0
      %603 = vmatprep.subr.bf16.mxu0 0
      %604 = vmatpush1.bf16.msra.mxu0 0
      %605 = vmatprep.subr.bf16.mxu0 0
      %606 = vmatpush1.bf16.msra.mxu0 0
      %607 = vmatprep.subr.bf16.mxu0 0
      %608 = vmatpush1.bf16.msra.mxu0 0
      %609 = vmatprep.subr.bf16.mxu0 0
      %610 = vmatpush1.bf16.msra.mxu0 0
      %611 = vmatprep.subr.bf16.mxu0 0
      %612 = vmatpush1.bf16.msra.mxu0 0
      %613 = vmatprep.mubr.bf16.mxu0 0
      %614 = vmatmul.mubr.bf16.gmra.mrb[0].mxu0 %v576
      %v615 = vpop.f32.mrb[0].mxu0
      %v616 = vadd.f32 %v563, %v615
      %v617 = vpop.f32.mrb[0].mxu0
      %v618 = vpop.f32.mrb[0].mxu0
      %v619 = vpop.f32.mrb[0].mxu0
      %620 = vdwg.mxu0
      %v621 = vmax.f32 %v616, 0.0
      %v622 = vpack.c.bf16 %v621, %v621
      %v623 = vld [vmem:[%s8] sm:$0xf]
      %v624 = vld [vmem:[%s8 + $0x4] sm:$0xf]
      %v625 = vld [vmem:[%s8 + $0x8] sm:$0xf]
      %v626 = vld [vmem:[%s8 + $0xc] sm:$0xf]
      %v627 = vld [vmem:[%s8 + $0x10] sm:$0xf]
      %v628 = vld [vmem:[%s8 + $0x14] sm:$0xf]
      %v629 = vld [vmem:[%s8 + $0x18] sm:$0xf]
      %v630 = vld [vmem:[%s8 + $0x1c] sm:$0xf]
      %v631 = vld [vmem:[%s9] sm:$0x1]
      %v633 = vlaneseq
      %v634 = vshrl.u32 %v633, 7
      %v635 = vsub.s32 0, %v634
      %v636 = vrot.slane %v631, %v635
      %v646 = vunpack.c.l.b16 %v623
      %v647 = vunpack.c.l.b16 %v624
      %v648 = vunpack.c.l.b16 %v625
      %v649 = vunpack.c.l.b16 %v626
      %v650 = vunpack.c.l.b16 %v627
      %v651 = vunpack.c.l.b16 %v628
      %v652 = vunpack.c.l.b16 %v629
      %v653 = vunpack.c.l.b16 %v630
      %v654 = vpack.c.b16 %v647, %v646
      %v655 = vpack.c.b16 %v649, %v648
      %v656 = vpack.c.b16 %v651, %v650
      %v657 = vpack.c.b16 %v653, %v652
      %v663 = vsel %vm512, %v622, 0
      %665 = vmatprep.subr.bf16.mxu0 0
      %666 = vmatpush1.bf16.msra.mxu0 %v654
      %667 = vmatprep.subr.bf16.mxu0 0
      %668 = vmatpush1.bf16.msra.mxu0 %v655
      %669 = vmatprep.subr.bf16.mxu0 0
      %670 = vmatpush1.bf16.msra.mxu0 %v656
      %671 = vmatprep.subr.bf16.mxu0 0
      %672 = vmatpush1.bf16.msra.mxu0 %v657
      %673 = vmatprep.subr.bf16.mxu0 0
      %674 = vmatpush1.bf16.msra.mxu0 0
      %675 = vmatprep.subr.bf16.mxu0 0
      %676 = vmatpush1.bf16.msra.mxu0 0
      %677 = vmatprep.subr.bf16.mxu0 0
      %678 = vmatpush1.bf16.msra.mxu0 0
      %679 = vmatprep.subr.bf16.mxu0 0
      %680 = vmatpush1.bf16.msra.mxu0 0
      %681 = vmatprep.subr.bf16.mxu0 0
      %682 = vmatpush1.bf16.msra.mxu0 0
      %683 = vmatprep.subr.bf16.mxu0 0
      %684 = vmatpush1.bf16.msra.mxu0 0
      %685 = vmatprep.subr.bf16.mxu0 0
      %686 = vmatpush1.bf16.msra.mxu0 0
      %687 = vmatprep.subr.bf16.mxu0 0
      %688 = vmatpush1.bf16.msra.mxu0 0
      %689 = vmatprep.subr.bf16.mxu0 0
      %690 = vmatpush1.bf16.msra.mxu0 0
      %691 = vmatprep.subr.bf16.mxu0 0
      %692 = vmatpush1.bf16.msra.mxu0 0
      %693 = vmatprep.subr.bf16.mxu0 0
      %694 = vmatpush1.bf16.msra.mxu0 0
      %695 = vmatprep.subr.bf16.mxu0 0
      %696 = vmatpush1.bf16.msra.mxu0 0
      %697 = vmatprep.mubr.bf16.mxu0 0
      %698 = vmatmul.mubr.bf16.gmra.mrb[0].mxu0 %v663
      %v699 = vpop.f32.mrb[0].mxu0
      %v700 = vadd.f32 %v636, %v699
      %v701 = vpop.f32.mrb[0].mxu0
      %v702 = vpop.f32.mrb[0].mxu0
      %v703 = vpop.f32.mrb[0].mxu0
      %704 = vdwg.mxu0
      %v705 = vmax.f32 %v700, 0.0
      %v707 = vrot.slane %v705, 7
      %vm709 = vcmask 1040384
      %v710 = vsel %vm709, %v556, %v707
      %v711 = vpack.c.bf16 %v710, %v710
      %v712 = vld [vmem:[%s10] sm:$0xff]
      %v713 = vld [vmem:[%s10 + $0x8] sm:$0xff]
      %v714 = vld [vmem:[%s10 + $0x10] sm:$0xff]
      %v715 = vld [vmem:[%s10 + $0x18] sm:$0xff]
      %v716 = vld [vmem:[%s10 + $0x20] sm:$0xff]
      %v717 = vld [vmem:[%s10 + $0x28] sm:$0xff]
      %v718 = vld [vmem:[%s10 + $0x30] sm:$0xff]
      %v719 = vld [vmem:[%s10 + $0x38] sm:$0xff]
      %v728 = vunpack.c.l.b16 %v712
      %v729 = vunpack.c.h.b16 %v712
      %v730 = vunpack.c.l.b16 %v713
      %v731 = vunpack.c.h.b16 %v713
      %v732 = vunpack.c.l.b16 %v714
      %v733 = vunpack.c.h.b16 %v714
      %v734 = vunpack.c.l.b16 %v715
      %v735 = vunpack.c.h.b16 %v715
      %v736 = vunpack.c.l.b16 %v716
      %v737 = vunpack.c.h.b16 %v716
      %v738 = vunpack.c.l.b16 %v717
      %v739 = vunpack.c.h.b16 %v717
      %v740 = vunpack.c.l.b16 %v718
      %v741 = vunpack.c.h.b16 %v718
      %v742 = vunpack.c.l.b16 %v719
      %v743 = vunpack.c.h.b16 %v719
      %v744 = vpack.c.b16 %v730, %v728
      %v745 = vpack.c.b16 %v731, %v729
      %v746 = vpack.c.b16 %v734, %v732
      %v747 = vpack.c.b16 %v735, %v733
      %v748 = vpack.c.b16 %v738, %v736
      %v749 = vpack.c.b16 %v739, %v737
      %v750 = vpack.c.b16 %v742, %v740
      %v751 = vpack.c.b16 %v743, %v741
      %v761 = vsel %vm512, %v711, 0
      %763 = vmatprep.subr.bf16.mxu0 %v745
      %764 = vmatpush1.bf16.msra.mxu0 %v744
      %765 = vmatprep.subr.bf16.mxu0 %v747
      %766 = vmatpush1.bf16.msra.mxu0 %v746
      %767 = vmatprep.subr.bf16.mxu0 %v749
      %768 = vmatpush1.bf16.msra.mxu0 %v748
      %769 = vmatprep.subr.bf16.mxu0 %v751
      %770 = vmatpush1.bf16.msra.mxu0 %v750
      %771 = vmatprep.subr.bf16.mxu0 0
      %772 = vmatpush1.bf16.msra.mxu0 0
      %773 = vmatprep.subr.bf16.mxu0 0
      %774 = vmatpush1.bf16.msra.mxu0 0
      %775 = vmatprep.subr.bf16.mxu0 0
      %776 = vmatpush1.bf16.msra.mxu0 0
      %777 = vmatprep.subr.bf16.mxu0 0
      %778 = vmatpush1.bf16.msra.mxu0 0
      %779 = vmatprep.subr.bf16.mxu0 0
      %780 = vmatpush1.bf16.msra.mxu0 0
      %781 = vmatprep.subr.bf16.mxu0 0
      %782 = vmatpush1.bf16.msra.mxu0 0
      %783 = vmatprep.subr.bf16.mxu0 0
      %784 = vmatpush1.bf16.msra.mxu0 0
      %785 = vmatprep.subr.bf16.mxu0 0
      %786 = vmatpush1.bf16.msra.mxu0 0
      %787 = vmatprep.subr.bf16.mxu0 0
      %788 = vmatpush1.bf16.msra.mxu0 0
      %789 = vmatprep.subr.bf16.mxu0 0
      %790 = vmatpush1.bf16.msra.mxu0 0
      %791 = vmatprep.subr.bf16.mxu0 0
      %792 = vmatpush1.bf16.msra.mxu0 0
      %793 = vmatprep.subr.bf16.mxu0 0
      %794 = vmatpush1.bf16.msra.mxu0 0
      %795 = vmatprep.mubr.bf16.mxu0 0
      %796 = vmatmul.mubr.bf16.gmra.mrb[0].mxu0 %v761
      %v797 = vpop.f32.mrb[0].mxu0
      %v798 = vadd.f32 0.0, %v797
      %v799 = vpop.f32.mrb[0].mxu0
      %v800 = vadd.f32 0.0, %v799
      %v801 = vpop.f32.mrb[0].mxu0
      %v802 = vpop.f32.mrb[0].mxu0
      %803 = vdwg.mxu0
      %vm804 = vcmask 261120
      %v806 = vsel %vm804, %v800, 0
      %v809 = vsel %vm804, %v798, 0
      %811 = vmatprep.subr.mxu0 0.0
      %812 = vmatpush1.xpose.msra.mxu0 %v809
      %813 = vmatprep.subr.mxu0 0.0
      %814 = vmatpush1.xpose.msra.mxu0 0.0
      %815 = vmatprep.subr.mxu0 0.0
      %816 = vmatpush1.xpose.msra.mxu0 0.0
      %817 = vmatprep.subr.mxu0 0.0
      %818 = vmatpush1.xpose.msra.mxu0 0.0
      %819 = vmatprep.subr.mxu0 0.0
      %820 = vmatpush1.xpose.msra.mxu0 0.0
      %821 = vmatprep.subr.mxu0 0.0
      %822 = vmatpush1.xpose.msra.mxu0 0.0
      %823 = vmatprep.subr.mxu0 0.0
      %824 = vmatpush1.xpose.msra.mxu0 0.0
      %825 = vmatprep.subr.mxu0 0.0
      %826 = vmatpush1.xpose.msra.mxu0 0.0
      %827 = vmatprep.subr.mxu0 0.0
      %828 = vmatpush1.xpose.msra.mxu0 0.0
      %829 = vmatprep.subr.mxu0 0.0
      %830 = vmatpush1.xpose.msra.mxu0 0.0
      %831 = vmatprep.subr.mxu0 0.0
      %832 = vmatpush1.xpose.msra.mxu0 0.0
      %833 = vmatprep.subr.mxu0 0.0
      %834 = vmatpush1.xpose.msra.mxu0 0.0
      %835 = vmatprep.subr.mxu0 0.0
      %836 = vmatpush1.xpose.msra.mxu0 0.0
      %837 = vmatprep.subr.mxu0 0.0
      %838 = vmatpush1.xpose.msra.mxu0 0.0
      %839 = vmatprep.subr.mxu0 0.0
      %840 = vmatpush1.xpose.msra.mxu0 0.0
      %841 = vmatprep.subr.mxu0 0.0
      %842 = vmatpush1.xpose.msra.mxu0 0.0
      %843 = vmatprep.subr.mxu0 0.0
      %844 = vmatpush1.xpose.msra.mxu0 0.0
      %845 = vmatprep.subr.mxu0 0.0
      %846 = vmatpush1.xpose.msra.mxu0 0.0
      %847 = vmatprep.subr.mxu0 0.0
      %848 = vmatpush1.xpose.msra.mxu0 0.0
      %849 = vmatprep.subr.mxu0 0.0
      %850 = vmatpush1.xpose.msra.mxu0 0.0
      %851 = vmatprep.subr.mxu0 0.0
      %852 = vmatpush1.xpose.msra.mxu0 0.0
      %853 = vmatprep.subr.mxu0 0.0
      %854 = vmatpush1.xpose.msra.mxu0 0.0
      %855 = vmatprep.subr.mxu0 0.0
      %856 = vmatpush1.xpose.msra.mxu0 0.0
      %857 = vmatprep.subr.mxu0 0.0
      %858 = vmatpush1.xpose.msra.mxu0 0.0
      %859 = vmatprep.subr.mxu0 0.0
      %860 = vmatpush1.xpose.msra.mxu0 0.0
      %861 = vmatprep.subr.mxu0 0.0
      %862 = vmatpush1.xpose.msra.mxu0 0.0
      %863 = vmatprep.subr.mxu0 0.0
      %864 = vmatpush1.xpose.msra.mxu0 0.0
      %865 = vmatprep.subr.mxu0 0.0
      %866 = vmatpush1.xpose.msra.mxu0 0.0
      %867 = vmatprep.subr.mxu0 0.0
      %868 = vmatpush1.xpose.msra.mxu0 0.0
      %869 = vmatprep.subr.mxu0 0.0
      %870 = vmatpush1.xpose.msra.mxu0 0.0
      %871 = vmatprep.subr.mxu0 0.0
      %872 = vmatpush1.xpose.msra.mxu0 0.0
      %873 = vmatprep.subr.mxu0 0.0
      %874 = vmatpush1.xpose.msra.mxu0 0.0
      %875 = vmatprep.mubr.f32.mxu0 0.0
      %876 = vmatmul.mubr.f32.gmra.mrb[0].mxu0 %v806
      %v877 = vpop.f32.mrb[0].mxu0
      %v878 = vadd.f32 0.0, %v877
      %v879 = vpop.f32.mrb[0].mxu0
      %880 = vdwg.mxu0
      %v881 = vmul.f32 %v878, 0.17677669
      %vm882 = vcmp.gt.f32.partialorder %v423, 0.5
      %v883 = vsel %vm882, -1e+09, %v881
      %vm884 = vcmask 32768
      %v885 = vsel %vm884, %v883, -inf
      %886 = vmax.xlane.f32.xlu0 %v885
      %v887 = vpop.xlane.xlu0 %886
      %v888 = vsub.f32 %v883, %v887
      %v889 = vmul.f32 %v888, 1.442695
      %v890 = vpow.pop %v889
      %v891 = vsel %vm884, %v890, 0.0
      %892 = vadd.xlane.f32.xlu0 %v891
      %v893 = vpop.xlane.xlu0 %892
      %v894 = vrcp.pop %v893
      %v895 = vmul.f32 %v890, %v894
      %896 = vrot.lane.b32.xlu0 %v798, 64
      %v897 = vpop.permute.xlu0 %896
      %vm898 = vcmask 39936
      %v900 = vsel %vm898, %v895, 0
      %vm902 = vcmask 1044480
      %v903 = vsel %vm902, %v897, 0
      %905 = vmatprep.subr.mxu0 0.0
      %906 = vmatpush1.msra.mxu0 %v903
      %907 = vmatprep.subr.mxu0 0.0
      %908 = vmatpush1.msra.mxu0 0.0
      %909 = vmatprep.subr.mxu0 0.0
      %910 = vmatpush1.msra.mxu0 0.0
      %911 = vmatprep.subr.mxu0 0.0
      %912 = vmatpush1.msra.mxu0 0.0
      %913 = vmatprep.subr.mxu0 0.0
      %914 = vmatpush1.msra.mxu0 0.0
      %915 = vmatprep.subr.mxu0 0.0
      %916 = vmatpush1.msra.mxu0 0.0
      %917 = vmatprep.subr.mxu0 0.0
      %918 = vmatpush1.msra.mxu0 0.0
      %919 = vmatprep.subr.mxu0 0.0
      %920 = vmatpush1.msra.mxu0 0.0
      %921 = vmatprep.subr.mxu0 0.0
      %922 = vmatpush1.msra.mxu0 0.0
      %923 = vmatprep.subr.mxu0 0.0
      %924 = vmatpush1.msra.mxu0 0.0
      %925 = vmatprep.subr.mxu0 0.0
      %926 = vmatpush1.msra.mxu0 0.0
      %927 = vmatprep.subr.mxu0 0.0
      %928 = vmatpush1.msra.mxu0 0.0
      %929 = vmatprep.subr.mxu0 0.0
      %930 = vmatpush1.msra.mxu0 0.0
      %931 = vmatprep.subr.mxu0 0.0
      %932 = vmatpush1.msra.mxu0 0.0
      %933 = vmatprep.subr.mxu0 0.0
      %934 = vmatpush1.msra.mxu0 0.0
      %935 = vmatprep.subr.mxu0 0.0
      %936 = vmatpush1.msra.mxu0 0.0
      %937 = vmatprep.subr.mxu0 0.0
      %938 = vmatpush1.msra.mxu0 0.0
      %939 = vmatprep.subr.mxu0 0.0
      %940 = vmatpush1.msra.mxu0 0.0
      %941 = vmatprep.subr.mxu0 0.0
      %942 = vmatpush1.msra.mxu0 0.0
      %943 = vmatprep.subr.mxu0 0.0
      %944 = vmatpush1.msra.mxu0 0.0
      %945 = vmatprep.subr.mxu0 0.0
      %946 = vmatpush1.msra.mxu0 0.0
      %947 = vmatprep.subr.mxu0 0.0
      %948 = vmatpush1.msra.mxu0 0.0
      %949 = vmatprep.subr.mxu0 0.0
      %950 = vmatpush1.msra.mxu0 0.0
      %951 = vmatprep.subr.mxu0 0.0
      %952 = vmatpush1.msra.mxu0 0.0
      %953 = vmatprep.subr.mxu0 0.0
      %954 = vmatpush1.msra.mxu0 0.0
      %955 = vmatprep.subr.mxu0 0.0
      %956 = vmatpush1.msra.mxu0 0.0
      %957 = vmatprep.subr.mxu0 0.0
      %958 = vmatpush1.msra.mxu0 0.0
      %959 = vmatprep.subr.mxu0 0.0
      %960 = vmatpush1.msra.mxu0 0.0
      %961 = vmatprep.subr.mxu0 0.0
      %962 = vmatpush1.msra.mxu0 0.0
      %963 = vmatprep.subr.mxu0 0.0
      %964 = vmatpush1.msra.mxu0 0.0
      %965 = vmatprep.subr.mxu0 0.0
      %966 = vmatpush1.msra.mxu0 0.0
      %967 = vmatprep.subr.mxu0 0.0
      %968 = vmatpush1.msra.mxu0 0.0
      %969 = vmatprep.mubr.f32.mxu0 0.0
      %970 = vmatmul.mubr.f32.gmra.mrb[0].mxu0 %v900
      %v971 = vpop.f32.mrb[0].mxu0
      %v972 = vadd.f32 0.0, %v971
      %v973 = vpop.f32.mrb[0].mxu0
      %974 = vdwg.mxu0
      %975 = vrot.lane.b32.xlu0 %v800, 96
      %v976 = vpop.permute.xlu0 %975
      %977 = vrot.lane.b32.xlu0 %v798, 96
      %v978 = vpop.permute.xlu0 %977
      %v979 = vsel %vm804, %v976, 0
      %v981 = vsel %vm804, %v978, 0
      %983 = vmatprep.subr.mxu0 0.0
      %984 = vmatpush1.xpose.msra.mxu0 %v981
      %985 = vmatprep.subr.mxu0 0.0
      %986 = vmatpush1.xpose.msra.mxu0 0.0
      %987 = vmatprep.subr.mxu0 0.0
      %988 = vmatpush1.xpose.msra.mxu0 0.0
      %989 = vmatprep.subr.mxu0 0.0
      %990 = vmatpush1.xpose.msra.mxu0 0.0
      %991 = vmatprep.subr.mxu0 0.0
      %992 = vmatpush1.xpose.msra.mxu0 0.0
      %993 = vmatprep.subr.mxu0 0.0
      %994 = vmatpush1.xpose.msra.mxu0 0.0
      %995 = vmatprep.subr.mxu0 0.0
      %996 = vmatpush1.xpose.msra.mxu0 0.0
      %997 = vmatprep.subr.mxu0 0.0
      %998 = vmatpush1.xpose.msra.mxu0 0.0
      %999 = vmatprep.subr.mxu0 0.0
      %1000 = vmatpush1.xpose.msra.mxu0 0.0
      %1001 = vmatprep.subr.mxu0 0.0
      %1002 = vmatpush1.xpose.msra.mxu0 0.0
      %1003 = vmatprep.subr.mxu0 0.0
      %1004 = vmatpush1.xpose.msra.mxu0 0.0
      %1005 = vmatprep.subr.mxu0 0.0
      %1006 = vmatpush1.xpose.msra.mxu0 0.0
      %1007 = vmatprep.subr.mxu0 0.0
      %1008 = vmatpush1.xpose.msra.mxu0 0.0
      %1009 = vmatprep.subr.mxu0 0.0
      %1010 = vmatpush1.xpose.msra.mxu0 0.0
      %1011 = vmatprep.subr.mxu0 0.0
      %1012 = vmatpush1.xpose.msra.mxu0 0.0
      %1013 = vmatprep.subr.mxu0 0.0
      %1014 = vmatpush1.xpose.msra.mxu0 0.0
      %1015 = vmatprep.subr.mxu0 0.0
      %1016 = vmatpush1.xpose.msra.mxu0 0.0
      %1017 = vmatprep.subr.mxu0 0.0
      %1018 = vmatpush1.xpose.msra.mxu0 0.0
      %1019 = vmatprep.subr.mxu0 0.0
      %1020 = vmatpush1.xpose.msra.mxu0 0.0
      %1021 = vmatprep.subr.mxu0 0.0
      %1022 = vmatpush1.xpose.msra.mxu0 0.0
      %1023 = vmatprep.subr.mxu0 0.0
      %1024 = vmatpush1.xpose.msra.mxu0 0.0
      %1025 = vmatprep.subr.mxu0 0.0
      %1026 = vmatpush1.xpose.msra.mxu0 0.0
      %1027 = vmatprep.subr.mxu0 0.0
      %1028 = vmatpush1.xpose.msra.mxu0 0.0
      %1029 = vmatprep.subr.mxu0 0.0
      %1030 = vmatpush1.xpose.msra.mxu0 0.0
      %1031 = vmatprep.subr.mxu0 0.0
      %1032 = vmatpush1.xpose.msra.mxu0 0.0
      %1033 = vmatprep.subr.mxu0 0.0
      %1034 = vmatpush1.xpose.msra.mxu0 0.0
      %1035 = vmatprep.subr.mxu0 0.0
      %1036 = vmatpush1.xpose.msra.mxu0 0.0
      %1037 = vmatprep.subr.mxu0 0.0
      %1038 = vmatpush1.xpose.msra.mxu0 0.0
      %1039 = vmatprep.subr.mxu0 0.0
      %1040 = vmatpush1.xpose.msra.mxu0 0.0
      %1041 = vmatprep.subr.mxu0 0.0
      %1042 = vmatpush1.xpose.msra.mxu0 0.0
      %1043 = vmatprep.subr.mxu0 0.0
      %1044 = vmatpush1.xpose.msra.mxu0 0.0
      %1045 = vmatprep.subr.mxu0 0.0
      %1046 = vmatpush1.xpose.msra.mxu0 0.0
      %1047 = vmatprep.mubr.f32.mxu0 0.0
      %1048 = vmatmul.mubr.f32.gmra.mrb[0].mxu0 %v979
      %v1049 = vpop.f32.mrb[0].mxu0
      %v1050 = vadd.f32 0.0, %v1049
      %v1051 = vpop.f32.mrb[0].mxu0
      %1052 = vdwg.mxu0
      %v1053 = vmul.f32 %v1050, 0.17677669
      %v1054 = vsel %vm882, -1e+09, %v1053
      %v1055 = vsel %vm884, %v1054, -inf
      %1056 = vmax.xlane.f32.xlu0 %v1055
      %v1057 = vpop.xlane.xlu0 %1056
      %v1058 = vsub.f32 %v1054, %v1057
      %v1059 = vmul.f32 %v1058, 1.442695
      %v1060 = vpow.pop %v1059
      %v1061 = vsel %vm884, %v1060, 0.0
      %1062 = vadd.xlane.f32.xlu0 %v1061
      %v1063 = vpop.xlane.xlu0 %1062
      %v1064 = vrcp.pop %v1063
      %v1065 = vmul.f32 %v1060, %v1064
      %1066 = vrot.lane.b32.xlu0 %v798, 32
      %v1067 = vpop.permute.xlu0 %1066
      %v1069 = vsel %vm898, %v1065, 0
      %v1071 = vsel %vm902, %v1067, 0
      %1073 = vmatprep.subr.mxu0 0.0
      %1074 = vmatpush1.msra.mxu0 %v1071
      %1075 = vmatprep.subr.mxu0 0.0
      %1076 = vmatpush1.msra.mxu0 0.0
      %1077 = vmatprep.subr.mxu0 0.0
      %1078 = vmatpush1.msra.mxu0 0.0
      %1079 = vmatprep.subr.mxu0 0.0
      %1080 = vmatpush1.msra.mxu0 0.0
      %1081 = vmatprep.subr.mxu0 0.0
      %1082 = vmatpush1.msra.mxu0 0.0
      %1083 = vmatprep.subr.mxu0 0.0
      %1084 = vmatpush1.msra.mxu0 0.0
      %1085 = vmatprep.subr.mxu0 0.0
      %1086 = vmatpush1.msra.mxu0 0.0
      %1087 = vmatprep.subr.mxu0 0.0
      %1088 = vmatpush1.msra.mxu0 0.0
      %1089 = vmatprep.subr.mxu0 0.0
      %1090 = vmatpush1.msra.mxu0 0.0
      %1091 = vmatprep.subr.mxu0 0.0
      %1092 = vmatpush1.msra.mxu0 0.0
      %1093 = vmatprep.subr.mxu0 0.0
      %1094 = vmatpush1.msra.mxu0 0.0
      %1095 = vmatprep.subr.mxu0 0.0
      %1096 = vmatpush1.msra.mxu0 0.0
      %1097 = vmatprep.subr.mxu0 0.0
      %1098 = vmatpush1.msra.mxu0 0.0
      %1099 = vmatprep.subr.mxu0 0.0
      %1100 = vmatpush1.msra.mxu0 0.0
      %1101 = vmatprep.subr.mxu0 0.0
      %1102 = vmatpush1.msra.mxu0 0.0
      %1103 = vmatprep.subr.mxu0 0.0
      %1104 = vmatpush1.msra.mxu0 0.0
      %1105 = vmatprep.subr.mxu0 0.0
      %1106 = vmatpush1.msra.mxu0 0.0
      %1107 = vmatprep.subr.mxu0 0.0
      %1108 = vmatpush1.msra.mxu0 0.0
      %1109 = vmatprep.subr.mxu0 0.0
      %1110 = vmatpush1.msra.mxu0 0.0
      %1111 = vmatprep.subr.mxu0 0.0
      %1112 = vmatpush1.msra.mxu0 0.0
      %1113 = vmatprep.subr.mxu0 0.0
      %1114 = vmatpush1.msra.mxu0 0.0
      %1115 = vmatprep.subr.mxu0 0.0
      %1116 = vmatpush1.msra.mxu0 0.0
      %1117 = vmatprep.subr.mxu0 0.0
      %1118 = vmatpush1.msra.mxu0 0.0
      %1119 = vmatprep.subr.mxu0 0.0
      %1120 = vmatpush1.msra.mxu0 0.0
      %1121 = vmatprep.subr.mxu0 0.0
      %1122 = vmatpush1.msra.mxu0 0.0
      %1123 = vmatprep.subr.mxu0 0.0
      %1124 = vmatpush1.msra.mxu0 0.0
      %1125 = vmatprep.subr.mxu0 0.0
      %1126 = vmatpush1.msra.mxu0 0.0
      %1127 = vmatprep.subr.mxu0 0.0
      %1128 = vmatpush1.msra.mxu0 0.0
      %1129 = vmatprep.subr.mxu0 0.0
      %1130 = vmatpush1.msra.mxu0 0.0
      %1131 = vmatprep.subr.mxu0 0.0
      %1132 = vmatpush1.msra.mxu0 0.0
      %1133 = vmatprep.subr.mxu0 0.0
      %1134 = vmatpush1.msra.mxu0 0.0
      %1135 = vmatprep.subr.mxu0 0.0
      %1136 = vmatpush1.msra.mxu0 0.0
      %1137 = vmatprep.mubr.f32.mxu0 0.0
      %1138 = vmatmul.mubr.f32.gmra.mrb[0].mxu0 %v1069
      %v1139 = vpop.f32.mrb[0].mxu0
      %v1140 = vadd.f32 0.0, %v1139
      %v1141 = vpop.f32.mrb[0].mxu0
      %1142 = vdwg.mxu0
      %1144 = vrot.lane.b32.xlu0 %v1140, 32
      %v1145 = vpop.permute.xlu0 %1144
      %v1147 = vsel %vm804, %v972, %v1145
      %v1148 = vpack.c.bf16 %v1147, %v1147
      %v1149 = vld [vmem:[%s11] sm:$0xf]
      %v1150 = vld [vmem:[%s11 + $0x4] sm:$0xf]
      %v1151 = vld [vmem:[%s11 + $0x8] sm:$0xf]
      %v1152 = vld [vmem:[%s11 + $0xc] sm:$0xf]
      %v1153 = vld [vmem:[%s11 + $0x10] sm:$0xf]
      %v1154 = vld [vmem:[%s11 + $0x14] sm:$0xf]
      %v1155 = vld [vmem:[%s11 + $0x18] sm:$0xf]
      %v1156 = vld [vmem:[%s11 + $0x1c] sm:$0xf]
      %v1165 = vunpack.c.l.b16 %v1149
      %v1166 = vunpack.c.l.b16 %v1150
      %v1167 = vunpack.c.l.b16 %v1151
      %v1168 = vunpack.c.l.b16 %v1152
      %v1169 = vunpack.c.l.b16 %v1153
      %v1170 = vunpack.c.l.b16 %v1154
      %v1171 = vunpack.c.l.b16 %v1155
      %v1172 = vunpack.c.l.b16 %v1156
      %v1173 = vpack.c.b16 %v1166, %v1165
      %v1174 = vpack.c.b16 %v1168, %v1167
      %v1175 = vpack.c.b16 %v1170, %v1169
      %v1176 = vpack.c.b16 %v1172, %v1171
      %v1182 = vsel %vm512, %v1148, 0
      %1184 = vmatprep.subr.bf16.mxu0 0
      %1185 = vmatpush1.bf16.msra.mxu0 %v1173
      %1186 = vmatprep.subr.bf16.mxu0 0
      %1187 = vmatpush1.bf16.msra.mxu0 %v1174
      %1188 = vmatprep.subr.bf16.mxu0 0
      %1189 = vmatpush1.bf16.msra.mxu0 %v1175
      %1190 = vmatprep.subr.bf16.mxu0 0
      %1191 = vmatpush1.bf16.msra.mxu0 %v1176
      %1192 = vmatprep.subr.bf16.mxu0 0
      %1193 = vmatpush1.bf16.msra.mxu0 0
      %1194 = vmatprep.subr.bf16.mxu0 0
      %1195 = vmatpush1.bf16.msra.mxu0 0
      %1196 = vmatprep.subr.bf16.mxu0 0
      %1197 = vmatpush1.bf16.msra.mxu0 0
      %1198 = vmatprep.subr.bf16.mxu0 0
      %1199 = vmatpush1.bf16.msra.mxu0 0
      %1200 = vmatprep.subr.bf16.mxu0 0
      %1201 = vmatpush1.bf16.msra.mxu0 0
      %1202 = vmatprep.subr.bf16.mxu0 0
      %1203 = vmatpush1.bf16.msra.mxu0 0
      %1204 = vmatprep.subr.bf16.mxu0 0
      %1205 = vmatpush1.bf16.msra.mxu0 0
      %1206 = vmatprep.subr.bf16.mxu0 0
      %1207 = vmatpush1.bf16.msra.mxu0 0
      %1208 = vmatprep.subr.bf16.mxu0 0
      %1209 = vmatpush1.bf16.msra.mxu0 0
      %1210 = vmatprep.subr.bf16.mxu0 0
      %1211 = vmatpush1.bf16.msra.mxu0 0
      %1212 = vmatprep.subr.bf16.mxu0 0
      %1213 = vmatpush1.bf16.msra.mxu0 0
      %1214 = vmatprep.subr.bf16.mxu0 0
      %1215 = vmatpush1.bf16.msra.mxu0 0
      %1216 = vmatprep.mubr.bf16.mxu0 0
      %1217 = vmatmul.mubr.bf16.gmra.mrb[0].mxu0 %v1182
      %v1218 = vpop.f32.mrb[0].mxu0
      %v1219 = vadd.f32 %v556, %v1218
      %v1220 = vpop.f32.mrb[0].mxu0
      %v1221 = vpop.f32.mrb[0].mxu0
      %v1222 = vpop.f32.mrb[0].mxu0
      %1223 = vdwg.mxu0
      %v1224 = vmul.f32 %v1219, 0.5
      %vm1225 = vcmask 516096
      %1226 = vst.msk [vmem:[%s420] sm:$0x1] %vm1225, %v1224
      %p1227 = scmp.lt.s32.totalorder %s23, 1
      %s1228 = scalar_select %p1227, %s23, 1
      %s1229 = scalar_lea.vmem %s12, %s1228
      // Predicated region
      $region69: #{forward.9} parent=67 // pred_check
        %p1230 = pneg %p303
      $region70: #{forward.9} parent=67 // pred_check_branch
        %1232 = sbr.rel (%p1230) target = $region72
      $region71: #{forward.9} parent=67 // pred_region
        _
      $region72: #{forward.9} parent=67 // pred_fallthru
        _
    $region68: #{forward.9} parent=5 // pred_fallthru
      _
    %p1233 = scmp.le.s32.totalorder 2, %s18
    // Predicated region
    $region73: #{forward.9} parent=5 // pred_check
      %p1234 = pneg %p1233
    $region74: #{forward.9} parent=5 // pred_check_branch
      %1236 = sbr.rel (%p1234) target = $region76
    $region75: #{forward.9} parent=5 // pred_region
      %s1237 = ssub.s32 %s18, 2
      // Predicated region
      $region77: #{forward.9} parent=75 // pred_check
        %p1238 = pneg %p309
      $region78: #{forward.9} parent=75 // pred_check_branch
        %1240 = sbr.rel (%p1238) target = $region80
      $region79: #{forward.9} parent=75 // pred_region
        %p1241 = scmp.lt.s32.totalorder %s24, 1
        %s1242 = scalar_select %p1241, %s24, 1
        %s1243 = scalar_lea.vmem %s12, %s1242
      $region80: #{forward.9} parent=75 // pred_fallthru
        _
    $region76: #{forward.9} parent=5 // pred_fallthru
      _
  $region6: #{forward.9} parent=0 // loop_footer
    %s22 = sadd.s32 1, %s18
  $region7: #{forward.9} parent=0 // loop_footer_branch
    %17 = sbr.rel target = $region3
  $region8: #{forward.9} parent=0 // loop_exit
    _

// kernel: forward.17
$region0: #{forward.17}
  #allocation0 [shape = 'u32[]', space=smem, size = 0x4, offset = 0x4, fixed_abs, tag = 'smem constant byte address 0x4 - core index']
  #allocation1 [shape = 'u32[144,128]{1,0:T(1,128)}', space=vmem, size = 0x12000, scoped, tag = 'internal scratch']
  #allocation2 [shape = 'f32[2,5]{1,0:T(2,128)}', space=vmem, size = 0x400, scoped, tag = 'scratch operand']
  %s0 = inlined_call_operand.vmem [shape: bf16[2,512], index: 0, kind: input, shape index: {}]
  %s1 = inlined_call_operand.vmem [shape: bf16[512,5], index: 1, kind: input, shape index: {}]
  %s2 = inlined_call_operand.vmem [shape: f32[1,5], index: 2, kind: input, shape index: {}]
  %s3 = inlined_call_operand.hbm [shape: f32[2,5], index: 3, kind: output, shape index: {}]
  %s4 = sld [smem:[#allocation0]]
  $region30: #{forward.17} parent=0
    _
  %s6 = ssub.s32 1, %s4
  %s7 = scalar_select 0, %s6, %s4
  $region1: #{forward.17} parent=0
    #allocation3 [shape = 'u8[1024]{0}', space=vmem, size = 0x400, scoped, tag = 'output window, operand 0, single buffered']
    #allocation4 [shape = 's32[1]{0}', space=sflag, size = 0x4, scoped, tag = 'scoped memory for forward.17']
    %8 = vsyncpa [#allocation4], 0
    // Predicated region
    $region2: #{forward.17} parent=1 // pred_check
      _
    $region3: #{forward.17} parent=1 // pred_check_branch
      %10 = sbr.rel (0) target = $region5
    $region4: #{forward.17} parent=1 // pred_region
      _
    $region5: #{forward.17} parent=1 // pred_fallthru
      _
    // Predicated region
    $region6: #{forward.17} parent=1 // pred_check
      _
    $region7: #{forward.17} parent=1 // pred_check_branch
      %12 = sbr.rel (0) target = $region9
    $region8: #{forward.17} parent=1 // pred_region
      _
    $region9: #{forward.17} parent=1 // pred_fallthru
      _
    // Predicated region
    $region10: #{forward.17} parent=1 // pred_check
      _
    $region11: #{forward.17} parent=1 // pred_check_branch
      %14 = sbr.rel (0) target = $region13
    $region12: #{forward.17} parent=1 // pred_region
      _
    $region13: #{forward.17} parent=1 // pred_fallthru
      _
    %p16 = scmp.eq.s32.totalorder 0, 0
    // Predicated region
    $region14: #{forward.17} parent=1 // pred_check
      %p17 = pneg %p16
    $region15: #{forward.17} parent=1 // pred_check_branch
      %19 = sbr.rel (%p17) target = $region17
    $region16: #{forward.17} parent=1 // pred_region
      %vm20 = vcmask 33792
      %21 = vst.msk [vmem:[#allocation2] sm:$0x3] %vm20, 0.0
    $region17: #{forward.17} parent=1 // pred_fallthru
      _
    %v22 = vld [vmem:[#allocation2] sm:$0x3]
    %v23 = vld [vmem:[%s0] sm:$0xf]
    %v24 = vld [vmem:[%s1] sm:$0xf]
    %v25 = vld [vmem:[%s1 + $0x4] sm:$0xf]
    %v26 = vld [vmem:[%s1 + $0x8] sm:$0xf]
    %v27 = vld [vmem:[%s1 + $0xc] sm:$0xf]
    %v28 = vld [vmem:[%s1 + $0x10] sm:$0xf]
    %v29 = vld [vmem:[%s1 + $0x14] sm:$0xf]
    %v30 = vld [vmem:[%s1 + $0x18] sm:$0xf]
    %v31 = vld [vmem:[%s1 + $0x1c] sm:$0xf]
    %v32 = vld [vmem:[%s1 + $0x20] sm:$0xf]
    %v33 = vld [vmem:[%s1 + $0x24] sm:$0xf]
    %v34 = vld [vmem:[%s1 + $0x28] sm:$0xf]
    %v35 = vld [vmem:[%s1 + $0x2c] sm:$0xf]
    %v36 = vld [vmem:[%s1 + $0x30] sm:$0xf]
    %v37 = vld [vmem:[%s1 + $0x34] sm:$0xf]
    %v38 = vld [vmem:[%s1 + $0x38] sm:$0xf]
    %v39 = vld [vmem:[%s1 + $0x3c] sm:$0xf]
    %v40 = vld [vmem:[%s1 + $0x40] sm:$0xf]
    %v41 = vld [vmem:[%s1 + $0x44] sm:$0xf]
    %v42 = vld [vmem:[%s1 + $0x48] sm:$0xf]
    %v43 = vld [vmem:[%s1 + $0x4c] sm:$0xf]
    %v44 = vld [vmem:[%s1 + $0x50] sm:$0xf]
    %v45 = vld [vmem:[%s1 + $0x54] sm:$0xf]
    %v46 = vld [vmem:[%s1 + $0x58] sm:$0xf]
    %v47 = vld [vmem:[%s1 + $0x5c] sm:$0xf]
    %v48 = vld [vmem:[%s1 + $0x60] sm:$0xf]
    %v49 = vld [vmem:[%s1 + $0x64] sm:$0xf]
    %v50 = vld [vmem:[%s1 + $0x68] sm:$0xf]
    %v51 = vld [vmem:[%s1 + $0x6c] sm:$0xf]
    %v52 = vld [vmem:[%s1 + $0x70] sm:$0xf]
    %v53 = vld [vmem:[%s1 + $0x74] sm:$0xf]
    %v54 = vld [vmem:[%s1 + $0x78] sm:$0xf]
    %v55 = vld [vmem:[%s1 + $0x7c] sm:$0xf]
    %v56 = vld [vmem:[%s1 + $0x80] sm:$0xf]
    %v57 = vld [vmem:[%s1 + $0x84] sm:$0xf]
    %v58 = vld [vmem:[%s1 + $0x88] sm:$0xf]
    %v59 = vld [vmem:[%s1 + $0x8c] sm:$0xf]
    %v60 = vld [vmem:[%s1 + $0x90] sm:$0xf]
    %v61 = vld [vmem:[%s1 + $0x94] sm:$0xf]
    %v62 = vld [vmem:[%s1 + $0x98] sm:$0xf]
    %v63 = vld [vmem:[%s1 + $0x9c] sm:$0xf]
    %v64 = vld [vmem:[%s1 + $0xa0] sm:$0xf]
    %v65 = vld [vmem:[%s1 + $0xa4] sm:$0xf]
    %v66 = vld [vmem:[%s1 + $0xa8] sm:$0xf]
    %v67 = vld [vmem:[%s1 + $0xac] sm:$0xf]
    %v68 = vld [vmem:[%s1 + $0xb0] sm:$0xf]
    %v69 = vld [vmem:[%s1 + $0xb4] sm:$0xf]
    %v70 = vld [vmem:[%s1 + $0xb8] sm:$0xf]
    %v71 = vld [vmem:[%s1 + $0xbc] sm:$0xf]
    %v72 = vld [vmem:[%s1 + $0xc0] sm:$0xf]
    %v73 = vld [vmem:[%s1 + $0xc4] sm:$0xf]
    %v74 = vld [vmem:[%s1 + $0xc8] sm:$0xf]
    %v75 = vld [vmem:[%s1 + $0xcc] sm:$0xf]
    %v76 = vld [vmem:[%s1 + $0xd0] sm:$0xf]
    %v77 = vld [vmem:[%s1 + $0xd4] sm:$0xf]
    %v78 = vld [vmem:[%s1 + $0xd8] sm:$0xf]
    %v79 = vld [vmem:[%s1 + $0xdc] sm:$0xf]
    %v80 = vld [vmem:[%s1 + $0xe0] sm:$0xf]
    %v81 = vld [vmem:[%s1 + $0xe4] sm:$0xf]
    %v82 = vld [vmem:[%s1 + $0xe8] sm:$0xf]
    %v83 = vld [vmem:[%s1 + $0xec] sm:$0xf]
    %v84 = vld [vmem:[%s1 + $0xf0] sm:$0xf]
    %v85 = vld [vmem:[%s1 + $0xf4] sm:$0xf]
    %v86 = vld [vmem:[%s1 + $0xf8] sm:$0xf]
    %v87 = vld [vmem:[%s1 + $0xfc] sm:$0xf]
    %v90 = vunpack.c.l.s4 1966171168
    %v91 = vunpack.c.0.s8 %v90
    %v92 = vlaneseq
    %v93 = vshrl.u32 %v92, 7
    %v94 = vsub.s32 %v91, %v93
    %v95 = vrot.slane %v23, %v94
    %v96 = vcombine.high %v95, %v95
    %v98 = vunpack.c.l.s4 1966171168
    %v99 = vunpack.c.0.s8 %v98
    %v100 = vlaneseq
    %v101 = vshrl.u32 %v100, 7
    %v102 = vsub.s32 %v99, %v101
    %v103 = vrot.slane %v95, %v102
    %v105 = vunpack.c.l.s4 1966171168
    %v106 = vunpack.c.0.s8 %v105
    %v107 = vlaneseq
    %v108 = vshrl.u32 %v107, 7
    %v109 = vsub.s32 %v106, %v108
    %v110 = vrot.slane %v96, %v109
    %v111 = vcombine.high %v103, %v103
    %v112 = vcombine.high %v110, %v110
    %v181 = vunpack.c.l.b16 %v24
    %v182 = vunpack.c.l.b16 %v25
    %v183 = vunpack.c.l.b16 %v26
    %v184 = vunpack.c.l.b16 %v27
    %v185 = vunpack.c.l.b16 %v28
    %v186 = vunpack.c.l.b16 %v29
    %v187 = vunpack.c.l.b16 %v30
    %v188 = vunpack.c.l.b16 %v31
    %v189 = vunpack.c.l.b16 %v32
    %v190 = vunpack.c.l.b16 %v33
    %v191 = vunpack.c.l.b16 %v34
    %v192 = vunpack.c.l.b16 %v35
    %v193 = vunpack.c.l.b16 %v36
    %v194 = vunpack.c.l.b16 %v37
    %v195 = vunpack.c.l.b16 %v38
    %v196 = vunpack.c.l.b16 %v39
    %v197 = vunpack.c.l.b16 %v40
    %v198 = vunpack.c.l.b16 %v41
    %v199 = vunpack.c.l.b16 %v42
    %v200 = vunpack.c.l.b16 %v43
    %v201 = vunpack.c.l.b16 %v44
    %v202 = vunpack.c.l.b16 %v45
    %v203 = vunpack.c.l.b16 %v46
    %v204 = vunpack.c.l.b16 %v47
    %v205 = vunpack.c.l.b16 %v48
    %v206 = vunpack.c.l.b16 %v49
    %v207 = vunpack.c.l.b16 %v50
    %v208 = vunpack.c.l.b16 %v51
    %v209 = vunpack.c.l.b16 %v52
    %v210 = vunpack.c.l.b16 %v53
    %v211 = vunpack.c.l.b16 %v54
    %v212 = vunpack.c.l.b16 %v55
    %v213 = vunpack.c.l.b16 %v56
    %v214 = vunpack.c.l.b16 %v57
    %v215 = vunpack.c.l.b16 %v58
    %v216 = vunpack.c.l.b16 %v59
    %v217 = vunpack.c.l.b16 %v60
    %v218 = vunpack.c.l.b16 %v61
    %v219 = vunpack.c.l.b16 %v62
    %v220 = vunpack.c.l.b16 %v63
    %v221 = vunpack.c.l.b16 %v64
    %v222 = vunpack.c.l.b16 %v65
    %v223 = vunpack.c.l.b16 %v66
    %v224 = vunpack.c.l.b16 %v67
    %v225 = vunpack.c.l.b16 %v68
    %v226 = vunpack.c.l.b16 %v69
    %v227 = vunpack.c.l.b16 %v70
    %v228 = vunpack.c.l.b16 %v71
    %v229 = vunpack.c.l.b16 %v72
    %v230 = vunpack.c.l.b16 %v73
    %v231 = vunpack.c.l.b16 %v74
    %v232 = vunpack.c.l.b16 %v75
    %v233 = vunpack.c.l.b16 %v76
    %v234 = vunpack.c.l.b16 %v77
    %v235 = vunpack.c.l.b16 %v78
    %v236 = vunpack.c.l.b16 %v79
    %v237 = vunpack.c.l.b16 %v80
    %v238 = vunpack.c.l.b16 %v81
    %v239 = vunpack.c.l.b16 %v82
    %v240 = vunpack.c.l.b16 %v83
    %v241 = vunpack.c.l.b16 %v84
    %v242 = vunpack.c.l.b16 %v85
    %v243 = vunpack.c.l.b16 %v86
    %v244 = vunpack.c.l.b16 %v87
    %v245 = vpack.c.b16 %v182, %v181
    %v246 = vpack.c.b16 %v184, %v183
    %v247 = vpack.c.b16 %v186, %v185
    %v248 = vpack.c.b16 %v188, %v187
    %v249 = vpack.c.b16 %v190, %v189
    %v250 = vpack.c.b16 %v192, %v191
    %v251 = vpack.c.b16 %v194, %v193
    %v252 = vpack.c.b16 %v196, %v195
    %v253 = vpack.c.b16 %v198, %v197
    %v254 = vpack.c.b16 %v200, %v199
    %v255 = vpack.c.b16 %v202, %v201
    %v256 = vpack.c.b16 %v204, %v203
    %v257 = vpack.c.b16 %v206, %v205
    %v258 = vpack.c.b16 %v208, %v207
    %v259 = vpack.c.b16 %v210, %v209
    %v260 = vpack.c.b16 %v212, %v211
    %v261 = vpack.c.b16 %v214, %v213
    %v262 = vpack.c.b16 %v216, %v215
    %v263 = vpack.c.b16 %v218, %v217
    %v264 = vpack.c.b16 %v220, %v219
    %v265 = vpack.c.b16 %v222, %v221
    %v266 = vpack.c.b16 %v224, %v223
    %v267 = vpack.c.b16 %v226, %v225
    %v268 = vpack.c.b16 %v228, %v227
    %v269 = vpack.c.b16 %v230, %v229
    %v270 = vpack.c.b16 %v232, %v231
    %v271 = vpack.c.b16 %v234, %v233
    %v272 = vpack.c.b16 %v236, %v235
    %v273 = vpack.c.b16 %v238, %v237
    %v274 = vpack.c.b16 %v240, %v239
    %v275 = vpack.c.b16 %v242, %v241
    %v276 = vpack.c.b16 %v244, %v243
    %309 = vmatprep.subr.bf16.mxu0 0
    %310 = vmatpush1.bf16.msra.mxu0 %v245
    %311 = vmatprep.subr.bf16.mxu0 0
    %312 = vmatpush1.bf16.msra.mxu0 %v246
    %313 = vmatprep.subr.bf16.mxu0 0
    %314 = vmatpush1.bf16.msra.mxu0 %v247
    %315 = vmatprep.subr.bf16.mxu0 0
    %316 = vmatpush1.bf16.msra.mxu0 %v248
    %317 = vmatprep.subr.bf16.mxu0 0
    %318 = vmatpush1.bf16.msra.mxu0 %v249
    %319 = vmatprep.subr.bf16.mxu0 0
    %320 = vmatpush1.bf16.msra.mxu0 %v250
    %321 = vmatprep.subr.bf16.mxu0 0
    %322 = vmatpush1.bf16.msra.mxu0 %v251
    %323 = vmatprep.subr.bf16.mxu0 0
    %324 = vmatpush1.bf16.msra.mxu0 %v252
    %325 = vmatprep.subr.bf16.mxu0 0
    %326 = vmatpush1.bf16.msra.mxu0 %v253
    %327 = vmatprep.subr.bf16.mxu0 0
    %328 = vmatpush1.bf16.msra.mxu0 %v254
    %329 = vmatprep.subr.bf16.mxu0 0
    %330 = vmatpush1.bf16.msra.mxu0 %v255
    %331 = vmatprep.subr.bf16.mxu0 0
    %332 = vmatpush1.bf16.msra.mxu0 %v256
    %333 = vmatprep.subr.bf16.mxu0 0
    %334 = vmatpush1.bf16.msra.mxu0 %v257
    %335 = vmatprep.subr.bf16.mxu0 0
    %336 = vmatpush1.bf16.msra.mxu0 %v258
    %337 = vmatprep.subr.bf16.mxu0 0
    %338 = vmatpush1.bf16.msra.mxu0 %v259
    %339 = vmatprep.subr.bf16.mxu0 0
    %340 = vmatpush1.bf16.msra.mxu0 %v260
    %341 = vmatprep.mubr.bf16.mxu0 %v110
    %342 = vmatmul.mubr.bf16.gmra.mrb[0].mxu0 %v103
    %v343 = vpop.f32.mrb[0].mxu0
    %v344 = vadd.f32 0.0, %v343
    %v345 = vpop.f32.mrb[0].mxu0
    %v346 = vpop.f32.mrb[0].mxu0
    %v347 = vpop.f32.mrb[0].mxu0
    %348 = vdwg.mxu0
    %349 = vmatprep.subr.bf16.mxu0 0
    %350 = vmatpush1.bf16.msra.mxu0 %v261
    %351 = vmatprep.subr.bf16.mxu0 0
    %352 = vmatpush1.bf16.msra.mxu0 %v262
    %353 = vmatprep.subr.bf16.mxu0 0
    %354 = vmatpush1.bf16.msra.mxu0 %v263
    %355 = vmatprep.subr.bf16.mxu0 0
    %356 = vmatpush1.bf16.msra.mxu0 %v264
    %357 = vmatprep.subr.bf16.mxu0 0
    %358 = vmatpush1.bf16.msra.mxu0 %v265
    %359 = vmatprep.subr.bf16.mxu0 0
    %360 = vmatpush1.bf16.msra.mxu0 %v266
    %361 = vmatprep.subr.bf16.mxu0 0
    %362 = vmatpush1.bf16.msra.mxu0 %v267
    %363 = vmatprep.subr.bf16.mxu0 0
    %364 = vmatpush1.bf16.msra.mxu0 %v268
    %365 = vmatprep.subr.bf16.mxu0 0
    %366 = vmatpush1.bf16.msra.mxu0 %v269
    %367 = vmatprep.subr.bf16.mxu0 0
    %368 = vmatpush1.bf16.msra.mxu0 %v270
    %369 = vmatprep.subr.bf16.mxu0 0
    %370 = vmatpush1.bf16.msra.mxu0 %v271
    %371 = vmatprep.subr.bf16.mxu0 0
    %372 = vmatpush1.bf16.msra.mxu0 %v272
    %373 = vmatprep.subr.bf16.mxu0 0
    %374 = vmatpush1.bf16.msra.mxu0 %v273
    %375 = vmatprep.subr.bf16.mxu0 0
    %376 = vmatpush1.bf16.msra.mxu0 %v274
    %377 = vmatprep.subr.bf16.mxu0 0
    %378 = vmatpush1.bf16.msra.mxu0 %v275
    %379 = vmatprep.subr.bf16.mxu0 0
    %380 = vmatpush1.bf16.msra.mxu0 %v276
    %381 = vmatprep.mubr.bf16.mxu0 %v112
    %382 = vmatmul.mubr.bf16.gmra.mrb[0].mxu0 %v111
    %v383 = vpop.f32.mrb[0].mxu0
    %v384 = vadd.f32 %v344, %v383
    %v385 = vpop.f32.mrb[0].mxu0
    %v386 = vpop.f32.mrb[0].mxu0
    %v387 = vpop.f32.mrb[0].mxu0
    %388 = vdwg.mxu0
    %v389 = vadd.f32 %v22, %v384
    %vm390 = vcmask 33792
    %391 = vst.msk [vmem:[#allocation2] sm:$0x3] %vm390, %v389
    // Predicated region
    $region18: #{forward.17} parent=1 // pred_check
      %p392 = pneg %p16
    $region19: #{forward.17} parent=1 // pred_check_branch
      %394 = sbr.rel (%p392) target = $region21
    $region20: #{forward.17} parent=1 // pred_region
      %v395 = vld [vmem:[#allocation2] sm:$0x3]
      %v396 = vld [vmem:[%s2] sm:$0x1]
      %v398 = vlaneseq
      %v399 = vshrl.u32 %v398, 7
      %v400 = vsub.s32 0, %v399
      %v401 = vrot.slane %v396, %v400
      %v403 = vadd.f32 %v395, %v401
      %404 = vst.msk [vmem:[#allocation3] sm:$0x3] %vm390, %v403
    $region21: #{forward.17} parent=1 // pred_fallthru
      _
    // Predicated region
    $region22: #{forward.17} parent=1 // pred_check
      _
    $region23: #{forward.17} parent=1 // pred_check_branch
      %406 = sbr.rel (0) target = $region25
    $region24: #{forward.17} parent=1 // pred_region
      %s408 = ssub.s32 32, 32
      %409 = vsyncadd [#allocation4], %s408
      %s411 = sshll.u32 [#allocation3], 4
      %s412 = int_to_ptr.vmem [resolvable:$true] %s411
      %414 = dma.vmem_to_hbm [thread:$0]  %s412, 32, %s3, [#allocation4]
    $region25: #{forward.17} parent=1 // pred_fallthru
      _
    // Predicated region
    $region26: #{forward.17} parent=1 // pred_check
      _
    $region27: #{forward.17} parent=1 // pred_check_branch
      %416 = sbr.rel (0) target = $region29
    $region28: #{forward.17} parent=1 // pred_region
      %417 = dma.done [#allocation4], 32
    $region29: #{forward.17} parent=1 // pred_fallthru
      _
    %418 = vsyncpa [#allocation4], 1

</llo_original>
